<compile_context>
chip_gen: v6e
topology: v6e:2x2x1
jax: 0.10.0
libtpu: 0.0.40
codegen_flags: <defaults>
</compile_context>

<pallas_src>
import functools

import jax
import jax.numpy as jnp
from jax.experimental import pallas as pl
from jax.experimental.pallas import tpu as pltpu


def _make_dense_block_kernel(n_layers, growth):
    """Builds the fused DenseBlock kernel for a fixed layer count / growth."""

    def kernel(*refs):
        x_ref = refs[0]                                   # (N, H, W, C0)
        layer_refs = refs[1:1 + 3 * n_layers]             # (w, gamma, beta)*L
        out_ref = refs[1 + 3 * n_layers]                  # (N, H, W, C_total)
        act_ref = refs[2 + 3 * n_layers]                  # (N, H+2, W+2, C_total)

        N, H, W, c0 = x_ref.shape
        inv_cnt = 1.0 / float(N * H * W)

        # Zero the padded activation scratch once: provides both the conv
        # zero-padding ring and zeroed not-yet-written channels.
        act_ref[...] = jnp.zeros_like(act_ref)

        # `feat` holds the running channel concat (the torch.cat state); its
        # zero-padded copy lives in act_ref for the shifted-window reads.
        feat = x_ref[...]
        act_ref[:, 1:H + 1, 1:W + 1, 0:c0] = feat

        cin = c0
        for l in range(n_layers):
            w_ref = layer_refs[3 * l]                     # (9*cin, growth)
            g_ref = layer_refs[3 * l + 1]                 # (1, growth)
            b_ref = layer_refs[3 * l + 2]                 # (1, growth)

            # ---- 3x3 conv as ONE im2col matmul (K = 9*cin) ---------------
            taps = [
                act_ref[:, kh:kh + H, kw:kw + W, 0:cin]
                for kh in range(3)
                for kw in range(3)
            ]
            lhs = jnp.concatenate(taps, axis=-1).reshape(N * H * W, 9 * cin)
            conv = jnp.dot(lhs, w_ref[...],
                           preferred_element_type=jnp.float32)  # (N*H*W, G)

            # ---- BatchNorm2d (training batch stats, biased var, eps=1e-5),
            #      single pass: sum + sum-of-squares ------------------------
            s = jnp.sum(conv, axis=0, keepdims=True)             # (1, G)
            ss = jnp.sum(conv * conv, axis=0, keepdims=True)     # (1, G)
            mean = s * inv_cnt
            var = jnp.maximum(ss * inv_cnt - mean * mean, 0.0)
            scale = g_ref[...] * jax.lax.rsqrt(var + 1e-5)       # (1, G)
            shift = b_ref[...] - mean * scale                    # (1, G)

            # ---- normalize + ReLU (one FMA + max), then in-kernel concat --
            y = jnp.maximum(conv * scale + shift, 0.0)
            feat = jnp.concatenate([feat, y.reshape(N, H, W, growth)], axis=-1)
            cin += growth

            # Refresh the padded copy for the next layer's window reads
            # (lane-aligned full-prefix store; skipped after the last layer).
            if l + 1 < n_layers:
                act_ref[:, 1:H + 1, 1:W + 1, 0:cin] = feat

        # Single HBM store of the fully concatenated result.
        out_ref[...] = feat

    return kernel


def _dense_block_pallas(x_nhwc, params, growth):
    """Fused DenseBlock on NHWC input. Returns (N, H, W, C0 + L*growth)."""
    N, H, W, c0 = x_nhwc.shape
    n_layers = len(params)
    c_total = c0 + n_layers * growth

    flat_inputs = [x_nhwc]
    flops = 0
    io_bytes = x_nhwc.size * 4
    cin = c0
    for (w, gamma, beta) in params:
        flat_inputs += [w, gamma, beta]
        flops += 2 * N * H * W * (9 * cin) * growth
        io_bytes += (w.size + gamma.size + beta.size) * 4
        cin += growth
    io_bytes += N * H * W * c_total * 4                      # output store

    act_bytes = N * (H + 2) * (W + 2) * c_total * 4
    vmem_limit = int(min(64 * 2 ** 20,
                         max(16 * 2 ** 20, 4 * (io_bytes + act_bytes))))

    vmem = pltpu.MemorySpace.VMEM
    return pl.pallas_call(
        _make_dense_block_kernel(n_layers, growth),
        out_shape=jax.ShapeDtypeStruct((N, H, W, c_total), jnp.float32),
        in_specs=[pl.BlockSpec(memory_space=vmem)] * len(flat_inputs),
        out_specs=pl.BlockSpec(memory_space=vmem),
        scratch_shapes=[pltpu.VMEM((N, H + 2, W + 2, c_total), jnp.float32)],
        compiler_params=pltpu.CompilerParams(vmem_limit_bytes=vmem_limit),
        cost_estimate=pl.CostEstimate(
            flops=flops,
            transcendentals=n_layers * growth,
            bytes_accessed=io_bytes),
    )(*flat_inputs)


def init_dense_block_params(key, n_channels, n_dense_layers, growth_rate):
    """Deterministic synthetic parameters (shapes match the PyTorch module).

    Conv weight is stored as (9*Cin, Cout) with rows ordered (kh, kw, cin).
    To import real PyTorch weights of shape (Cout, Cin, 3, 3), permute them to
    (kh, kw, Cin, Cout) via w.transpose(2, 3, 1, 0) before the reshape below.
    """
    params = []
    c_in = n_channels
    for _ in range(n_dense_layers):
        key, kw_key, kg, kb = jax.random.split(key, 4)
        w = (0.1 * jax.random.normal(
            kw_key, (3, 3, c_in, growth_rate), jnp.float32)
             ).reshape(9 * c_in, growth_rate)
        gamma = 1.0 + 0.1 * jax.random.normal(kg, (1, growth_rate), jnp.float32)
        beta = 0.1 * jax.random.normal(kb, (1, growth_rate), jnp.float32)
        params.append((w, gamma, beta))
        c_in += growth_rate
    return params


@functools.partial(jax.jit, static_argnames=("growth_rate",))
def dense_block_forward(x_nchw, params, growth_rate):
    """DenseBlock forward. x: (N, C, H, W) -> (N, C + L*growth, H, W)."""
    x = jnp.transpose(x_nchw, (0, 2, 3, 1)).astype(jnp.float32)  # -> NHWC
    y = _dense_block_pallas(x, params, growth_rate)
    return jnp.transpose(y, (0, 3, 1, 2))                        # -> NCHW


def _reference_dense_block(x_nchw, params, growth):
    """Plain-JAX reference with identical forward semantics (for checking)."""
    x = jnp.transpose(x_nchw, (0, 2, 3, 1)).astype(jnp.float32)
    for (w, gamma, beta) in params:
        N, H, W, cin = x.shape
        xp = jnp.pad(x, ((0, 0), (1, 1), (1, 1), (0, 0)))
        taps = [xp[:, kh:kh + H, kw:kw + W, :]
                for kh in range(3) for kw in range(3)]
        lhs = jnp.concatenate(taps, axis=-1).reshape(N * H * W, 9 * cin)
        conv = jnp.dot(lhs, w)
        mean = jnp.mean(conv, axis=0, keepdims=True)
        var = jnp.mean((conv - mean) ** 2, axis=0, keepdims=True)
        y = jnp.maximum(
            (conv - mean) * jax.lax.rsqrt(var + 1e-5) * gamma + beta, 0.0)
        x = jnp.concatenate([x, y.reshape(N, H, W, growth)], axis=-1)
    return jnp.transpose(x, (0, 3, 1, 2))


if __name__ == "__main__":
    N, C, H, W = 2, 4, 16, 16
    n_dense_layers, growth_rate = 3, 8

    key = jax.random.PRNGKey(0)
    key, kx = jax.random.split(key)
    x = jax.random.normal(kx, (N, C, H, W), jnp.float32)

    params = init_dense_block_params(key, C, n_dense_layers, growth_rate)

    out = dense_block_forward(x, params, growth_rate)
    jax.block_until_ready(out)

    expected_c = C + n_dense_layers * growth_rate
    assert out.shape == (N, expected_c, H, W), out.shape
    assert bool(jnp.all(jnp.isfinite(out)))

    ref = _reference_dense_block(x, params, growth_rate)
    max_err = float(jnp.max(jnp.abs(out - ref)))
    assert max_err < 5e-3, f"max abs err vs reference: {max_err}"

    print("KERNEL_OK")
</pallas_src>

<mosaic_0001>
module attributes {stable_mosaic.version = 11 : i64} {
  func.func @kernel(%arg0: memref<2x16x16x4xf32, #tpu.memory_space<vmem>>, %arg1: memref<36x8xf32, #tpu.memory_space<vmem>>, %arg2: memref<1x8xf32, #tpu.memory_space<vmem>>, %arg3: memref<1x8xf32, #tpu.memory_space<vmem>>, %arg4: memref<108x8xf32, #tpu.memory_space<vmem>>, %arg5: memref<1x8xf32, #tpu.memory_space<vmem>>, %arg6: memref<1x8xf32, #tpu.memory_space<vmem>>, %arg7: memref<180x8xf32, #tpu.memory_space<vmem>>, %arg8: memref<1x8xf32, #tpu.memory_space<vmem>>, %arg9: memref<1x8xf32, #tpu.memory_space<vmem>>, %arg10: memref<2x16x16x28xf32, #tpu.memory_space<vmem>>, %arg11: memref<2x18x18x28xf32, #tpu.memory_space<vmem>>) attributes {dimension_semantics = [], scalar_prefetch = 0 : i64, scratch_operands = 1 : i64, tpu.core_type = #tpu.core_type<tc>} {
    %cst = arith.constant 0.000000e+00 : f32
    %0 = vector.broadcast %cst : f32 to vector<2x18x18x28xf32>
    %c0 = arith.constant 0 : index
    %c0_0 = arith.constant 0 : index
    %c0_1 = arith.constant 0 : index
    %c0_2 = arith.constant 0 : index
    %1 = vector.load %arg11[%c0, %c0_0, %c0_1, %c0_2] : memref<2x18x18x28xf32, #tpu.memory_space<vmem>>, vector<2x18x18x28xf32>
    tpu.vector_store %arg11[%c0, %c0_0, %c0_1, %c0_2], %0 {strides = array<i32>} : memref<2x18x18x28xf32, #tpu.memory_space<vmem>>, vector<2x18x18x28xf32>,
    %c0_3 = arith.constant 0 : index
    %c0_4 = arith.constant 0 : index
    %c0_5 = arith.constant 0 : index
    %c0_6 = arith.constant 0 : index
    %2 = vector.load %arg0[%c0_3, %c0_4, %c0_5, %c0_6] : memref<2x16x16x4xf32, #tpu.memory_space<vmem>>, vector<2x16x16x4xf32>
    %c0_7 = arith.constant 0 : index
    %c1 = arith.constant 1 : index
    %c1_8 = arith.constant 1 : index
    %c0_9 = arith.constant 0 : index
    %3 = vector.load %arg11[%c0_7, %c1, %c1_8, %c0_9] : memref<2x18x18x28xf32, #tpu.memory_space<vmem>>, vector<2x16x16x4xf32>
    tpu.vector_store %arg11[%c0_7, %c1, %c1_8, %c0_9], %2 {strides = array<i32>} : memref<2x18x18x28xf32, #tpu.memory_space<vmem>>, vector<2x16x16x4xf32>,
    %c0_10 = arith.constant 0 : index
    %c0_11 = arith.constant 0 : index
    %c0_12 = arith.constant 0 : index
    %c0_13 = arith.constant 0 : index
    %4 = vector.load %arg11[%c0_10, %c0_11, %c0_12, %c0_13] : memref<2x18x18x28xf32, #tpu.memory_space<vmem>>, vector<2x16x16x4xf32>
    %c0_14 = arith.constant 0 : index
    %c0_15 = arith.constant 0 : index
    %c1_16 = arith.constant 1 : index
    %c0_17 = arith.constant 0 : index
    %5 = vector.load %arg11[%c0_14, %c0_15, %c1_16, %c0_17] : memref<2x18x18x28xf32, #tpu.memory_space<vmem>>, vector<2x16x16x4xf32>
    %c0_18 = arith.constant 0 : index
    %c0_19 = arith.constant 0 : index
    %c2 = arith.constant 2 : index
    %c0_20 = arith.constant 0 : index
    %6 = vector.load %arg11[%c0_18, %c0_19, %c2, %c0_20] : memref<2x18x18x28xf32, #tpu.memory_space<vmem>>, vector<2x16x16x4xf32>
    %c0_21 = arith.constant 0 : index
    %c1_22 = arith.constant 1 : index
    %c0_23 = arith.constant 0 : index
    %c0_24 = arith.constant 0 : index
    %7 = vector.load %arg11[%c0_21, %c1_22, %c0_23, %c0_24] : memref<2x18x18x28xf32, #tpu.memory_space<vmem>>, vector<2x16x16x4xf32>
    %c0_25 = arith.constant 0 : index
    %c1_26 = arith.constant 1 : index
    %c1_27 = arith.constant 1 : index
    %c0_28 = arith.constant 0 : index
    %8 = vector.load %arg11[%c0_25, %c1_26, %c1_27, %c0_28] : memref<2x18x18x28xf32, #tpu.memory_space<vmem>>, vector<2x16x16x4xf32>
    %c0_29 = arith.constant 0 : index
    %c1_30 = arith.constant 1 : index
    %c2_31 = arith.constant 2 : index
    %c0_32 = arith.constant 0 : index
    %9 = vector.load %arg11[%c0_29, %c1_30, %c2_31, %c0_32] : memref<2x18x18x28xf32, #tpu.memory_space<vmem>>, vector<2x16x16x4xf32>
    %c0_33 = arith.constant 0 : index
    %c2_34 = arith.constant 2 : index
    %c0_35 = arith.constant 0 : index
    %c0_36 = arith.constant 0 : index
    %10 = vector.load %arg11[%c0_33, %c2_34, %c0_35, %c0_36] : memref<2x18x18x28xf32, #tpu.memory_space<vmem>>, vector<2x16x16x4xf32>
    %c0_37 = arith.constant 0 : index
    %c2_38 = arith.constant 2 : index
    %c1_39 = arith.constant 1 : index
    %c0_40 = arith.constant 0 : index
    %11 = vector.load %arg11[%c0_37, %c2_38, %c1_39, %c0_40] : memref<2x18x18x28xf32, #tpu.memory_space<vmem>>, vector<2x16x16x4xf32>
    %c0_41 = arith.constant 0 : index
    %c2_42 = arith.constant 2 : index
    %c2_43 = arith.constant 2 : index
    %c0_44 = arith.constant 0 : index
    %12 = vector.load %arg11[%c0_41, %c2_42, %c2_43, %c0_44] : memref<2x18x18x28xf32, #tpu.memory_space<vmem>>, vector<2x16x16x4xf32>
    %13 = tpu.concatenate %4, %5, %6, %7, %8, %9, %10, %11, %12 in 3 : vector<2x16x16x4xf32>, vector<2x16x16x4xf32>, vector<2x16x16x4xf32>, vector<2x16x16x4xf32>, vector<2x16x16x4xf32>, vector<2x16x16x4xf32>, vector<2x16x16x4xf32>, vector<2x16x16x4xf32>, vector<2x16x16x4xf32> -> vector<2x16x16x36xf32>
    %14 = vector.shape_cast %13 : vector<2x16x16x36xf32> to vector<512x36xf32>
    %c0_45 = arith.constant 0 : index
    %c0_46 = arith.constant 0 : index
    %15 = vector.load %arg1[%c0_45, %c0_46] : memref<36x8xf32, #tpu.memory_space<vmem>>, vector<36x8xf32>
    %cst_47 = arith.constant dense<0.000000e+00> : vector<512x8xf32>
    %16 = tpu.matmul %14, %15, %cst_47 {dimension_numbers = #tpu.dot_dimension_numbers<[1], [0], [0], [1], [0, 0, 1, 1], [], []>} : vector<512x36xf32>, vector<36x8xf32>, vector<512x8xf32> -> vector<512x8xf32>
    %cst_48 = arith.constant dense<0.000000e+00> : vector<8xf32>
    %17 = vector.multi_reduction <add>, %16, %cst_48 [0] : vector<512x8xf32> to vector<8xf32>
    %18 = vector.shape_cast %17 : vector<8xf32> to vector<1x8xf32>
    %19 = arith.mulf %16, %16 : vector<512x8xf32>
    %cst_49 = arith.constant dense<0.000000e+00> : vector<8xf32>
    %20 = vector.multi_reduction <add>, %19, %cst_49 [0] : vector<512x8xf32> to vector<8xf32>
    %21 = vector.shape_cast %20 : vector<8xf32> to vector<1x8xf32>
    %cst_50 = arith.constant 0.001953125 : f32
    %22 = vector.broadcast %cst_50 : f32 to vector<1x8xf32>
    %23 = arith.mulf %18, %22 : vector<1x8xf32>
    %cst_51 = arith.constant 0.001953125 : f32
    %24 = vector.broadcast %cst_51 : f32 to vector<1x8xf32>
    %25 = arith.mulf %21, %24 : vector<1x8xf32>
    %26 = arith.mulf %23, %23 : vector<1x8xf32>
    %27 = arith.subf %25, %26 : vector<1x8xf32>
    %cst_52 = arith.constant 0.000000e+00 : f32
    %28 = vector.broadcast %cst_52 : f32 to vector<1x8xf32>
    %29 = arith.maximumf %27, %28 : vector<1x8xf32>
    %c0_53 = arith.constant 0 : index
    %c0_54 = arith.constant 0 : index
    %30 = vector.load %arg2[%c0_53, %c0_54] : memref<1x8xf32, #tpu.memory_space<vmem>>, vector<1x8xf32>
    %cst_55 = arith.constant 9.99999974E-6 : f32
    %31 = vector.broadcast %cst_55 : f32 to vector<1x8xf32>
    %32 = arith.addf %29, %31 : vector<1x8xf32>
    %33 = math.rsqrt %32 : vector<1x8xf32>
    %34 = arith.mulf %30, %33 : vector<1x8xf32>
    %c0_56 = arith.constant 0 : index
    %c0_57 = arith.constant 0 : index
    %35 = vector.load %arg3[%c0_56, %c0_57] : memref<1x8xf32, #tpu.memory_space<vmem>>, vector<1x8xf32>
    %36 = arith.mulf %23, %34 : vector<1x8xf32>
    %37 = arith.subf %35, %36 : vector<1x8xf32>
    %38 = vector.broadcast %34 : vector<1x8xf32> to vector<512x8xf32>
    %39 = arith.mulf %16, %38 : vector<512x8xf32>
    %40 = vector.broadcast %37 : vector<1x8xf32> to vector<512x8xf32>
    %41 = arith.addf %39, %40 : vector<512x8xf32>
    %cst_58 = arith.constant 0.000000e+00 : f32
    %42 = vector.broadcast %cst_58 : f32 to vector<512x8xf32>
    %43 = arith.maximumf %41, %42 : vector<512x8xf32>
    %44 = vector.shape_cast %43 : vector<512x8xf32> to vector<2x16x16x8xf32>
    %45 = tpu.concatenate %2, %44 in 3 : vector<2x16x16x4xf32>, vector<2x16x16x8xf32> -> vector<2x16x16x12xf32>
    %c0_59 = arith.constant 0 : index
    %c1_60 = arith.constant 1 : index
    %c1_61 = arith.constant 1 : index
    %c0_62 = arith.constant 0 : index
    %46 = vector.load %arg11[%c0_59, %c1_60, %c1_61, %c0_62] : memref<2x18x18x28xf32, #tpu.memory_space<vmem>>, vector<2x16x16x12xf32>
    tpu.vector_store %arg11[%c0_59, %c1_60, %c1_61, %c0_62], %45 {strides = array<i32>} : memref<2x18x18x28xf32, #tpu.memory_space<vmem>>, vector<2x16x16x12xf32>,
    %c0_63 = arith.constant 0 : index
    %c0_64 = arith.constant 0 : index
    %c0_65 = arith.constant 0 : index
    %c0_66 = arith.constant 0 : index
    %47 = vector.load %arg11[%c0_63, %c0_64, %c0_65, %c0_66] : memref<2x18x18x28xf32, #tpu.memory_space<vmem>>, vector<2x16x16x12xf32>
    %c0_67 = arith.constant 0 : index
    %c0_68 = arith.constant 0 : index
    %c1_69 = arith.constant 1 : index
    %c0_70 = arith.constant 0 : index
    %48 = vector.load %arg11[%c0_67, %c0_68, %c1_69, %c0_70] : memref<2x18x18x28xf32, #tpu.memory_space<vmem>>, vector<2x16x16x12xf32>
    %c0_71 = arith.constant 0 : index
    %c0_72 = arith.constant 0 : index
    %c2_73 = arith.constant 2 : index
    %c0_74 = arith.constant 0 : index
    %49 = vector.load %arg11[%c0_71, %c0_72, %c2_73, %c0_74] : memref<2x18x18x28xf32, #tpu.memory_space<vmem>>, vector<2x16x16x12xf32>
    %c0_75 = arith.constant 0 : index
    %c1_76 = arith.constant 1 : index
    %c0_77 = arith.constant 0 : index
    %c0_78 = arith.constant 0 : index
    %50 = vector.load %arg11[%c0_75, %c1_76, %c0_77, %c0_78] : memref<2x18x18x28xf32, #tpu.memory_space<vmem>>, vector<2x16x16x12xf32>
    %c0_79 = arith.constant 0 : index
    %c1_80 = arith.constant 1 : index
    %c1_81 = arith.constant 1 : index
    %c0_82 = arith.constant 0 : index
    %51 = vector.load %arg11[%c0_79, %c1_80, %c1_81, %c0_82] : memref<2x18x18x28xf32, #tpu.memory_space<vmem>>, vector<2x16x16x12xf32>
    %c0_83 = arith.constant 0 : index
    %c1_84 = arith.constant 1 : index
    %c2_85 = arith.constant 2 : index
    %c0_86 = arith.constant 0 : index
    %52 = vector.load %arg11[%c0_83, %c1_84, %c2_85, %c0_86] : memref<2x18x18x28xf32, #tpu.memory_space<vmem>>, vector<2x16x16x12xf32>
    %c0_87 = arith.constant 0 : index
    %c2_88 = arith.constant 2 : index
    %c0_89 = arith.constant 0 : index
    %c0_90 = arith.constant 0 : index
    %53 = vector.load %arg11[%c0_87, %c2_88, %c0_89, %c0_90] : memref<2x18x18x28xf32, #tpu.memory_space<vmem>>, vector<2x16x16x12xf32>
    %c0_91 = arith.constant 0 : index
    %c2_92 = arith.constant 2 : index
    %c1_93 = arith.constant 1 : index
    %c0_94 = arith.constant 0 : index
    %54 = vector.load %arg11[%c0_91, %c2_92, %c1_93, %c0_94] : memref<2x18x18x28xf32, #tpu.memory_space<vmem>>, vector<2x16x16x12xf32>
    %c0_95 = arith.constant 0 : index
    %c2_96 = arith.constant 2 : index
    %c2_97 = arith.constant 2 : index
    %c0_98 = arith.constant 0 : index
    %55 = vector.load %arg11[%c0_95, %c2_96, %c2_97, %c0_98] : memref<2x18x18x28xf32, #tpu.memory_space<vmem>>, vector<2x16x16x12xf32>
    %56 = tpu.concatenate %47, %48, %49, %50, %51, %52, %53, %54, %55 in 3 : vector<2x16x16x12xf32>, vector<2x16x16x12xf32>, vector<2x16x16x12xf32>, vector<2x16x16x12xf32>, vector<2x16x16x12xf32>, vector<2x16x16x12xf32>, vector<2x16x16x12xf32>, vector<2x16x16x12xf32>, vector<2x16x16x12xf32> -> vector<2x16x16x108xf32>
    %57 = vector.shape_cast %56 : vector<2x16x16x108xf32> to vector<512x108xf32>
    %c0_99 = arith.constant 0 : index
    %c0_100 = arith.constant 0 : index
    %58 = vector.load %arg4[%c0_99, %c0_100] : memref<108x8xf32, #tpu.memory_space<vmem>>, vector<108x8xf32>
    %cst_101 = arith.constant dense<0.000000e+00> : vector<512x8xf32>
    %59 = tpu.matmul %57, %58, %cst_101 {dimension_numbers = #tpu.dot_dimension_numbers<[1], [0], [0], [1], [0, 0, 1, 1], [], []>} : vector<512x108xf32>, vector<108x8xf32>, vector<512x8xf32> -> vector<512x8xf32>
    %cst_102 = arith.constant dense<0.000000e+00> : vector<8xf32>
    %60 = vector.multi_reduction <add>, %59, %cst_102 [0] : vector<512x8xf32> to vector<8xf32>
    %61 = vector.shape_cast %60 : vector<8xf32> to vector<1x8xf32>
    %62 = arith.mulf %59, %59 : vector<512x8xf32>
    %cst_103 = arith.constant dense<0.000000e+00> : vector<8xf32>
    %63 = vector.multi_reduction <add>, %62, %cst_103 [0] : vector<512x8xf32> to vector<8xf32>
    %64 = vector.shape_cast %63 : vector<8xf32> to vector<1x8xf32>
    %cst_104 = arith.constant 0.001953125 : f32
    %65 = vector.broadcast %cst_104 : f32 to vector<1x8xf32>
    %66 = arith.mulf %61, %65 : vector<1x8xf32>
    %cst_105 = arith.constant 0.001953125 : f32
    %67 = vector.broadcast %cst_105 : f32 to vector<1x8xf32>
    %68 = arith.mulf %64, %67 : vector<1x8xf32>
    %69 = arith.mulf %66, %66 : vector<1x8xf32>
    %70 = arith.subf %68, %69 : vector<1x8xf32>
    %cst_106 = arith.constant 0.000000e+00 : f32
    %71 = vector.broadcast %cst_106 : f32 to vector<1x8xf32>
    %72 = arith.maximumf %70, %71 : vector<1x8xf32>
    %c0_107 = arith.constant 0 : index
    %c0_108 = arith.constant 0 : index
    %73 = vector.load %arg5[%c0_107, %c0_108] : memref<1x8xf32, #tpu.memory_space<vmem>>, vector<1x8xf32>
    %cst_109 = arith.constant 9.99999974E-6 : f32
    %74 = vector.broadcast %cst_109 : f32 to vector<1x8xf32>
    %75 = arith.addf %72, %74 : vector<1x8xf32>
    %76 = math.rsqrt %75 : vector<1x8xf32>
    %77 = arith.mulf %73, %76 : vector<1x8xf32>
    %c0_110 = arith.constant 0 : index
    %c0_111 = arith.constant 0 : index
    %78 = vector.load %arg6[%c0_110, %c0_111] : memref<1x8xf32, #tpu.memory_space<vmem>>, vector<1x8xf32>
    %79 = arith.mulf %66, %77 : vector<1x8xf32>
    %80 = arith.subf %78, %79 : vector<1x8xf32>
    %81 = vector.broadcast %77 : vector<1x8xf32> to vector<512x8xf32>
    %82 = arith.mulf %59, %81 : vector<512x8xf32>
    %83 = vector.broadcast %80 : vector<1x8xf32> to vector<512x8xf32>
    %84 = arith.addf %82, %83 : vector<512x8xf32>
    %cst_112 = arith.constant 0.000000e+00 : f32
    %85 = vector.broadcast %cst_112 : f32 to vector<512x8xf32>
    %86 = arith.maximumf %84, %85 : vector<512x8xf32>
    %87 = vector.shape_cast %86 : vector<512x8xf32> to vector<2x16x16x8xf32>
    %88 = tpu.concatenate %45, %87 in 3 : vector<2x16x16x12xf32>, vector<2x16x16x8xf32> -> vector<2x16x16x20xf32>
    %c0_113 = arith.constant 0 : index
    %c1_114 = arith.constant 1 : index
    %c1_115 = arith.constant 1 : index
    %c0_116 = arith.constant 0 : index
    %89 = vector.load %arg11[%c0_113, %c1_114, %c1_115, %c0_116] : memref<2x18x18x28xf32, #tpu.memory_space<vmem>>, vector<2x16x16x20xf32>
    tpu.vector_store %arg11[%c0_113, %c1_114, %c1_115, %c0_116], %88 {strides = array<i32>} : memref<2x18x18x28xf32, #tpu.memory_space<vmem>>, vector<2x16x16x20xf32>,
    %c0_117 = arith.constant 0 : index
    %c0_118 = arith.constant 0 : index
    %c0_119 = arith.constant 0 : index
    %c0_120 = arith.constant 0 : index
    %90 = vector.load %arg11[%c0_117, %c0_118, %c0_119, %c0_120] : memref<2x18x18x28xf32, #tpu.memory_space<vmem>>, vector<2x16x16x20xf32>
    %c0_121 = arith.constant 0 : index
    %c0_122 = arith.constant 0 : index
    %c1_123 = arith.constant 1 : index
    %c0_124 = arith.constant 0 : index
    %91 = vector.load %arg11[%c0_121, %c0_122, %c1_123, %c0_124] : memref<2x18x18x28xf32, #tpu.memory_space<vmem>>, vector<2x16x16x20xf32>
    %c0_125 = arith.constant 0 : index
    %c0_126 = arith.constant 0 : index
    %c2_127 = arith.constant 2 : index
    %c0_128 = arith.constant 0 : index
    %92 = vector.load %arg11[%c0_125, %c0_126, %c2_127, %c0_128] : memref<2x18x18x28xf32, #tpu.memory_space<vmem>>, vector<2x16x16x20xf32>
    %c0_129 = arith.constant 0 : index
    %c1_130 = arith.constant 1 : index
    %c0_131 = arith.constant 0 : index
    %c0_132 = arith.constant 0 : index
    %93 = vector.load %arg11[%c0_129, %c1_130, %c0_131, %c0_132] : memref<2x18x18x28xf32, #tpu.memory_space<vmem>>, vector<2x16x16x20xf32>
    %c0_133 = arith.constant 0 : index
    %c1_134 = arith.constant 1 : index
    %c1_135 = arith.constant 1 : index
    %c0_136 = arith.constant 0 : index
    %94 = vector.load %arg11[%c0_133, %c1_134, %c1_135, %c0_136] : memref<2x18x18x28xf32, #tpu.memory_space<vmem>>, vector<2x16x16x20xf32>
    %c0_137 = arith.constant 0 : index
    %c1_138 = arith.constant 1 : index
    %c2_139 = arith.constant 2 : index
    %c0_140 = arith.constant 0 : index
    %95 = vector.load %arg11[%c0_137, %c1_138, %c2_139, %c0_140] : memref<2x18x18x28xf32, #tpu.memory_space<vmem>>, vector<2x16x16x20xf32>
    %c0_141 = arith.constant 0 : index
    %c2_142 = arith.constant 2 : index
    %c0_143 = arith.constant 0 : index
    %c0_144 = arith.constant 0 : index
    %96 = vector.load %arg11[%c0_141, %c2_142, %c0_143, %c0_144] : memref<2x18x18x28xf32, #tpu.memory_space<vmem>>, vector<2x16x16x20xf32>
    %c0_145 = arith.constant 0 : index
    %c2_146 = arith.constant 2 : index
    %c1_147 = arith.constant 1 : index
    %c0_148 = arith.constant 0 : index
    %97 = vector.load %arg11[%c0_145, %c2_146, %c1_147, %c0_148] : memref<2x18x18x28xf32, #tpu.memory_space<vmem>>, vector<2x16x16x20xf32>
    %c0_149 = arith.constant 0 : index
    %c2_150 = arith.constant 2 : index
    %c2_151 = arith.constant 2 : index
    %c0_152 = arith.constant 0 : index
    %98 = vector.load %arg11[%c0_149, %c2_150, %c2_151, %c0_152] : memref<2x18x18x28xf32, #tpu.memory_space<vmem>>, vector<2x16x16x20xf32>
    %99 = tpu.concatenate %90, %91, %92, %93, %94, %95, %96, %97, %98 in 3 : vector<2x16x16x20xf32>, vector<2x16x16x20xf32>, vector<2x16x16x20xf32>, vector<2x16x16x20xf32>, vector<2x16x16x20xf32>, vector<2x16x16x20xf32>, vector<2x16x16x20xf32>, vector<2x16x16x20xf32>, vector<2x16x16x20xf32> -> vector<2x16x16x180xf32>
    %100 = vector.shape_cast %99 : vector<2x16x16x180xf32> to vector<512x180xf32>
    %c0_153 = arith.constant 0 : index
    %c0_154 = arith.constant 0 : index
    %101 = vector.load %arg7[%c0_153, %c0_154] : memref<180x8xf32, #tpu.memory_space<vmem>>, vector<180x8xf32>
    %cst_155 = arith.constant dense<0.000000e+00> : vector<512x8xf32>
    %102 = tpu.matmul %100, %101, %cst_155 {dimension_numbers = #tpu.dot_dimension_numbers<[1], [0], [0], [1], [0, 0, 1, 1], [], []>} : vector<512x180xf32>, vector<180x8xf32>, vector<512x8xf32> -> vector<512x8xf32>
    %cst_156 = arith.constant dense<0.000000e+00> : vector<8xf32>
    %103 = vector.multi_reduction <add>, %102, %cst_156 [0] : vector<512x8xf32> to vector<8xf32>
    %104 = vector.shape_cast %103 : vector<8xf32> to vector<1x8xf32>
    %105 = arith.mulf %102, %102 : vector<512x8xf32>
    %cst_157 = arith.constant dense<0.000000e+00> : vector<8xf32>
    %106 = vector.multi_reduction <add>, %105, %cst_157 [0] : vector<512x8xf32> to vector<8xf32>
    %107 = vector.shape_cast %106 : vector<8xf32> to vector<1x8xf32>
    %cst_158 = arith.constant 0.001953125 : f32
    %108 = vector.broadcast %cst_158 : f32 to vector<1x8xf32>
    %109 = arith.mulf %104, %108 : vector<1x8xf32>
    %cst_159 = arith.constant 0.001953125 : f32
    %110 = vector.broadcast %cst_159 : f32 to vector<1x8xf32>
    %111 = arith.mulf %107, %110 : vector<1x8xf32>
    %112 = arith.mulf %109, %109 : vector<1x8xf32>
    %113 = arith.subf %111, %112 : vector<1x8xf32>
    %cst_160 = arith.constant 0.000000e+00 : f32
    %114 = vector.broadcast %cst_160 : f32 to vector<1x8xf32>
    %115 = arith.maximumf %113, %114 : vector<1x8xf32>
    %c0_161 = arith.constant 0 : index
    %c0_162 = arith.constant 0 : index
    %116 = vector.load %arg8[%c0_161, %c0_162] : memref<1x8xf32, #tpu.memory_space<vmem>>, vector<1x8xf32>
    %cst_163 = arith.constant 9.99999974E-6 : f32
    %117 = vector.broadcast %cst_163 : f32 to vector<1x8xf32>
    %118 = arith.addf %115, %117 : vector<1x8xf32>
    %119 = math.rsqrt %118 : vector<1x8xf32>
    %120 = arith.mulf %116, %119 : vector<1x8xf32>
    %c0_164 = arith.constant 0 : index
    %c0_165 = arith.constant 0 : index
    %121 = vector.load %arg9[%c0_164, %c0_165] : memref<1x8xf32, #tpu.memory_space<vmem>>, vector<1x8xf32>
    %122 = arith.mulf %109, %120 : vector<1x8xf32>
    %123 = arith.subf %121, %122 : vector<1x8xf32>
    %124 = vector.broadcast %120 : vector<1x8xf32> to vector<512x8xf32>
    %125 = arith.mulf %102, %124 : vector<512x8xf32>
    %126 = vector.broadcast %123 : vector<1x8xf32> to vector<512x8xf32>
    %127 = arith.addf %125, %126 : vector<512x8xf32>
    %cst_166 = arith.constant 0.000000e+00 : f32
    %128 = vector.broadcast %cst_166 : f32 to vector<512x8xf32>
    %129 = arith.maximumf %127, %128 : vector<512x8xf32>
    %130 = vector.shape_cast %129 : vector<512x8xf32> to vector<2x16x16x8xf32>
    %131 = tpu.concatenate %88, %130 in 3 : vector<2x16x16x20xf32>, vector<2x16x16x8xf32> -> vector<2x16x16x28xf32>
    %c0_167 = arith.constant 0 : index
    %c0_168 = arith.constant 0 : index
    %c0_169 = arith.constant 0 : index
    %c0_170 = arith.constant 0 : index
    %132 = vector.load %arg10[%c0_167, %c0_168, %c0_169, %c0_170] : memref<2x16x16x28xf32, #tpu.memory_space<vmem>>, vector<2x16x16x28xf32>
    tpu.vector_store %arg10[%c0_167, %c0_168, %c0_169, %c0_170], %131 {strides = array<i32>} : memref<2x16x16x28xf32, #tpu.memory_space<vmem>>, vector<2x16x16x28xf32>,
    return
  }
}

</mosaic_0001>

<llo_original>
// kernel: dense_block_forward.1
$region0: #{dense_block_forward.1}
  #allocation0 [shape = 'u32[]', space=smem, size = 0x4, offset = 0x4, fixed_abs, tag = 'smem constant byte address 0x4 - core index']
  #allocation1 [shape = 'u32[144,128]{1,0:T(1,128)}', space=vmem, size = 0x12000, scoped, tag = 'internal scratch']
  #allocation2 [shape = 'f32[2,18,18,28]{3,2,1,0:T(8,128)}', space=vmem, size = 0x6c000, scoped, tag = 'scratch operand']
  %s0 = inlined_call_operand.vmem [shape: f32[2,16,16,4], index: 0, kind: input, shape index: {}]
  %s1 = inlined_call_operand.vmem [shape: f32[36,8], index: 1, kind: input, shape index: {}]
  %s2 = inlined_call_operand.vmem [shape: f32[1,8], index: 2, kind: input, shape index: {}]
  %s3 = inlined_call_operand.vmem [shape: f32[1,8], index: 3, kind: input, shape index: {}]
  %s4 = inlined_call_operand.vmem [shape: f32[108,8], index: 4, kind: input, shape index: {}]
  %s5 = inlined_call_operand.vmem [shape: f32[1,8], index: 5, kind: input, shape index: {}]
  %s6 = inlined_call_operand.vmem [shape: f32[1,8], index: 6, kind: input, shape index: {}]
  %s7 = inlined_call_operand.vmem [shape: f32[180,8], index: 7, kind: input, shape index: {}]
  %s8 = inlined_call_operand.vmem [shape: f32[1,8], index: 8, kind: input, shape index: {}]
  %s9 = inlined_call_operand.vmem [shape: f32[1,8], index: 9, kind: input, shape index: {}]
  %s10 = inlined_call_operand.hbm [shape: f32[2,16,16,28], index: 10, kind: output, shape index: {}]
  %s11 = sld [smem:[#allocation0]]
  $region50: #{dense_block_forward.1} parent=0
    _
  %s13 = ssub.s32 1, %s11
  %s14 = scalar_select 0, %s13, %s11
  $region1: #{dense_block_forward.1} parent=0
    #allocation3 [shape = 'u8[262144]{0}', space=vmem, size = 0x40000, scoped, tag = 'output window, operand 0, single buffered']
    #allocation4 [shape = 's32[1]{0}', space=sflag, size = 0x4, scoped, tag = 'scoped memory for dense_block_forward.1']
    %15 = vsyncpa [#allocation4], 0
    // Predicated region
    $region2: #{dense_block_forward.1} parent=1 // pred_check
      _
    $region3: #{dense_block_forward.1} parent=1 // pred_check_branch
      %17 = sbr.rel (0) target = $region5
    $region4: #{dense_block_forward.1} parent=1 // pred_region
      _
    $region5: #{dense_block_forward.1} parent=1 // pred_fallthru
      _
    // Predicated region
    $region6: #{dense_block_forward.1} parent=1 // pred_check
      _
    $region7: #{dense_block_forward.1} parent=1 // pred_check_branch
      %19 = sbr.rel (0) target = $region9
    $region8: #{dense_block_forward.1} parent=1 // pred_region
      _
    $region9: #{dense_block_forward.1} parent=1 // pred_fallthru
      _
    // Predicated region
    $region10: #{dense_block_forward.1} parent=1 // pred_check
      _
    $region11: #{dense_block_forward.1} parent=1 // pred_check_branch
      %21 = sbr.rel (0) target = $region13
    $region12: #{dense_block_forward.1} parent=1 // pred_region
      _
    $region13: #{dense_block_forward.1} parent=1 // pred_fallthru
      _
    // Predicated region
    $region14: #{dense_block_forward.1} parent=1 // pred_check
      _
    $region15: #{dense_block_forward.1} parent=1 // pred_check_branch
      %23 = sbr.rel (0) target = $region17
    $region16: #{dense_block_forward.1} parent=1 // pred_region
      _
    $region17: #{dense_block_forward.1} parent=1 // pred_fallthru
      _
    // Predicated region
    $region18: #{dense_block_forward.1} parent=1 // pred_check
      _
    $region19: #{dense_block_forward.1} parent=1 // pred_check_branch
      %25 = sbr.rel (0) target = $region21
    $region20: #{dense_block_forward.1} parent=1 // pred_region
      _
    $region21: #{dense_block_forward.1} parent=1 // pred_fallthru
      _
    // Predicated region
    $region22: #{dense_block_forward.1} parent=1 // pred_check
      _
    $region23: #{dense_block_forward.1} parent=1 // pred_check_branch
      %27 = sbr.rel (0) target = $region25
    $region24: #{dense_block_forward.1} parent=1 // pred_region
      _
    $region25: #{dense_block_forward.1} parent=1 // pred_fallthru
      _
    // Predicated region
    $region26: #{dense_block_forward.1} parent=1 // pred_check
      _
    $region27: #{dense_block_forward.1} parent=1 // pred_check_branch
      %29 = sbr.rel (0) target = $region29
    $region28: #{dense_block_forward.1} parent=1 // pred_region
      _
    $region29: #{dense_block_forward.1} parent=1 // pred_fallthru
      _
    // Predicated region
    $region30: #{dense_block_forward.1} parent=1 // pred_check
      _
    $region31: #{dense_block_forward.1} parent=1 // pred_check_branch
      %31 = sbr.rel (0) target = $region33
    $region32: #{dense_block_forward.1} parent=1 // pred_region
      _
    $region33: #{dense_block_forward.1} parent=1 // pred_fallthru
      _
    // Predicated region
    $region34: #{dense_block_forward.1} parent=1 // pred_check
      _
    $region35: #{dense_block_forward.1} parent=1 // pred_check_branch
      %33 = sbr.rel (0) target = $region37
    $region36: #{dense_block_forward.1} parent=1 // pred_region
      _
    $region37: #{dense_block_forward.1} parent=1 // pred_fallthru
      _
    // Predicated region
    $region38: #{dense_block_forward.1} parent=1 // pred_check
      _
    $region39: #{dense_block_forward.1} parent=1 // pred_check_branch
      %35 = sbr.rel (0) target = $region41
    $region40: #{dense_block_forward.1} parent=1 // pred_region
      _
    $region41: #{dense_block_forward.1} parent=1 // pred_fallthru
      _
    %vm36 = vcmask 228352
    %37 = vst.msk [vmem:[#allocation2] sm:$0xff] %vm36, 0.0
    %38 = vst.msk [vmem:[#allocation2 + $0x8] sm:$0xff] %vm36, 0.0
    %vm39 = vcmask 222208
    %40 = vst.msk [vmem:[#allocation2 + $0x10] sm:$0x3] %vm39, 0.0
    %41 = vst.msk [vmem:[#allocation2 + $0x18] sm:$0xff] %vm36, 0.0
    %42 = vst.msk [vmem:[#allocation2 + $0x20] sm:$0xff] %vm36, 0.0
    %43 = vst.msk [vmem:[#allocation2 + $0x28] sm:$0x3] %vm39, 0.0
    %44 = vst.msk [vmem:[#allocation2 + $0x30] sm:$0xff] %vm36, 0.0
    %45 = vst.msk [vmem:[#allocation2 + $0x38] sm:$0xff] %vm36, 0.0
    %46 = vst.msk [vmem:[#allocation2 + $0x40] sm:$0x3] %vm39, 0.0
    %47 = vst.msk [vmem:[#allocation2 + $0x48] sm:$0xff] %vm36, 0.0
    %48 = vst.msk [vmem:[#allocation2 + $0x50] sm:$0xff] %vm36, 0.0
    %49 = vst.msk [vmem:[#allocation2 + $0x58] sm:$0x3] %vm39, 0.0
    %50 = vst.msk [vmem:[#allocation2 + $0x60] sm:$0xff] %vm36, 0.0
    %51 = vst.msk [vmem:[#allocation2 + $0x68] sm:$0xff] %vm36, 0.0
    %52 = vst.msk [vmem:[#allocation2 + $0x70] sm:$0x3] %vm39, 0.0
    %53 = vst.msk [vmem:[#allocation2 + $0x78] sm:$0xff] %vm36, 0.0
    %54 = vst.msk [vmem:[#allocation2 + $0x80] sm:$0xff] %vm36, 0.0
    %55 = vst.msk [vmem:[#allocation2 + $0x88] sm:$0x3] %vm39, 0.0
    %56 = vst.msk [vmem:[#allocation2 + $0x90] sm:$0xff] %vm36, 0.0
    %57 = vst.msk [vmem:[#allocation2 + $0x98] sm:$0xff] %vm36, 0.0
    %58 = vst.msk [vmem:[#allocation2 + $0xa0] sm:$0x3] %vm39, 0.0
    %59 = vst.msk [vmem:[#allocation2 + $0xa8] sm:$0xff] %vm36, 0.0
    %60 = vst.msk [vmem:[#allocation2 + $0xb0] sm:$0xff] %vm36, 0.0
    %61 = vst.msk [vmem:[#allocation2 + $0xb8] sm:$0x3] %vm39, 0.0
    %62 = vst.msk [vmem:[#allocation2 + $0xc0] sm:$0xff] %vm36, 0.0
    %63 = vst.msk [vmem:[#allocation2 + $0xc8] sm:$0xff] %vm36, 0.0
    %64 = vst.msk [vmem:[#allocation2 + $0xd0] sm:$0x3] %vm39, 0.0
    %65 = vst.msk [vmem:[#allocation2 + $0xd8] sm:$0xff] %vm36, 0.0
    %66 = vst.msk [vmem:[#allocation2 + $0xe0] sm:$0xff] %vm36, 0.0
    %67 = vst.msk [vmem:[#allocation2 + $0xe8] sm:$0x3] %vm39, 0.0
    %68 = vst.msk [vmem:[#allocation2 + $0xf0] sm:$0xff] %vm36, 0.0
    %69 = vst.msk [vmem:[#allocation2 + $0xf8] sm:$0xff] %vm36, 0.0
    %70 = vst.msk [vmem:[#allocation2 + $0x100] sm:$0x3] %vm39, 0.0
    %71 = vst.msk [vmem:[#allocation2 + $0x108] sm:$0xff] %vm36, 0.0
    %72 = vst.msk [vmem:[#allocation2 + $0x110] sm:$0xff] %vm36, 0.0
    %73 = vst.msk [vmem:[#allocation2 + $0x118] sm:$0x3] %vm39, 0.0
    %74 = vst.msk [vmem:[#allocation2 + $0x120] sm:$0xff] %vm36, 0.0
    %75 = vst.msk [vmem:[#allocation2 + $0x128] sm:$0xff] %vm36, 0.0
    %76 = vst.msk [vmem:[#allocation2 + $0x130] sm:$0x3] %vm39, 0.0
    %77 = vst.msk [vmem:[#allocation2 + $0x138] sm:$0xff] %vm36, 0.0
    %78 = vst.msk [vmem:[#allocation2 + $0x140] sm:$0xff] %vm36, 0.0
    %79 = vst.msk [vmem:[#allocation2 + $0x148] sm:$0x3] %vm39, 0.0
    %80 = vst.msk [vmem:[#allocation2 + $0x150] sm:$0xff] %vm36, 0.0
    %81 = vst.msk [vmem:[#allocation2 + $0x158] sm:$0xff] %vm36, 0.0
    %82 = vst.msk [vmem:[#allocation2 + $0x160] sm:$0x3] %vm39, 0.0
    %83 = vst.msk [vmem:[#allocation2 + $0x168] sm:$0xff] %vm36, 0.0
    %84 = vst.msk [vmem:[#allocation2 + $0x170] sm:$0xff] %vm36, 0.0
    %85 = vst.msk [vmem:[#allocation2 + $0x178] sm:$0x3] %vm39, 0.0
    %86 = vst.msk [vmem:[#allocation2 + $0x180] sm:$0xff] %vm36, 0.0
    %87 = vst.msk [vmem:[#allocation2 + $0x188] sm:$0xff] %vm36, 0.0
    %88 = vst.msk [vmem:[#allocation2 + $0x190] sm:$0x3] %vm39, 0.0
    %89 = vst.msk [vmem:[#allocation2 + $0x198] sm:$0xff] %vm36, 0.0
    %90 = vst.msk [vmem:[#allocation2 + $0x1a0] sm:$0xff] %vm36, 0.0
    %91 = vst.msk [vmem:[#allocation2 + $0x1a8] sm:$0x3] %vm39, 0.0
    %92 = vst.msk [vmem:[#allocation2 + $0x1b0] sm:$0xff] %vm36, 0.0
    %93 = vst.msk [vmem:[#allocation2 + $0x1b8] sm:$0xff] %vm36, 0.0
    %94 = vst.msk [vmem:[#allocation2 + $0x1c0] sm:$0x3] %vm39, 0.0
    %95 = vst.msk [vmem:[#allocation2 + $0x1c8] sm:$0xff] %vm36, 0.0
    %96 = vst.msk [vmem:[#allocation2 + $0x1d0] sm:$0xff] %vm36, 0.0
    %97 = vst.msk [vmem:[#allocation2 + $0x1d8] sm:$0x3] %vm39, 0.0
    %98 = vst.msk [vmem:[#allocation2 + $0x1e0] sm:$0xff] %vm36, 0.0
    %99 = vst.msk [vmem:[#allocation2 + $0x1e8] sm:$0xff] %vm36, 0.0
    %100 = vst.msk [vmem:[#allocation2 + $0x1f0] sm:$0x3] %vm39, 0.0
    %101 = vst.msk [vmem:[#allocation2 + $0x1f8] sm:$0xff] %vm36, 0.0
    %102 = vst.msk [vmem:[#allocation2 + $0x200] sm:$0xff] %vm36, 0.0
    %103 = vst.msk [vmem:[#allocation2 + $0x208] sm:$0x3] %vm39, 0.0
    %104 = vst.msk [vmem:[#allocation2 + $0x210] sm:$0xff] %vm36, 0.0
    %105 = vst.msk [vmem:[#allocation2 + $0x218] sm:$0xff] %vm36, 0.0
    %106 = vst.msk [vmem:[#allocation2 + $0x220] sm:$0x3] %vm39, 0.0
    %107 = vst.msk [vmem:[#allocation2 + $0x228] sm:$0xff] %vm36, 0.0
    %108 = vst.msk [vmem:[#allocation2 + $0x230] sm:$0xff] %vm36, 0.0
    %109 = vst.msk [vmem:[#allocation2 + $0x238] sm:$0x3] %vm39, 0.0
    %110 = vst.msk [vmem:[#allocation2 + $0x240] sm:$0xff] %vm36, 0.0
    %111 = vst.msk [vmem:[#allocation2 + $0x248] sm:$0xff] %vm36, 0.0
    %112 = vst.msk [vmem:[#allocation2 + $0x250] sm:$0x3] %vm39, 0.0
    %113 = vst.msk [vmem:[#allocation2 + $0x258] sm:$0xff] %vm36, 0.0
    %114 = vst.msk [vmem:[#allocation2 + $0x260] sm:$0xff] %vm36, 0.0
    %115 = vst.msk [vmem:[#allocation2 + $0x268] sm:$0x3] %vm39, 0.0
    %116 = vst.msk [vmem:[#allocation2 + $0x270] sm:$0xff] %vm36, 0.0
    %117 = vst.msk [vmem:[#allocation2 + $0x278] sm:$0xff] %vm36, 0.0
    %118 = vst.msk [vmem:[#allocation2 + $0x280] sm:$0x3] %vm39, 0.0
    %119 = vst.msk [vmem:[#allocation2 + $0x288] sm:$0xff] %vm36, 0.0
    %120 = vst.msk [vmem:[#allocation2 + $0x290] sm:$0xff] %vm36, 0.0
    %121 = vst.msk [vmem:[#allocation2 + $0x298] sm:$0x3] %vm39, 0.0
    %122 = vst.msk [vmem:[#allocation2 + $0x2a0] sm:$0xff] %vm36, 0.0
    %123 = vst.msk [vmem:[#allocation2 + $0x2a8] sm:$0xff] %vm36, 0.0
    %124 = vst.msk [vmem:[#allocation2 + $0x2b0] sm:$0x3] %vm39, 0.0
    %125 = vst.msk [vmem:[#allocation2 + $0x2b8] sm:$0xff] %vm36, 0.0
    %126 = vst.msk [vmem:[#allocation2 + $0x2c0] sm:$0xff] %vm36, 0.0
    %127 = vst.msk [vmem:[#allocation2 + $0x2c8] sm:$0x3] %vm39, 0.0
    %128 = vst.msk [vmem:[#allocation2 + $0x2d0] sm:$0xff] %vm36, 0.0
    %129 = vst.msk [vmem:[#allocation2 + $0x2d8] sm:$0xff] %vm36, 0.0
    %130 = vst.msk [vmem:[#allocation2 + $0x2e0] sm:$0x3] %vm39, 0.0
    %131 = vst.msk [vmem:[#allocation2 + $0x2e8] sm:$0xff] %vm36, 0.0
    %132 = vst.msk [vmem:[#allocation2 + $0x2f0] sm:$0xff] %vm36, 0.0
    %133 = vst.msk [vmem:[#allocation2 + $0x2f8] sm:$0x3] %vm39, 0.0
    %134 = vst.msk [vmem:[#allocation2 + $0x300] sm:$0xff] %vm36, 0.0
    %135 = vst.msk [vmem:[#allocation2 + $0x308] sm:$0xff] %vm36, 0.0
    %136 = vst.msk [vmem:[#allocation2 + $0x310] sm:$0x3] %vm39, 0.0
    %137 = vst.msk [vmem:[#allocation2 + $0x318] sm:$0xff] %vm36, 0.0
    %138 = vst.msk [vmem:[#allocation2 + $0x320] sm:$0xff] %vm36, 0.0
    %139 = vst.msk [vmem:[#allocation2 + $0x328] sm:$0x3] %vm39, 0.0
    %140 = vst.msk [vmem:[#allocation2 + $0x330] sm:$0xff] %vm36, 0.0
    %141 = vst.msk [vmem:[#allocation2 + $0x338] sm:$0xff] %vm36, 0.0
    %142 = vst.msk [vmem:[#allocation2 + $0x340] sm:$0x3] %vm39, 0.0
    %143 = vst.msk [vmem:[#allocation2 + $0x348] sm:$0xff] %vm36, 0.0
    %144 = vst.msk [vmem:[#allocation2 + $0x350] sm:$0xff] %vm36, 0.0
    %145 = vst.msk [vmem:[#allocation2 + $0x358] sm:$0x3] %vm39, 0.0
    %v146 = vld [vmem:[%s0] sm:$0xff]
    %v147 = vld [vmem:[%s0 + $0x8] sm:$0xff]
    %v148 = vld [vmem:[%s0 + $0x10] sm:$0xff]
    %v149 = vld [vmem:[%s0 + $0x18] sm:$0xff]
    %v150 = vld [vmem:[%s0 + $0x20] sm:$0xff]
    %v151 = vld [vmem:[%s0 + $0x28] sm:$0xff]
    %v152 = vld [vmem:[%s0 + $0x30] sm:$0xff]
    %v153 = vld [vmem:[%s0 + $0x38] sm:$0xff]
    %v154 = vld [vmem:[%s0 + $0x40] sm:$0xff]
    %v155 = vld [vmem:[%s0 + $0x48] sm:$0xff]
    %v156 = vld [vmem:[%s0 + $0x50] sm:$0xff]
    %v157 = vld [vmem:[%s0 + $0x58] sm:$0xff]
    %v158 = vld [vmem:[%s0 + $0x60] sm:$0xff]
    %v159 = vld [vmem:[%s0 + $0x68] sm:$0xff]
    %v160 = vld [vmem:[%s0 + $0x70] sm:$0xff]
    %v161 = vld [vmem:[%s0 + $0x78] sm:$0xff]
    %v162 = vld [vmem:[%s0 + $0x80] sm:$0xff]
    %v163 = vld [vmem:[%s0 + $0x88] sm:$0xff]
    %v164 = vld [vmem:[%s0 + $0x90] sm:$0xff]
    %v165 = vld [vmem:[%s0 + $0x98] sm:$0xff]
    %v166 = vld [vmem:[%s0 + $0xa0] sm:$0xff]
    %v167 = vld [vmem:[%s0 + $0xa8] sm:$0xff]
    %v168 = vld [vmem:[%s0 + $0xb0] sm:$0xff]
    %v169 = vld [vmem:[%s0 + $0xb8] sm:$0xff]
    %v170 = vld [vmem:[%s0 + $0xc0] sm:$0xff]
    %v171 = vld [vmem:[%s0 + $0xc8] sm:$0xff]
    %v172 = vld [vmem:[%s0 + $0xd0] sm:$0xff]
    %v173 = vld [vmem:[%s0 + $0xd8] sm:$0xff]
    %v174 = vld [vmem:[%s0 + $0xe0] sm:$0xff]
    %v175 = vld [vmem:[%s0 + $0xe8] sm:$0xff]
    %v176 = vld [vmem:[%s0 + $0xf0] sm:$0xff]
    %v177 = vld [vmem:[%s0 + $0xf8] sm:$0xff]
    %v178 = vld [vmem:[%s0 + $0x100] sm:$0xff]
    %v179 = vld [vmem:[%s0 + $0x108] sm:$0xff]
    %v180 = vld [vmem:[%s0 + $0x110] sm:$0xff]
    %v181 = vld [vmem:[%s0 + $0x118] sm:$0xff]
    %v182 = vld [vmem:[%s0 + $0x120] sm:$0xff]
    %v183 = vld [vmem:[%s0 + $0x128] sm:$0xff]
    %v184 = vld [vmem:[%s0 + $0x130] sm:$0xff]
    %v185 = vld [vmem:[%s0 + $0x138] sm:$0xff]
    %v186 = vld [vmem:[%s0 + $0x140] sm:$0xff]
    %v187 = vld [vmem:[%s0 + $0x148] sm:$0xff]
    %v188 = vld [vmem:[%s0 + $0x150] sm:$0xff]
    %v189 = vld [vmem:[%s0 + $0x158] sm:$0xff]
    %v190 = vld [vmem:[%s0 + $0x160] sm:$0xff]
    %v191 = vld [vmem:[%s0 + $0x168] sm:$0xff]
    %v192 = vld [vmem:[%s0 + $0x170] sm:$0xff]
    %v193 = vld [vmem:[%s0 + $0x178] sm:$0xff]
    %v194 = vld [vmem:[%s0 + $0x180] sm:$0xff]
    %v195 = vld [vmem:[%s0 + $0x188] sm:$0xff]
    %v196 = vld [vmem:[%s0 + $0x190] sm:$0xff]
    %v197 = vld [vmem:[%s0 + $0x198] sm:$0xff]
    %v198 = vld [vmem:[%s0 + $0x1a0] sm:$0xff]
    %v199 = vld [vmem:[%s0 + $0x1a8] sm:$0xff]
    %v200 = vld [vmem:[%s0 + $0x1b0] sm:$0xff]
    %v201 = vld [vmem:[%s0 + $0x1b8] sm:$0xff]
    %v202 = vld [vmem:[%s0 + $0x1c0] sm:$0xff]
    %v203 = vld [vmem:[%s0 + $0x1c8] sm:$0xff]
    %v204 = vld [vmem:[%s0 + $0x1d0] sm:$0xff]
    %v205 = vld [vmem:[%s0 + $0x1d8] sm:$0xff]
    %v206 = vld [vmem:[%s0 + $0x1e0] sm:$0xff]
    %v207 = vld [vmem:[%s0 + $0x1e8] sm:$0xff]
    %v208 = vld [vmem:[%s0 + $0x1f0] sm:$0xff]
    %v209 = vld [vmem:[%s0 + $0x1f8] sm:$0xff]
    %s210 = scalar_lea.vmem [#allocation2], 24
    %vm211 = vcmask 31744
    %212 = vst.msk [vmem:[%s210 + $0x1] sm:$0xff] %vm211, %v146
    %213 = vst.msk [vmem:[%s210 + $0x9] sm:$0xff] %vm211, %v147
    %214 = vst.msk [vmem:[%s210 + $0x19] sm:$0xff] %vm211, %v148
    %215 = vst.msk [vmem:[%s210 + $0x21] sm:$0xff] %vm211, %v149
    %216 = vst.msk [vmem:[%s210 + $0x31] sm:$0xff] %vm211, %v150
    %217 = vst.msk [vmem:[%s210 + $0x39] sm:$0xff] %vm211, %v151
    %218 = vst.msk [vmem:[%s210 + $0x49] sm:$0xff] %vm211, %v152
    %219 = vst.msk [vmem:[%s210 + $0x51] sm:$0xff] %vm211, %v153
    %220 = vst.msk [vmem:[%s210 + $0x61] sm:$0xff] %vm211, %v154
    %221 = vst.msk [vmem:[%s210 + $0x69] sm:$0xff] %vm211, %v155
    %222 = vst.msk [vmem:[%s210 + $0x79] sm:$0xff] %vm211, %v156
    %223 = vst.msk [vmem:[%s210 + $0x81] sm:$0xff] %vm211, %v157
    %224 = vst.msk [vmem:[%s210 + $0x91] sm:$0xff] %vm211, %v158
    %225 = vst.msk [vmem:[%s210 + $0x99] sm:$0xff] %vm211, %v159
    %226 = vst.msk [vmem:[%s210 + $0xa9] sm:$0xff] %vm211, %v160
    %227 = vst.msk [vmem:[%s210 + $0xb1] sm:$0xff] %vm211, %v161
    %228 = vst.msk [vmem:[%s210 + $0xc1] sm:$0xff] %vm211, %v162
    %229 = vst.msk [vmem:[%s210 + $0xc9] sm:$0xff] %vm211, %v163
    %230 = vst.msk [vmem:[%s210 + $0xd9] sm:$0xff] %vm211, %v164
    %231 = vst.msk [vmem:[%s210 + $0xe1] sm:$0xff] %vm211, %v165
    %232 = vst.msk [vmem:[%s210 + $0xf1] sm:$0xff] %vm211, %v166
    %233 = vst.msk [vmem:[%s210 + $0xf9] sm:$0xff] %vm211, %v167
    %234 = vst.msk [vmem:[%s210 + $0x109] sm:$0xff] %vm211, %v168
    %235 = vst.msk [vmem:[%s210 + $0x111] sm:$0xff] %vm211, %v169
    %236 = vst.msk [vmem:[%s210 + $0x121] sm:$0xff] %vm211, %v170
    %237 = vst.msk [vmem:[%s210 + $0x129] sm:$0xff] %vm211, %v171
    %238 = vst.msk [vmem:[%s210 + $0x139] sm:$0xff] %vm211, %v172
    %239 = vst.msk [vmem:[%s210 + $0x141] sm:$0xff] %vm211, %v173
    %240 = vst.msk [vmem:[%s210 + $0x151] sm:$0xff] %vm211, %v174
    %241 = vst.msk [vmem:[%s210 + $0x159] sm:$0xff] %vm211, %v175
    %242 = vst.msk [vmem:[%s210 + $0x169] sm:$0xff] %vm211, %v176
    %243 = vst.msk [vmem:[%s210 + $0x171] sm:$0xff] %vm211, %v177
    %244 = vst.msk [vmem:[%s210 + $0x1b1] sm:$0xff] %vm211, %v178
    %245 = vst.msk [vmem:[%s210 + $0x1b9] sm:$0xff] %vm211, %v179
    %246 = vst.msk [vmem:[%s210 + $0x1c9] sm:$0xff] %vm211, %v180
    %247 = vst.msk [vmem:[%s210 + $0x1d1] sm:$0xff] %vm211, %v181
    %248 = vst.msk [vmem:[%s210 + $0x1e1] sm:$0xff] %vm211, %v182
    %249 = vst.msk [vmem:[%s210 + $0x1e9] sm:$0xff] %vm211, %v183
    %250 = vst.msk [vmem:[%s210 + $0x1f9] sm:$0xff] %vm211, %v184
    %251 = vst.msk [vmem:[%s210 + $0x201] sm:$0xff] %vm211, %v185
    %252 = vst.msk [vmem:[%s210 + $0x211] sm:$0xff] %vm211, %v186
    %253 = vst.msk [vmem:[%s210 + $0x219] sm:$0xff] %vm211, %v187
    %254 = vst.msk [vmem:[%s210 + $0x229] sm:$0xff] %vm211, %v188
    %255 = vst.msk [vmem:[%s210 + $0x231] sm:$0xff] %vm211, %v189
    %256 = vst.msk [vmem:[%s210 + $0x241] sm:$0xff] %vm211, %v190
    %257 = vst.msk [vmem:[%s210 + $0x249] sm:$0xff] %vm211, %v191
    %258 = vst.msk [vmem:[%s210 + $0x259] sm:$0xff] %vm211, %v192
    %259 = vst.msk [vmem:[%s210 + $0x261] sm:$0xff] %vm211, %v193
    %260 = vst.msk [vmem:[%s210 + $0x271] sm:$0xff] %vm211, %v194
    %261 = vst.msk [vmem:[%s210 + $0x279] sm:$0xff] %vm211, %v195
    %262 = vst.msk [vmem:[%s210 + $0x289] sm:$0xff] %vm211, %v196
    %263 = vst.msk [vmem:[%s210 + $0x291] sm:$0xff] %vm211, %v197
    %264 = vst.msk [vmem:[%s210 + $0x2a1] sm:$0xff] %vm211, %v198
    %265 = vst.msk [vmem:[%s210 + $0x2a9] sm:$0xff] %vm211, %v199
    %266 = vst.msk [vmem:[%s210 + $0x2b9] sm:$0xff] %vm211, %v200
    %267 = vst.msk [vmem:[%s210 + $0x2c1] sm:$0xff] %vm211, %v201
    %268 = vst.msk [vmem:[%s210 + $0x2d1] sm:$0xff] %vm211, %v202
    %269 = vst.msk [vmem:[%s210 + $0x2d9] sm:$0xff] %vm211, %v203
    %270 = vst.msk [vmem:[%s210 + $0x2e9] sm:$0xff] %vm211, %v204
    %271 = vst.msk [vmem:[%s210 + $0x2f1] sm:$0xff] %vm211, %v205
    %272 = vst.msk [vmem:[%s210 + $0x301] sm:$0xff] %vm211, %v206
    %273 = vst.msk [vmem:[%s210 + $0x309] sm:$0xff] %vm211, %v207
    %274 = vst.msk [vmem:[%s210 + $0x319] sm:$0xff] %vm211, %v208
    %275 = vst.msk [vmem:[%s210 + $0x321] sm:$0xff] %vm211, %v209
    %v276 = vld [vmem:[#allocation2] sm:$0xff]
    %v277 = vld [vmem:[#allocation2 + $0x8] sm:$0xff]
    %v278 = vld [vmem:[#allocation2 + $0x18] sm:$0xff]
    %v279 = vld [vmem:[#allocation2 + $0x20] sm:$0xff]
    %v280 = vld [vmem:[#allocation2 + $0x30] sm:$0xff]
    %v281 = vld [vmem:[#allocation2 + $0x38] sm:$0xff]
    %v282 = vld [vmem:[#allocation2 + $0x48] sm:$0xff]
    %v283 = vld [vmem:[#allocation2 + $0x50] sm:$0xff]
    %v284 = vld [vmem:[#allocation2 + $0x60] sm:$0xff]
    %v285 = vld [vmem:[#allocation2 + $0x68] sm:$0xff]
    %v286 = vld [vmem:[#allocation2 + $0x78] sm:$0xff]
    %v287 = vld [vmem:[#allocation2 + $0x80] sm:$0xff]
    %v288 = vld [vmem:[#allocation2 + $0x90] sm:$0xff]
    %v289 = vld [vmem:[#allocation2 + $0x98] sm:$0xff]
    %v290 = vld [vmem:[#allocation2 + $0xa8] sm:$0xff]
    %v291 = vld [vmem:[#allocation2 + $0xb0] sm:$0xff]
    %v292 = vld [vmem:[#allocation2 + $0xc0] sm:$0xff]
    %v293 = vld [vmem:[#allocation2 + $0xc8] sm:$0xff]
    %v294 = vld [vmem:[#allocation2 + $0xd8] sm:$0xff]
    %v295 = vld [vmem:[#allocation2 + $0xe0] sm:$0xff]
    %v296 = vld [vmem:[#allocation2 + $0xf0] sm:$0xff]
    %v297 = vld [vmem:[#allocation2 + $0xf8] sm:$0xff]
    %v298 = vld [vmem:[#allocation2 + $0x108] sm:$0xff]
    %v299 = vld [vmem:[#allocation2 + $0x110] sm:$0xff]
    %v300 = vld [vmem:[#allocation2 + $0x120] sm:$0xff]
    %v301 = vld [vmem:[#allocation2 + $0x128] sm:$0xff]
    %v302 = vld [vmem:[#allocation2 + $0x138] sm:$0xff]
    %v303 = vld [vmem:[#allocation2 + $0x140] sm:$0xff]
    %v304 = vld [vmem:[#allocation2 + $0x150] sm:$0xff]
    %v305 = vld [vmem:[#allocation2 + $0x158] sm:$0xff]
    %v306 = vld [vmem:[#allocation2 + $0x168] sm:$0xff]
    %v307 = vld [vmem:[#allocation2 + $0x170] sm:$0xff]
    %v308 = vld [vmem:[#allocation2 + $0x1b0] sm:$0xff]
    %v309 = vld [vmem:[#allocation2 + $0x1b8] sm:$0xff]
    %v310 = vld [vmem:[#allocation2 + $0x1c8] sm:$0xff]
    %v311 = vld [vmem:[#allocation2 + $0x1d0] sm:$0xff]
    %v312 = vld [vmem:[#allocation2 + $0x1e0] sm:$0xff]
    %v313 = vld [vmem:[#allocation2 + $0x1e8] sm:$0xff]
    %v314 = vld [vmem:[#allocation2 + $0x1f8] sm:$0xff]
    %v315 = vld [vmem:[#allocation2 + $0x200] sm:$0xff]
    %v316 = vld [vmem:[#allocation2 + $0x210] sm:$0xff]
    %v317 = vld [vmem:[#allocation2 + $0x218] sm:$0xff]
    %v318 = vld [vmem:[#allocation2 + $0x228] sm:$0xff]
    %v319 = vld [vmem:[#allocation2 + $0x230] sm:$0xff]
    %v320 = vld [vmem:[#allocation2 + $0x240] sm:$0xff]
    %v321 = vld [vmem:[#allocation2 + $0x248] sm:$0xff]
    %v322 = vld [vmem:[#allocation2 + $0x258] sm:$0xff]
    %v323 = vld [vmem:[#allocation2 + $0x260] sm:$0xff]
    %v324 = vld [vmem:[#allocation2 + $0x270] sm:$0xff]
    %v325 = vld [vmem:[#allocation2 + $0x278] sm:$0xff]
    %v326 = vld [vmem:[#allocation2 + $0x288] sm:$0xff]
    %v327 = vld [vmem:[#allocation2 + $0x290] sm:$0xff]
    %v328 = vld [vmem:[#allocation2 + $0x2a0] sm:$0xff]
    %v329 = vld [vmem:[#allocation2 + $0x2a8] sm:$0xff]
    %v330 = vld [vmem:[#allocation2 + $0x2b8] sm:$0xff]
    %v331 = vld [vmem:[#allocation2 + $0x2c0] sm:$0xff]
    %v332 = vld [vmem:[#allocation2 + $0x2d0] sm:$0xff]
    %v333 = vld [vmem:[#allocation2 + $0x2d8] sm:$0xff]
    %v334 = vld [vmem:[#allocation2 + $0x2e8] sm:$0xff]
    %v335 = vld [vmem:[#allocation2 + $0x2f0] sm:$0xff]
    %v336 = vld [vmem:[#allocation2 + $0x300] sm:$0xff]
    %v337 = vld [vmem:[#allocation2 + $0x308] sm:$0xff]
    %v338 = vld [vmem:[#allocation2 + $0x318] sm:$0xff]
    %v339 = vld [vmem:[#allocation2 + $0x320] sm:$0xff]
    %v340 = vld [vmem:[#allocation2 + $0x1] sm:$0xff]
    %v341 = vld [vmem:[#allocation2 + $0x9] sm:$0xff]
    %v342 = vld [vmem:[#allocation2 + $0x19] sm:$0xff]
    %v343 = vld [vmem:[#allocation2 + $0x21] sm:$0xff]
    %v344 = vld [vmem:[#allocation2 + $0x31] sm:$0xff]
    %v345 = vld [vmem:[#allocation2 + $0x39] sm:$0xff]
    %v346 = vld [vmem:[#allocation2 + $0x49] sm:$0xff]
    %v347 = vld [vmem:[#allocation2 + $0x51] sm:$0xff]
    %v348 = vld [vmem:[#allocation2 + $0x61] sm:$0xff]
    %v349 = vld [vmem:[#allocation2 + $0x69] sm:$0xff]
    %v350 = vld [vmem:[#allocation2 + $0x79] sm:$0xff]
    %v351 = vld [vmem:[#allocation2 + $0x81] sm:$0xff]
    %v352 = vld [vmem:[#allocation2 + $0x91] sm:$0xff]
    %v353 = vld [vmem:[#allocation2 + $0x99] sm:$0xff]
    %v354 = vld [vmem:[#allocation2 + $0xa9] sm:$0xff]
    %v355 = vld [vmem:[#allocation2 + $0xb1] sm:$0xff]
    %v356 = vld [vmem:[#allocation2 + $0xc1] sm:$0xff]
    %v357 = vld [vmem:[#allocation2 + $0xc9] sm:$0xff]
    %v358 = vld [vmem:[#allocation2 + $0xd9] sm:$0xff]
    %v359 = vld [vmem:[#allocation2 + $0xe1] sm:$0xff]
    %v360 = vld [vmem:[#allocation2 + $0xf1] sm:$0xff]
    %v361 = vld [vmem:[#allocation2 + $0xf9] sm:$0xff]
    %v362 = vld [vmem:[#allocation2 + $0x109] sm:$0xff]
    %v363 = vld [vmem:[#allocation2 + $0x111] sm:$0xff]
    %v364 = vld [vmem:[#allocation2 + $0x121] sm:$0xff]
    %v365 = vld [vmem:[#allocation2 + $0x129] sm:$0xff]
    %v366 = vld [vmem:[#allocation2 + $0x139] sm:$0xff]
    %v367 = vld [vmem:[#allocation2 + $0x141] sm:$0xff]
    %v368 = vld [vmem:[#allocation2 + $0x151] sm:$0xff]
    %v369 = vld [vmem:[#allocation2 + $0x159] sm:$0xff]
    %v370 = vld [vmem:[#allocation2 + $0x169] sm:$0xff]
    %v371 = vld [vmem:[#allocation2 + $0x171] sm:$0xff]
    %v372 = vld [vmem:[#allocation2 + $0x1b1] sm:$0xff]
    %v373 = vld [vmem:[#allocation2 + $0x1b9] sm:$0xff]
    %v374 = vld [vmem:[#allocation2 + $0x1c9] sm:$0xff]
    %v375 = vld [vmem:[#allocation2 + $0x1d1] sm:$0xff]
    %v376 = vld [vmem:[#allocation2 + $0x1e1] sm:$0xff]
    %v377 = vld [vmem:[#allocation2 + $0x1e9] sm:$0xff]
    %v378 = vld [vmem:[#allocation2 + $0x1f9] sm:$0xff]
    %v379 = vld [vmem:[#allocation2 + $0x201] sm:$0xff]
    %v380 = vld [vmem:[#allocation2 + $0x211] sm:$0xff]
    %v381 = vld [vmem:[#allocation2 + $0x219] sm:$0xff]
    %v382 = vld [vmem:[#allocation2 + $0x229] sm:$0xff]
    %v383 = vld [vmem:[#allocation2 + $0x231] sm:$0xff]
    %v384 = vld [vmem:[#allocation2 + $0x241] sm:$0xff]
    %v385 = vld [vmem:[#allocation2 + $0x249] sm:$0xff]
    %v386 = vld [vmem:[#allocation2 + $0x259] sm:$0xff]
    %v387 = vld [vmem:[#allocation2 + $0x261] sm:$0xff]
    %v388 = vld [vmem:[#allocation2 + $0x271] sm:$0xff]
    %v389 = vld [vmem:[#allocation2 + $0x279] sm:$0xff]
    %v390 = vld [vmem:[#allocation2 + $0x289] sm:$0xff]
    %v391 = vld [vmem:[#allocation2 + $0x291] sm:$0xff]
    %v392 = vld [vmem:[#allocation2 + $0x2a1] sm:$0xff]
    %v393 = vld [vmem:[#allocation2 + $0x2a9] sm:$0xff]
    %v394 = vld [vmem:[#allocation2 + $0x2b9] sm:$0xff]
    %v395 = vld [vmem:[#allocation2 + $0x2c1] sm:$0xff]
    %v396 = vld [vmem:[#allocation2 + $0x2d1] sm:$0xff]
    %v397 = vld [vmem:[#allocation2 + $0x2d9] sm:$0xff]
    %v398 = vld [vmem:[#allocation2 + $0x2e9] sm:$0xff]
    %v399 = vld [vmem:[#allocation2 + $0x2f1] sm:$0xff]
    %v400 = vld [vmem:[#allocation2 + $0x301] sm:$0xff]
    %v401 = vld [vmem:[#allocation2 + $0x309] sm:$0xff]
    %v402 = vld [vmem:[#allocation2 + $0x319] sm:$0xff]
    %v403 = vld [vmem:[#allocation2 + $0x321] sm:$0xff]
    %v404 = vld [vmem:[#allocation2 + $0x2] sm:$0xff]
    %v405 = vld [vmem:[#allocation2 + $0xa] sm:$0xff]
    %v406 = vld [vmem:[#allocation2 + $0x1a] sm:$0xff]
    %v407 = vld [vmem:[#allocation2 + $0x22] sm:$0xff]
    %v408 = vld [vmem:[#allocation2 + $0x32] sm:$0xff]
    %v409 = vld [vmem:[#allocation2 + $0x3a] sm:$0xff]
    %v410 = vld [vmem:[#allocation2 + $0x4a] sm:$0xff]
    %v411 = vld [vmem:[#allocation2 + $0x52] sm:$0xff]
    %v412 = vld [vmem:[#allocation2 + $0x62] sm:$0xff]
    %v413 = vld [vmem:[#allocation2 + $0x6a] sm:$0xff]
    %v414 = vld [vmem:[#allocation2 + $0x7a] sm:$0xff]
    %v415 = vld [vmem:[#allocation2 + $0x82] sm:$0xff]
    %v416 = vld [vmem:[#allocation2 + $0x92] sm:$0xff]
    %v417 = vld [vmem:[#allocation2 + $0x9a] sm:$0xff]
    %v418 = vld [vmem:[#allocation2 + $0xaa] sm:$0xff]
    %v419 = vld [vmem:[#allocation2 + $0xb2] sm:$0xff]
    %v420 = vld [vmem:[#allocation2 + $0xc2] sm:$0xff]
    %v421 = vld [vmem:[#allocation2 + $0xca] sm:$0xff]
    %v422 = vld [vmem:[#allocation2 + $0xda] sm:$0xff]
    %v423 = vld [vmem:[#allocation2 + $0xe2] sm:$0xff]
    %v424 = vld [vmem:[#allocation2 + $0xf2] sm:$0xff]
    %v425 = vld [vmem:[#allocation2 + $0xfa] sm:$0xff]
    %v426 = vld [vmem:[#allocation2 + $0x10a] sm:$0xff]
    %v427 = vld [vmem:[#allocation2 + $0x112] sm:$0xff]
    %v428 = vld [vmem:[#allocation2 + $0x122] sm:$0xff]
    %v429 = vld [vmem:[#allocation2 + $0x12a] sm:$0xff]
    %v430 = vld [vmem:[#allocation2 + $0x13a] sm:$0xff]
    %v431 = vld [vmem:[#allocation2 + $0x142] sm:$0xff]
    %v432 = vld [vmem:[#allocation2 + $0x152] sm:$0xff]
    %v433 = vld [vmem:[#allocation2 + $0x15a] sm:$0xff]
    %v434 = vld [vmem:[#allocation2 + $0x16a] sm:$0xff]
    %v435 = vld [vmem:[#allocation2 + $0x172] sm:$0xff]
    %v436 = vld [vmem:[#allocation2 + $0x1b2] sm:$0xff]
    %v437 = vld [vmem:[#allocation2 + $0x1ba] sm:$0xff]
    %v438 = vld [vmem:[#allocation2 + $0x1ca] sm:$0xff]
    %v439 = vld [vmem:[#allocation2 + $0x1d2] sm:$0xff]
    %v440 = vld [vmem:[#allocation2 + $0x1e2] sm:$0xff]
    %v441 = vld [vmem:[#allocation2 + $0x1ea] sm:$0xff]
    %v442 = vld [vmem:[#allocation2 + $0x1fa] sm:$0xff]
    %v443 = vld [vmem:[#allocation2 + $0x202] sm:$0xff]
    %v444 = vld [vmem:[#allocation2 + $0x212] sm:$0xff]
    %v445 = vld [vmem:[#allocation2 + $0x21a] sm:$0xff]
    %v446 = vld [vmem:[#allocation2 + $0x22a] sm:$0xff]
    %v447 = vld [vmem:[#allocation2 + $0x232] sm:$0xff]
    %v448 = vld [vmem:[#allocation2 + $0x242] sm:$0xff]
    %v449 = vld [vmem:[#allocation2 + $0x24a] sm:$0xff]
    %v450 = vld [vmem:[#allocation2 + $0x25a] sm:$0xff]
    %v451 = vld [vmem:[#allocation2 + $0x262] sm:$0xff]
    %v452 = vld [vmem:[#allocation2 + $0x272] sm:$0xff]
    %v453 = vld [vmem:[#allocation2 + $0x27a] sm:$0xff]
    %v454 = vld [vmem:[#allocation2 + $0x28a] sm:$0xff]
    %v455 = vld [vmem:[#allocation2 + $0x292] sm:$0xff]
    %v456 = vld [vmem:[#allocation2 + $0x2a2] sm:$0xff]
    %v457 = vld [vmem:[#allocation2 + $0x2aa] sm:$0xff]
    %v458 = vld [vmem:[#allocation2 + $0x2ba] sm:$0xff]
    %v459 = vld [vmem:[#allocation2 + $0x2c2] sm:$0xff]
    %v460 = vld [vmem:[#allocation2 + $0x2d2] sm:$0xff]
    %v461 = vld [vmem:[#allocation2 + $0x2da] sm:$0xff]
    %v462 = vld [vmem:[#allocation2 + $0x2ea] sm:$0xff]
    %v463 = vld [vmem:[#allocation2 + $0x2f2] sm:$0xff]
    %v464 = vld [vmem:[#allocation2 + $0x302] sm:$0xff]
    %v465 = vld [vmem:[#allocation2 + $0x30a] sm:$0xff]
    %v466 = vld [vmem:[#allocation2 + $0x31a] sm:$0xff]
    %v467 = vld [vmem:[#allocation2 + $0x322] sm:$0xff]
    %v468 = vld [vmem:[%s210] sm:$0xff]
    %v469 = vld [vmem:[%s210 + $0x8] sm:$0xff]
    %v470 = vld [vmem:[%s210 + $0x18] sm:$0xff]
    %v471 = vld [vmem:[%s210 + $0x20] sm:$0xff]
    %v472 = vld [vmem:[%s210 + $0x30] sm:$0xff]
    %v473 = vld [vmem:[%s210 + $0x38] sm:$0xff]
    %v474 = vld [vmem:[%s210 + $0x48] sm:$0xff]
    %v475 = vld [vmem:[%s210 + $0x50] sm:$0xff]
    %v476 = vld [vmem:[%s210 + $0x60] sm:$0xff]
    %v477 = vld [vmem:[%s210 + $0x68] sm:$0xff]
    %v478 = vld [vmem:[%s210 + $0x78] sm:$0xff]
    %v479 = vld [vmem:[%s210 + $0x80] sm:$0xff]
    %v480 = vld [vmem:[%s210 + $0x90] sm:$0xff]
    %v481 = vld [vmem:[%s210 + $0x98] sm:$0xff]
    %v482 = vld [vmem:[%s210 + $0xa8] sm:$0xff]
    %v483 = vld [vmem:[%s210 + $0xb0] sm:$0xff]
    %v484 = vld [vmem:[%s210 + $0xc0] sm:$0xff]
    %v485 = vld [vmem:[%s210 + $0xc8] sm:$0xff]
    %v486 = vld [vmem:[%s210 + $0xd8] sm:$0xff]
    %v487 = vld [vmem:[%s210 + $0xe0] sm:$0xff]
    %v488 = vld [vmem:[%s210 + $0xf0] sm:$0xff]
    %v489 = vld [vmem:[%s210 + $0xf8] sm:$0xff]
    %v490 = vld [vmem:[%s210 + $0x108] sm:$0xff]
    %v491 = vld [vmem:[%s210 + $0x110] sm:$0xff]
    %v492 = vld [vmem:[%s210 + $0x120] sm:$0xff]
    %v493 = vld [vmem:[%s210 + $0x128] sm:$0xff]
    %v494 = vld [vmem:[%s210 + $0x138] sm:$0xff]
    %v495 = vld [vmem:[%s210 + $0x140] sm:$0xff]
    %v496 = vld [vmem:[%s210 + $0x150] sm:$0xff]
    %v497 = vld [vmem:[%s210 + $0x158] sm:$0xff]
    %v498 = vld [vmem:[%s210 + $0x168] sm:$0xff]
    %v499 = vld [vmem:[%s210 + $0x170] sm:$0xff]
    %v500 = vld [vmem:[%s210 + $0x1b0] sm:$0xff]
    %v501 = vld [vmem:[%s210 + $0x1b8] sm:$0xff]
    %v502 = vld [vmem:[%s210 + $0x1c8] sm:$0xff]
    %v503 = vld [vmem:[%s210 + $0x1d0] sm:$0xff]
    %v504 = vld [vmem:[%s210 + $0x1e0] sm:$0xff]
    %v505 = vld [vmem:[%s210 + $0x1e8] sm:$0xff]
    %v506 = vld [vmem:[%s210 + $0x1f8] sm:$0xff]
    %v507 = vld [vmem:[%s210 + $0x200] sm:$0xff]
    %v508 = vld [vmem:[%s210 + $0x210] sm:$0xff]
    %v509 = vld [vmem:[%s210 + $0x218] sm:$0xff]
    %v510 = vld [vmem:[%s210 + $0x228] sm:$0xff]
    %v511 = vld [vmem:[%s210 + $0x230] sm:$0xff]
    %v512 = vld [vmem:[%s210 + $0x240] sm:$0xff]
    %v513 = vld [vmem:[%s210 + $0x248] sm:$0xff]
    %v514 = vld [vmem:[%s210 + $0x258] sm:$0xff]
    %v515 = vld [vmem:[%s210 + $0x260] sm:$0xff]
    %v516 = vld [vmem:[%s210 + $0x270] sm:$0xff]
    %v517 = vld [vmem:[%s210 + $0x278] sm:$0xff]
    %v518 = vld [vmem:[%s210 + $0x288] sm:$0xff]
    %v519 = vld [vmem:[%s210 + $0x290] sm:$0xff]
    %v520 = vld [vmem:[%s210 + $0x2a0] sm:$0xff]
    %v521 = vld [vmem:[%s210 + $0x2a8] sm:$0xff]
    %v522 = vld [vmem:[%s210 + $0x2b8] sm:$0xff]
    %v523 = vld [vmem:[%s210 + $0x2c0] sm:$0xff]
    %v524 = vld [vmem:[%s210 + $0x2d0] sm:$0xff]
    %v525 = vld [vmem:[%s210 + $0x2d8] sm:$0xff]
    %v526 = vld [vmem:[%s210 + $0x2e8] sm:$0xff]
    %v527 = vld [vmem:[%s210 + $0x2f0] sm:$0xff]
    %v528 = vld [vmem:[%s210 + $0x300] sm:$0xff]
    %v529 = vld [vmem:[%s210 + $0x308] sm:$0xff]
    %v530 = vld [vmem:[%s210 + $0x318] sm:$0xff]
    %v531 = vld [vmem:[%s210 + $0x320] sm:$0xff]
    %v532 = vld [vmem:[%s210 + $0x1] sm:$0xff]
    %v533 = vld [vmem:[%s210 + $0x9] sm:$0xff]
    %v534 = vld [vmem:[%s210 + $0x19] sm:$0xff]
    %v535 = vld [vmem:[%s210 + $0x21] sm:$0xff]
    %v536 = vld [vmem:[%s210 + $0x31] sm:$0xff]
    %v537 = vld [vmem:[%s210 + $0x39] sm:$0xff]
    %v538 = vld [vmem:[%s210 + $0x49] sm:$0xff]
    %v539 = vld [vmem:[%s210 + $0x51] sm:$0xff]
    %v540 = vld [vmem:[%s210 + $0x61] sm:$0xff]
    %v541 = vld [vmem:[%s210 + $0x69] sm:$0xff]
    %v542 = vld [vmem:[%s210 + $0x79] sm:$0xff]
    %v543 = vld [vmem:[%s210 + $0x81] sm:$0xff]
    %v544 = vld [vmem:[%s210 + $0x91] sm:$0xff]
    %v545 = vld [vmem:[%s210 + $0x99] sm:$0xff]
    %v546 = vld [vmem:[%s210 + $0xa9] sm:$0xff]
    %v547 = vld [vmem:[%s210 + $0xb1] sm:$0xff]
    %v548 = vld [vmem:[%s210 + $0xc1] sm:$0xff]
    %v549 = vld [vmem:[%s210 + $0xc9] sm:$0xff]
    %v550 = vld [vmem:[%s210 + $0xd9] sm:$0xff]
    %v551 = vld [vmem:[%s210 + $0xe1] sm:$0xff]
    %v552 = vld [vmem:[%s210 + $0xf1] sm:$0xff]
    %v553 = vld [vmem:[%s210 + $0xf9] sm:$0xff]
    %v554 = vld [vmem:[%s210 + $0x109] sm:$0xff]
    %v555 = vld [vmem:[%s210 + $0x111] sm:$0xff]
    %v556 = vld [vmem:[%s210 + $0x121] sm:$0xff]
    %v557 = vld [vmem:[%s210 + $0x129] sm:$0xff]
    %v558 = vld [vmem:[%s210 + $0x139] sm:$0xff]
    %v559 = vld [vmem:[%s210 + $0x141] sm:$0xff]
    %v560 = vld [vmem:[%s210 + $0x151] sm:$0xff]
    %v561 = vld [vmem:[%s210 + $0x159] sm:$0xff]
    %v562 = vld [vmem:[%s210 + $0x169] sm:$0xff]
    %v563 = vld [vmem:[%s210 + $0x171] sm:$0xff]
    %v564 = vld [vmem:[%s210 + $0x1b1] sm:$0xff]
    %v565 = vld [vmem:[%s210 + $0x1b9] sm:$0xff]
    %v566 = vld [vmem:[%s210 + $0x1c9] sm:$0xff]
    %v567 = vld [vmem:[%s210 + $0x1d1] sm:$0xff]
    %v568 = vld [vmem:[%s210 + $0x1e1] sm:$0xff]
    %v569 = vld [vmem:[%s210 + $0x1e9] sm:$0xff]
    %v570 = vld [vmem:[%s210 + $0x1f9] sm:$0xff]
    %v571 = vld [vmem:[%s210 + $0x201] sm:$0xff]
    %v572 = vld [vmem:[%s210 + $0x211] sm:$0xff]
    %v573 = vld [vmem:[%s210 + $0x219] sm:$0xff]
    %v574 = vld [vmem:[%s210 + $0x229] sm:$0xff]
    %v575 = vld [vmem:[%s210 + $0x231] sm:$0xff]
    %v576 = vld [vmem:[%s210 + $0x241] sm:$0xff]
    %v577 = vld [vmem:[%s210 + $0x249] sm:$0xff]
    %v578 = vld [vmem:[%s210 + $0x259] sm:$0xff]
    %v579 = vld [vmem:[%s210 + $0x261] sm:$0xff]
    %v580 = vld [vmem:[%s210 + $0x271] sm:$0xff]
    %v581 = vld [vmem:[%s210 + $0x279] sm:$0xff]
    %v582 = vld [vmem:[%s210 + $0x289] sm:$0xff]
    %v583 = vld [vmem:[%s210 + $0x291] sm:$0xff]
    %v584 = vld [vmem:[%s210 + $0x2a1] sm:$0xff]
    %v585 = vld [vmem:[%s210 + $0x2a9] sm:$0xff]
    %v586 = vld [vmem:[%s210 + $0x2b9] sm:$0xff]
    %v587 = vld [vmem:[%s210 + $0x2c1] sm:$0xff]
    %v588 = vld [vmem:[%s210 + $0x2d1] sm:$0xff]
    %v589 = vld [vmem:[%s210 + $0x2d9] sm:$0xff]
    %v590 = vld [vmem:[%s210 + $0x2e9] sm:$0xff]
    %v591 = vld [vmem:[%s210 + $0x2f1] sm:$0xff]
    %v592 = vld [vmem:[%s210 + $0x301] sm:$0xff]
    %v593 = vld [vmem:[%s210 + $0x309] sm:$0xff]
    %v594 = vld [vmem:[%s210 + $0x319] sm:$0xff]
    %v595 = vld [vmem:[%s210 + $0x321] sm:$0xff]
    %v596 = vld [vmem:[%s210 + $0x2] sm:$0xff]
    %v597 = vld [vmem:[%s210 + $0xa] sm:$0xff]
    %v598 = vld [vmem:[%s210 + $0x1a] sm:$0xff]
    %v599 = vld [vmem:[%s210 + $0x22] sm:$0xff]
    %v600 = vld [vmem:[%s210 + $0x32] sm:$0xff]
    %v601 = vld [vmem:[%s210 + $0x3a] sm:$0xff]
    %v602 = vld [vmem:[%s210 + $0x4a] sm:$0xff]
    %v603 = vld [vmem:[%s210 + $0x52] sm:$0xff]
    %v604 = vld [vmem:[%s210 + $0x62] sm:$0xff]
    %v605 = vld [vmem:[%s210 + $0x6a] sm:$0xff]
    %v606 = vld [vmem:[%s210 + $0x7a] sm:$0xff]
    %v607 = vld [vmem:[%s210 + $0x82] sm:$0xff]
    %v608 = vld [vmem:[%s210 + $0x92] sm:$0xff]
    %v609 = vld [vmem:[%s210 + $0x9a] sm:$0xff]
    %v610 = vld [vmem:[%s210 + $0xaa] sm:$0xff]
    %v611 = vld [vmem:[%s210 + $0xb2] sm:$0xff]
    %v612 = vld [vmem:[%s210 + $0xc2] sm:$0xff]
    %v613 = vld [vmem:[%s210 + $0xca] sm:$0xff]
    %v614 = vld [vmem:[%s210 + $0xda] sm:$0xff]
    %v615 = vld [vmem:[%s210 + $0xe2] sm:$0xff]
    %v616 = vld [vmem:[%s210 + $0xf2] sm:$0xff]
    %v617 = vld [vmem:[%s210 + $0xfa] sm:$0xff]
    %v618 = vld [vmem:[%s210 + $0x10a] sm:$0xff]
    %v619 = vld [vmem:[%s210 + $0x112] sm:$0xff]
    %v620 = vld [vmem:[%s210 + $0x122] sm:$0xff]
    %v621 = vld [vmem:[%s210 + $0x12a] sm:$0xff]
    %v622 = vld [vmem:[%s210 + $0x13a] sm:$0xff]
    %v623 = vld [vmem:[%s210 + $0x142] sm:$0xff]
    %v624 = vld [vmem:[%s210 + $0x152] sm:$0xff]
    %v625 = vld [vmem:[%s210 + $0x15a] sm:$0xff]
    %v626 = vld [vmem:[%s210 + $0x16a] sm:$0xff]
    %v627 = vld [vmem:[%s210 + $0x172] sm:$0xff]
    %v628 = vld [vmem:[%s210 + $0x1b2] sm:$0xff]
    %v629 = vld [vmem:[%s210 + $0x1ba] sm:$0xff]
    %v630 = vld [vmem:[%s210 + $0x1ca] sm:$0xff]
    %v631 = vld [vmem:[%s210 + $0x1d2] sm:$0xff]
    %v632 = vld [vmem:[%s210 + $0x1e2] sm:$0xff]
    %v633 = vld [vmem:[%s210 + $0x1ea] sm:$0xff]
    %v634 = vld [vmem:[%s210 + $0x1fa] sm:$0xff]
    %v635 = vld [vmem:[%s210 + $0x202] sm:$0xff]
    %v636 = vld [vmem:[%s210 + $0x212] sm:$0xff]
    %v637 = vld [vmem:[%s210 + $0x21a] sm:$0xff]
    %v638 = vld [vmem:[%s210 + $0x22a] sm:$0xff]
    %v639 = vld [vmem:[%s210 + $0x232] sm:$0xff]
    %v640 = vld [vmem:[%s210 + $0x242] sm:$0xff]
    %v641 = vld [vmem:[%s210 + $0x24a] sm:$0xff]
    %v642 = vld [vmem:[%s210 + $0x25a] sm:$0xff]
    %v643 = vld [vmem:[%s210 + $0x262] sm:$0xff]
    %v644 = vld [vmem:[%s210 + $0x272] sm:$0xff]
    %v645 = vld [vmem:[%s210 + $0x27a] sm:$0xff]
    %v646 = vld [vmem:[%s210 + $0x28a] sm:$0xff]
    %v647 = vld [vmem:[%s210 + $0x292] sm:$0xff]
    %v648 = vld [vmem:[%s210 + $0x2a2] sm:$0xff]
    %v649 = vld [vmem:[%s210 + $0x2aa] sm:$0xff]
    %v650 = vld [vmem:[%s210 + $0x2ba] sm:$0xff]
    %v651 = vld [vmem:[%s210 + $0x2c2] sm:$0xff]
    %v652 = vld [vmem:[%s210 + $0x2d2] sm:$0xff]
    %v653 = vld [vmem:[%s210 + $0x2da] sm:$0xff]
    %v654 = vld [vmem:[%s210 + $0x2ea] sm:$0xff]
    %v655 = vld [vmem:[%s210 + $0x2f2] sm:$0xff]
    %v656 = vld [vmem:[%s210 + $0x302] sm:$0xff]
    %v657 = vld [vmem:[%s210 + $0x30a] sm:$0xff]
    %v658 = vld [vmem:[%s210 + $0x31a] sm:$0xff]
    %v659 = vld [vmem:[%s210 + $0x322] sm:$0xff]
    %s660 = scalar_lea.vmem [#allocation2], 48
    %v661 = vld [vmem:[%s660] sm:$0xff]
    %v662 = vld [vmem:[%s660 + $0x8] sm:$0xff]
    %v663 = vld [vmem:[%s660 + $0x18] sm:$0xff]
    %v664 = vld [vmem:[%s660 + $0x20] sm:$0xff]
    %v665 = vld [vmem:[%s660 + $0x30] sm:$0xff]
    %v666 = vld [vmem:[%s660 + $0x38] sm:$0xff]
    %v667 = vld [vmem:[%s660 + $0x48] sm:$0xff]
    %v668 = vld [vmem:[%s660 + $0x50] sm:$0xff]
    %v669 = vld [vmem:[%s660 + $0x60] sm:$0xff]
    %v670 = vld [vmem:[%s660 + $0x68] sm:$0xff]
    %v671 = vld [vmem:[%s660 + $0x78] sm:$0xff]
    %v672 = vld [vmem:[%s660 + $0x80] sm:$0xff]
    %v673 = vld [vmem:[%s660 + $0x90] sm:$0xff]
    %v674 = vld [vmem:[%s660 + $0x98] sm:$0xff]
    %v675 = vld [vmem:[%s660 + $0xa8] sm:$0xff]
    %v676 = vld [vmem:[%s660 + $0xb0] sm:$0xff]
    %v677 = vld [vmem:[%s660 + $0xc0] sm:$0xff]
    %v678 = vld [vmem:[%s660 + $0xc8] sm:$0xff]
    %v679 = vld [vmem:[%s660 + $0xd8] sm:$0xff]
    %v680 = vld [vmem:[%s660 + $0xe0] sm:$0xff]
    %v681 = vld [vmem:[%s660 + $0xf0] sm:$0xff]
    %v682 = vld [vmem:[%s660 + $0xf8] sm:$0xff]
    %v683 = vld [vmem:[%s660 + $0x108] sm:$0xff]
    %v684 = vld [vmem:[%s660 + $0x110] sm:$0xff]
    %v685 = vld [vmem:[%s660 + $0x120] sm:$0xff]
    %v686 = vld [vmem:[%s660 + $0x128] sm:$0xff]
    %v687 = vld [vmem:[%s660 + $0x138] sm:$0xff]
    %v688 = vld [vmem:[%s660 + $0x140] sm:$0xff]
    %v689 = vld [vmem:[%s660 + $0x150] sm:$0xff]
    %v690 = vld [vmem:[%s660 + $0x158] sm:$0xff]
    %v691 = vld [vmem:[%s660 + $0x168] sm:$0xff]
    %v692 = vld [vmem:[%s660 + $0x170] sm:$0xff]
    %v693 = vld [vmem:[%s660 + $0x1b0] sm:$0xff]
    %v694 = vld [vmem:[%s660 + $0x1b8] sm:$0xff]
    %v695 = vld [vmem:[%s660 + $0x1c8] sm:$0xff]
    %v696 = vld [vmem:[%s660 + $0x1d0] sm:$0xff]
    %v697 = vld [vmem:[%s660 + $0x1e0] sm:$0xff]
    %v698 = vld [vmem:[%s660 + $0x1e8] sm:$0xff]
    %v699 = vld [vmem:[%s660 + $0x1f8] sm:$0xff]
    %v700 = vld [vmem:[%s660 + $0x200] sm:$0xff]
    %v701 = vld [vmem:[%s660 + $0x210] sm:$0xff]
    %v702 = vld [vmem:[%s660 + $0x218] sm:$0xff]
    %v703 = vld [vmem:[%s660 + $0x228] sm:$0xff]
    %v704 = vld [vmem:[%s660 + $0x230] sm:$0xff]
    %v705 = vld [vmem:[%s660 + $0x240] sm:$0xff]
    %v706 = vld [vmem:[%s660 + $0x248] sm:$0xff]
    %v707 = vld [vmem:[%s660 + $0x258] sm:$0xff]
    %v708 = vld [vmem:[%s660 + $0x260] sm:$0xff]
    %v709 = vld [vmem:[%s660 + $0x270] sm:$0xff]
    %v710 = vld [vmem:[%s660 + $0x278] sm:$0xff]
    %v711 = vld [vmem:[%s660 + $0x288] sm:$0xff]
    %v712 = vld [vmem:[%s660 + $0x290] sm:$0xff]
    %v713 = vld [vmem:[%s660 + $0x2a0] sm:$0xff]
    %v714 = vld [vmem:[%s660 + $0x2a8] sm:$0xff]
    %v715 = vld [vmem:[%s660 + $0x2b8] sm:$0xff]
    %v716 = vld [vmem:[%s660 + $0x2c0] sm:$0xff]
    %v717 = vld [vmem:[%s660 + $0x2d0] sm:$0xff]
    %v718 = vld [vmem:[%s660 + $0x2d8] sm:$0xff]
    %v719 = vld [vmem:[%s660 + $0x2e8] sm:$0xff]
    %v720 = vld [vmem:[%s660 + $0x2f0] sm:$0xff]
    %v721 = vld [vmem:[%s660 + $0x300] sm:$0xff]
    %v722 = vld [vmem:[%s660 + $0x308] sm:$0xff]
    %v723 = vld [vmem:[%s660 + $0x318] sm:$0xff]
    %v724 = vld [vmem:[%s660 + $0x320] sm:$0xff]
    %v725 = vld [vmem:[%s660 + $0x1] sm:$0xff]
    %v726 = vld [vmem:[%s660 + $0x9] sm:$0xff]
    %v727 = vld [vmem:[%s660 + $0x19] sm:$0xff]
    %v728 = vld [vmem:[%s660 + $0x21] sm:$0xff]
    %v729 = vld [vmem:[%s660 + $0x31] sm:$0xff]
    %v730 = vld [vmem:[%s660 + $0x39] sm:$0xff]
    %v731 = vld [vmem:[%s660 + $0x49] sm:$0xff]
    %v732 = vld [vmem:[%s660 + $0x51] sm:$0xff]
    %v733 = vld [vmem:[%s660 + $0x61] sm:$0xff]
    %v734 = vld [vmem:[%s660 + $0x69] sm:$0xff]
    %v735 = vld [vmem:[%s660 + $0x79] sm:$0xff]
    %v736 = vld [vmem:[%s660 + $0x81] sm:$0xff]
    %v737 = vld [vmem:[%s660 + $0x91] sm:$0xff]
    %v738 = vld [vmem:[%s660 + $0x99] sm:$0xff]
    %v739 = vld [vmem:[%s660 + $0xa9] sm:$0xff]
    %v740 = vld [vmem:[%s660 + $0xb1] sm:$0xff]
    %v741 = vld [vmem:[%s660 + $0xc1] sm:$0xff]
    %v742 = vld [vmem:[%s660 + $0xc9] sm:$0xff]
    %v743 = vld [vmem:[%s660 + $0xd9] sm:$0xff]
    %v744 = vld [vmem:[%s660 + $0xe1] sm:$0xff]
    %v745 = vld [vmem:[%s660 + $0xf1] sm:$0xff]
    %v746 = vld [vmem:[%s660 + $0xf9] sm:$0xff]
    %v747 = vld [vmem:[%s660 + $0x109] sm:$0xff]
    %v748 = vld [vmem:[%s660 + $0x111] sm:$0xff]
    %v749 = vld [vmem:[%s660 + $0x121] sm:$0xff]
    %v750 = vld [vmem:[%s660 + $0x129] sm:$0xff]
    %v751 = vld [vmem:[%s660 + $0x139] sm:$0xff]
    %v752 = vld [vmem:[%s660 + $0x141] sm:$0xff]
    %v753 = vld [vmem:[%s660 + $0x151] sm:$0xff]
    %v754 = vld [vmem:[%s660 + $0x159] sm:$0xff]
    %v755 = vld [vmem:[%s660 + $0x169] sm:$0xff]
    %v756 = vld [vmem:[%s660 + $0x171] sm:$0xff]
    %v757 = vld [vmem:[%s660 + $0x1b1] sm:$0xff]
    %v758 = vld [vmem:[%s660 + $0x1b9] sm:$0xff]
    %v759 = vld [vmem:[%s660 + $0x1c9] sm:$0xff]
    %v760 = vld [vmem:[%s660 + $0x1d1] sm:$0xff]
    %v761 = vld [vmem:[%s660 + $0x1e1] sm:$0xff]
    %v762 = vld [vmem:[%s660 + $0x1e9] sm:$0xff]
    %v763 = vld [vmem:[%s660 + $0x1f9] sm:$0xff]
    %v764 = vld [vmem:[%s660 + $0x201] sm:$0xff]
    %v765 = vld [vmem:[%s660 + $0x211] sm:$0xff]
    %v766 = vld [vmem:[%s660 + $0x219] sm:$0xff]
    %v767 = vld [vmem:[%s660 + $0x229] sm:$0xff]
    %v768 = vld [vmem:[%s660 + $0x231] sm:$0xff]
    %v769 = vld [vmem:[%s660 + $0x241] sm:$0xff]
    %v770 = vld [vmem:[%s660 + $0x249] sm:$0xff]
    %v771 = vld [vmem:[%s660 + $0x259] sm:$0xff]
    %v772 = vld [vmem:[%s660 + $0x261] sm:$0xff]
    %v773 = vld [vmem:[%s660 + $0x271] sm:$0xff]
    %v774 = vld [vmem:[%s660 + $0x279] sm:$0xff]
    %v775 = vld [vmem:[%s660 + $0x289] sm:$0xff]
    %v776 = vld [vmem:[%s660 + $0x291] sm:$0xff]
    %v777 = vld [vmem:[%s660 + $0x2a1] sm:$0xff]
    %v778 = vld [vmem:[%s660 + $0x2a9] sm:$0xff]
    %v779 = vld [vmem:[%s660 + $0x2b9] sm:$0xff]
    %v780 = vld [vmem:[%s660 + $0x2c1] sm:$0xff]
    %v781 = vld [vmem:[%s660 + $0x2d1] sm:$0xff]
    %v782 = vld [vmem:[%s660 + $0x2d9] sm:$0xff]
    %v783 = vld [vmem:[%s660 + $0x2e9] sm:$0xff]
    %v784 = vld [vmem:[%s660 + $0x2f1] sm:$0xff]
    %v785 = vld [vmem:[%s660 + $0x301] sm:$0xff]
    %v786 = vld [vmem:[%s660 + $0x309] sm:$0xff]
    %v787 = vld [vmem:[%s660 + $0x319] sm:$0xff]
    %v788 = vld [vmem:[%s660 + $0x321] sm:$0xff]
    %v789 = vld [vmem:[%s660 + $0x2] sm:$0xff]
    %v790 = vld [vmem:[%s660 + $0xa] sm:$0xff]
    %v791 = vld [vmem:[%s660 + $0x1a] sm:$0xff]
    %v792 = vld [vmem:[%s660 + $0x22] sm:$0xff]
    %v793 = vld [vmem:[%s660 + $0x32] sm:$0xff]
    %v794 = vld [vmem:[%s660 + $0x3a] sm:$0xff]
    %v795 = vld [vmem:[%s660 + $0x4a] sm:$0xff]
    %v796 = vld [vmem:[%s660 + $0x52] sm:$0xff]
    %v797 = vld [vmem:[%s660 + $0x62] sm:$0xff]
    %v798 = vld [vmem:[%s660 + $0x6a] sm:$0xff]
    %v799 = vld [vmem:[%s660 + $0x7a] sm:$0xff]
    %v800 = vld [vmem:[%s660 + $0x82] sm:$0xff]
    %v801 = vld [vmem:[%s660 + $0x92] sm:$0xff]
    %v802 = vld [vmem:[%s660 + $0x9a] sm:$0xff]
    %v803 = vld [vmem:[%s660 + $0xaa] sm:$0xff]
    %v804 = vld [vmem:[%s660 + $0xb2] sm:$0xff]
    %v805 = vld [vmem:[%s660 + $0xc2] sm:$0xff]
    %v806 = vld [vmem:[%s660 + $0xca] sm:$0xff]
    %v807 = vld [vmem:[%s660 + $0xda] sm:$0xff]
    %v808 = vld [vmem:[%s660 + $0xe2] sm:$0xff]
    %v809 = vld [vmem:[%s660 + $0xf2] sm:$0xff]
    %v810 = vld [vmem:[%s660 + $0xfa] sm:$0xff]
    %v811 = vld [vmem:[%s660 + $0x10a] sm:$0xff]
    %v812 = vld [vmem:[%s660 + $0x112] sm:$0xff]
    %v813 = vld [vmem:[%s660 + $0x122] sm:$0xff]
    %v814 = vld [vmem:[%s660 + $0x12a] sm:$0xff]
    %v815 = vld [vmem:[%s660 + $0x13a] sm:$0xff]
    %v816 = vld [vmem:[%s660 + $0x142] sm:$0xff]
    %v817 = vld [vmem:[%s660 + $0x152] sm:$0xff]
    %v818 = vld [vmem:[%s660 + $0x15a] sm:$0xff]
    %v819 = vld [vmem:[%s660 + $0x16a] sm:$0xff]
    %v820 = vld [vmem:[%s660 + $0x172] sm:$0xff]
    %v821 = vld [vmem:[%s660 + $0x1b2] sm:$0xff]
    %v822 = vld [vmem:[%s660 + $0x1ba] sm:$0xff]
    %v823 = vld [vmem:[%s660 + $0x1ca] sm:$0xff]
    %v824 = vld [vmem:[%s660 + $0x1d2] sm:$0xff]
    %v825 = vld [vmem:[%s660 + $0x1e2] sm:$0xff]
    %v826 = vld [vmem:[%s660 + $0x1ea] sm:$0xff]
    %v827 = vld [vmem:[%s660 + $0x1fa] sm:$0xff]
    %v828 = vld [vmem:[%s660 + $0x202] sm:$0xff]
    %v829 = vld [vmem:[%s660 + $0x212] sm:$0xff]
    %v830 = vld [vmem:[%s660 + $0x21a] sm:$0xff]
    %v831 = vld [vmem:[%s660 + $0x22a] sm:$0xff]
    %v832 = vld [vmem:[%s660 + $0x232] sm:$0xff]
    %v833 = vld [vmem:[%s660 + $0x242] sm:$0xff]
    %v834 = vld [vmem:[%s660 + $0x24a] sm:$0xff]
    %v835 = vld [vmem:[%s660 + $0x25a] sm:$0xff]
    %v836 = vld [vmem:[%s660 + $0x262] sm:$0xff]
    %v837 = vld [vmem:[%s660 + $0x272] sm:$0xff]
    %v838 = vld [vmem:[%s660 + $0x27a] sm:$0xff]
    %v839 = vld [vmem:[%s660 + $0x28a] sm:$0xff]
    %v840 = vld [vmem:[%s660 + $0x292] sm:$0xff]
    %v841 = vld [vmem:[%s660 + $0x2a2] sm:$0xff]
    %v842 = vld [vmem:[%s660 + $0x2aa] sm:$0xff]
    %v843 = vld [vmem:[%s660 + $0x2ba] sm:$0xff]
    %v844 = vld [vmem:[%s660 + $0x2c2] sm:$0xff]
    %v845 = vld [vmem:[%s660 + $0x2d2] sm:$0xff]
    %v846 = vld [vmem:[%s660 + $0x2da] sm:$0xff]
    %v847 = vld [vmem:[%s660 + $0x2ea] sm:$0xff]
    %v848 = vld [vmem:[%s660 + $0x2f2] sm:$0xff]
    %v849 = vld [vmem:[%s660 + $0x302] sm:$0xff]
    %v850 = vld [vmem:[%s660 + $0x30a] sm:$0xff]
    %v851 = vld [vmem:[%s660 + $0x31a] sm:$0xff]
    %v852 = vld [vmem:[%s660 + $0x322] sm:$0xff]
    %917 = vrot.lane.b32.xlu0 %v340, 4
    %v918 = vpop.permute.xlu0 %917
    %919 = vrot.lane.b32.xlu0 %v341, 4
    %v920 = vpop.permute.xlu0 %919
    %921 = vrot.lane.b32.xlu0 %v342, 4
    %v922 = vpop.permute.xlu0 %921
    %923 = vrot.lane.b32.xlu0 %v343, 4
    %v924 = vpop.permute.xlu0 %923
    %925 = vrot.lane.b32.xlu0 %v344, 4
    %v926 = vpop.permute.xlu0 %925
    %927 = vrot.lane.b32.xlu0 %v345, 4
    %v928 = vpop.permute.xlu0 %927
    %929 = vrot.lane.b32.xlu0 %v346, 4
    %v930 = vpop.permute.xlu0 %929
    %931 = vrot.lane.b32.xlu0 %v347, 4
    %v932 = vpop.permute.xlu0 %931
    %933 = vrot.lane.b32.xlu0 %v348, 4
    %v934 = vpop.permute.xlu0 %933
    %935 = vrot.lane.b32.xlu0 %v349, 4
    %v936 = vpop.permute.xlu0 %935
    %937 = vrot.lane.b32.xlu0 %v350, 4
    %v938 = vpop.permute.xlu0 %937
    %939 = vrot.lane.b32.xlu0 %v351, 4
    %v940 = vpop.permute.xlu0 %939
    %941 = vrot.lane.b32.xlu0 %v352, 4
    %v942 = vpop.permute.xlu0 %941
    %943 = vrot.lane.b32.xlu0 %v353, 4
    %v944 = vpop.permute.xlu0 %943
    %945 = vrot.lane.b32.xlu0 %v354, 4
    %v946 = vpop.permute.xlu0 %945
    %947 = vrot.lane.b32.xlu0 %v355, 4
    %v948 = vpop.permute.xlu0 %947
    %949 = vrot.lane.b32.xlu0 %v356, 4
    %v950 = vpop.permute.xlu0 %949
    %951 = vrot.lane.b32.xlu0 %v357, 4
    %v952 = vpop.permute.xlu0 %951
    %953 = vrot.lane.b32.xlu0 %v358, 4
    %v954 = vpop.permute.xlu0 %953
    %955 = vrot.lane.b32.xlu0 %v359, 4
    %v956 = vpop.permute.xlu0 %955
    %957 = vrot.lane.b32.xlu0 %v360, 4
    %v958 = vpop.permute.xlu0 %957
    %959 = vrot.lane.b32.xlu0 %v361, 4
    %v960 = vpop.permute.xlu0 %959
    %961 = vrot.lane.b32.xlu0 %v362, 4
    %v962 = vpop.permute.xlu0 %961
    %963 = vrot.lane.b32.xlu0 %v363, 4
    %v964 = vpop.permute.xlu0 %963
    %965 = vrot.lane.b32.xlu0 %v364, 4
    %v966 = vpop.permute.xlu0 %965
    %967 = vrot.lane.b32.xlu0 %v365, 4
    %v968 = vpop.permute.xlu0 %967
    %969 = vrot.lane.b32.xlu0 %v366, 4
    %v970 = vpop.permute.xlu0 %969
    %971 = vrot.lane.b32.xlu0 %v367, 4
    %v972 = vpop.permute.xlu0 %971
    %973 = vrot.lane.b32.xlu0 %v368, 4
    %v974 = vpop.permute.xlu0 %973
    %975 = vrot.lane.b32.xlu0 %v369, 4
    %v976 = vpop.permute.xlu0 %975
    %977 = vrot.lane.b32.xlu0 %v370, 4
    %v978 = vpop.permute.xlu0 %977
    %979 = vrot.lane.b32.xlu0 %v371, 4
    %v980 = vpop.permute.xlu0 %979
    %981 = vrot.lane.b32.xlu0 %v372, 4
    %v982 = vpop.permute.xlu0 %981
    %983 = vrot.lane.b32.xlu0 %v373, 4
    %v984 = vpop.permute.xlu0 %983
    %985 = vrot.lane.b32.xlu0 %v374, 4
    %v986 = vpop.permute.xlu0 %985
    %987 = vrot.lane.b32.xlu0 %v375, 4
    %v988 = vpop.permute.xlu0 %987
    %989 = vrot.lane.b32.xlu0 %v376, 4
    %v990 = vpop.permute.xlu0 %989
    %991 = vrot.lane.b32.xlu0 %v377, 4
    %v992 = vpop.permute.xlu0 %991
    %993 = vrot.lane.b32.xlu0 %v378, 4
    %v994 = vpop.permute.xlu0 %993
    %995 = vrot.lane.b32.xlu0 %v379, 4
    %v996 = vpop.permute.xlu0 %995
    %997 = vrot.lane.b32.xlu0 %v380, 4
    %v998 = vpop.permute.xlu0 %997
    %999 = vrot.lane.b32.xlu0 %v381, 4
    %v1000 = vpop.permute.xlu0 %999
    %1001 = vrot.lane.b32.xlu0 %v382, 4
    %v1002 = vpop.permute.xlu0 %1001
    %1003 = vrot.lane.b32.xlu0 %v383, 4
    %v1004 = vpop.permute.xlu0 %1003
    %1005 = vrot.lane.b32.xlu0 %v384, 4
    %v1006 = vpop.permute.xlu0 %1005
    %1007 = vrot.lane.b32.xlu0 %v385, 4
    %v1008 = vpop.permute.xlu0 %1007
    %1009 = vrot.lane.b32.xlu0 %v386, 4
    %v1010 = vpop.permute.xlu0 %1009
    %1011 = vrot.lane.b32.xlu0 %v387, 4
    %v1012 = vpop.permute.xlu0 %1011
    %1013 = vrot.lane.b32.xlu0 %v388, 4
    %v1014 = vpop.permute.xlu0 %1013
    %1015 = vrot.lane.b32.xlu0 %v389, 4
    %v1016 = vpop.permute.xlu0 %1015
    %1017 = vrot.lane.b32.xlu0 %v390, 4
    %v1018 = vpop.permute.xlu0 %1017
    %1019 = vrot.lane.b32.xlu0 %v391, 4
    %v1020 = vpop.permute.xlu0 %1019
    %1021 = vrot.lane.b32.xlu0 %v392, 4
    %v1022 = vpop.permute.xlu0 %1021
    %1023 = vrot.lane.b32.xlu0 %v393, 4
    %v1024 = vpop.permute.xlu0 %1023
    %1025 = vrot.lane.b32.xlu0 %v394, 4
    %v1026 = vpop.permute.xlu0 %1025
    %1027 = vrot.lane.b32.xlu0 %v395, 4
    %v1028 = vpop.permute.xlu0 %1027
    %1029 = vrot.lane.b32.xlu0 %v396, 4
    %v1030 = vpop.permute.xlu0 %1029
    %1031 = vrot.lane.b32.xlu0 %v397, 4
    %v1032 = vpop.permute.xlu0 %1031
    %1033 = vrot.lane.b32.xlu0 %v398, 4
    %v1034 = vpop.permute.xlu0 %1033
    %1035 = vrot.lane.b32.xlu0 %v399, 4
    %v1036 = vpop.permute.xlu0 %1035
    %1037 = vrot.lane.b32.xlu0 %v400, 4
    %v1038 = vpop.permute.xlu0 %1037
    %1039 = vrot.lane.b32.xlu0 %v401, 4
    %v1040 = vpop.permute.xlu0 %1039
    %1041 = vrot.lane.b32.xlu0 %v402, 4
    %v1042 = vpop.permute.xlu0 %1041
    %1043 = vrot.lane.b32.xlu0 %v403, 4
    %v1044 = vpop.permute.xlu0 %1043
    %1173 = vrot.lane.b32.xlu0 %v404, 8
    %v1174 = vpop.permute.xlu0 %1173
    %1175 = vrot.lane.b32.xlu0 %v405, 8
    %v1176 = vpop.permute.xlu0 %1175
    %1177 = vrot.lane.b32.xlu0 %v406, 8
    %v1178 = vpop.permute.xlu0 %1177
    %1179 = vrot.lane.b32.xlu0 %v407, 8
    %v1180 = vpop.permute.xlu0 %1179
    %1181 = vrot.lane.b32.xlu0 %v408, 8
    %v1182 = vpop.permute.xlu0 %1181
    %1183 = vrot.lane.b32.xlu0 %v409, 8
    %v1184 = vpop.permute.xlu0 %1183
    %1185 = vrot.lane.b32.xlu0 %v410, 8
    %v1186 = vpop.permute.xlu0 %1185
    %1187 = vrot.lane.b32.xlu0 %v411, 8
    %v1188 = vpop.permute.xlu0 %1187
    %1189 = vrot.lane.b32.xlu0 %v412, 8
    %v1190 = vpop.permute.xlu0 %1189
    %1191 = vrot.lane.b32.xlu0 %v413, 8
    %v1192 = vpop.permute.xlu0 %1191
    %1193 = vrot.lane.b32.xlu0 %v414, 8
    %v1194 = vpop.permute.xlu0 %1193
    %1195 = vrot.lane.b32.xlu0 %v415, 8
    %v1196 = vpop.permute.xlu0 %1195
    %1197 = vrot.lane.b32.xlu0 %v416, 8
    %v1198 = vpop.permute.xlu0 %1197
    %1199 = vrot.lane.b32.xlu0 %v417, 8
    %v1200 = vpop.permute.xlu0 %1199
    %1201 = vrot.lane.b32.xlu0 %v418, 8
    %v1202 = vpop.permute.xlu0 %1201
    %1203 = vrot.lane.b32.xlu0 %v419, 8
    %v1204 = vpop.permute.xlu0 %1203
    %1205 = vrot.lane.b32.xlu0 %v420, 8
    %v1206 = vpop.permute.xlu0 %1205
    %1207 = vrot.lane.b32.xlu0 %v421, 8
    %v1208 = vpop.permute.xlu0 %1207
    %1209 = vrot.lane.b32.xlu0 %v422, 8
    %v1210 = vpop.permute.xlu0 %1209
    %1211 = vrot.lane.b32.xlu0 %v423, 8
    %v1212 = vpop.permute.xlu0 %1211
    %1213 = vrot.lane.b32.xlu0 %v424, 8
    %v1214 = vpop.permute.xlu0 %1213
    %1215 = vrot.lane.b32.xlu0 %v425, 8
    %v1216 = vpop.permute.xlu0 %1215
    %1217 = vrot.lane.b32.xlu0 %v426, 8
    %v1218 = vpop.permute.xlu0 %1217
    %1219 = vrot.lane.b32.xlu0 %v427, 8
    %v1220 = vpop.permute.xlu0 %1219
    %1221 = vrot.lane.b32.xlu0 %v428, 8
    %v1222 = vpop.permute.xlu0 %1221
    %1223 = vrot.lane.b32.xlu0 %v429, 8
    %v1224 = vpop.permute.xlu0 %1223
    %1225 = vrot.lane.b32.xlu0 %v430, 8
    %v1226 = vpop.permute.xlu0 %1225
    %1227 = vrot.lane.b32.xlu0 %v431, 8
    %v1228 = vpop.permute.xlu0 %1227
    %1229 = vrot.lane.b32.xlu0 %v432, 8
    %v1230 = vpop.permute.xlu0 %1229
    %1231 = vrot.lane.b32.xlu0 %v433, 8
    %v1232 = vpop.permute.xlu0 %1231
    %1233 = vrot.lane.b32.xlu0 %v434, 8
    %v1234 = vpop.permute.xlu0 %1233
    %1235 = vrot.lane.b32.xlu0 %v435, 8
    %v1236 = vpop.permute.xlu0 %1235
    %1237 = vrot.lane.b32.xlu0 %v436, 8
    %v1238 = vpop.permute.xlu0 %1237
    %1239 = vrot.lane.b32.xlu0 %v437, 8
    %v1240 = vpop.permute.xlu0 %1239
    %1241 = vrot.lane.b32.xlu0 %v438, 8
    %v1242 = vpop.permute.xlu0 %1241
    %1243 = vrot.lane.b32.xlu0 %v439, 8
    %v1244 = vpop.permute.xlu0 %1243
    %1245 = vrot.lane.b32.xlu0 %v440, 8
    %v1246 = vpop.permute.xlu0 %1245
    %1247 = vrot.lane.b32.xlu0 %v441, 8
    %v1248 = vpop.permute.xlu0 %1247
    %1249 = vrot.lane.b32.xlu0 %v442, 8
    %v1250 = vpop.permute.xlu0 %1249
    %1251 = vrot.lane.b32.xlu0 %v443, 8
    %v1252 = vpop.permute.xlu0 %1251
    %1253 = vrot.lane.b32.xlu0 %v444, 8
    %v1254 = vpop.permute.xlu0 %1253
    %1255 = vrot.lane.b32.xlu0 %v445, 8
    %v1256 = vpop.permute.xlu0 %1255
    %1257 = vrot.lane.b32.xlu0 %v446, 8
    %v1258 = vpop.permute.xlu0 %1257
    %1259 = vrot.lane.b32.xlu0 %v447, 8
    %v1260 = vpop.permute.xlu0 %1259
    %1261 = vrot.lane.b32.xlu0 %v448, 8
    %v1262 = vpop.permute.xlu0 %1261
    %1263 = vrot.lane.b32.xlu0 %v449, 8
    %v1264 = vpop.permute.xlu0 %1263
    %1265 = vrot.lane.b32.xlu0 %v450, 8
    %v1266 = vpop.permute.xlu0 %1265
    %1267 = vrot.lane.b32.xlu0 %v451, 8
    %v1268 = vpop.permute.xlu0 %1267
    %1269 = vrot.lane.b32.xlu0 %v452, 8
    %v1270 = vpop.permute.xlu0 %1269
    %1271 = vrot.lane.b32.xlu0 %v453, 8
    %v1272 = vpop.permute.xlu0 %1271
    %1273 = vrot.lane.b32.xlu0 %v454, 8
    %v1274 = vpop.permute.xlu0 %1273
    %1275 = vrot.lane.b32.xlu0 %v455, 8
    %v1276 = vpop.permute.xlu0 %1275
    %1277 = vrot.lane.b32.xlu0 %v456, 8
    %v1278 = vpop.permute.xlu0 %1277
    %1279 = vrot.lane.b32.xlu0 %v457, 8
    %v1280 = vpop.permute.xlu0 %1279
    %1281 = vrot.lane.b32.xlu0 %v458, 8
    %v1282 = vpop.permute.xlu0 %1281
    %1283 = vrot.lane.b32.xlu0 %v459, 8
    %v1284 = vpop.permute.xlu0 %1283
    %1285 = vrot.lane.b32.xlu0 %v460, 8
    %v1286 = vpop.permute.xlu0 %1285
    %1287 = vrot.lane.b32.xlu0 %v461, 8
    %v1288 = vpop.permute.xlu0 %1287
    %1289 = vrot.lane.b32.xlu0 %v462, 8
    %v1290 = vpop.permute.xlu0 %1289
    %1291 = vrot.lane.b32.xlu0 %v463, 8
    %v1292 = vpop.permute.xlu0 %1291
    %1293 = vrot.lane.b32.xlu0 %v464, 8
    %v1294 = vpop.permute.xlu0 %1293
    %1295 = vrot.lane.b32.xlu0 %v465, 8
    %v1296 = vpop.permute.xlu0 %1295
    %1297 = vrot.lane.b32.xlu0 %v466, 8
    %v1298 = vpop.permute.xlu0 %1297
    %1299 = vrot.lane.b32.xlu0 %v467, 8
    %v1300 = vpop.permute.xlu0 %1299
    %1429 = vrot.lane.b32.xlu0 %v468, 12
    %v1430 = vpop.permute.xlu0 %1429
    %1431 = vrot.lane.b32.xlu0 %v469, 12
    %v1432 = vpop.permute.xlu0 %1431
    %1433 = vrot.lane.b32.xlu0 %v470, 12
    %v1434 = vpop.permute.xlu0 %1433
    %1435 = vrot.lane.b32.xlu0 %v471, 12
    %v1436 = vpop.permute.xlu0 %1435
    %1437 = vrot.lane.b32.xlu0 %v472, 12
    %v1438 = vpop.permute.xlu0 %1437
    %1439 = vrot.lane.b32.xlu0 %v473, 12
    %v1440 = vpop.permute.xlu0 %1439
    %1441 = vrot.lane.b32.xlu0 %v474, 12
    %v1442 = vpop.permute.xlu0 %1441
    %1443 = vrot.lane.b32.xlu0 %v475, 12
    %v1444 = vpop.permute.xlu0 %1443
    %1445 = vrot.lane.b32.xlu0 %v476, 12
    %v1446 = vpop.permute.xlu0 %1445
    %1447 = vrot.lane.b32.xlu0 %v477, 12
    %v1448 = vpop.permute.xlu0 %1447
    %1449 = vrot.lane.b32.xlu0 %v478, 12
    %v1450 = vpop.permute.xlu0 %1449
    %1451 = vrot.lane.b32.xlu0 %v479, 12
    %v1452 = vpop.permute.xlu0 %1451
    %1453 = vrot.lane.b32.xlu0 %v480, 12
    %v1454 = vpop.permute.xlu0 %1453
    %1455 = vrot.lane.b32.xlu0 %v481, 12
    %v1456 = vpop.permute.xlu0 %1455
    %1457 = vrot.lane.b32.xlu0 %v482, 12
    %v1458 = vpop.permute.xlu0 %1457
    %1459 = vrot.lane.b32.xlu0 %v483, 12
    %v1460 = vpop.permute.xlu0 %1459
    %1461 = vrot.lane.b32.xlu0 %v484, 12
    %v1462 = vpop.permute.xlu0 %1461
    %1463 = vrot.lane.b32.xlu0 %v485, 12
    %v1464 = vpop.permute.xlu0 %1463
    %1465 = vrot.lane.b32.xlu0 %v486, 12
    %v1466 = vpop.permute.xlu0 %1465
    %1467 = vrot.lane.b32.xlu0 %v487, 12
    %v1468 = vpop.permute.xlu0 %1467
    %1469 = vrot.lane.b32.xlu0 %v488, 12
    %v1470 = vpop.permute.xlu0 %1469
    %1471 = vrot.lane.b32.xlu0 %v489, 12
    %v1472 = vpop.permute.xlu0 %1471
    %1473 = vrot.lane.b32.xlu0 %v490, 12
    %v1474 = vpop.permute.xlu0 %1473
    %1475 = vrot.lane.b32.xlu0 %v491, 12
    %v1476 = vpop.permute.xlu0 %1475
    %1477 = vrot.lane.b32.xlu0 %v492, 12
    %v1478 = vpop.permute.xlu0 %1477
    %1479 = vrot.lane.b32.xlu0 %v493, 12
    %v1480 = vpop.permute.xlu0 %1479
    %1481 = vrot.lane.b32.xlu0 %v494, 12
    %v1482 = vpop.permute.xlu0 %1481
    %1483 = vrot.lane.b32.xlu0 %v495, 12
    %v1484 = vpop.permute.xlu0 %1483
    %1485 = vrot.lane.b32.xlu0 %v496, 12
    %v1486 = vpop.permute.xlu0 %1485
    %1487 = vrot.lane.b32.xlu0 %v497, 12
    %v1488 = vpop.permute.xlu0 %1487
    %1489 = vrot.lane.b32.xlu0 %v498, 12
    %v1490 = vpop.permute.xlu0 %1489
    %1491 = vrot.lane.b32.xlu0 %v499, 12
    %v1492 = vpop.permute.xlu0 %1491
    %1493 = vrot.lane.b32.xlu0 %v500, 12
    %v1494 = vpop.permute.xlu0 %1493
    %1495 = vrot.lane.b32.xlu0 %v501, 12
    %v1496 = vpop.permute.xlu0 %1495
    %1497 = vrot.lane.b32.xlu0 %v502, 12
    %v1498 = vpop.permute.xlu0 %1497
    %1499 = vrot.lane.b32.xlu0 %v503, 12
    %v1500 = vpop.permute.xlu0 %1499
    %1501 = vrot.lane.b32.xlu0 %v504, 12
    %v1502 = vpop.permute.xlu0 %1501
    %1503 = vrot.lane.b32.xlu0 %v505, 12
    %v1504 = vpop.permute.xlu0 %1503
    %1505 = vrot.lane.b32.xlu0 %v506, 12
    %v1506 = vpop.permute.xlu0 %1505
    %1507 = vrot.lane.b32.xlu0 %v507, 12
    %v1508 = vpop.permute.xlu0 %1507
    %1509 = vrot.lane.b32.xlu0 %v508, 12
    %v1510 = vpop.permute.xlu0 %1509
    %1511 = vrot.lane.b32.xlu0 %v509, 12
    %v1512 = vpop.permute.xlu0 %1511
    %1513 = vrot.lane.b32.xlu0 %v510, 12
    %v1514 = vpop.permute.xlu0 %1513
    %1515 = vrot.lane.b32.xlu0 %v511, 12
    %v1516 = vpop.permute.xlu0 %1515
    %1517 = vrot.lane.b32.xlu0 %v512, 12
    %v1518 = vpop.permute.xlu0 %1517
    %1519 = vrot.lane.b32.xlu0 %v513, 12
    %v1520 = vpop.permute.xlu0 %1519
    %1521 = vrot.lane.b32.xlu0 %v514, 12
    %v1522 = vpop.permute.xlu0 %1521
    %1523 = vrot.lane.b32.xlu0 %v515, 12
    %v1524 = vpop.permute.xlu0 %1523
    %1525 = vrot.lane.b32.xlu0 %v516, 12
    %v1526 = vpop.permute.xlu0 %1525
    %1527 = vrot.lane.b32.xlu0 %v517, 12
    %v1528 = vpop.permute.xlu0 %1527
    %1529 = vrot.lane.b32.xlu0 %v518, 12
    %v1530 = vpop.permute.xlu0 %1529
    %1531 = vrot.lane.b32.xlu0 %v519, 12
    %v1532 = vpop.permute.xlu0 %1531
    %1533 = vrot.lane.b32.xlu0 %v520, 12
    %v1534 = vpop.permute.xlu0 %1533
    %1535 = vrot.lane.b32.xlu0 %v521, 12
    %v1536 = vpop.permute.xlu0 %1535
    %1537 = vrot.lane.b32.xlu0 %v522, 12
    %v1538 = vpop.permute.xlu0 %1537
    %1539 = vrot.lane.b32.xlu0 %v523, 12
    %v1540 = vpop.permute.xlu0 %1539
    %1541 = vrot.lane.b32.xlu0 %v524, 12
    %v1542 = vpop.permute.xlu0 %1541
    %1543 = vrot.lane.b32.xlu0 %v525, 12
    %v1544 = vpop.permute.xlu0 %1543
    %1545 = vrot.lane.b32.xlu0 %v526, 12
    %v1546 = vpop.permute.xlu0 %1545
    %1547 = vrot.lane.b32.xlu0 %v527, 12
    %v1548 = vpop.permute.xlu0 %1547
    %1549 = vrot.lane.b32.xlu0 %v528, 12
    %v1550 = vpop.permute.xlu0 %1549
    %1551 = vrot.lane.b32.xlu0 %v529, 12
    %v1552 = vpop.permute.xlu0 %1551
    %1553 = vrot.lane.b32.xlu0 %v530, 12
    %v1554 = vpop.permute.xlu0 %1553
    %1555 = vrot.lane.b32.xlu0 %v531, 12
    %v1556 = vpop.permute.xlu0 %1555
    %1685 = vrot.lane.b32.xlu0 %v532, 16
    %v1686 = vpop.permute.xlu0 %1685
    %1687 = vrot.lane.b32.xlu0 %v533, 16
    %v1688 = vpop.permute.xlu0 %1687
    %1689 = vrot.lane.b32.xlu0 %v534, 16
    %v1690 = vpop.permute.xlu0 %1689
    %1691 = vrot.lane.b32.xlu0 %v535, 16
    %v1692 = vpop.permute.xlu0 %1691
    %1693 = vrot.lane.b32.xlu0 %v536, 16
    %v1694 = vpop.permute.xlu0 %1693
    %1695 = vrot.lane.b32.xlu0 %v537, 16
    %v1696 = vpop.permute.xlu0 %1695
    %1697 = vrot.lane.b32.xlu0 %v538, 16
    %v1698 = vpop.permute.xlu0 %1697
    %1699 = vrot.lane.b32.xlu0 %v539, 16
    %v1700 = vpop.permute.xlu0 %1699
    %1701 = vrot.lane.b32.xlu0 %v540, 16
    %v1702 = vpop.permute.xlu0 %1701
    %1703 = vrot.lane.b32.xlu0 %v541, 16
    %v1704 = vpop.permute.xlu0 %1703
    %1705 = vrot.lane.b32.xlu0 %v542, 16
    %v1706 = vpop.permute.xlu0 %1705
    %1707 = vrot.lane.b32.xlu0 %v543, 16
    %v1708 = vpop.permute.xlu0 %1707
    %1709 = vrot.lane.b32.xlu0 %v544, 16
    %v1710 = vpop.permute.xlu0 %1709
    %1711 = vrot.lane.b32.xlu0 %v545, 16
    %v1712 = vpop.permute.xlu0 %1711
    %1713 = vrot.lane.b32.xlu0 %v546, 16
    %v1714 = vpop.permute.xlu0 %1713
    %1715 = vrot.lane.b32.xlu0 %v547, 16
    %v1716 = vpop.permute.xlu0 %1715
    %1717 = vrot.lane.b32.xlu0 %v548, 16
    %v1718 = vpop.permute.xlu0 %1717
    %1719 = vrot.lane.b32.xlu0 %v549, 16
    %v1720 = vpop.permute.xlu0 %1719
    %1721 = vrot.lane.b32.xlu0 %v550, 16
    %v1722 = vpop.permute.xlu0 %1721
    %1723 = vrot.lane.b32.xlu0 %v551, 16
    %v1724 = vpop.permute.xlu0 %1723
    %1725 = vrot.lane.b32.xlu0 %v552, 16
    %v1726 = vpop.permute.xlu0 %1725
    %1727 = vrot.lane.b32.xlu0 %v553, 16
    %v1728 = vpop.permute.xlu0 %1727
    %1729 = vrot.lane.b32.xlu0 %v554, 16
    %v1730 = vpop.permute.xlu0 %1729
    %1731 = vrot.lane.b32.xlu0 %v555, 16
    %v1732 = vpop.permute.xlu0 %1731
    %1733 = vrot.lane.b32.xlu0 %v556, 16
    %v1734 = vpop.permute.xlu0 %1733
    %1735 = vrot.lane.b32.xlu0 %v557, 16
    %v1736 = vpop.permute.xlu0 %1735
    %1737 = vrot.lane.b32.xlu0 %v558, 16
    %v1738 = vpop.permute.xlu0 %1737
    %1739 = vrot.lane.b32.xlu0 %v559, 16
    %v1740 = vpop.permute.xlu0 %1739
    %1741 = vrot.lane.b32.xlu0 %v560, 16
    %v1742 = vpop.permute.xlu0 %1741
    %1743 = vrot.lane.b32.xlu0 %v561, 16
    %v1744 = vpop.permute.xlu0 %1743
    %1745 = vrot.lane.b32.xlu0 %v562, 16
    %v1746 = vpop.permute.xlu0 %1745
    %1747 = vrot.lane.b32.xlu0 %v563, 16
    %v1748 = vpop.permute.xlu0 %1747
    %1749 = vrot.lane.b32.xlu0 %v564, 16
    %v1750 = vpop.permute.xlu0 %1749
    %1751 = vrot.lane.b32.xlu0 %v565, 16
    %v1752 = vpop.permute.xlu0 %1751
    %1753 = vrot.lane.b32.xlu0 %v566, 16
    %v1754 = vpop.permute.xlu0 %1753
    %1755 = vrot.lane.b32.xlu0 %v567, 16
    %v1756 = vpop.permute.xlu0 %1755
    %1757 = vrot.lane.b32.xlu0 %v568, 16
    %v1758 = vpop.permute.xlu0 %1757
    %1759 = vrot.lane.b32.xlu0 %v569, 16
    %v1760 = vpop.permute.xlu0 %1759
    %1761 = vrot.lane.b32.xlu0 %v570, 16
    %v1762 = vpop.permute.xlu0 %1761
    %1763 = vrot.lane.b32.xlu0 %v571, 16
    %v1764 = vpop.permute.xlu0 %1763
    %1765 = vrot.lane.b32.xlu0 %v572, 16
    %v1766 = vpop.permute.xlu0 %1765
    %1767 = vrot.lane.b32.xlu0 %v573, 16
    %v1768 = vpop.permute.xlu0 %1767
    %1769 = vrot.lane.b32.xlu0 %v574, 16
    %v1770 = vpop.permute.xlu0 %1769
    %1771 = vrot.lane.b32.xlu0 %v575, 16
    %v1772 = vpop.permute.xlu0 %1771
    %1773 = vrot.lane.b32.xlu0 %v576, 16
    %v1774 = vpop.permute.xlu0 %1773
    %1775 = vrot.lane.b32.xlu0 %v577, 16
    %v1776 = vpop.permute.xlu0 %1775
    %1777 = vrot.lane.b32.xlu0 %v578, 16
    %v1778 = vpop.permute.xlu0 %1777
    %1779 = vrot.lane.b32.xlu0 %v579, 16
    %v1780 = vpop.permute.xlu0 %1779
    %1781 = vrot.lane.b32.xlu0 %v580, 16
    %v1782 = vpop.permute.xlu0 %1781
    %1783 = vrot.lane.b32.xlu0 %v581, 16
    %v1784 = vpop.permute.xlu0 %1783
    %1785 = vrot.lane.b32.xlu0 %v582, 16
    %v1786 = vpop.permute.xlu0 %1785
    %1787 = vrot.lane.b32.xlu0 %v583, 16
    %v1788 = vpop.permute.xlu0 %1787
    %1789 = vrot.lane.b32.xlu0 %v584, 16
    %v1790 = vpop.permute.xlu0 %1789
    %1791 = vrot.lane.b32.xlu0 %v585, 16
    %v1792 = vpop.permute.xlu0 %1791
    %1793 = vrot.lane.b32.xlu0 %v586, 16
    %v1794 = vpop.permute.xlu0 %1793
    %1795 = vrot.lane.b32.xlu0 %v587, 16
    %v1796 = vpop.permute.xlu0 %1795
    %1797 = vrot.lane.b32.xlu0 %v588, 16
    %v1798 = vpop.permute.xlu0 %1797
    %1799 = vrot.lane.b32.xlu0 %v589, 16
    %v1800 = vpop.permute.xlu0 %1799
    %1801 = vrot.lane.b32.xlu0 %v590, 16
    %v1802 = vpop.permute.xlu0 %1801
    %1803 = vrot.lane.b32.xlu0 %v591, 16
    %v1804 = vpop.permute.xlu0 %1803
    %1805 = vrot.lane.b32.xlu0 %v592, 16
    %v1806 = vpop.permute.xlu0 %1805
    %1807 = vrot.lane.b32.xlu0 %v593, 16
    %v1808 = vpop.permute.xlu0 %1807
    %1809 = vrot.lane.b32.xlu0 %v594, 16
    %v1810 = vpop.permute.xlu0 %1809
    %1811 = vrot.lane.b32.xlu0 %v595, 16
    %v1812 = vpop.permute.xlu0 %1811
    %1941 = vrot.lane.b32.xlu0 %v596, 20
    %v1942 = vpop.permute.xlu0 %1941
    %1943 = vrot.lane.b32.xlu0 %v597, 20
    %v1944 = vpop.permute.xlu0 %1943
    %1945 = vrot.lane.b32.xlu0 %v598, 20
    %v1946 = vpop.permute.xlu0 %1945
    %1947 = vrot.lane.b32.xlu0 %v599, 20
    %v1948 = vpop.permute.xlu0 %1947
    %1949 = vrot.lane.b32.xlu0 %v600, 20
    %v1950 = vpop.permute.xlu0 %1949
    %1951 = vrot.lane.b32.xlu0 %v601, 20
    %v1952 = vpop.permute.xlu0 %1951
    %1953 = vrot.lane.b32.xlu0 %v602, 20
    %v1954 = vpop.permute.xlu0 %1953
    %1955 = vrot.lane.b32.xlu0 %v603, 20
    %v1956 = vpop.permute.xlu0 %1955
    %1957 = vrot.lane.b32.xlu0 %v604, 20
    %v1958 = vpop.permute.xlu0 %1957
    %1959 = vrot.lane.b32.xlu0 %v605, 20
    %v1960 = vpop.permute.xlu0 %1959
    %1961 = vrot.lane.b32.xlu0 %v606, 20
    %v1962 = vpop.permute.xlu0 %1961
    %1963 = vrot.lane.b32.xlu0 %v607, 20
    %v1964 = vpop.permute.xlu0 %1963
    %1965 = vrot.lane.b32.xlu0 %v608, 20
    %v1966 = vpop.permute.xlu0 %1965
    %1967 = vrot.lane.b32.xlu0 %v609, 20
    %v1968 = vpop.permute.xlu0 %1967
    %1969 = vrot.lane.b32.xlu0 %v610, 20
    %v1970 = vpop.permute.xlu0 %1969
    %1971 = vrot.lane.b32.xlu0 %v611, 20
    %v1972 = vpop.permute.xlu0 %1971
    %1973 = vrot.lane.b32.xlu0 %v612, 20
    %v1974 = vpop.permute.xlu0 %1973
    %1975 = vrot.lane.b32.xlu0 %v613, 20
    %v1976 = vpop.permute.xlu0 %1975
    %1977 = vrot.lane.b32.xlu0 %v614, 20
    %v1978 = vpop.permute.xlu0 %1977
    %1979 = vrot.lane.b32.xlu0 %v615, 20
    %v1980 = vpop.permute.xlu0 %1979
    %1981 = vrot.lane.b32.xlu0 %v616, 20
    %v1982 = vpop.permute.xlu0 %1981
    %1983 = vrot.lane.b32.xlu0 %v617, 20
    %v1984 = vpop.permute.xlu0 %1983
    %1985 = vrot.lane.b32.xlu0 %v618, 20
    %v1986 = vpop.permute.xlu0 %1985
    %1987 = vrot.lane.b32.xlu0 %v619, 20
    %v1988 = vpop.permute.xlu0 %1987
    %1989 = vrot.lane.b32.xlu0 %v620, 20
    %v1990 = vpop.permute.xlu0 %1989
    %1991 = vrot.lane.b32.xlu0 %v621, 20
    %v1992 = vpop.permute.xlu0 %1991
    %1993 = vrot.lane.b32.xlu0 %v622, 20
    %v1994 = vpop.permute.xlu0 %1993
    %1995 = vrot.lane.b32.xlu0 %v623, 20
    %v1996 = vpop.permute.xlu0 %1995
    %1997 = vrot.lane.b32.xlu0 %v624, 20
    %v1998 = vpop.permute.xlu0 %1997
    %1999 = vrot.lane.b32.xlu0 %v625, 20
    %v2000 = vpop.permute.xlu0 %1999
    %2001 = vrot.lane.b32.xlu0 %v626, 20
    %v2002 = vpop.permute.xlu0 %2001
    %2003 = vrot.lane.b32.xlu0 %v627, 20
    %v2004 = vpop.permute.xlu0 %2003
    %2005 = vrot.lane.b32.xlu0 %v628, 20
    %v2006 = vpop.permute.xlu0 %2005
    %2007 = vrot.lane.b32.xlu0 %v629, 20
    %v2008 = vpop.permute.xlu0 %2007
    %2009 = vrot.lane.b32.xlu0 %v630, 20
    %v2010 = vpop.permute.xlu0 %2009
    %2011 = vrot.lane.b32.xlu0 %v631, 20
    %v2012 = vpop.permute.xlu0 %2011
    %2013 = vrot.lane.b32.xlu0 %v632, 20
    %v2014 = vpop.permute.xlu0 %2013
    %2015 = vrot.lane.b32.xlu0 %v633, 20
    %v2016 = vpop.permute.xlu0 %2015
    %2017 = vrot.lane.b32.xlu0 %v634, 20
    %v2018 = vpop.permute.xlu0 %2017
    %2019 = vrot.lane.b32.xlu0 %v635, 20
    %v2020 = vpop.permute.xlu0 %2019
    %2021 = vrot.lane.b32.xlu0 %v636, 20
    %v2022 = vpop.permute.xlu0 %2021
    %2023 = vrot.lane.b32.xlu0 %v637, 20
    %v2024 = vpop.permute.xlu0 %2023
    %2025 = vrot.lane.b32.xlu0 %v638, 20
    %v2026 = vpop.permute.xlu0 %2025
    %2027 = vrot.lane.b32.xlu0 %v639, 20
    %v2028 = vpop.permute.xlu0 %2027
    %2029 = vrot.lane.b32.xlu0 %v640, 20
    %v2030 = vpop.permute.xlu0 %2029
    %2031 = vrot.lane.b32.xlu0 %v641, 20
    %v2032 = vpop.permute.xlu0 %2031
    %2033 = vrot.lane.b32.xlu0 %v642, 20
    %v2034 = vpop.permute.xlu0 %2033
    %2035 = vrot.lane.b32.xlu0 %v643, 20
    %v2036 = vpop.permute.xlu0 %2035
    %2037 = vrot.lane.b32.xlu0 %v644, 20
    %v2038 = vpop.permute.xlu0 %2037
    %2039 = vrot.lane.b32.xlu0 %v645, 20
    %v2040 = vpop.permute.xlu0 %2039
    %2041 = vrot.lane.b32.xlu0 %v646, 20
    %v2042 = vpop.permute.xlu0 %2041
    %2043 = vrot.lane.b32.xlu0 %v647, 20
    %v2044 = vpop.permute.xlu0 %2043
    %2045 = vrot.lane.b32.xlu0 %v648, 20
    %v2046 = vpop.permute.xlu0 %2045
    %2047 = vrot.lane.b32.xlu0 %v649, 20
    %v2048 = vpop.permute.xlu0 %2047
    %2049 = vrot.lane.b32.xlu0 %v650, 20
    %v2050 = vpop.permute.xlu0 %2049
    %2051 = vrot.lane.b32.xlu0 %v651, 20
    %v2052 = vpop.permute.xlu0 %2051
    %2053 = vrot.lane.b32.xlu0 %v652, 20
    %v2054 = vpop.permute.xlu0 %2053
    %2055 = vrot.lane.b32.xlu0 %v653, 20
    %v2056 = vpop.permute.xlu0 %2055
    %2057 = vrot.lane.b32.xlu0 %v654, 20
    %v2058 = vpop.permute.xlu0 %2057
    %2059 = vrot.lane.b32.xlu0 %v655, 20
    %v2060 = vpop.permute.xlu0 %2059
    %2061 = vrot.lane.b32.xlu0 %v656, 20
    %v2062 = vpop.permute.xlu0 %2061
    %2063 = vrot.lane.b32.xlu0 %v657, 20
    %v2064 = vpop.permute.xlu0 %2063
    %2065 = vrot.lane.b32.xlu0 %v658, 20
    %v2066 = vpop.permute.xlu0 %2065
    %2067 = vrot.lane.b32.xlu0 %v659, 20
    %v2068 = vpop.permute.xlu0 %2067
    %2197 = vrot.lane.b32.xlu0 %v661, 24
    %v2198 = vpop.permute.xlu0 %2197
    %2199 = vrot.lane.b32.xlu0 %v662, 24
    %v2200 = vpop.permute.xlu0 %2199
    %2201 = vrot.lane.b32.xlu0 %v663, 24
    %v2202 = vpop.permute.xlu0 %2201
    %2203 = vrot.lane.b32.xlu0 %v664, 24
    %v2204 = vpop.permute.xlu0 %2203
    %2205 = vrot.lane.b32.xlu0 %v665, 24
    %v2206 = vpop.permute.xlu0 %2205
    %2207 = vrot.lane.b32.xlu0 %v666, 24
    %v2208 = vpop.permute.xlu0 %2207
    %2209 = vrot.lane.b32.xlu0 %v667, 24
    %v2210 = vpop.permute.xlu0 %2209
    %2211 = vrot.lane.b32.xlu0 %v668, 24
    %v2212 = vpop.permute.xlu0 %2211
    %2213 = vrot.lane.b32.xlu0 %v669, 24
    %v2214 = vpop.permute.xlu0 %2213
    %2215 = vrot.lane.b32.xlu0 %v670, 24
    %v2216 = vpop.permute.xlu0 %2215
    %2217 = vrot.lane.b32.xlu0 %v671, 24
    %v2218 = vpop.permute.xlu0 %2217
    %2219 = vrot.lane.b32.xlu0 %v672, 24
    %v2220 = vpop.permute.xlu0 %2219
    %2221 = vrot.lane.b32.xlu0 %v673, 24
    %v2222 = vpop.permute.xlu0 %2221
    %2223 = vrot.lane.b32.xlu0 %v674, 24
    %v2224 = vpop.permute.xlu0 %2223
    %2225 = vrot.lane.b32.xlu0 %v675, 24
    %v2226 = vpop.permute.xlu0 %2225
    %2227 = vrot.lane.b32.xlu0 %v676, 24
    %v2228 = vpop.permute.xlu0 %2227
    %2229 = vrot.lane.b32.xlu0 %v677, 24
    %v2230 = vpop.permute.xlu0 %2229
    %2231 = vrot.lane.b32.xlu0 %v678, 24
    %v2232 = vpop.permute.xlu0 %2231
    %2233 = vrot.lane.b32.xlu0 %v679, 24
    %v2234 = vpop.permute.xlu0 %2233
    %2235 = vrot.lane.b32.xlu0 %v680, 24
    %v2236 = vpop.permute.xlu0 %2235
    %2237 = vrot.lane.b32.xlu0 %v681, 24
    %v2238 = vpop.permute.xlu0 %2237
    %2239 = vrot.lane.b32.xlu0 %v682, 24
    %v2240 = vpop.permute.xlu0 %2239
    %2241 = vrot.lane.b32.xlu0 %v683, 24
    %v2242 = vpop.permute.xlu0 %2241
    %2243 = vrot.lane.b32.xlu0 %v684, 24
    %v2244 = vpop.permute.xlu0 %2243
    %2245 = vrot.lane.b32.xlu0 %v685, 24
    %v2246 = vpop.permute.xlu0 %2245
    %2247 = vrot.lane.b32.xlu0 %v686, 24
    %v2248 = vpop.permute.xlu0 %2247
    %2249 = vrot.lane.b32.xlu0 %v687, 24
    %v2250 = vpop.permute.xlu0 %2249
    %2251 = vrot.lane.b32.xlu0 %v688, 24
    %v2252 = vpop.permute.xlu0 %2251
    %2253 = vrot.lane.b32.xlu0 %v689, 24
    %v2254 = vpop.permute.xlu0 %2253
    %2255 = vrot.lane.b32.xlu0 %v690, 24
    %v2256 = vpop.permute.xlu0 %2255
    %2257 = vrot.lane.b32.xlu0 %v691, 24
    %v2258 = vpop.permute.xlu0 %2257
    %2259 = vrot.lane.b32.xlu0 %v692, 24
    %v2260 = vpop.permute.xlu0 %2259
    %2261 = vrot.lane.b32.xlu0 %v693, 24
    %v2262 = vpop.permute.xlu0 %2261
    %2263 = vrot.lane.b32.xlu0 %v694, 24
    %v2264 = vpop.permute.xlu0 %2263
    %2265 = vrot.lane.b32.xlu0 %v695, 24
    %v2266 = vpop.permute.xlu0 %2265
    %2267 = vrot.lane.b32.xlu0 %v696, 24
    %v2268 = vpop.permute.xlu0 %2267
    %2269 = vrot.lane.b32.xlu0 %v697, 24
    %v2270 = vpop.permute.xlu0 %2269
    %2271 = vrot.lane.b32.xlu0 %v698, 24
    %v2272 = vpop.permute.xlu0 %2271
    %2273 = vrot.lane.b32.xlu0 %v699, 24
    %v2274 = vpop.permute.xlu0 %2273
    %2275 = vrot.lane.b32.xlu0 %v700, 24
    %v2276 = vpop.permute.xlu0 %2275
    %2277 = vrot.lane.b32.xlu0 %v701, 24
    %v2278 = vpop.permute.xlu0 %2277
    %2279 = vrot.lane.b32.xlu0 %v702, 24
    %v2280 = vpop.permute.xlu0 %2279
    %2281 = vrot.lane.b32.xlu0 %v703, 24
    %v2282 = vpop.permute.xlu0 %2281
    %2283 = vrot.lane.b32.xlu0 %v704, 24
    %v2284 = vpop.permute.xlu0 %2283
    %2285 = vrot.lane.b32.xlu0 %v705, 24
    %v2286 = vpop.permute.xlu0 %2285
    %2287 = vrot.lane.b32.xlu0 %v706, 24
    %v2288 = vpop.permute.xlu0 %2287
    %2289 = vrot.lane.b32.xlu0 %v707, 24
    %v2290 = vpop.permute.xlu0 %2289
    %2291 = vrot.lane.b32.xlu0 %v708, 24
    %v2292 = vpop.permute.xlu0 %2291
    %2293 = vrot.lane.b32.xlu0 %v709, 24
    %v2294 = vpop.permute.xlu0 %2293
    %2295 = vrot.lane.b32.xlu0 %v710, 24
    %v2296 = vpop.permute.xlu0 %2295
    %2297 = vrot.lane.b32.xlu0 %v711, 24
    %v2298 = vpop.permute.xlu0 %2297
    %2299 = vrot.lane.b32.xlu0 %v712, 24
    %v2300 = vpop.permute.xlu0 %2299
    %2301 = vrot.lane.b32.xlu0 %v713, 24
    %v2302 = vpop.permute.xlu0 %2301
    %2303 = vrot.lane.b32.xlu0 %v714, 24
    %v2304 = vpop.permute.xlu0 %2303
    %2305 = vrot.lane.b32.xlu0 %v715, 24
    %v2306 = vpop.permute.xlu0 %2305
    %2307 = vrot.lane.b32.xlu0 %v716, 24
    %v2308 = vpop.permute.xlu0 %2307
    %2309 = vrot.lane.b32.xlu0 %v717, 24
    %v2310 = vpop.permute.xlu0 %2309
    %2311 = vrot.lane.b32.xlu0 %v718, 24
    %v2312 = vpop.permute.xlu0 %2311
    %2313 = vrot.lane.b32.xlu0 %v719, 24
    %v2314 = vpop.permute.xlu0 %2313
    %2315 = vrot.lane.b32.xlu0 %v720, 24
    %v2316 = vpop.permute.xlu0 %2315
    %2317 = vrot.lane.b32.xlu0 %v721, 24
    %v2318 = vpop.permute.xlu0 %2317
    %2319 = vrot.lane.b32.xlu0 %v722, 24
    %v2320 = vpop.permute.xlu0 %2319
    %2321 = vrot.lane.b32.xlu0 %v723, 24
    %v2322 = vpop.permute.xlu0 %2321
    %2323 = vrot.lane.b32.xlu0 %v724, 24
    %v2324 = vpop.permute.xlu0 %2323
    %2453 = vrot.lane.b32.xlu0 %v725, 28
    %v2454 = vpop.permute.xlu0 %2453
    %2455 = vrot.lane.b32.xlu0 %v726, 28
    %v2456 = vpop.permute.xlu0 %2455
    %2457 = vrot.lane.b32.xlu0 %v727, 28
    %v2458 = vpop.permute.xlu0 %2457
    %2459 = vrot.lane.b32.xlu0 %v728, 28
    %v2460 = vpop.permute.xlu0 %2459
    %2461 = vrot.lane.b32.xlu0 %v729, 28
    %v2462 = vpop.permute.xlu0 %2461
    %2463 = vrot.lane.b32.xlu0 %v730, 28
    %v2464 = vpop.permute.xlu0 %2463
    %2465 = vrot.lane.b32.xlu0 %v731, 28
    %v2466 = vpop.permute.xlu0 %2465
    %2467 = vrot.lane.b32.xlu0 %v732, 28
    %v2468 = vpop.permute.xlu0 %2467
    %2469 = vrot.lane.b32.xlu0 %v733, 28
    %v2470 = vpop.permute.xlu0 %2469
    %2471 = vrot.lane.b32.xlu0 %v734, 28
    %v2472 = vpop.permute.xlu0 %2471
    %2473 = vrot.lane.b32.xlu0 %v735, 28
    %v2474 = vpop.permute.xlu0 %2473
    %2475 = vrot.lane.b32.xlu0 %v736, 28
    %v2476 = vpop.permute.xlu0 %2475
    %2477 = vrot.lane.b32.xlu0 %v737, 28
    %v2478 = vpop.permute.xlu0 %2477
    %2479 = vrot.lane.b32.xlu0 %v738, 28
    %v2480 = vpop.permute.xlu0 %2479
    %2481 = vrot.lane.b32.xlu0 %v739, 28
    %v2482 = vpop.permute.xlu0 %2481
    %2483 = vrot.lane.b32.xlu0 %v740, 28
    %v2484 = vpop.permute.xlu0 %2483
    %2485 = vrot.lane.b32.xlu0 %v741, 28
    %v2486 = vpop.permute.xlu0 %2485
    %2487 = vrot.lane.b32.xlu0 %v742, 28
    %v2488 = vpop.permute.xlu0 %2487
    %2489 = vrot.lane.b32.xlu0 %v743, 28
    %v2490 = vpop.permute.xlu0 %2489
    %2491 = vrot.lane.b32.xlu0 %v744, 28
    %v2492 = vpop.permute.xlu0 %2491
    %2493 = vrot.lane.b32.xlu0 %v745, 28
    %v2494 = vpop.permute.xlu0 %2493
    %2495 = vrot.lane.b32.xlu0 %v746, 28
    %v2496 = vpop.permute.xlu0 %2495
    %2497 = vrot.lane.b32.xlu0 %v747, 28
    %v2498 = vpop.permute.xlu0 %2497
    %2499 = vrot.lane.b32.xlu0 %v748, 28
    %v2500 = vpop.permute.xlu0 %2499
    %2501 = vrot.lane.b32.xlu0 %v749, 28
    %v2502 = vpop.permute.xlu0 %2501
    %2503 = vrot.lane.b32.xlu0 %v750, 28
    %v2504 = vpop.permute.xlu0 %2503
    %2505 = vrot.lane.b32.xlu0 %v751, 28
    %v2506 = vpop.permute.xlu0 %2505
    %2507 = vrot.lane.b32.xlu0 %v752, 28
    %v2508 = vpop.permute.xlu0 %2507
    %2509 = vrot.lane.b32.xlu0 %v753, 28
    %v2510 = vpop.permute.xlu0 %2509
    %2511 = vrot.lane.b32.xlu0 %v754, 28
    %v2512 = vpop.permute.xlu0 %2511
    %2513 = vrot.lane.b32.xlu0 %v755, 28
    %v2514 = vpop.permute.xlu0 %2513
    %2515 = vrot.lane.b32.xlu0 %v756, 28
    %v2516 = vpop.permute.xlu0 %2515
    %2517 = vrot.lane.b32.xlu0 %v757, 28
    %v2518 = vpop.permute.xlu0 %2517
    %2519 = vrot.lane.b32.xlu0 %v758, 28
    %v2520 = vpop.permute.xlu0 %2519
    %2521 = vrot.lane.b32.xlu0 %v759, 28
    %v2522 = vpop.permute.xlu0 %2521
    %2523 = vrot.lane.b32.xlu0 %v760, 28
    %v2524 = vpop.permute.xlu0 %2523
    %2525 = vrot.lane.b32.xlu0 %v761, 28
    %v2526 = vpop.permute.xlu0 %2525
    %2527 = vrot.lane.b32.xlu0 %v762, 28
    %v2528 = vpop.permute.xlu0 %2527
    %2529 = vrot.lane.b32.xlu0 %v763, 28
    %v2530 = vpop.permute.xlu0 %2529
    %2531 = vrot.lane.b32.xlu0 %v764, 28
    %v2532 = vpop.permute.xlu0 %2531
    %2533 = vrot.lane.b32.xlu0 %v765, 28
    %v2534 = vpop.permute.xlu0 %2533
    %2535 = vrot.lane.b32.xlu0 %v766, 28
    %v2536 = vpop.permute.xlu0 %2535
    %2537 = vrot.lane.b32.xlu0 %v767, 28
    %v2538 = vpop.permute.xlu0 %2537
    %2539 = vrot.lane.b32.xlu0 %v768, 28
    %v2540 = vpop.permute.xlu0 %2539
    %2541 = vrot.lane.b32.xlu0 %v769, 28
    %v2542 = vpop.permute.xlu0 %2541
    %2543 = vrot.lane.b32.xlu0 %v770, 28
    %v2544 = vpop.permute.xlu0 %2543
    %2545 = vrot.lane.b32.xlu0 %v771, 28
    %v2546 = vpop.permute.xlu0 %2545
    %2547 = vrot.lane.b32.xlu0 %v772, 28
    %v2548 = vpop.permute.xlu0 %2547
    %2549 = vrot.lane.b32.xlu0 %v773, 28
    %v2550 = vpop.permute.xlu0 %2549
    %2551 = vrot.lane.b32.xlu0 %v774, 28
    %v2552 = vpop.permute.xlu0 %2551
    %2553 = vrot.lane.b32.xlu0 %v775, 28
    %v2554 = vpop.permute.xlu0 %2553
    %2555 = vrot.lane.b32.xlu0 %v776, 28
    %v2556 = vpop.permute.xlu0 %2555
    %2557 = vrot.lane.b32.xlu0 %v777, 28
    %v2558 = vpop.permute.xlu0 %2557
    %2559 = vrot.lane.b32.xlu0 %v778, 28
    %v2560 = vpop.permute.xlu0 %2559
    %2561 = vrot.lane.b32.xlu0 %v779, 28
    %v2562 = vpop.permute.xlu0 %2561
    %2563 = vrot.lane.b32.xlu0 %v780, 28
    %v2564 = vpop.permute.xlu0 %2563
    %2565 = vrot.lane.b32.xlu0 %v781, 28
    %v2566 = vpop.permute.xlu0 %2565
    %2567 = vrot.lane.b32.xlu0 %v782, 28
    %v2568 = vpop.permute.xlu0 %2567
    %2569 = vrot.lane.b32.xlu0 %v783, 28
    %v2570 = vpop.permute.xlu0 %2569
    %2571 = vrot.lane.b32.xlu0 %v784, 28
    %v2572 = vpop.permute.xlu0 %2571
    %2573 = vrot.lane.b32.xlu0 %v785, 28
    %v2574 = vpop.permute.xlu0 %2573
    %2575 = vrot.lane.b32.xlu0 %v786, 28
    %v2576 = vpop.permute.xlu0 %2575
    %2577 = vrot.lane.b32.xlu0 %v787, 28
    %v2578 = vpop.permute.xlu0 %2577
    %2579 = vrot.lane.b32.xlu0 %v788, 28
    %v2580 = vpop.permute.xlu0 %2579
    %2709 = vrot.lane.b32.xlu0 %v789, 32
    %v2710 = vpop.permute.xlu0 %2709
    %2711 = vrot.lane.b32.xlu0 %v790, 32
    %v2712 = vpop.permute.xlu0 %2711
    %2713 = vrot.lane.b32.xlu0 %v791, 32
    %v2714 = vpop.permute.xlu0 %2713
    %2715 = vrot.lane.b32.xlu0 %v792, 32
    %v2716 = vpop.permute.xlu0 %2715
    %2717 = vrot.lane.b32.xlu0 %v793, 32
    %v2718 = vpop.permute.xlu0 %2717
    %2719 = vrot.lane.b32.xlu0 %v794, 32
    %v2720 = vpop.permute.xlu0 %2719
    %2721 = vrot.lane.b32.xlu0 %v795, 32
    %v2722 = vpop.permute.xlu0 %2721
    %2723 = vrot.lane.b32.xlu0 %v796, 32
    %v2724 = vpop.permute.xlu0 %2723
    %2725 = vrot.lane.b32.xlu0 %v797, 32
    %v2726 = vpop.permute.xlu0 %2725
    %2727 = vrot.lane.b32.xlu0 %v798, 32
    %v2728 = vpop.permute.xlu0 %2727
    %2729 = vrot.lane.b32.xlu0 %v799, 32
    %v2730 = vpop.permute.xlu0 %2729
    %2731 = vrot.lane.b32.xlu0 %v800, 32
    %v2732 = vpop.permute.xlu0 %2731
    %2733 = vrot.lane.b32.xlu0 %v801, 32
    %v2734 = vpop.permute.xlu0 %2733
    %2735 = vrot.lane.b32.xlu0 %v802, 32
    %v2736 = vpop.permute.xlu0 %2735
    %2737 = vrot.lane.b32.xlu0 %v803, 32
    %v2738 = vpop.permute.xlu0 %2737
    %2739 = vrot.lane.b32.xlu0 %v804, 32
    %v2740 = vpop.permute.xlu0 %2739
    %2741 = vrot.lane.b32.xlu0 %v805, 32
    %v2742 = vpop.permute.xlu0 %2741
    %2743 = vrot.lane.b32.xlu0 %v806, 32
    %v2744 = vpop.permute.xlu0 %2743
    %2745 = vrot.lane.b32.xlu0 %v807, 32
    %v2746 = vpop.permute.xlu0 %2745
    %2747 = vrot.lane.b32.xlu0 %v808, 32
    %v2748 = vpop.permute.xlu0 %2747
    %2749 = vrot.lane.b32.xlu0 %v809, 32
    %v2750 = vpop.permute.xlu0 %2749
    %2751 = vrot.lane.b32.xlu0 %v810, 32
    %v2752 = vpop.permute.xlu0 %2751
    %2753 = vrot.lane.b32.xlu0 %v811, 32
    %v2754 = vpop.permute.xlu0 %2753
    %2755 = vrot.lane.b32.xlu0 %v812, 32
    %v2756 = vpop.permute.xlu0 %2755
    %2757 = vrot.lane.b32.xlu0 %v813, 32
    %v2758 = vpop.permute.xlu0 %2757
    %2759 = vrot.lane.b32.xlu0 %v814, 32
    %v2760 = vpop.permute.xlu0 %2759
    %2761 = vrot.lane.b32.xlu0 %v815, 32
    %v2762 = vpop.permute.xlu0 %2761
    %2763 = vrot.lane.b32.xlu0 %v816, 32
    %v2764 = vpop.permute.xlu0 %2763
    %2765 = vrot.lane.b32.xlu0 %v817, 32
    %v2766 = vpop.permute.xlu0 %2765
    %2767 = vrot.lane.b32.xlu0 %v818, 32
    %v2768 = vpop.permute.xlu0 %2767
    %2769 = vrot.lane.b32.xlu0 %v819, 32
    %v2770 = vpop.permute.xlu0 %2769
    %2771 = vrot.lane.b32.xlu0 %v820, 32
    %v2772 = vpop.permute.xlu0 %2771
    %2773 = vrot.lane.b32.xlu0 %v821, 32
    %v2774 = vpop.permute.xlu0 %2773
    %2775 = vrot.lane.b32.xlu0 %v822, 32
    %v2776 = vpop.permute.xlu0 %2775
    %2777 = vrot.lane.b32.xlu0 %v823, 32
    %v2778 = vpop.permute.xlu0 %2777
    %2779 = vrot.lane.b32.xlu0 %v824, 32
    %v2780 = vpop.permute.xlu0 %2779
    %2781 = vrot.lane.b32.xlu0 %v825, 32
    %v2782 = vpop.permute.xlu0 %2781
    %2783 = vrot.lane.b32.xlu0 %v826, 32
    %v2784 = vpop.permute.xlu0 %2783
    %2785 = vrot.lane.b32.xlu0 %v827, 32
    %v2786 = vpop.permute.xlu0 %2785
    %2787 = vrot.lane.b32.xlu0 %v828, 32
    %v2788 = vpop.permute.xlu0 %2787
    %2789 = vrot.lane.b32.xlu0 %v829, 32
    %v2790 = vpop.permute.xlu0 %2789
    %2791 = vrot.lane.b32.xlu0 %v830, 32
    %v2792 = vpop.permute.xlu0 %2791
    %2793 = vrot.lane.b32.xlu0 %v831, 32
    %v2794 = vpop.permute.xlu0 %2793
    %2795 = vrot.lane.b32.xlu0 %v832, 32
    %v2796 = vpop.permute.xlu0 %2795
    %2797 = vrot.lane.b32.xlu0 %v833, 32
    %v2798 = vpop.permute.xlu0 %2797
    %2799 = vrot.lane.b32.xlu0 %v834, 32
    %v2800 = vpop.permute.xlu0 %2799
    %2801 = vrot.lane.b32.xlu0 %v835, 32
    %v2802 = vpop.permute.xlu0 %2801
    %2803 = vrot.lane.b32.xlu0 %v836, 32
    %v2804 = vpop.permute.xlu0 %2803
    %2805 = vrot.lane.b32.xlu0 %v837, 32
    %v2806 = vpop.permute.xlu0 %2805
    %2807 = vrot.lane.b32.xlu0 %v838, 32
    %v2808 = vpop.permute.xlu0 %2807
    %2809 = vrot.lane.b32.xlu0 %v839, 32
    %v2810 = vpop.permute.xlu0 %2809
    %2811 = vrot.lane.b32.xlu0 %v840, 32
    %v2812 = vpop.permute.xlu0 %2811
    %2813 = vrot.lane.b32.xlu0 %v841, 32
    %v2814 = vpop.permute.xlu0 %2813
    %2815 = vrot.lane.b32.xlu0 %v842, 32
    %v2816 = vpop.permute.xlu0 %2815
    %2817 = vrot.lane.b32.xlu0 %v843, 32
    %v2818 = vpop.permute.xlu0 %2817
    %2819 = vrot.lane.b32.xlu0 %v844, 32
    %v2820 = vpop.permute.xlu0 %2819
    %2821 = vrot.lane.b32.xlu0 %v845, 32
    %v2822 = vpop.permute.xlu0 %2821
    %2823 = vrot.lane.b32.xlu0 %v846, 32
    %v2824 = vpop.permute.xlu0 %2823
    %2825 = vrot.lane.b32.xlu0 %v847, 32
    %v2826 = vpop.permute.xlu0 %2825
    %2827 = vrot.lane.b32.xlu0 %v848, 32
    %v2828 = vpop.permute.xlu0 %2827
    %2829 = vrot.lane.b32.xlu0 %v849, 32
    %v2830 = vpop.permute.xlu0 %2829
    %2831 = vrot.lane.b32.xlu0 %v850, 32
    %v2832 = vpop.permute.xlu0 %2831
    %2833 = vrot.lane.b32.xlu0 %v851, 32
    %v2834 = vpop.permute.xlu0 %2833
    %2835 = vrot.lane.b32.xlu0 %v852, 32
    %v2836 = vpop.permute.xlu0 %2835
    %v2901 = vsel %vm211, %v276, %v918
    %v2902 = vsel %vm211, %v277, %v920
    %v2903 = vsel %vm211, %v278, %v922
    %v2904 = vsel %vm211, %v279, %v924
    %v2905 = vsel %vm211, %v280, %v926
    %v2906 = vsel %vm211, %v281, %v928
    %v2907 = vsel %vm211, %v282, %v930
    %v2908 = vsel %vm211, %v283, %v932
    %v2909 = vsel %vm211, %v284, %v934
    %v2910 = vsel %vm211, %v285, %v936
    %v2911 = vsel %vm211, %v286, %v938
    %v2912 = vsel %vm211, %v287, %v940
    %v2913 = vsel %vm211, %v288, %v942
    %v2914 = vsel %vm211, %v289, %v944
    %v2915 = vsel %vm211, %v290, %v946
    %v2916 = vsel %vm211, %v291, %v948
    %v2917 = vsel %vm211, %v292, %v950
    %v2918 = vsel %vm211, %v293, %v952
    %v2919 = vsel %vm211, %v294, %v954
    %v2920 = vsel %vm211, %v295, %v956
    %v2921 = vsel %vm211, %v296, %v958
    %v2922 = vsel %vm211, %v297, %v960
    %v2923 = vsel %vm211, %v298, %v962
    %v2924 = vsel %vm211, %v299, %v964
    %v2925 = vsel %vm211, %v300, %v966
    %v2926 = vsel %vm211, %v301, %v968
    %v2927 = vsel %vm211, %v302, %v970
    %v2928 = vsel %vm211, %v303, %v972
    %v2929 = vsel %vm211, %v304, %v974
    %v2930 = vsel %vm211, %v305, %v976
    %v2931 = vsel %vm211, %v306, %v978
    %v2932 = vsel %vm211, %v307, %v980
    %v2933 = vsel %vm211, %v308, %v982
    %v2934 = vsel %vm211, %v309, %v984
    %v2935 = vsel %vm211, %v310, %v986
    %v2936 = vsel %vm211, %v311, %v988
    %v2937 = vsel %vm211, %v312, %v990
    %v2938 = vsel %vm211, %v313, %v992
    %v2939 = vsel %vm211, %v314, %v994
    %v2940 = vsel %vm211, %v315, %v996
    %v2941 = vsel %vm211, %v316, %v998
    %v2942 = vsel %vm211, %v317, %v1000
    %v2943 = vsel %vm211, %v318, %v1002
    %v2944 = vsel %vm211, %v319, %v1004
    %v2945 = vsel %vm211, %v320, %v1006
    %v2946 = vsel %vm211, %v321, %v1008
    %v2947 = vsel %vm211, %v322, %v1010
    %v2948 = vsel %vm211, %v323, %v1012
    %v2949 = vsel %vm211, %v324, %v1014
    %v2950 = vsel %vm211, %v325, %v1016
    %v2951 = vsel %vm211, %v326, %v1018
    %v2952 = vsel %vm211, %v327, %v1020
    %v2953 = vsel %vm211, %v328, %v1022
    %v2954 = vsel %vm211, %v329, %v1024
    %v2955 = vsel %vm211, %v330, %v1026
    %v2956 = vsel %vm211, %v331, %v1028
    %v2957 = vsel %vm211, %v332, %v1030
    %v2958 = vsel %vm211, %v333, %v1032
    %v2959 = vsel %vm211, %v334, %v1034
    %v2960 = vsel %vm211, %v335, %v1036
    %v2961 = vsel %vm211, %v336, %v1038
    %v2962 = vsel %vm211, %v337, %v1040
    %v2963 = vsel %vm211, %v338, %v1042
    %v2964 = vsel %vm211, %v339, %v1044
    %vm2965 = vcmask 64512
    %v2966 = vsel %vm2965, %v2901, %v1174
    %v2967 = vsel %vm2965, %v2902, %v1176
    %v2968 = vsel %vm2965, %v2903, %v1178
    %v2969 = vsel %vm2965, %v2904, %v1180
    %v2970 = vsel %vm2965, %v2905, %v1182
    %v2971 = vsel %vm2965, %v2906, %v1184
    %v2972 = vsel %vm2965, %v2907, %v1186
    %v2973 = vsel %vm2965, %v2908, %v1188
    %v2974 = vsel %vm2965, %v2909, %v1190
    %v2975 = vsel %vm2965, %v2910, %v1192
    %v2976 = vsel %vm2965, %v2911, %v1194
    %v2977 = vsel %vm2965, %v2912, %v1196
    %v2978 = vsel %vm2965, %v2913, %v1198
    %v2979 = vsel %vm2965, %v2914, %v1200
    %v2980 = vsel %vm2965, %v2915, %v1202
    %v2981 = vsel %vm2965, %v2916, %v1204
    %v2982 = vsel %vm2965, %v2917, %v1206
    %v2983 = vsel %vm2965, %v2918, %v1208
    %v2984 = vsel %vm2965, %v2919, %v1210
    %v2985 = vsel %vm2965, %v2920, %v1212
    %v2986 = vsel %vm2965, %v2921, %v1214
    %v2987 = vsel %vm2965, %v2922, %v1216
    %v2988 = vsel %vm2965, %v2923, %v1218
    %v2989 = vsel %vm2965, %v2924, %v1220
    %v2990 = vsel %vm2965, %v2925, %v1222
    %v2991 = vsel %vm2965, %v2926, %v1224
    %v2992 = vsel %vm2965, %v2927, %v1226
    %v2993 = vsel %vm2965, %v2928, %v1228
    %v2994 = vsel %vm2965, %v2929, %v1230
    %v2995 = vsel %vm2965, %v2930, %v1232
    %v2996 = vsel %vm2965, %v2931, %v1234
    %v2997 = vsel %vm2965, %v2932, %v1236
    %v2998 = vsel %vm2965, %v2933, %v1238
    %v2999 = vsel %vm2965, %v2934, %v1240
    %v3000 = vsel %vm2965, %v2935, %v1242
    %v3001 = vsel %vm2965, %v2936, %v1244
    %v3002 = vsel %vm2965, %v2937, %v1246
    %v3003 = vsel %vm2965, %v2938, %v1248
    %v3004 = vsel %vm2965, %v2939, %v1250
    %v3005 = vsel %vm2965, %v2940, %v1252
    %v3006 = vsel %vm2965, %v2941, %v1254
    %v3007 = vsel %vm2965, %v2942, %v1256
    %v3008 = vsel %vm2965, %v2943, %v1258
    %v3009 = vsel %vm2965, %v2944, %v1260
    %v3010 = vsel %vm2965, %v2945, %v1262
    %v3011 = vsel %vm2965, %v2946, %v1264
    %v3012 = vsel %vm2965, %v2947, %v1266
    %v3013 = vsel %vm2965, %v2948, %v1268
    %v3014 = vsel %vm2965, %v2949, %v1270
    %v3015 = vsel %vm2965, %v2950, %v1272
    %v3016 = vsel %vm2965, %v2951, %v1274
    %v3017 = vsel %vm2965, %v2952, %v1276
    %v3018 = vsel %vm2965, %v2953, %v1278
    %v3019 = vsel %vm2965, %v2954, %v1280
    %v3020 = vsel %vm2965, %v2955, %v1282
    %v3021 = vsel %vm2965, %v2956, %v1284
    %v3022 = vsel %vm2965, %v2957, %v1286
    %v3023 = vsel %vm2965, %v2958, %v1288
    %v3024 = vsel %vm2965, %v2959, %v1290
    %v3025 = vsel %vm2965, %v2960, %v1292
    %v3026 = vsel %vm2965, %v2961, %v1294
    %v3027 = vsel %vm2965, %v2962, %v1296
    %v3028 = vsel %vm2965, %v2963, %v1298
    %v3029 = vsel %vm2965, %v2964, %v1300
    %vm3030 = vcmask 97280
    %v3031 = vsel %vm3030, %v2966, %v1430
    %v3032 = vsel %vm3030, %v2967, %v1432
    %v3033 = vsel %vm3030, %v2968, %v1434
    %v3034 = vsel %vm3030, %v2969, %v1436
    %v3035 = vsel %vm3030, %v2970, %v1438
    %v3036 = vsel %vm3030, %v2971, %v1440
    %v3037 = vsel %vm3030, %v2972, %v1442
    %v3038 = vsel %vm3030, %v2973, %v1444
    %v3039 = vsel %vm3030, %v2974, %v1446
    %v3040 = vsel %vm3030, %v2975, %v1448
    %v3041 = vsel %vm3030, %v2976, %v1450
    %v3042 = vsel %vm3030, %v2977, %v1452
    %v3043 = vsel %vm3030, %v2978, %v1454
    %v3044 = vsel %vm3030, %v2979, %v1456
    %v3045 = vsel %vm3030, %v2980, %v1458
    %v3046 = vsel %vm3030, %v2981, %v1460
    %v3047 = vsel %vm3030, %v2982, %v1462
    %v3048 = vsel %vm3030, %v2983, %v1464
    %v3049 = vsel %vm3030, %v2984, %v1466
    %v3050 = vsel %vm3030, %v2985, %v1468
    %v3051 = vsel %vm3030, %v2986, %v1470
    %v3052 = vsel %vm3030, %v2987, %v1472
    %v3053 = vsel %vm3030, %v2988, %v1474
    %v3054 = vsel %vm3030, %v2989, %v1476
    %v3055 = vsel %vm3030, %v2990, %v1478
    %v3056 = vsel %vm3030, %v2991, %v1480
    %v3057 = vsel %vm3030, %v2992, %v1482
    %v3058 = vsel %vm3030, %v2993, %v1484
    %v3059 = vsel %vm3030, %v2994, %v1486
    %v3060 = vsel %vm3030, %v2995, %v1488
    %v3061 = vsel %vm3030, %v2996, %v1490
    %v3062 = vsel %vm3030, %v2997, %v1492
    %v3063 = vsel %vm3030, %v2998, %v1494
    %v3064 = vsel %vm3030, %v2999, %v1496
    %v3065 = vsel %vm3030, %v3000, %v1498
    %v3066 = vsel %vm3030, %v3001, %v1500
    %v3067 = vsel %vm3030, %v3002, %v1502
    %v3068 = vsel %vm3030, %v3003, %v1504
    %v3069 = vsel %vm3030, %v3004, %v1506
    %v3070 = vsel %vm3030, %v3005, %v1508
    %v3071 = vsel %vm3030, %v3006, %v1510
    %v3072 = vsel %vm3030, %v3007, %v1512
    %v3073 = vsel %vm3030, %v3008, %v1514
    %v3074 = vsel %vm3030, %v3009, %v1516
    %v3075 = vsel %vm3030, %v3010, %v1518
    %v3076 = vsel %vm3030, %v3011, %v1520
    %v3077 = vsel %vm3030, %v3012, %v1522
    %v3078 = vsel %vm3030, %v3013, %v1524
    %v3079 = vsel %vm3030, %v3014, %v1526
    %v3080 = vsel %vm3030, %v3015, %v1528
    %v3081 = vsel %vm3030, %v3016, %v1530
    %v3082 = vsel %vm3030, %v3017, %v1532
    %v3083 = vsel %vm3030, %v3018, %v1534
    %v3084 = vsel %vm3030, %v3019, %v1536
    %v3085 = vsel %vm3030, %v3020, %v1538
    %v3086 = vsel %vm3030, %v3021, %v1540
    %v3087 = vsel %vm3030, %v3022, %v1542
    %v3088 = vsel %vm3030, %v3023, %v1544
    %v3089 = vsel %vm3030, %v3024, %v1546
    %v3090 = vsel %vm3030, %v3025, %v1548
    %v3091 = vsel %vm3030, %v3026, %v1550
    %v3092 = vsel %vm3030, %v3027, %v1552
    %v3093 = vsel %vm3030, %v3028, %v1554
    %v3094 = vsel %vm3030, %v3029, %v1556
    %vm3095 = vcmask 130048
    %v3096 = vsel %vm3095, %v3031, %v1686
    %v3097 = vsel %vm3095, %v3032, %v1688
    %v3098 = vsel %vm3095, %v3033, %v1690
    %v3099 = vsel %vm3095, %v3034, %v1692
    %v3100 = vsel %vm3095, %v3035, %v1694
    %v3101 = vsel %vm3095, %v3036, %v1696
    %v3102 = vsel %vm3095, %v3037, %v1698
    %v3103 = vsel %vm3095, %v3038, %v1700
    %v3104 = vsel %vm3095, %v3039, %v1702
    %v3105 = vsel %vm3095, %v3040, %v1704
    %v3106 = vsel %vm3095, %v3041, %v1706
    %v3107 = vsel %vm3095, %v3042, %v1708
    %v3108 = vsel %vm3095, %v3043, %v1710
    %v3109 = vsel %vm3095, %v3044, %v1712
    %v3110 = vsel %vm3095, %v3045, %v1714
    %v3111 = vsel %vm3095, %v3046, %v1716
    %v3112 = vsel %vm3095, %v3047, %v1718
    %v3113 = vsel %vm3095, %v3048, %v1720
    %v3114 = vsel %vm3095, %v3049, %v1722
    %v3115 = vsel %vm3095, %v3050, %v1724
    %v3116 = vsel %vm3095, %v3051, %v1726
    %v3117 = vsel %vm3095, %v3052, %v1728
    %v3118 = vsel %vm3095, %v3053, %v1730
    %v3119 = vsel %vm3095, %v3054, %v1732
    %v3120 = vsel %vm3095, %v3055, %v1734
    %v3121 = vsel %vm3095, %v3056, %v1736
    %v3122 = vsel %vm3095, %v3057, %v1738
    %v3123 = vsel %vm3095, %v3058, %v1740
    %v3124 = vsel %vm3095, %v3059, %v1742
    %v3125 = vsel %vm3095, %v3060, %v1744
    %v3126 = vsel %vm3095, %v3061, %v1746
    %v3127 = vsel %vm3095, %v3062, %v1748
    %v3128 = vsel %vm3095, %v3063, %v1750
    %v3129 = vsel %vm3095, %v3064, %v1752
    %v3130 = vsel %vm3095, %v3065, %v1754
    %v3131 = vsel %vm3095, %v3066, %v1756
    %v3132 = vsel %vm3095, %v3067, %v1758
    %v3133 = vsel %vm3095, %v3068, %v1760
    %v3134 = vsel %vm3095, %v3069, %v1762
    %v3135 = vsel %vm3095, %v3070, %v1764
    %v3136 = vsel %vm3095, %v3071, %v1766
    %v3137 = vsel %vm3095, %v3072, %v1768
    %v3138 = vsel %vm3095, %v3073, %v1770
    %v3139 = vsel %vm3095, %v3074, %v1772
    %v3140 = vsel %vm3095, %v3075, %v1774
    %v3141 = vsel %vm3095, %v3076, %v1776
    %v3142 = vsel %vm3095, %v3077, %v1778
    %v3143 = vsel %vm3095, %v3078, %v1780
    %v3144 = vsel %vm3095, %v3079, %v1782
    %v3145 = vsel %vm3095, %v3080, %v1784
    %v3146 = vsel %vm3095, %v3081, %v1786
    %v3147 = vsel %vm3095, %v3082, %v1788
    %v3148 = vsel %vm3095, %v3083, %v1790
    %v3149 = vsel %vm3095, %v3084, %v1792
    %v3150 = vsel %vm3095, %v3085, %v1794
    %v3151 = vsel %vm3095, %v3086, %v1796
    %v3152 = vsel %vm3095, %v3087, %v1798
    %v3153 = vsel %vm3095, %v3088, %v1800
    %v3154 = vsel %vm3095, %v3089, %v1802
    %v3155 = vsel %vm3095, %v3090, %v1804
    %v3156 = vsel %vm3095, %v3091, %v1806
    %v3157 = vsel %vm3095, %v3092, %v1808
    %v3158 = vsel %vm3095, %v3093, %v1810
    %v3159 = vsel %vm3095, %v3094, %v1812
    %vm3160 = vcmask 162816
    %v3161 = vsel %vm3160, %v3096, %v1942
    %v3162 = vsel %vm3160, %v3097, %v1944
    %v3163 = vsel %vm3160, %v3098, %v1946
    %v3164 = vsel %vm3160, %v3099, %v1948
    %v3165 = vsel %vm3160, %v3100, %v1950
    %v3166 = vsel %vm3160, %v3101, %v1952
    %v3167 = vsel %vm3160, %v3102, %v1954
    %v3168 = vsel %vm3160, %v3103, %v1956
    %v3169 = vsel %vm3160, %v3104, %v1958
    %v3170 = vsel %vm3160, %v3105, %v1960
    %v3171 = vsel %vm3160, %v3106, %v1962
    %v3172 = vsel %vm3160, %v3107, %v1964
    %v3173 = vsel %vm3160, %v3108, %v1966
    %v3174 = vsel %vm3160, %v3109, %v1968
    %v3175 = vsel %vm3160, %v3110, %v1970
    %v3176 = vsel %vm3160, %v3111, %v1972
    %v3177 = vsel %vm3160, %v3112, %v1974
    %v3178 = vsel %vm3160, %v3113, %v1976
    %v3179 = vsel %vm3160, %v3114, %v1978
    %v3180 = vsel %vm3160, %v3115, %v1980
    %v3181 = vsel %vm3160, %v3116, %v1982
    %v3182 = vsel %vm3160, %v3117, %v1984
    %v3183 = vsel %vm3160, %v3118, %v1986
    %v3184 = vsel %vm3160, %v3119, %v1988
    %v3185 = vsel %vm3160, %v3120, %v1990
    %v3186 = vsel %vm3160, %v3121, %v1992
    %v3187 = vsel %vm3160, %v3122, %v1994
    %v3188 = vsel %vm3160, %v3123, %v1996
    %v3189 = vsel %vm3160, %v3124, %v1998
    %v3190 = vsel %vm3160, %v3125, %v2000
    %v3191 = vsel %vm3160, %v3126, %v2002
    %v3192 = vsel %vm3160, %v3127, %v2004
    %v3193 = vsel %vm3160, %v3128, %v2006
    %v3194 = vsel %vm3160, %v3129, %v2008
    %v3195 = vsel %vm3160, %v3130, %v2010
    %v3196 = vsel %vm3160, %v3131, %v2012
    %v3197 = vsel %vm3160, %v3132, %v2014
    %v3198 = vsel %vm3160, %v3133, %v2016
    %v3199 = vsel %vm3160, %v3134, %v2018
    %v3200 = vsel %vm3160, %v3135, %v2020
    %v3201 = vsel %vm3160, %v3136, %v2022
    %v3202 = vsel %vm3160, %v3137, %v2024
    %v3203 = vsel %vm3160, %v3138, %v2026
    %v3204 = vsel %vm3160, %v3139, %v2028
    %v3205 = vsel %vm3160, %v3140, %v2030
    %v3206 = vsel %vm3160, %v3141, %v2032
    %v3207 = vsel %vm3160, %v3142, %v2034
    %v3208 = vsel %vm3160, %v3143, %v2036
    %v3209 = vsel %vm3160, %v3144, %v2038
    %v3210 = vsel %vm3160, %v3145, %v2040
    %v3211 = vsel %vm3160, %v3146, %v2042
    %v3212 = vsel %vm3160, %v3147, %v2044
    %v3213 = vsel %vm3160, %v3148, %v2046
    %v3214 = vsel %vm3160, %v3149, %v2048
    %v3215 = vsel %vm3160, %v3150, %v2050
    %v3216 = vsel %vm3160, %v3151, %v2052
    %v3217 = vsel %vm3160, %v3152, %v2054
    %v3218 = vsel %vm3160, %v3153, %v2056
    %v3219 = vsel %vm3160, %v3154, %v2058
    %v3220 = vsel %vm3160, %v3155, %v2060
    %v3221 = vsel %vm3160, %v3156, %v2062
    %v3222 = vsel %vm3160, %v3157, %v2064
    %v3223 = vsel %vm3160, %v3158, %v2066
    %v3224 = vsel %vm3160, %v3159, %v2068
    %vm3225 = vcmask 195584
    %v3226 = vsel %vm3225, %v3161, %v2198
    %v3227 = vsel %vm3225, %v3162, %v2200
    %v3228 = vsel %vm3225, %v3163, %v2202
    %v3229 = vsel %vm3225, %v3164, %v2204
    %v3230 = vsel %vm3225, %v3165, %v2206
    %v3231 = vsel %vm3225, %v3166, %v2208
    %v3232 = vsel %vm3225, %v3167, %v2210
    %v3233 = vsel %vm3225, %v3168, %v2212
    %v3234 = vsel %vm3225, %v3169, %v2214
    %v3235 = vsel %vm3225, %v3170, %v2216
    %v3236 = vsel %vm3225, %v3171, %v2218
    %v3237 = vsel %vm3225, %v3172, %v2220
    %v3238 = vsel %vm3225, %v3173, %v2222
    %v3239 = vsel %vm3225, %v3174, %v2224
    %v3240 = vsel %vm3225, %v3175, %v2226
    %v3241 = vsel %vm3225, %v3176, %v2228
    %v3242 = vsel %vm3225, %v3177, %v2230
    %v3243 = vsel %vm3225, %v3178, %v2232
    %v3244 = vsel %vm3225, %v3179, %v2234
    %v3245 = vsel %vm3225, %v3180, %v2236
    %v3246 = vsel %vm3225, %v3181, %v2238
    %v3247 = vsel %vm3225, %v3182, %v2240
    %v3248 = vsel %vm3225, %v3183, %v2242
    %v3249 = vsel %vm3225, %v3184, %v2244
    %v3250 = vsel %vm3225, %v3185, %v2246
    %v3251 = vsel %vm3225, %v3186, %v2248
    %v3252 = vsel %vm3225, %v3187, %v2250
    %v3253 = vsel %vm3225, %v3188, %v2252
    %v3254 = vsel %vm3225, %v3189, %v2254
    %v3255 = vsel %vm3225, %v3190, %v2256
    %v3256 = vsel %vm3225, %v3191, %v2258
    %v3257 = vsel %vm3225, %v3192, %v2260
    %v3258 = vsel %vm3225, %v3193, %v2262
    %v3259 = vsel %vm3225, %v3194, %v2264
    %v3260 = vsel %vm3225, %v3195, %v2266
    %v3261 = vsel %vm3225, %v3196, %v2268
    %v3262 = vsel %vm3225, %v3197, %v2270
    %v3263 = vsel %vm3225, %v3198, %v2272
    %v3264 = vsel %vm3225, %v3199, %v2274
    %v3265 = vsel %vm3225, %v3200, %v2276
    %v3266 = vsel %vm3225, %v3201, %v2278
    %v3267 = vsel %vm3225, %v3202, %v2280
    %v3268 = vsel %vm3225, %v3203, %v2282
    %v3269 = vsel %vm3225, %v3204, %v2284
    %v3270 = vsel %vm3225, %v3205, %v2286
    %v3271 = vsel %vm3225, %v3206, %v2288
    %v3272 = vsel %vm3225, %v3207, %v2290
    %v3273 = vsel %vm3225, %v3208, %v2292
    %v3274 = vsel %vm3225, %v3209, %v2294
    %v3275 = vsel %vm3225, %v3210, %v2296
    %v3276 = vsel %vm3225, %v3211, %v2298
    %v3277 = vsel %vm3225, %v3212, %v2300
    %v3278 = vsel %vm3225, %v3213, %v2302
    %v3279 = vsel %vm3225, %v3214, %v2304
    %v3280 = vsel %vm3225, %v3215, %v2306
    %v3281 = vsel %vm3225, %v3216, %v2308
    %v3282 = vsel %vm3225, %v3217, %v2310
    %v3283 = vsel %vm3225, %v3218, %v2312
    %v3284 = vsel %vm3225, %v3219, %v2314
    %v3285 = vsel %vm3225, %v3220, %v2316
    %v3286 = vsel %vm3225, %v3221, %v2318
    %v3287 = vsel %vm3225, %v3222, %v2320
    %v3288 = vsel %vm3225, %v3223, %v2322
    %v3289 = vsel %vm3225, %v3224, %v2324
    %v3290 = vsel %vm36, %v3226, %v2454
    %v3291 = vsel %vm36, %v3227, %v2456
    %v3292 = vsel %vm36, %v3228, %v2458
    %v3293 = vsel %vm36, %v3229, %v2460
    %v3294 = vsel %vm36, %v3230, %v2462
    %v3295 = vsel %vm36, %v3231, %v2464
    %v3296 = vsel %vm36, %v3232, %v2466
    %v3297 = vsel %vm36, %v3233, %v2468
    %v3298 = vsel %vm36, %v3234, %v2470
    %v3299 = vsel %vm36, %v3235, %v2472
    %v3300 = vsel %vm36, %v3236, %v2474
    %v3301 = vsel %vm36, %v3237, %v2476
    %v3302 = vsel %vm36, %v3238, %v2478
    %v3303 = vsel %vm36, %v3239, %v2480
    %v3304 = vsel %vm36, %v3240, %v2482
    %v3305 = vsel %vm36, %v3241, %v2484
    %v3306 = vsel %vm36, %v3242, %v2486
    %v3307 = vsel %vm36, %v3243, %v2488
    %v3308 = vsel %vm36, %v3244, %v2490
    %v3309 = vsel %vm36, %v3245, %v2492
    %v3310 = vsel %vm36, %v3246, %v2494
    %v3311 = vsel %vm36, %v3247, %v2496
    %v3312 = vsel %vm36, %v3248, %v2498
    %v3313 = vsel %vm36, %v3249, %v2500
    %v3314 = vsel %vm36, %v3250, %v2502
    %v3315 = vsel %vm36, %v3251, %v2504
    %v3316 = vsel %vm36, %v3252, %v2506
    %v3317 = vsel %vm36, %v3253, %v2508
    %v3318 = vsel %vm36, %v3254, %v2510
    %v3319 = vsel %vm36, %v3255, %v2512
    %v3320 = vsel %vm36, %v3256, %v2514
    %v3321 = vsel %vm36, %v3257, %v2516
    %v3322 = vsel %vm36, %v3258, %v2518
    %v3323 = vsel %vm36, %v3259, %v2520
    %v3324 = vsel %vm36, %v3260, %v2522
    %v3325 = vsel %vm36, %v3261, %v2524
    %v3326 = vsel %vm36, %v3262, %v2526
    %v3327 = vsel %vm36, %v3263, %v2528
    %v3328 = vsel %vm36, %v3264, %v2530
    %v3329 = vsel %vm36, %v3265, %v2532
    %v3330 = vsel %vm36, %v3266, %v2534
    %v3331 = vsel %vm36, %v3267, %v2536
    %v3332 = vsel %vm36, %v3268, %v2538
    %v3333 = vsel %vm36, %v3269, %v2540
    %v3334 = vsel %vm36, %v3270, %v2542
    %v3335 = vsel %vm36, %v3271, %v2544
    %v3336 = vsel %vm36, %v3272, %v2546
    %v3337 = vsel %vm36, %v3273, %v2548
    %v3338 = vsel %vm36, %v3274, %v2550
    %v3339 = vsel %vm36, %v3275, %v2552
    %v3340 = vsel %vm36, %v3276, %v2554
    %v3341 = vsel %vm36, %v3277, %v2556
    %v3342 = vsel %vm36, %v3278, %v2558
    %v3343 = vsel %vm36, %v3279, %v2560
    %v3344 = vsel %vm36, %v3280, %v2562
    %v3345 = vsel %vm36, %v3281, %v2564
    %v3346 = vsel %vm36, %v3282, %v2566
    %v3347 = vsel %vm36, %v3283, %v2568
    %v3348 = vsel %vm36, %v3284, %v2570
    %v3349 = vsel %vm36, %v3285, %v2572
    %v3350 = vsel %vm36, %v3286, %v2574
    %v3351 = vsel %vm36, %v3287, %v2576
    %v3352 = vsel %vm36, %v3288, %v2578
    %v3353 = vsel %vm36, %v3289, %v2580
    %vm3354 = vcmask 261120
    %v3355 = vsel %vm3354, %v3290, %v2710
    %v3356 = vsel %vm3354, %v3291, %v2712
    %v3357 = vsel %vm3354, %v3292, %v2714
    %v3358 = vsel %vm3354, %v3293, %v2716
    %v3359 = vsel %vm3354, %v3294, %v2718
    %v3360 = vsel %vm3354, %v3295, %v2720
    %v3361 = vsel %vm3354, %v3296, %v2722
    %v3362 = vsel %vm3354, %v3297, %v2724
    %v3363 = vsel %vm3354, %v3298, %v2726
    %v3364 = vsel %vm3354, %v3299, %v2728
    %v3365 = vsel %vm3354, %v3300, %v2730
    %v3366 = vsel %vm3354, %v3301, %v2732
    %v3367 = vsel %vm3354, %v3302, %v2734
    %v3368 = vsel %vm3354, %v3303, %v2736
    %v3369 = vsel %vm3354, %v3304, %v2738
    %v3370 = vsel %vm3354, %v3305, %v2740
    %v3371 = vsel %vm3354, %v3306, %v2742
    %v3372 = vsel %vm3354, %v3307, %v2744
    %v3373 = vsel %vm3354, %v3308, %v2746
    %v3374 = vsel %vm3354, %v3309, %v2748
    %v3375 = vsel %vm3354, %v3310, %v2750
    %v3376 = vsel %vm3354, %v3311, %v2752
    %v3377 = vsel %vm3354, %v3312, %v2754
    %v3378 = vsel %vm3354, %v3313, %v2756
    %v3379 = vsel %vm3354, %v3314, %v2758
    %v3380 = vsel %vm3354, %v3315, %v2760
    %v3381 = vsel %vm3354, %v3316, %v2762
    %v3382 = vsel %vm3354, %v3317, %v2764
    %v3383 = vsel %vm3354, %v3318, %v2766
    %v3384 = vsel %vm3354, %v3319, %v2768
    %v3385 = vsel %vm3354, %v3320, %v2770
    %v3386 = vsel %vm3354, %v3321, %v2772
    %v3387 = vsel %vm3354, %v3322, %v2774
    %v3388 = vsel %vm3354, %v3323, %v2776
    %v3389 = vsel %vm3354, %v3324, %v2778
    %v3390 = vsel %vm3354, %v3325, %v2780
    %v3391 = vsel %vm3354, %v3326, %v2782
    %v3392 = vsel %vm3354, %v3327, %v2784
    %v3393 = vsel %vm3354, %v3328, %v2786
    %v3394 = vsel %vm3354, %v3329, %v2788
    %v3395 = vsel %vm3354, %v3330, %v2790
    %v3396 = vsel %vm3354, %v3331, %v2792
    %v3397 = vsel %vm3354, %v3332, %v2794
    %v3398 = vsel %vm3354, %v3333, %v2796
    %v3399 = vsel %vm3354, %v3334, %v2798
    %v3400 = vsel %vm3354, %v3335, %v2800
    %v3401 = vsel %vm3354, %v3336, %v2802
    %v3402 = vsel %vm3354, %v3337, %v2804
    %v3403 = vsel %vm3354, %v3338, %v2806
    %v3404 = vsel %vm3354, %v3339, %v2808
    %v3405 = vsel %vm3354, %v3340, %v2810
    %v3406 = vsel %vm3354, %v3341, %v2812
    %v3407 = vsel %vm3354, %v3342, %v2814
    %v3408 = vsel %vm3354, %v3343, %v2816
    %v3409 = vsel %vm3354, %v3344, %v2818
    %v3410 = vsel %vm3354, %v3345, %v2820
    %v3411 = vsel %vm3354, %v3346, %v2822
    %v3412 = vsel %vm3354, %v3347, %v2824
    %v3413 = vsel %vm3354, %v3348, %v2826
    %v3414 = vsel %vm3354, %v3349, %v2828
    %v3415 = vsel %vm3354, %v3350, %v2830
    %v3416 = vsel %vm3354, %v3351, %v2832
    %v3417 = vsel %vm3354, %v3352, %v2834
    %v3418 = vsel %vm3354, %v3353, %v2836
    %v3419 = vld [vmem:[%s1] sm:$0xff]
    %v3420 = vld [vmem:[%s1 + $0x8] sm:$0xff]
    %v3421 = vld [vmem:[%s1 + $0x10] sm:$0xff]
    %v3422 = vld [vmem:[%s1 + $0x18] sm:$0xff]
    %v3423 = vld [vmem:[%s1 + $0x20] sm:$0xf]
    %vm3424 = vcmask 293888
    %v3426 = vsel %vm3424, %v3355, 0
    %v3429 = vsel %vm3424, %v3356, 0
    %v3432 = vsel %vm3424, %v3357, 0
    %v3435 = vsel %vm3424, %v3358, 0
    %v3438 = vsel %vm3424, %v3359, 0
    %v3441 = vsel %vm3424, %v3360, 0
    %v3444 = vsel %vm3424, %v3361, 0
    %v3447 = vsel %vm3424, %v3362, 0
    %v3450 = vsel %vm3424, %v3363, 0
    %v3453 = vsel %vm3424, %v3364, 0
    %v3456 = vsel %vm3424, %v3365, 0
    %v3459 = vsel %vm3424, %v3366, 0
    %v3462 = vsel %vm3424, %v3367, 0
    %v3465 = vsel %vm3424, %v3368, 0
    %v3468 = vsel %vm3424, %v3369, 0
    %v3471 = vsel %vm3424, %v3370, 0
    %v3474 = vsel %vm3424, %v3371, 0
    %v3477 = vsel %vm3424, %v3372, 0
    %v3480 = vsel %vm3424, %v3373, 0
    %v3483 = vsel %vm3424, %v3374, 0
    %v3486 = vsel %vm3424, %v3375, 0
    %v3489 = vsel %vm3424, %v3376, 0
    %v3492 = vsel %vm3424, %v3377, 0
    %v3495 = vsel %vm3424, %v3378, 0
    %v3498 = vsel %vm3424, %v3379, 0
    %v3501 = vsel %vm3424, %v3380, 0
    %v3504 = vsel %vm3424, %v3381, 0
    %v3507 = vsel %vm3424, %v3382, 0
    %v3510 = vsel %vm3424, %v3383, 0
    %v3513 = vsel %vm3424, %v3384, 0
    %v3516 = vsel %vm3424, %v3385, 0
    %v3519 = vsel %vm3424, %v3386, 0
    %v3522 = vsel %vm3424, %v3387, 0
    %v3525 = vsel %vm3424, %v3388, 0
    %v3528 = vsel %vm3424, %v3389, 0
    %v3531 = vsel %vm3424, %v3390, 0
    %v3534 = vsel %vm3424, %v3391, 0
    %v3537 = vsel %vm3424, %v3392, 0
    %v3540 = vsel %vm3424, %v3393, 0
    %v3543 = vsel %vm3424, %v3394, 0
    %v3546 = vsel %vm3424, %v3395, 0
    %v3549 = vsel %vm3424, %v3396, 0
    %v3552 = vsel %vm3424, %v3397, 0
    %v3555 = vsel %vm3424, %v3398, 0
    %v3558 = vsel %vm3424, %v3399, 0
    %v3561 = vsel %vm3424, %v3400, 0
    %v3564 = vsel %vm3424, %v3401, 0
    %v3567 = vsel %vm3424, %v3402, 0
    %v3570 = vsel %vm3424, %v3403, 0
    %v3573 = vsel %vm3424, %v3404, 0
    %v3576 = vsel %vm3424, %v3405, 0
    %v3579 = vsel %vm3424, %v3406, 0
    %v3582 = vsel %vm3424, %v3407, 0
    %v3585 = vsel %vm3424, %v3408, 0
    %v3588 = vsel %vm3424, %v3409, 0
    %v3591 = vsel %vm3424, %v3410, 0
    %v3594 = vsel %vm3424, %v3411, 0
    %v3597 = vsel %vm3424, %v3412, 0
    %v3600 = vsel %vm3424, %v3413, 0
    %v3603 = vsel %vm3424, %v3414, 0
    %v3606 = vsel %vm3424, %v3415, 0
    %v3609 = vsel %vm3424, %v3416, 0
    %v3612 = vsel %vm3424, %v3417, 0
    %v3615 = vsel %vm3424, %v3418, 0
    %vm3617 = vcmask 1043456
    %v3619 = vsel %vm3617, %v3423, 0
    %3621 = vmatprep.subr.mxu0 0.0
    %3622 = vmatpush1.msra.mxu0 0.0
    %3623 = vmatprep.subr.mxu0 0.0
    %3624 = vmatpush1.msra.mxu0 0.0
    %3625 = vmatprep.subr.mxu0 0.0
    %3626 = vmatpush1.msra.mxu0 0.0
    %3627 = vmatprep.subr.mxu0 0.0
    %3628 = vmatpush1.msra.mxu0 0.0
    %3629 = vmatprep.subr.mxu0 0.0
    %3630 = vmatpush1.msra.mxu0 0.0
    %3631 = vmatprep.subr.mxu0 0.0
    %3632 = vmatpush1.msra.mxu0 0.0
    %3633 = vmatprep.subr.mxu0 0.0
    %3634 = vmatpush1.msra.mxu0 0.0
    %3635 = vmatprep.subr.mxu0 0.0
    %3636 = vmatpush1.msra.mxu0 0.0
    %3637 = vmatprep.subr.mxu0 0.0
    %3638 = vmatpush1.msra.mxu0 0.0
    %3639 = vmatprep.subr.mxu0 0.0
    %3640 = vmatpush1.msra.mxu0 0.0
    %3641 = vmatprep.subr.mxu0 0.0
    %3642 = vmatpush1.msra.mxu0 0.0
    %3643 = vmatprep.subr.mxu0 0.0
    %3644 = vmatpush1.msra.mxu0 %v3619
    %3645 = vmatprep.subr.mxu0 0.0
    %3646 = vmatpush1.msra.mxu0 %v3422
    %3647 = vmatprep.subr.mxu0 0.0
    %3648 = vmatpush1.msra.mxu0 %v3421
    %3649 = vmatprep.subr.mxu0 0.0
    %3650 = vmatpush1.msra.mxu0 %v3420
    %3651 = vmatprep.subr.mxu0 0.0
    %3652 = vmatpush1.msra.mxu0 %v3419
    %3653 = vmatprep.subr.mxu0 0.0
    %3654 = vmatpush2.msra.mxu0 0.0
    %3655 = vmatprep.subr.mxu0 0.0
    %3656 = vmatpush2.msra.mxu0 0.0
    %3657 = vmatprep.subr.mxu0 0.0
    %3658 = vmatpush2.msra.mxu0 0.0
    %3659 = vmatprep.subr.mxu0 0.0
    %3660 = vmatpush2.msra.mxu0 0.0
    %3661 = vmatprep.subr.mxu0 0.0
    %3662 = vmatpush2.msra.mxu0 0.0
    %3663 = vmatprep.subr.mxu0 0.0
    %3664 = vmatpush2.msra.mxu0 0.0
    %3665 = vmatprep.subr.mxu0 0.0
    %3666 = vmatpush2.msra.mxu0 0.0
    %3667 = vmatprep.subr.mxu0 0.0
    %3668 = vmatpush2.msra.mxu0 0.0
    %3669 = vmatprep.subr.mxu0 0.0
    %3670 = vmatpush2.msra.mxu0 0.0
    %3671 = vmatprep.subr.mxu0 0.0
    %3672 = vmatpush2.msra.mxu0 0.0
    %3673 = vmatprep.subr.mxu0 0.0
    %3674 = vmatpush2.msra.mxu0 0.0
    %3675 = vmatprep.subr.mxu0 0.0
    %3676 = vmatpush2.msra.mxu0 0.0
    %3677 = vmatprep.subr.mxu0 0.0
    %3678 = vmatpush2.msra.mxu0 0.0
    %3679 = vmatprep.subr.mxu0 0.0
    %3680 = vmatpush2.msra.mxu0 0.0
    %3681 = vmatprep.subr.mxu0 0.0
    %3682 = vmatpush2.msra.mxu0 0.0
    %3683 = vmatprep.subr.mxu0 0.0
    %3684 = vmatpush2.msra.mxu0 0.0
    %3685 = vmatprep.mubr.f32.mxu0 0.0
    %3686 = vmatmul.mubr.f32.gmra.mxu0 %v3426
    %v3687 = vpop.f32.mrf.mxu0
    %v3688 = vadd.f32 0.0, %v3687
    %v3689 = vpop.f32.mrf.mxu0
    %3690 = vmatprep.mubr.f32.mxu0 0.0
    %3691 = vmatmul.mubr.f32.gmra.mxu0 %v3429
    %v3692 = vpop.f32.mrf.mxu0
    %v3693 = vadd.f32 0.0, %v3692
    %v3694 = vpop.f32.mrf.mxu0
    %3695 = vmatprep.mubr.f32.mxu0 0.0
    %3696 = vmatmul.mubr.f32.gmra.mxu0 %v3432
    %v3697 = vpop.f32.mrf.mxu0
    %v3698 = vadd.f32 0.0, %v3697
    %v3699 = vpop.f32.mrf.mxu0
    %3700 = vmatprep.mubr.f32.mxu0 0.0
    %3701 = vmatmul.mubr.f32.gmra.mxu0 %v3435
    %v3702 = vpop.f32.mrf.mxu0
    %v3703 = vadd.f32 0.0, %v3702
    %v3704 = vpop.f32.mrf.mxu0
    %3705 = vmatprep.mubr.f32.mxu0 0.0
    %3706 = vmatmul.mubr.f32.gmra.mxu0 %v3438
    %v3707 = vpop.f32.mrf.mxu0
    %v3708 = vadd.f32 0.0, %v3707
    %v3709 = vpop.f32.mrf.mxu0
    %3710 = vmatprep.mubr.f32.mxu0 0.0
    %3711 = vmatmul.mubr.f32.gmra.mxu0 %v3441
    %v3712 = vpop.f32.mrf.mxu0
    %v3713 = vadd.f32 0.0, %v3712
    %v3714 = vpop.f32.mrf.mxu0
    %3715 = vmatprep.mubr.f32.mxu0 0.0
    %3716 = vmatmul.mubr.f32.gmra.mxu0 %v3444
    %v3717 = vpop.f32.mrf.mxu0
    %v3718 = vadd.f32 0.0, %v3717
    %v3719 = vpop.f32.mrf.mxu0
    %3720 = vmatprep.mubr.f32.mxu0 0.0
    %3721 = vmatmul.mubr.f32.gmra.mxu0 %v3447
    %v3722 = vpop.f32.mrf.mxu0
    %v3723 = vadd.f32 0.0, %v3722
    %v3724 = vpop.f32.mrf.mxu0
    %3725 = vmatprep.mubr.f32.mxu0 0.0
    %3726 = vmatmul.mubr.f32.gmra.mxu0 %v3450
    %v3727 = vpop.f32.mrf.mxu0
    %v3728 = vadd.f32 0.0, %v3727
    %v3729 = vpop.f32.mrf.mxu0
    %3730 = vmatprep.mubr.f32.mxu0 0.0
    %3731 = vmatmul.mubr.f32.gmra.mxu0 %v3453
    %v3732 = vpop.f32.mrf.mxu0
    %v3733 = vadd.f32 0.0, %v3732
    %v3734 = vpop.f32.mrf.mxu0
    %3735 = vmatprep.mubr.f32.mxu0 0.0
    %3736 = vmatmul.mubr.f32.gmra.mxu0 %v3456
    %v3737 = vpop.f32.mrf.mxu0
    %v3738 = vadd.f32 0.0, %v3737
    %v3739 = vpop.f32.mrf.mxu0
    %3740 = vmatprep.mubr.f32.mxu0 0.0
    %3741 = vmatmul.mubr.f32.gmra.mxu0 %v3459
    %v3742 = vpop.f32.mrf.mxu0
    %v3743 = vadd.f32 0.0, %v3742
    %v3744 = vpop.f32.mrf.mxu0
    %3745 = vmatprep.mubr.f32.mxu0 0.0
    %3746 = vmatmul.mubr.f32.gmra.mxu0 %v3462
    %v3747 = vpop.f32.mrf.mxu0
    %v3748 = vadd.f32 0.0, %v3747
    %v3749 = vpop.f32.mrf.mxu0
    %3750 = vmatprep.mubr.f32.mxu0 0.0
    %3751 = vmatmul.mubr.f32.gmra.mxu0 %v3465
    %v3752 = vpop.f32.mrf.mxu0
    %v3753 = vadd.f32 0.0, %v3752
    %v3754 = vpop.f32.mrf.mxu0
    %3755 = vmatprep.mubr.f32.mxu0 0.0
    %3756 = vmatmul.mubr.f32.gmra.mxu0 %v3468
    %v3757 = vpop.f32.mrf.mxu0
    %v3758 = vadd.f32 0.0, %v3757
    %v3759 = vpop.f32.mrf.mxu0
    %3760 = vmatprep.mubr.f32.mxu0 0.0
    %3761 = vmatmul.mubr.f32.gmra.mxu0 %v3471
    %v3762 = vpop.f32.mrf.mxu0
    %v3763 = vadd.f32 0.0, %v3762
    %v3764 = vpop.f32.mrf.mxu0
    %3765 = vmatprep.mubr.f32.mxu0 0.0
    %3766 = vmatmul.mubr.f32.gmra.mxu0 %v3474
    %v3767 = vpop.f32.mrf.mxu0
    %v3768 = vadd.f32 0.0, %v3767
    %v3769 = vpop.f32.mrf.mxu0
    %3770 = vmatprep.mubr.f32.mxu0 0.0
    %3771 = vmatmul.mubr.f32.gmra.mxu0 %v3477
    %v3772 = vpop.f32.mrf.mxu0
    %v3773 = vadd.f32 0.0, %v3772
    %v3774 = vpop.f32.mrf.mxu0
    %3775 = vmatprep.mubr.f32.mxu0 0.0
    %3776 = vmatmul.mubr.f32.gmra.mxu0 %v3480
    %v3777 = vpop.f32.mrf.mxu0
    %v3778 = vadd.f32 0.0, %v3777
    %v3779 = vpop.f32.mrf.mxu0
    %3780 = vmatprep.mubr.f32.mxu0 0.0
    %3781 = vmatmul.mubr.f32.gmra.mxu0 %v3483
    %v3782 = vpop.f32.mrf.mxu0
    %v3783 = vadd.f32 0.0, %v3782
    %v3784 = vpop.f32.mrf.mxu0
    %3785 = vmatprep.mubr.f32.mxu0 0.0
    %3786 = vmatmul.mubr.f32.gmra.mxu0 %v3486
    %v3787 = vpop.f32.mrf.mxu0
    %v3788 = vadd.f32 0.0, %v3787
    %v3789 = vpop.f32.mrf.mxu0
    %3790 = vmatprep.mubr.f32.mxu0 0.0
    %3791 = vmatmul.mubr.f32.gmra.mxu0 %v3489
    %v3792 = vpop.f32.mrf.mxu0
    %v3793 = vadd.f32 0.0, %v3792
    %v3794 = vpop.f32.mrf.mxu0
    %3795 = vmatprep.mubr.f32.mxu0 0.0
    %3796 = vmatmul.mubr.f32.gmra.mxu0 %v3492
    %v3797 = vpop.f32.mrf.mxu0
    %v3798 = vadd.f32 0.0, %v3797
    %v3799 = vpop.f32.mrf.mxu0
    %3800 = vmatprep.mubr.f32.mxu0 0.0
    %3801 = vmatmul.mubr.f32.gmra.mxu0 %v3495
    %v3802 = vpop.f32.mrf.mxu0
    %v3803 = vadd.f32 0.0, %v3802
    %v3804 = vpop.f32.mrf.mxu0
    %3805 = vmatprep.mubr.f32.mxu0 0.0
    %3806 = vmatmul.mubr.f32.gmra.mxu0 %v3498
    %v3807 = vpop.f32.mrf.mxu0
    %v3808 = vadd.f32 0.0, %v3807
    %v3809 = vpop.f32.mrf.mxu0
    %3810 = vmatprep.mubr.f32.mxu0 0.0
    %3811 = vmatmul.mubr.f32.gmra.mxu0 %v3501
    %v3812 = vpop.f32.mrf.mxu0
    %v3813 = vadd.f32 0.0, %v3812
    %v3814 = vpop.f32.mrf.mxu0
    %3815 = vmatprep.mubr.f32.mxu0 0.0
    %3816 = vmatmul.mubr.f32.gmra.mxu0 %v3504
    %v3817 = vpop.f32.mrf.mxu0
    %v3818 = vadd.f32 0.0, %v3817
    %v3819 = vpop.f32.mrf.mxu0
    %3820 = vmatprep.mubr.f32.mxu0 0.0
    %3821 = vmatmul.mubr.f32.gmra.mxu0 %v3507
    %v3822 = vpop.f32.mrf.mxu0
    %v3823 = vadd.f32 0.0, %v3822
    %v3824 = vpop.f32.mrf.mxu0
    %3825 = vmatprep.mubr.f32.mxu0 0.0
    %3826 = vmatmul.mubr.f32.gmra.mxu0 %v3510
    %v3827 = vpop.f32.mrf.mxu0
    %v3828 = vadd.f32 0.0, %v3827
    %v3829 = vpop.f32.mrf.mxu0
    %3830 = vmatprep.mubr.f32.mxu0 0.0
    %3831 = vmatmul.mubr.f32.gmra.mxu0 %v3513
    %v3832 = vpop.f32.mrf.mxu0
    %v3833 = vadd.f32 0.0, %v3832
    %v3834 = vpop.f32.mrf.mxu0
    %3835 = vmatprep.mubr.f32.mxu0 0.0
    %3836 = vmatmul.mubr.f32.gmra.mxu0 %v3516
    %v3837 = vpop.f32.mrf.mxu0
    %v3838 = vadd.f32 0.0, %v3837
    %v3839 = vpop.f32.mrf.mxu0
    %3840 = vmatprep.mubr.f32.mxu0 0.0
    %3841 = vmatmul.mubr.f32.gmra.mxu0 %v3519
    %v3842 = vpop.f32.mrf.mxu0
    %v3843 = vadd.f32 0.0, %v3842
    %v3844 = vpop.f32.mrf.mxu0
    %3845 = vmatprep.mubr.f32.mxu0 0.0
    %3846 = vmatmul.mubr.f32.gmra.mxu0 %v3522
    %v3847 = vpop.f32.mrf.mxu0
    %v3848 = vadd.f32 0.0, %v3847
    %v3849 = vpop.f32.mrf.mxu0
    %3850 = vmatprep.mubr.f32.mxu0 0.0
    %3851 = vmatmul.mubr.f32.gmra.mxu0 %v3525
    %v3852 = vpop.f32.mrf.mxu0
    %v3853 = vadd.f32 0.0, %v3852
    %v3854 = vpop.f32.mrf.mxu0
    %3855 = vmatprep.mubr.f32.mxu0 0.0
    %3856 = vmatmul.mubr.f32.gmra.mxu0 %v3528
    %v3857 = vpop.f32.mrf.mxu0
    %v3858 = vadd.f32 0.0, %v3857
    %v3859 = vpop.f32.mrf.mxu0
    %3860 = vmatprep.mubr.f32.mxu0 0.0
    %3861 = vmatmul.mubr.f32.gmra.mxu0 %v3531
    %v3862 = vpop.f32.mrf.mxu0
    %v3863 = vadd.f32 0.0, %v3862
    %v3864 = vpop.f32.mrf.mxu0
    %3865 = vmatprep.mubr.f32.mxu0 0.0
    %3866 = vmatmul.mubr.f32.gmra.mxu0 %v3534
    %v3867 = vpop.f32.mrf.mxu0
    %v3868 = vadd.f32 0.0, %v3867
    %v3869 = vpop.f32.mrf.mxu0
    %3870 = vmatprep.mubr.f32.mxu0 0.0
    %3871 = vmatmul.mubr.f32.gmra.mxu0 %v3537
    %v3872 = vpop.f32.mrf.mxu0
    %v3873 = vadd.f32 0.0, %v3872
    %v3874 = vpop.f32.mrf.mxu0
    %3875 = vmatprep.mubr.f32.mxu0 0.0
    %3876 = vmatmul.mubr.f32.gmra.mxu0 %v3540
    %v3877 = vpop.f32.mrf.mxu0
    %v3878 = vadd.f32 0.0, %v3877
    %v3879 = vpop.f32.mrf.mxu0
    %3880 = vmatprep.mubr.f32.mxu0 0.0
    %3881 = vmatmul.mubr.f32.gmra.mxu0 %v3543
    %v3882 = vpop.f32.mrf.mxu0
    %v3883 = vadd.f32 0.0, %v3882
    %v3884 = vpop.f32.mrf.mxu0
    %3885 = vmatprep.mubr.f32.mxu0 0.0
    %3886 = vmatmul.mubr.f32.gmra.mxu0 %v3546
    %v3887 = vpop.f32.mrf.mxu0
    %v3888 = vadd.f32 0.0, %v3887
    %v3889 = vpop.f32.mrf.mxu0
    %3890 = vmatprep.mubr.f32.mxu0 0.0
    %3891 = vmatmul.mubr.f32.gmra.mxu0 %v3549
    %v3892 = vpop.f32.mrf.mxu0
    %v3893 = vadd.f32 0.0, %v3892
    %v3894 = vpop.f32.mrf.mxu0
    %3895 = vmatprep.mubr.f32.mxu0 0.0
    %3896 = vmatmul.mubr.f32.gmra.mxu0 %v3552
    %v3897 = vpop.f32.mrf.mxu0
    %v3898 = vadd.f32 0.0, %v3897
    %v3899 = vpop.f32.mrf.mxu0
    %3900 = vmatprep.mubr.f32.mxu0 0.0
    %3901 = vmatmul.mubr.f32.gmra.mxu0 %v3555
    %v3902 = vpop.f32.mrf.mxu0
    %v3903 = vadd.f32 0.0, %v3902
    %v3904 = vpop.f32.mrf.mxu0
    %3905 = vmatprep.mubr.f32.mxu0 0.0
    %3906 = vmatmul.mubr.f32.gmra.mxu0 %v3558
    %v3907 = vpop.f32.mrf.mxu0
    %v3908 = vadd.f32 0.0, %v3907
    %v3909 = vpop.f32.mrf.mxu0
    %3910 = vmatprep.mubr.f32.mxu0 0.0
    %3911 = vmatmul.mubr.f32.gmra.mxu0 %v3561
    %v3912 = vpop.f32.mrf.mxu0
    %v3913 = vadd.f32 0.0, %v3912
    %v3914 = vpop.f32.mrf.mxu0
    %3915 = vmatprep.mubr.f32.mxu0 0.0
    %3916 = vmatmul.mubr.f32.gmra.mxu0 %v3564
    %v3917 = vpop.f32.mrf.mxu0
    %v3918 = vadd.f32 0.0, %v3917
    %v3919 = vpop.f32.mrf.mxu0
    %3920 = vmatprep.mubr.f32.mxu0 0.0
    %3921 = vmatmul.mubr.f32.gmra.mxu0 %v3567
    %v3922 = vpop.f32.mrf.mxu0
    %v3923 = vadd.f32 0.0, %v3922
    %v3924 = vpop.f32.mrf.mxu0
    %3925 = vmatprep.mubr.f32.mxu0 0.0
    %3926 = vmatmul.mubr.f32.gmra.mxu0 %v3570
    %v3927 = vpop.f32.mrf.mxu0
    %v3928 = vadd.f32 0.0, %v3927
    %v3929 = vpop.f32.mrf.mxu0
    %3930 = vmatprep.mubr.f32.mxu0 0.0
    %3931 = vmatmul.mubr.f32.gmra.mxu0 %v3573
    %v3932 = vpop.f32.mrf.mxu0
    %v3933 = vadd.f32 0.0, %v3932
    %v3934 = vpop.f32.mrf.mxu0
    %3935 = vmatprep.mubr.f32.mxu0 0.0
    %3936 = vmatmul.mubr.f32.gmra.mxu0 %v3576
    %v3937 = vpop.f32.mrf.mxu0
    %v3938 = vadd.f32 0.0, %v3937
    %v3939 = vpop.f32.mrf.mxu0
    %3940 = vmatprep.mubr.f32.mxu0 0.0
    %3941 = vmatmul.mubr.f32.gmra.mxu0 %v3579
    %v3942 = vpop.f32.mrf.mxu0
    %v3943 = vadd.f32 0.0, %v3942
    %v3944 = vpop.f32.mrf.mxu0
    %3945 = vmatprep.mubr.f32.mxu0 0.0
    %3946 = vmatmul.mubr.f32.gmra.mxu0 %v3582
    %v3947 = vpop.f32.mrf.mxu0
    %v3948 = vadd.f32 0.0, %v3947
    %v3949 = vpop.f32.mrf.mxu0
    %3950 = vmatprep.mubr.f32.mxu0 0.0
    %3951 = vmatmul.mubr.f32.gmra.mxu0 %v3585
    %v3952 = vpop.f32.mrf.mxu0
    %v3953 = vadd.f32 0.0, %v3952
    %v3954 = vpop.f32.mrf.mxu0
    %3955 = vmatprep.mubr.f32.mxu0 0.0
    %3956 = vmatmul.mubr.f32.gmra.mxu0 %v3588
    %v3957 = vpop.f32.mrf.mxu0
    %v3958 = vadd.f32 0.0, %v3957
    %v3959 = vpop.f32.mrf.mxu0
    %3960 = vmatprep.mubr.f32.mxu0 0.0
    %3961 = vmatmul.mubr.f32.gmra.mxu0 %v3591
    %v3962 = vpop.f32.mrf.mxu0
    %v3963 = vadd.f32 0.0, %v3962
    %v3964 = vpop.f32.mrf.mxu0
    %3965 = vmatprep.mubr.f32.mxu0 0.0
    %3966 = vmatmul.mubr.f32.gmra.mxu0 %v3594
    %v3967 = vpop.f32.mrf.mxu0
    %v3968 = vadd.f32 0.0, %v3967
    %v3969 = vpop.f32.mrf.mxu0
    %3970 = vmatprep.mubr.f32.mxu0 0.0
    %3971 = vmatmul.mubr.f32.gmra.mxu0 %v3597
    %v3972 = vpop.f32.mrf.mxu0
    %v3973 = vadd.f32 0.0, %v3972
    %v3974 = vpop.f32.mrf.mxu0
    %3975 = vmatprep.mubr.f32.mxu0 0.0
    %3976 = vmatmul.mubr.f32.gmra.mxu0 %v3600
    %v3977 = vpop.f32.mrf.mxu0
    %v3978 = vadd.f32 0.0, %v3977
    %v3979 = vpop.f32.mrf.mxu0
    %3980 = vmatprep.mubr.f32.mxu0 0.0
    %3981 = vmatmul.mubr.f32.gmra.mxu0 %v3603
    %v3982 = vpop.f32.mrf.mxu0
    %v3983 = vadd.f32 0.0, %v3982
    %v3984 = vpop.f32.mrf.mxu0
    %3985 = vmatprep.mubr.f32.mxu0 0.0
    %3986 = vmatmul.mubr.f32.gmra.mxu0 %v3606
    %v3987 = vpop.f32.mrf.mxu0
    %v3988 = vadd.f32 0.0, %v3987
    %v3989 = vpop.f32.mrf.mxu0
    %3990 = vmatprep.mubr.f32.mxu0 0.0
    %3991 = vmatmul.mubr.f32.gmra.mxu0 %v3609
    %v3992 = vpop.f32.mrf.mxu0
    %v3993 = vadd.f32 0.0, %v3992
    %v3994 = vpop.f32.mrf.mxu0
    %3995 = vmatprep.mubr.f32.mxu0 0.0
    %3996 = vmatmul.mubr.f32.gmra.mxu0 %v3612
    %v3997 = vpop.f32.mrf.mxu0
    %v3998 = vadd.f32 0.0, %v3997
    %v3999 = vpop.f32.mrf.mxu0
    %4000 = vmatprep.mubr.f32.mxu0 0.0
    %4001 = vmatmul.mubr.f32.gmra.mxu0 %v3615
    %v4002 = vpop.f32.mrf.mxu0
    %v4003 = vadd.f32 0.0, %v4002
    %v4004 = vpop.f32.mrf.mxu0
    %4005 = vdwg.mxu0
    %v4006 = vsel %vm2965, %v3688, 0.0
    %v4007 = vsel %vm2965, %v3693, 0.0
    %v4008 = vadd.f32 %v4006, %v4007
    %v4009 = vsel %vm2965, %v3698, 0.0
    %v4010 = vadd.f32 %v4008, %v4009
    %v4011 = vsel %vm2965, %v3703, 0.0
    %v4012 = vadd.f32 %v4010, %v4011
    %v4013 = vsel %vm2965, %v3708, 0.0
    %v4014 = vadd.f32 %v4012, %v4013
    %v4015 = vsel %vm2965, %v3713, 0.0
    %v4016 = vadd.f32 %v4014, %v4015
    %v4017 = vsel %vm2965, %v3718, 0.0
    %v4018 = vadd.f32 %v4016, %v4017
    %v4019 = vsel %vm2965, %v3723, 0.0
    %v4020 = vadd.f32 %v4018, %v4019
    %v4021 = vsel %vm2965, %v3728, 0.0
    %v4022 = vadd.f32 %v4020, %v4021
    %v4023 = vsel %vm2965, %v3733, 0.0
    %v4024 = vadd.f32 %v4022, %v4023
    %v4025 = vsel %vm2965, %v3738, 0.0
    %v4026 = vadd.f32 %v4024, %v4025
    %v4027 = vsel %vm2965, %v3743, 0.0
    %v4028 = vadd.f32 %v4026, %v4027
    %v4029 = vsel %vm2965, %v3748, 0.0
    %v4030 = vadd.f32 %v4028, %v4029
    %v4031 = vsel %vm2965, %v3753, 0.0
    %v4032 = vadd.f32 %v4030, %v4031
    %v4033 = vsel %vm2965, %v3758, 0.0
    %v4034 = vadd.f32 %v4032, %v4033
    %v4035 = vsel %vm2965, %v3763, 0.0
    %v4036 = vadd.f32 %v4034, %v4035
    %v4037 = vsel %vm2965, %v3768, 0.0
    %v4038 = vadd.f32 %v4036, %v4037
    %v4039 = vsel %vm2965, %v3773, 0.0
    %v4040 = vadd.f32 %v4038, %v4039
    %v4041 = vsel %vm2965, %v3778, 0.0
    %v4042 = vadd.f32 %v4040, %v4041
    %v4043 = vsel %vm2965, %v3783, 0.0
    %v4044 = vadd.f32 %v4042, %v4043
    %v4045 = vsel %vm2965, %v3788, 0.0
    %v4046 = vadd.f32 %v4044, %v4045
    %v4047 = vsel %vm2965, %v3793, 0.0
    %v4048 = vadd.f32 %v4046, %v4047
    %v4049 = vsel %vm2965, %v3798, 0.0
    %v4050 = vadd.f32 %v4048, %v4049
    %v4051 = vsel %vm2965, %v3803, 0.0
    %v4052 = vadd.f32 %v4050, %v4051
    %v4053 = vsel %vm2965, %v3808, 0.0
    %v4054 = vadd.f32 %v4052, %v4053
    %v4055 = vsel %vm2965, %v3813, 0.0
    %v4056 = vadd.f32 %v4054, %v4055
    %v4057 = vsel %vm2965, %v3818, 0.0
    %v4058 = vadd.f32 %v4056, %v4057
    %v4059 = vsel %vm2965, %v3823, 0.0
    %v4060 = vadd.f32 %v4058, %v4059
    %v4061 = vsel %vm2965, %v3828, 0.0
    %v4062 = vadd.f32 %v4060, %v4061
    %v4063 = vsel %vm2965, %v3833, 0.0
    %v4064 = vadd.f32 %v4062, %v4063
    %v4065 = vsel %vm2965, %v3838, 0.0
    %v4066 = vadd.f32 %v4064, %v4065
    %v4067 = vsel %vm2965, %v3843, 0.0
    %v4068 = vadd.f32 %v4066, %v4067
    %v4069 = vsel %vm2965, %v3848, 0.0
    %v4070 = vadd.f32 %v4068, %v4069
    %v4071 = vsel %vm2965, %v3853, 0.0
    %v4072 = vadd.f32 %v4070, %v4071
    %v4073 = vsel %vm2965, %v3858, 0.0
    %v4074 = vadd.f32 %v4072, %v4073
    %v4075 = vsel %vm2965, %v3863, 0.0
    %v4076 = vadd.f32 %v4074, %v4075
    %v4077 = vsel %vm2965, %v3868, 0.0
    %v4078 = vadd.f32 %v4076, %v4077
    %v4079 = vsel %vm2965, %v3873, 0.0
    %v4080 = vadd.f32 %v4078, %v4079
    %v4081 = vsel %vm2965, %v3878, 0.0
    %v4082 = vadd.f32 %v4080, %v4081
    %v4083 = vsel %vm2965, %v3883, 0.0
    %v4084 = vadd.f32 %v4082, %v4083
    %v4085 = vsel %vm2965, %v3888, 0.0
    %v4086 = vadd.f32 %v4084, %v4085
    %v4087 = vsel %vm2965, %v3893, 0.0
    %v4088 = vadd.f32 %v4086, %v4087
    %v4089 = vsel %vm2965, %v3898, 0.0
    %v4090 = vadd.f32 %v4088, %v4089
    %v4091 = vsel %vm2965, %v3903, 0.0
    %v4092 = vadd.f32 %v4090, %v4091
    %v4093 = vsel %vm2965, %v3908, 0.0
    %v4094 = vadd.f32 %v4092, %v4093
    %v4095 = vsel %vm2965, %v3913, 0.0
    %v4096 = vadd.f32 %v4094, %v4095
    %v4097 = vsel %vm2965, %v3918, 0.0
    %v4098 = vadd.f32 %v4096, %v4097
    %v4099 = vsel %vm2965, %v3923, 0.0
    %v4100 = vadd.f32 %v4098, %v4099
    %v4101 = vsel %vm2965, %v3928, 0.0
    %v4102 = vadd.f32 %v4100, %v4101
    %v4103 = vsel %vm2965, %v3933, 0.0
    %v4104 = vadd.f32 %v4102, %v4103
    %v4105 = vsel %vm2965, %v3938, 0.0
    %v4106 = vadd.f32 %v4104, %v4105
    %v4107 = vsel %vm2965, %v3943, 0.0
    %v4108 = vadd.f32 %v4106, %v4107
    %v4109 = vsel %vm2965, %v3948, 0.0
    %v4110 = vadd.f32 %v4108, %v4109
    %v4111 = vsel %vm2965, %v3953, 0.0
    %v4112 = vadd.f32 %v4110, %v4111
    %v4113 = vsel %vm2965, %v3958, 0.0
    %v4114 = vadd.f32 %v4112, %v4113
    %v4115 = vsel %vm2965, %v3963, 0.0
    %v4116 = vadd.f32 %v4114, %v4115
    %v4117 = vsel %vm2965, %v3968, 0.0
    %v4118 = vadd.f32 %v4116, %v4117
    %v4119 = vsel %vm2965, %v3973, 0.0
    %v4120 = vadd.f32 %v4118, %v4119
    %v4121 = vsel %vm2965, %v3978, 0.0
    %v4122 = vadd.f32 %v4120, %v4121
    %v4123 = vsel %vm2965, %v3983, 0.0
    %v4124 = vadd.f32 %v4122, %v4123
    %v4125 = vsel %vm2965, %v3988, 0.0
    %v4126 = vadd.f32 %v4124, %v4125
    %v4127 = vsel %vm2965, %v3993, 0.0
    %v4128 = vadd.f32 %v4126, %v4127
    %v4129 = vsel %vm2965, %v3998, 0.0
    %v4130 = vadd.f32 %v4128, %v4129
    %v4131 = vsel %vm2965, %v4003, 0.0
    %v4132 = vadd.f32 %v4130, %v4131
    %v4133 = vrot.slane %v4132, 4
    %v4134 = vadd.f32 %v4132, %v4133
    %v4135 = vrot.slane %v4134, 2
    %v4136 = vadd.f32 %v4134, %v4135
    %v4137 = vrot.slane %v4136, 1
    %v4138 = vadd.f32 %v4136, %v4137
    %v4139 = vmul.f32 %v3688, %v3688
    %v4140 = vmul.f32 %v3693, %v3693
    %v4141 = vmul.f32 %v3698, %v3698
    %v4142 = vmul.f32 %v3703, %v3703
    %v4143 = vmul.f32 %v3708, %v3708
    %v4144 = vmul.f32 %v3713, %v3713
    %v4145 = vmul.f32 %v3718, %v3718
    %v4146 = vmul.f32 %v3723, %v3723
    %v4147 = vmul.f32 %v3728, %v3728
    %v4148 = vmul.f32 %v3733, %v3733
    %v4149 = vmul.f32 %v3738, %v3738
    %v4150 = vmul.f32 %v3743, %v3743
    %v4151 = vmul.f32 %v3748, %v3748
    %v4152 = vmul.f32 %v3753, %v3753
    %v4153 = vmul.f32 %v3758, %v3758
    %v4154 = vmul.f32 %v3763, %v3763
    %v4155 = vmul.f32 %v3768, %v3768
    %v4156 = vmul.f32 %v3773, %v3773
    %v4157 = vmul.f32 %v3778, %v3778
    %v4158 = vmul.f32 %v3783, %v3783
    %v4159 = vmul.f32 %v3788, %v3788
    %v4160 = vmul.f32 %v3793, %v3793
    %v4161 = vmul.f32 %v3798, %v3798
    %v4162 = vmul.f32 %v3803, %v3803
    %v4163 = vmul.f32 %v3808, %v3808
    %v4164 = vmul.f32 %v3813, %v3813
    %v4165 = vmul.f32 %v3818, %v3818
    %v4166 = vmul.f32 %v3823, %v3823
    %v4167 = vmul.f32 %v3828, %v3828
    %v4168 = vmul.f32 %v3833, %v3833
    %v4169 = vmul.f32 %v3838, %v3838
    %v4170 = vmul.f32 %v3843, %v3843
    %v4171 = vmul.f32 %v3848, %v3848
    %v4172 = vmul.f32 %v3853, %v3853
    %v4173 = vmul.f32 %v3858, %v3858
    %v4174 = vmul.f32 %v3863, %v3863
    %v4175 = vmul.f32 %v3868, %v3868
    %v4176 = vmul.f32 %v3873, %v3873
    %v4177 = vmul.f32 %v3878, %v3878
    %v4178 = vmul.f32 %v3883, %v3883
    %v4179 = vmul.f32 %v3888, %v3888
    %v4180 = vmul.f32 %v3893, %v3893
    %v4181 = vmul.f32 %v3898, %v3898
    %v4182 = vmul.f32 %v3903, %v3903
    %v4183 = vmul.f32 %v3908, %v3908
    %v4184 = vmul.f32 %v3913, %v3913
    %v4185 = vmul.f32 %v3918, %v3918
    %v4186 = vmul.f32 %v3923, %v3923
    %v4187 = vmul.f32 %v3928, %v3928
    %v4188 = vmul.f32 %v3933, %v3933
    %v4189 = vmul.f32 %v3938, %v3938
    %v4190 = vmul.f32 %v3943, %v3943
    %v4191 = vmul.f32 %v3948, %v3948
    %v4192 = vmul.f32 %v3953, %v3953
    %v4193 = vmul.f32 %v3958, %v3958
    %v4194 = vmul.f32 %v3963, %v3963
    %v4195 = vmul.f32 %v3968, %v3968
    %v4196 = vmul.f32 %v3973, %v3973
    %v4197 = vmul.f32 %v3978, %v3978
    %v4198 = vmul.f32 %v3983, %v3983
    %v4199 = vmul.f32 %v3988, %v3988
    %v4200 = vmul.f32 %v3993, %v3993
    %v4201 = vmul.f32 %v3998, %v3998
    %v4202 = vmul.f32 %v4003, %v4003
    %v4203 = vsel %vm2965, %v4139, 0.0
    %v4204 = vsel %vm2965, %v4140, 0.0
    %v4205 = vadd.f32 %v4203, %v4204
    %v4206 = vsel %vm2965, %v4141, 0.0
    %v4207 = vadd.f32 %v4205, %v4206
    %v4208 = vsel %vm2965, %v4142, 0.0
    %v4209 = vadd.f32 %v4207, %v4208
    %v4210 = vsel %vm2965, %v4143, 0.0
    %v4211 = vadd.f32 %v4209, %v4210
    %v4212 = vsel %vm2965, %v4144, 0.0
    %v4213 = vadd.f32 %v4211, %v4212
    %v4214 = vsel %vm2965, %v4145, 0.0
    %v4215 = vadd.f32 %v4213, %v4214
    %v4216 = vsel %vm2965, %v4146, 0.0
    %v4217 = vadd.f32 %v4215, %v4216
    %v4218 = vsel %vm2965, %v4147, 0.0
    %v4219 = vadd.f32 %v4217, %v4218
    %v4220 = vsel %vm2965, %v4148, 0.0
    %v4221 = vadd.f32 %v4219, %v4220
    %v4222 = vsel %vm2965, %v4149, 0.0
    %v4223 = vadd.f32 %v4221, %v4222
    %v4224 = vsel %vm2965, %v4150, 0.0
    %v4225 = vadd.f32 %v4223, %v4224
    %v4226 = vsel %vm2965, %v4151, 0.0
    %v4227 = vadd.f32 %v4225, %v4226
    %v4228 = vsel %vm2965, %v4152, 0.0
    %v4229 = vadd.f32 %v4227, %v4228
    %v4230 = vsel %vm2965, %v4153, 0.0
    %v4231 = vadd.f32 %v4229, %v4230
    %v4232 = vsel %vm2965, %v4154, 0.0
    %v4233 = vadd.f32 %v4231, %v4232
    %v4234 = vsel %vm2965, %v4155, 0.0
    %v4235 = vadd.f32 %v4233, %v4234
    %v4236 = vsel %vm2965, %v4156, 0.0
    %v4237 = vadd.f32 %v4235, %v4236
    %v4238 = vsel %vm2965, %v4157, 0.0
    %v4239 = vadd.f32 %v4237, %v4238
    %v4240 = vsel %vm2965, %v4158, 0.0
    %v4241 = vadd.f32 %v4239, %v4240
    %v4242 = vsel %vm2965, %v4159, 0.0
    %v4243 = vadd.f32 %v4241, %v4242
    %v4244 = vsel %vm2965, %v4160, 0.0
    %v4245 = vadd.f32 %v4243, %v4244
    %v4246 = vsel %vm2965, %v4161, 0.0
    %v4247 = vadd.f32 %v4245, %v4246
    %v4248 = vsel %vm2965, %v4162, 0.0
    %v4249 = vadd.f32 %v4247, %v4248
    %v4250 = vsel %vm2965, %v4163, 0.0
    %v4251 = vadd.f32 %v4249, %v4250
    %v4252 = vsel %vm2965, %v4164, 0.0
    %v4253 = vadd.f32 %v4251, %v4252
    %v4254 = vsel %vm2965, %v4165, 0.0
    %v4255 = vadd.f32 %v4253, %v4254
    %v4256 = vsel %vm2965, %v4166, 0.0
    %v4257 = vadd.f32 %v4255, %v4256
    %v4258 = vsel %vm2965, %v4167, 0.0
    %v4259 = vadd.f32 %v4257, %v4258
    %v4260 = vsel %vm2965, %v4168, 0.0
    %v4261 = vadd.f32 %v4259, %v4260
    %v4262 = vsel %vm2965, %v4169, 0.0
    %v4263 = vadd.f32 %v4261, %v4262
    %v4264 = vsel %vm2965, %v4170, 0.0
    %v4265 = vadd.f32 %v4263, %v4264
    %v4266 = vsel %vm2965, %v4171, 0.0
    %v4267 = vadd.f32 %v4265, %v4266
    %v4268 = vsel %vm2965, %v4172, 0.0
    %v4269 = vadd.f32 %v4267, %v4268
    %v4270 = vsel %vm2965, %v4173, 0.0
    %v4271 = vadd.f32 %v4269, %v4270
    %v4272 = vsel %vm2965, %v4174, 0.0
    %v4273 = vadd.f32 %v4271, %v4272
    %v4274 = vsel %vm2965, %v4175, 0.0
    %v4275 = vadd.f32 %v4273, %v4274
    %v4276 = vsel %vm2965, %v4176, 0.0
    %v4277 = vadd.f32 %v4275, %v4276
    %v4278 = vsel %vm2965, %v4177, 0.0
    %v4279 = vadd.f32 %v4277, %v4278
    %v4280 = vsel %vm2965, %v4178, 0.0
    %v4281 = vadd.f32 %v4279, %v4280
    %v4282 = vsel %vm2965, %v4179, 0.0
    %v4283 = vadd.f32 %v4281, %v4282
    %v4284 = vsel %vm2965, %v4180, 0.0
    %v4285 = vadd.f32 %v4283, %v4284
    %v4286 = vsel %vm2965, %v4181, 0.0
    %v4287 = vadd.f32 %v4285, %v4286
    %v4288 = vsel %vm2965, %v4182, 0.0
    %v4289 = vadd.f32 %v4287, %v4288
    %v4290 = vsel %vm2965, %v4183, 0.0
    %v4291 = vadd.f32 %v4289, %v4290
    %v4292 = vsel %vm2965, %v4184, 0.0
    %v4293 = vadd.f32 %v4291, %v4292
    %v4294 = vsel %vm2965, %v4185, 0.0
    %v4295 = vadd.f32 %v4293, %v4294
    %v4296 = vsel %vm2965, %v4186, 0.0
    %v4297 = vadd.f32 %v4295, %v4296
    %v4298 = vsel %vm2965, %v4187, 0.0
    %v4299 = vadd.f32 %v4297, %v4298
    %v4300 = vsel %vm2965, %v4188, 0.0
    %v4301 = vadd.f32 %v4299, %v4300
    %v4302 = vsel %vm2965, %v4189, 0.0
    %v4303 = vadd.f32 %v4301, %v4302
    %v4304 = vsel %vm2965, %v4190, 0.0
    %v4305 = vadd.f32 %v4303, %v4304
    %v4306 = vsel %vm2965, %v4191, 0.0
    %v4307 = vadd.f32 %v4305, %v4306
    %v4308 = vsel %vm2965, %v4192, 0.0
    %v4309 = vadd.f32 %v4307, %v4308
    %v4310 = vsel %vm2965, %v4193, 0.0
    %v4311 = vadd.f32 %v4309, %v4310
    %v4312 = vsel %vm2965, %v4194, 0.0
    %v4313 = vadd.f32 %v4311, %v4312
    %v4314 = vsel %vm2965, %v4195, 0.0
    %v4315 = vadd.f32 %v4313, %v4314
    %v4316 = vsel %vm2965, %v4196, 0.0
    %v4317 = vadd.f32 %v4315, %v4316
    %v4318 = vsel %vm2965, %v4197, 0.0
    %v4319 = vadd.f32 %v4317, %v4318
    %v4320 = vsel %vm2965, %v4198, 0.0
    %v4321 = vadd.f32 %v4319, %v4320
    %v4322 = vsel %vm2965, %v4199, 0.0
    %v4323 = vadd.f32 %v4321, %v4322
    %v4324 = vsel %vm2965, %v4200, 0.0
    %v4325 = vadd.f32 %v4323, %v4324
    %v4326 = vsel %vm2965, %v4201, 0.0
    %v4327 = vadd.f32 %v4325, %v4326
    %v4328 = vsel %vm2965, %v4202, 0.0
    %v4329 = vadd.f32 %v4327, %v4328
    %v4330 = vrot.slane %v4329, 4
    %v4331 = vadd.f32 %v4329, %v4330
    %v4332 = vrot.slane %v4331, 2
    %v4333 = vadd.f32 %v4331, %v4332
    %v4334 = vrot.slane %v4333, 1
    %v4335 = vadd.f32 %v4333, %v4334
    %v4336 = vmul.f32 %v4138, 0.001953125
    %v4337 = vmul.f32 %v4335, 0.001953125
    %v4338 = vmul.f32 %v4336, %v4336
    %v4339 = vsub.f32 %v4337, %v4338
    %v4340 = vmax.f32 %v4339, 0.0
    %v4341 = vld [vmem:[%s2] sm:$0x1]
    %v4342 = vadd.f32 %v4340, 1e-05
    %v4343 = vrsqrt.pop %v4342
    %v4344 = vmul.f32 %v4341, %v4343
    %v4345 = vld [vmem:[%s3] sm:$0x1]
    %v4346 = vmul.f32 %v4336, %v4344
    %v4347 = vsub.f32 %v4345, %v4346
    %v4349 = vlaneseq
    %v4350 = vshrl.u32 %v4349, 7
    %v4351 = vsub.s32 0, %v4350
    %v4352 = vrot.slane %v4344, %v4351
    %v4354 = vmul.f32 %v3688, %v4352
    %v4355 = vmul.f32 %v3693, %v4352
    %v4356 = vmul.f32 %v3698, %v4352
    %v4357 = vmul.f32 %v3703, %v4352
    %v4358 = vmul.f32 %v3708, %v4352
    %v4359 = vmul.f32 %v3713, %v4352
    %v4360 = vmul.f32 %v3718, %v4352
    %v4361 = vmul.f32 %v3723, %v4352
    %v4362 = vmul.f32 %v3728, %v4352
    %v4363 = vmul.f32 %v3733, %v4352
    %v4364 = vmul.f32 %v3738, %v4352
    %v4365 = vmul.f32 %v3743, %v4352
    %v4366 = vmul.f32 %v3748, %v4352
    %v4367 = vmul.f32 %v3753, %v4352
    %v4368 = vmul.f32 %v3758, %v4352
    %v4369 = vmul.f32 %v3763, %v4352
    %v4370 = vmul.f32 %v3768, %v4352
    %v4371 = vmul.f32 %v3773, %v4352
    %v4372 = vmul.f32 %v3778, %v4352
    %v4373 = vmul.f32 %v3783, %v4352
    %v4374 = vmul.f32 %v3788, %v4352
    %v4375 = vmul.f32 %v3793, %v4352
    %v4376 = vmul.f32 %v3798, %v4352
    %v4377 = vmul.f32 %v3803, %v4352
    %v4378 = vmul.f32 %v3808, %v4352
    %v4379 = vmul.f32 %v3813, %v4352
    %v4380 = vmul.f32 %v3818, %v4352
    %v4381 = vmul.f32 %v3823, %v4352
    %v4382 = vmul.f32 %v3828, %v4352
    %v4383 = vmul.f32 %v3833, %v4352
    %v4384 = vmul.f32 %v3838, %v4352
    %v4385 = vmul.f32 %v3843, %v4352
    %v4386 = vmul.f32 %v3848, %v4352
    %v4387 = vmul.f32 %v3853, %v4352
    %v4388 = vmul.f32 %v3858, %v4352
    %v4389 = vmul.f32 %v3863, %v4352
    %v4390 = vmul.f32 %v3868, %v4352
    %v4391 = vmul.f32 %v3873, %v4352
    %v4392 = vmul.f32 %v3878, %v4352
    %v4393 = vmul.f32 %v3883, %v4352
    %v4394 = vmul.f32 %v3888, %v4352
    %v4395 = vmul.f32 %v3893, %v4352
    %v4396 = vmul.f32 %v3898, %v4352
    %v4397 = vmul.f32 %v3903, %v4352
    %v4398 = vmul.f32 %v3908, %v4352
    %v4399 = vmul.f32 %v3913, %v4352
    %v4400 = vmul.f32 %v3918, %v4352
    %v4401 = vmul.f32 %v3923, %v4352
    %v4402 = vmul.f32 %v3928, %v4352
    %v4403 = vmul.f32 %v3933, %v4352
    %v4404 = vmul.f32 %v3938, %v4352
    %v4405 = vmul.f32 %v3943, %v4352
    %v4406 = vmul.f32 %v3948, %v4352
    %v4407 = vmul.f32 %v3953, %v4352
    %v4408 = vmul.f32 %v3958, %v4352
    %v4409 = vmul.f32 %v3963, %v4352
    %v4410 = vmul.f32 %v3968, %v4352
    %v4411 = vmul.f32 %v3973, %v4352
    %v4412 = vmul.f32 %v3978, %v4352
    %v4413 = vmul.f32 %v3983, %v4352
    %v4414 = vmul.f32 %v3988, %v4352
    %v4415 = vmul.f32 %v3993, %v4352
    %v4416 = vmul.f32 %v3998, %v4352
    %v4417 = vmul.f32 %v4003, %v4352
    %v4419 = vlaneseq
    %v4420 = vshrl.u32 %v4419, 7
    %v4421 = vsub.s32 0, %v4420
    %v4422 = vrot.slane %v4347, %v4421
    %v4424 = vadd.f32 %v4354, %v4422
    %v4425 = vadd.f32 %v4355, %v4422
    %v4426 = vadd.f32 %v4356, %v4422
    %v4427 = vadd.f32 %v4357, %v4422
    %v4428 = vadd.f32 %v4358, %v4422
    %v4429 = vadd.f32 %v4359, %v4422
    %v4430 = vadd.f32 %v4360, %v4422
    %v4431 = vadd.f32 %v4361, %v4422
    %v4432 = vadd.f32 %v4362, %v4422
    %v4433 = vadd.f32 %v4363, %v4422
    %v4434 = vadd.f32 %v4364, %v4422
    %v4435 = vadd.f32 %v4365, %v4422
    %v4436 = vadd.f32 %v4366, %v4422
    %v4437 = vadd.f32 %v4367, %v4422
    %v4438 = vadd.f32 %v4368, %v4422
    %v4439 = vadd.f32 %v4369, %v4422
    %v4440 = vadd.f32 %v4370, %v4422
    %v4441 = vadd.f32 %v4371, %v4422
    %v4442 = vadd.f32 %v4372, %v4422
    %v4443 = vadd.f32 %v4373, %v4422
    %v4444 = vadd.f32 %v4374, %v4422
    %v4445 = vadd.f32 %v4375, %v4422
    %v4446 = vadd.f32 %v4376, %v4422
    %v4447 = vadd.f32 %v4377, %v4422
    %v4448 = vadd.f32 %v4378, %v4422
    %v4449 = vadd.f32 %v4379, %v4422
    %v4450 = vadd.f32 %v4380, %v4422
    %v4451 = vadd.f32 %v4381, %v4422
    %v4452 = vadd.f32 %v4382, %v4422
    %v4453 = vadd.f32 %v4383, %v4422
    %v4454 = vadd.f32 %v4384, %v4422
    %v4455 = vadd.f32 %v4385, %v4422
    %v4456 = vadd.f32 %v4386, %v4422
    %v4457 = vadd.f32 %v4387, %v4422
    %v4458 = vadd.f32 %v4388, %v4422
    %v4459 = vadd.f32 %v4389, %v4422
    %v4460 = vadd.f32 %v4390, %v4422
    %v4461 = vadd.f32 %v4391, %v4422
    %v4462 = vadd.f32 %v4392, %v4422
    %v4463 = vadd.f32 %v4393, %v4422
    %v4464 = vadd.f32 %v4394, %v4422
    %v4465 = vadd.f32 %v4395, %v4422
    %v4466 = vadd.f32 %v4396, %v4422
    %v4467 = vadd.f32 %v4397, %v4422
    %v4468 = vadd.f32 %v4398, %v4422
    %v4469 = vadd.f32 %v4399, %v4422
    %v4470 = vadd.f32 %v4400, %v4422
    %v4471 = vadd.f32 %v4401, %v4422
    %v4472 = vadd.f32 %v4402, %v4422
    %v4473 = vadd.f32 %v4403, %v4422
    %v4474 = vadd.f32 %v4404, %v4422
    %v4475 = vadd.f32 %v4405, %v4422
    %v4476 = vadd.f32 %v4406, %v4422
    %v4477 = vadd.f32 %v4407, %v4422
    %v4478 = vadd.f32 %v4408, %v4422
    %v4479 = vadd.f32 %v4409, %v4422
    %v4480 = vadd.f32 %v4410, %v4422
    %v4481 = vadd.f32 %v4411, %v4422
    %v4482 = vadd.f32 %v4412, %v4422
    %v4483 = vadd.f32 %v4413, %v4422
    %v4484 = vadd.f32 %v4414, %v4422
    %v4485 = vadd.f32 %v4415, %v4422
    %v4486 = vadd.f32 %v4416, %v4422
    %v4487 = vadd.f32 %v4417, %v4422
    %v4488 = vmax.f32 %v4424, 0.0
    %v4489 = vmax.f32 %v4425, 0.0
    %v4490 = vmax.f32 %v4426, 0.0
    %v4491 = vmax.f32 %v4427, 0.0
    %v4492 = vmax.f32 %v4428, 0.0
    %v4493 = vmax.f32 %v4429, 0.0
    %v4494 = vmax.f32 %v4430, 0.0
    %v4495 = vmax.f32 %v4431, 0.0
    %v4496 = vmax.f32 %v4432, 0.0
    %v4497 = vmax.f32 %v4433, 0.0
    %v4498 = vmax.f32 %v4434, 0.0
    %v4499 = vmax.f32 %v4435, 0.0
    %v4500 = vmax.f32 %v4436, 0.0
    %v4501 = vmax.f32 %v4437, 0.0
    %v4502 = vmax.f32 %v4438, 0.0
    %v4503 = vmax.f32 %v4439, 0.0
    %v4504 = vmax.f32 %v4440, 0.0
    %v4505 = vmax.f32 %v4441, 0.0
    %v4506 = vmax.f32 %v4442, 0.0
    %v4507 = vmax.f32 %v4443, 0.0
    %v4508 = vmax.f32 %v4444, 0.0
    %v4509 = vmax.f32 %v4445, 0.0
    %v4510 = vmax.f32 %v4446, 0.0
    %v4511 = vmax.f32 %v4447, 0.0
    %v4512 = vmax.f32 %v4448, 0.0
    %v4513 = vmax.f32 %v4449, 0.0
    %v4514 = vmax.f32 %v4450, 0.0
    %v4515 = vmax.f32 %v4451, 0.0
    %v4516 = vmax.f32 %v4452, 0.0
    %v4517 = vmax.f32 %v4453, 0.0
    %v4518 = vmax.f32 %v4454, 0.0
    %v4519 = vmax.f32 %v4455, 0.0
    %v4520 = vmax.f32 %v4456, 0.0
    %v4521 = vmax.f32 %v4457, 0.0
    %v4522 = vmax.f32 %v4458, 0.0
    %v4523 = vmax.f32 %v4459, 0.0
    %v4524 = vmax.f32 %v4460, 0.0
    %v4525 = vmax.f32 %v4461, 0.0
    %v4526 = vmax.f32 %v4462, 0.0
    %v4527 = vmax.f32 %v4463, 0.0
    %v4528 = vmax.f32 %v4464, 0.0
    %v4529 = vmax.f32 %v4465, 0.0
    %v4530 = vmax.f32 %v4466, 0.0
    %v4531 = vmax.f32 %v4467, 0.0
    %v4532 = vmax.f32 %v4468, 0.0
    %v4533 = vmax.f32 %v4469, 0.0
    %v4534 = vmax.f32 %v4470, 0.0
    %v4535 = vmax.f32 %v4471, 0.0
    %v4536 = vmax.f32 %v4472, 0.0
    %v4537 = vmax.f32 %v4473, 0.0
    %v4538 = vmax.f32 %v4474, 0.0
    %v4539 = vmax.f32 %v4475, 0.0
    %v4540 = vmax.f32 %v4476, 0.0
    %v4541 = vmax.f32 %v4477, 0.0
    %v4542 = vmax.f32 %v4478, 0.0
    %v4543 = vmax.f32 %v4479, 0.0
    %v4544 = vmax.f32 %v4480, 0.0
    %v4545 = vmax.f32 %v4481, 0.0
    %v4546 = vmax.f32 %v4482, 0.0
    %v4547 = vmax.f32 %v4483, 0.0
    %v4548 = vmax.f32 %v4484, 0.0
    %v4549 = vmax.f32 %v4485, 0.0
    %v4550 = vmax.f32 %v4486, 0.0
    %v4551 = vmax.f32 %v4487, 0.0
    %4616 = vrot.lane.b32.xlu0 %v4488, 4
    %v4617 = vpop.permute.xlu0 %4616
    %4618 = vrot.lane.b32.xlu0 %v4489, 4
    %v4619 = vpop.permute.xlu0 %4618
    %4620 = vrot.lane.b32.xlu0 %v4490, 4
    %v4621 = vpop.permute.xlu0 %4620
    %4622 = vrot.lane.b32.xlu0 %v4491, 4
    %v4623 = vpop.permute.xlu0 %4622
    %4624 = vrot.lane.b32.xlu0 %v4492, 4
    %v4625 = vpop.permute.xlu0 %4624
    %4626 = vrot.lane.b32.xlu0 %v4493, 4
    %v4627 = vpop.permute.xlu0 %4626
    %4628 = vrot.lane.b32.xlu0 %v4494, 4
    %v4629 = vpop.permute.xlu0 %4628
    %4630 = vrot.lane.b32.xlu0 %v4495, 4
    %v4631 = vpop.permute.xlu0 %4630
    %4632 = vrot.lane.b32.xlu0 %v4496, 4
    %v4633 = vpop.permute.xlu0 %4632
    %4634 = vrot.lane.b32.xlu0 %v4497, 4
    %v4635 = vpop.permute.xlu0 %4634
    %4636 = vrot.lane.b32.xlu0 %v4498, 4
    %v4637 = vpop.permute.xlu0 %4636
    %4638 = vrot.lane.b32.xlu0 %v4499, 4
    %v4639 = vpop.permute.xlu0 %4638
    %4640 = vrot.lane.b32.xlu0 %v4500, 4
    %v4641 = vpop.permute.xlu0 %4640
    %4642 = vrot.lane.b32.xlu0 %v4501, 4
    %v4643 = vpop.permute.xlu0 %4642
    %4644 = vrot.lane.b32.xlu0 %v4502, 4
    %v4645 = vpop.permute.xlu0 %4644
    %4646 = vrot.lane.b32.xlu0 %v4503, 4
    %v4647 = vpop.permute.xlu0 %4646
    %4648 = vrot.lane.b32.xlu0 %v4504, 4
    %v4649 = vpop.permute.xlu0 %4648
    %4650 = vrot.lane.b32.xlu0 %v4505, 4
    %v4651 = vpop.permute.xlu0 %4650
    %4652 = vrot.lane.b32.xlu0 %v4506, 4
    %v4653 = vpop.permute.xlu0 %4652
    %4654 = vrot.lane.b32.xlu0 %v4507, 4
    %v4655 = vpop.permute.xlu0 %4654
    %4656 = vrot.lane.b32.xlu0 %v4508, 4
    %v4657 = vpop.permute.xlu0 %4656
    %4658 = vrot.lane.b32.xlu0 %v4509, 4
    %v4659 = vpop.permute.xlu0 %4658
    %4660 = vrot.lane.b32.xlu0 %v4510, 4
    %v4661 = vpop.permute.xlu0 %4660
    %4662 = vrot.lane.b32.xlu0 %v4511, 4
    %v4663 = vpop.permute.xlu0 %4662
    %4664 = vrot.lane.b32.xlu0 %v4512, 4
    %v4665 = vpop.permute.xlu0 %4664
    %4666 = vrot.lane.b32.xlu0 %v4513, 4
    %v4667 = vpop.permute.xlu0 %4666
    %4668 = vrot.lane.b32.xlu0 %v4514, 4
    %v4669 = vpop.permute.xlu0 %4668
    %4670 = vrot.lane.b32.xlu0 %v4515, 4
    %v4671 = vpop.permute.xlu0 %4670
    %4672 = vrot.lane.b32.xlu0 %v4516, 4
    %v4673 = vpop.permute.xlu0 %4672
    %4674 = vrot.lane.b32.xlu0 %v4517, 4
    %v4675 = vpop.permute.xlu0 %4674
    %4676 = vrot.lane.b32.xlu0 %v4518, 4
    %v4677 = vpop.permute.xlu0 %4676
    %4678 = vrot.lane.b32.xlu0 %v4519, 4
    %v4679 = vpop.permute.xlu0 %4678
    %4680 = vrot.lane.b32.xlu0 %v4520, 4
    %v4681 = vpop.permute.xlu0 %4680
    %4682 = vrot.lane.b32.xlu0 %v4521, 4
    %v4683 = vpop.permute.xlu0 %4682
    %4684 = vrot.lane.b32.xlu0 %v4522, 4
    %v4685 = vpop.permute.xlu0 %4684
    %4686 = vrot.lane.b32.xlu0 %v4523, 4
    %v4687 = vpop.permute.xlu0 %4686
    %4688 = vrot.lane.b32.xlu0 %v4524, 4
    %v4689 = vpop.permute.xlu0 %4688
    %4690 = vrot.lane.b32.xlu0 %v4525, 4
    %v4691 = vpop.permute.xlu0 %4690
    %4692 = vrot.lane.b32.xlu0 %v4526, 4
    %v4693 = vpop.permute.xlu0 %4692
    %4694 = vrot.lane.b32.xlu0 %v4527, 4
    %v4695 = vpop.permute.xlu0 %4694
    %4696 = vrot.lane.b32.xlu0 %v4528, 4
    %v4697 = vpop.permute.xlu0 %4696
    %4698 = vrot.lane.b32.xlu0 %v4529, 4
    %v4699 = vpop.permute.xlu0 %4698
    %4700 = vrot.lane.b32.xlu0 %v4530, 4
    %v4701 = vpop.permute.xlu0 %4700
    %4702 = vrot.lane.b32.xlu0 %v4531, 4
    %v4703 = vpop.permute.xlu0 %4702
    %4704 = vrot.lane.b32.xlu0 %v4532, 4
    %v4705 = vpop.permute.xlu0 %4704
    %4706 = vrot.lane.b32.xlu0 %v4533, 4
    %v4707 = vpop.permute.xlu0 %4706
    %4708 = vrot.lane.b32.xlu0 %v4534, 4
    %v4709 = vpop.permute.xlu0 %4708
    %4710 = vrot.lane.b32.xlu0 %v4535, 4
    %v4711 = vpop.permute.xlu0 %4710
    %4712 = vrot.lane.b32.xlu0 %v4536, 4
    %v4713 = vpop.permute.xlu0 %4712
    %4714 = vrot.lane.b32.xlu0 %v4537, 4
    %v4715 = vpop.permute.xlu0 %4714
    %4716 = vrot.lane.b32.xlu0 %v4538, 4
    %v4717 = vpop.permute.xlu0 %4716
    %4718 = vrot.lane.b32.xlu0 %v4539, 4
    %v4719 = vpop.permute.xlu0 %4718
    %4720 = vrot.lane.b32.xlu0 %v4540, 4
    %v4721 = vpop.permute.xlu0 %4720
    %4722 = vrot.lane.b32.xlu0 %v4541, 4
    %v4723 = vpop.permute.xlu0 %4722
    %4724 = vrot.lane.b32.xlu0 %v4542, 4
    %v4725 = vpop.permute.xlu0 %4724
    %4726 = vrot.lane.b32.xlu0 %v4543, 4
    %v4727 = vpop.permute.xlu0 %4726
    %4728 = vrot.lane.b32.xlu0 %v4544, 4
    %v4729 = vpop.permute.xlu0 %4728
    %4730 = vrot.lane.b32.xlu0 %v4545, 4
    %v4731 = vpop.permute.xlu0 %4730
    %4732 = vrot.lane.b32.xlu0 %v4546, 4
    %v4733 = vpop.permute.xlu0 %4732
    %4734 = vrot.lane.b32.xlu0 %v4547, 4
    %v4735 = vpop.permute.xlu0 %4734
    %4736 = vrot.lane.b32.xlu0 %v4548, 4
    %v4737 = vpop.permute.xlu0 %4736
    %4738 = vrot.lane.b32.xlu0 %v4549, 4
    %v4739 = vpop.permute.xlu0 %4738
    %4740 = vrot.lane.b32.xlu0 %v4550, 4
    %v4741 = vpop.permute.xlu0 %4740
    %4742 = vrot.lane.b32.xlu0 %v4551, 4
    %v4743 = vpop.permute.xlu0 %4742
    %v4808 = vsel %vm211, %v146, %v4617
    %v4809 = vsel %vm211, %v147, %v4619
    %v4810 = vsel %vm211, %v148, %v4621
    %v4811 = vsel %vm211, %v149, %v4623
    %v4812 = vsel %vm211, %v150, %v4625
    %v4813 = vsel %vm211, %v151, %v4627
    %v4814 = vsel %vm211, %v152, %v4629
    %v4815 = vsel %vm211, %v153, %v4631
    %v4816 = vsel %vm211, %v154, %v4633
    %v4817 = vsel %vm211, %v155, %v4635
    %v4818 = vsel %vm211, %v156, %v4637
    %v4819 = vsel %vm211, %v157, %v4639
    %v4820 = vsel %vm211, %v158, %v4641
    %v4821 = vsel %vm211, %v159, %v4643
    %v4822 = vsel %vm211, %v160, %v4645
    %v4823 = vsel %vm211, %v161, %v4647
    %v4824 = vsel %vm211, %v162, %v4649
    %v4825 = vsel %vm211, %v163, %v4651
    %v4826 = vsel %vm211, %v164, %v4653
    %v4827 = vsel %vm211, %v165, %v4655
    %v4828 = vsel %vm211, %v166, %v4657
    %v4829 = vsel %vm211, %v167, %v4659
    %v4830 = vsel %vm211, %v168, %v4661
    %v4831 = vsel %vm211, %v169, %v4663
    %v4832 = vsel %vm211, %v170, %v4665
    %v4833 = vsel %vm211, %v171, %v4667
    %v4834 = vsel %vm211, %v172, %v4669
    %v4835 = vsel %vm211, %v173, %v4671
    %v4836 = vsel %vm211, %v174, %v4673
    %v4837 = vsel %vm211, %v175, %v4675
    %v4838 = vsel %vm211, %v176, %v4677
    %v4839 = vsel %vm211, %v177, %v4679
    %v4840 = vsel %vm211, %v178, %v4681
    %v4841 = vsel %vm211, %v179, %v4683
    %v4842 = vsel %vm211, %v180, %v4685
    %v4843 = vsel %vm211, %v181, %v4687
    %v4844 = vsel %vm211, %v182, %v4689
    %v4845 = vsel %vm211, %v183, %v4691
    %v4846 = vsel %vm211, %v184, %v4693
    %v4847 = vsel %vm211, %v185, %v4695
    %v4848 = vsel %vm211, %v186, %v4697
    %v4849 = vsel %vm211, %v187, %v4699
    %v4850 = vsel %vm211, %v188, %v4701
    %v4851 = vsel %vm211, %v189, %v4703
    %v4852 = vsel %vm211, %v190, %v4705
    %v4853 = vsel %vm211, %v191, %v4707
    %v4854 = vsel %vm211, %v192, %v4709
    %v4855 = vsel %vm211, %v193, %v4711
    %v4856 = vsel %vm211, %v194, %v4713
    %v4857 = vsel %vm211, %v195, %v4715
    %v4858 = vsel %vm211, %v196, %v4717
    %v4859 = vsel %vm211, %v197, %v4719
    %v4860 = vsel %vm211, %v198, %v4721
    %v4861 = vsel %vm211, %v199, %v4723
    %v4862 = vsel %vm211, %v200, %v4725
    %v4863 = vsel %vm211, %v201, %v4727
    %v4864 = vsel %vm211, %v202, %v4729
    %v4865 = vsel %vm211, %v203, %v4731
    %v4866 = vsel %vm211, %v204, %v4733
    %v4867 = vsel %vm211, %v205, %v4735
    %v4868 = vsel %vm211, %v206, %v4737
    %v4869 = vsel %vm211, %v207, %v4739
    %v4870 = vsel %vm211, %v208, %v4741
    %v4871 = vsel %vm211, %v209, %v4743
    %4872 = vst.msk [vmem:[%s210 + $0x1] sm:$0xff] %vm3030, %v4808
    %4873 = vst.msk [vmem:[%s210 + $0x9] sm:$0xff] %vm3030, %v4809
    %4874 = vst.msk [vmem:[%s210 + $0x19] sm:$0xff] %vm3030, %v4810
    %4875 = vst.msk [vmem:[%s210 + $0x21] sm:$0xff] %vm3030, %v4811
    %4876 = vst.msk [vmem:[%s210 + $0x31] sm:$0xff] %vm3030, %v4812
    %4877 = vst.msk [vmem:[%s210 + $0x39] sm:$0xff] %vm3030, %v4813
    %4878 = vst.msk [vmem:[%s210 + $0x49] sm:$0xff] %vm3030, %v4814
    %4879 = vst.msk [vmem:[%s210 + $0x51] sm:$0xff] %vm3030, %v4815
    %4880 = vst.msk [vmem:[%s210 + $0x61] sm:$0xff] %vm3030, %v4816
    %4881 = vst.msk [vmem:[%s210 + $0x69] sm:$0xff] %vm3030, %v4817
    %4882 = vst.msk [vmem:[%s210 + $0x79] sm:$0xff] %vm3030, %v4818
    %4883 = vst.msk [vmem:[%s210 + $0x81] sm:$0xff] %vm3030, %v4819
    %4884 = vst.msk [vmem:[%s210 + $0x91] sm:$0xff] %vm3030, %v4820
    %4885 = vst.msk [vmem:[%s210 + $0x99] sm:$0xff] %vm3030, %v4821
    %4886 = vst.msk [vmem:[%s210 + $0xa9] sm:$0xff] %vm3030, %v4822
    %4887 = vst.msk [vmem:[%s210 + $0xb1] sm:$0xff] %vm3030, %v4823
    %4888 = vst.msk [vmem:[%s210 + $0xc1] sm:$0xff] %vm3030, %v4824
    %4889 = vst.msk [vmem:[%s210 + $0xc9] sm:$0xff] %vm3030, %v4825
    %4890 = vst.msk [vmem:[%s210 + $0xd9] sm:$0xff] %vm3030, %v4826
    %4891 = vst.msk [vmem:[%s210 + $0xe1] sm:$0xff] %vm3030, %v4827
    %4892 = vst.msk [vmem:[%s210 + $0xf1] sm:$0xff] %vm3030, %v4828
    %4893 = vst.msk [vmem:[%s210 + $0xf9] sm:$0xff] %vm3030, %v4829
    %4894 = vst.msk [vmem:[%s210 + $0x109] sm:$0xff] %vm3030, %v4830
    %4895 = vst.msk [vmem:[%s210 + $0x111] sm:$0xff] %vm3030, %v4831
    %4896 = vst.msk [vmem:[%s210 + $0x121] sm:$0xff] %vm3030, %v4832
    %4897 = vst.msk [vmem:[%s210 + $0x129] sm:$0xff] %vm3030, %v4833
    %4898 = vst.msk [vmem:[%s210 + $0x139] sm:$0xff] %vm3030, %v4834
    %4899 = vst.msk [vmem:[%s210 + $0x141] sm:$0xff] %vm3030, %v4835
    %4900 = vst.msk [vmem:[%s210 + $0x151] sm:$0xff] %vm3030, %v4836
    %4901 = vst.msk [vmem:[%s210 + $0x159] sm:$0xff] %vm3030, %v4837
    %4902 = vst.msk [vmem:[%s210 + $0x169] sm:$0xff] %vm3030, %v4838
    %4903 = vst.msk [vmem:[%s210 + $0x171] sm:$0xff] %vm3030, %v4839
    %4904 = vst.msk [vmem:[%s210 + $0x1b1] sm:$0xff] %vm3030, %v4840
    %4905 = vst.msk [vmem:[%s210 + $0x1b9] sm:$0xff] %vm3030, %v4841
    %4906 = vst.msk [vmem:[%s210 + $0x1c9] sm:$0xff] %vm3030, %v4842
    %4907 = vst.msk [vmem:[%s210 + $0x1d1] sm:$0xff] %vm3030, %v4843
    %4908 = vst.msk [vmem:[%s210 + $0x1e1] sm:$0xff] %vm3030, %v4844
    %4909 = vst.msk [vmem:[%s210 + $0x1e9] sm:$0xff] %vm3030, %v4845
    %4910 = vst.msk [vmem:[%s210 + $0x1f9] sm:$0xff] %vm3030, %v4846
    %4911 = vst.msk [vmem:[%s210 + $0x201] sm:$0xff] %vm3030, %v4847
    %4912 = vst.msk [vmem:[%s210 + $0x211] sm:$0xff] %vm3030, %v4848
    %4913 = vst.msk [vmem:[%s210 + $0x219] sm:$0xff] %vm3030, %v4849
    %4914 = vst.msk [vmem:[%s210 + $0x229] sm:$0xff] %vm3030, %v4850
    %4915 = vst.msk [vmem:[%s210 + $0x231] sm:$0xff] %vm3030, %v4851
    %4916 = vst.msk [vmem:[%s210 + $0x241] sm:$0xff] %vm3030, %v4852
    %4917 = vst.msk [vmem:[%s210 + $0x249] sm:$0xff] %vm3030, %v4853
    %4918 = vst.msk [vmem:[%s210 + $0x259] sm:$0xff] %vm3030, %v4854
    %4919 = vst.msk [vmem:[%s210 + $0x261] sm:$0xff] %vm3030, %v4855
    %4920 = vst.msk [vmem:[%s210 + $0x271] sm:$0xff] %vm3030, %v4856
    %4921 = vst.msk [vmem:[%s210 + $0x279] sm:$0xff] %vm3030, %v4857
    %4922 = vst.msk [vmem:[%s210 + $0x289] sm:$0xff] %vm3030, %v4858
    %4923 = vst.msk [vmem:[%s210 + $0x291] sm:$0xff] %vm3030, %v4859
    %4924 = vst.msk [vmem:[%s210 + $0x2a1] sm:$0xff] %vm3030, %v4860
    %4925 = vst.msk [vmem:[%s210 + $0x2a9] sm:$0xff] %vm3030, %v4861
    %4926 = vst.msk [vmem:[%s210 + $0x2b9] sm:$0xff] %vm3030, %v4862
    %4927 = vst.msk [vmem:[%s210 + $0x2c1] sm:$0xff] %vm3030, %v4863
    %4928 = vst.msk [vmem:[%s210 + $0x2d1] sm:$0xff] %vm3030, %v4864
    %4929 = vst.msk [vmem:[%s210 + $0x2d9] sm:$0xff] %vm3030, %v4865
    %4930 = vst.msk [vmem:[%s210 + $0x2e9] sm:$0xff] %vm3030, %v4866
    %4931 = vst.msk [vmem:[%s210 + $0x2f1] sm:$0xff] %vm3030, %v4867
    %4932 = vst.msk [vmem:[%s210 + $0x301] sm:$0xff] %vm3030, %v4868
    %4933 = vst.msk [vmem:[%s210 + $0x309] sm:$0xff] %vm3030, %v4869
    %4934 = vst.msk [vmem:[%s210 + $0x319] sm:$0xff] %vm3030, %v4870
    %4935 = vst.msk [vmem:[%s210 + $0x321] sm:$0xff] %vm3030, %v4871
    %v4936 = vld [vmem:[#allocation2] sm:$0xff]
    %v4937 = vld [vmem:[#allocation2 + $0x8] sm:$0xff]
    %v4938 = vld [vmem:[#allocation2 + $0x18] sm:$0xff]
    %v4939 = vld [vmem:[#allocation2 + $0x20] sm:$0xff]
    %v4940 = vld [vmem:[#allocation2 + $0x30] sm:$0xff]
    %v4941 = vld [vmem:[#allocation2 + $0x38] sm:$0xff]
    %v4942 = vld [vmem:[#allocation2 + $0x48] sm:$0xff]
    %v4943 = vld [vmem:[#allocation2 + $0x50] sm:$0xff]
    %v4944 = vld [vmem:[#allocation2 + $0x60] sm:$0xff]
    %v4945 = vld [vmem:[#allocation2 + $0x68] sm:$0xff]
    %v4946 = vld [vmem:[#allocation2 + $0x78] sm:$0xff]
    %v4947 = vld [vmem:[#allocation2 + $0x80] sm:$0xff]
    %v4948 = vld [vmem:[#allocation2 + $0x90] sm:$0xff]
    %v4949 = vld [vmem:[#allocation2 + $0x98] sm:$0xff]
    %v4950 = vld [vmem:[#allocation2 + $0xa8] sm:$0xff]
    %v4951 = vld [vmem:[#allocation2 + $0xb0] sm:$0xff]
    %v4952 = vld [vmem:[#allocation2 + $0xc0] sm:$0xff]
    %v4953 = vld [vmem:[#allocation2 + $0xc8] sm:$0xff]
    %v4954 = vld [vmem:[#allocation2 + $0xd8] sm:$0xff]
    %v4955 = vld [vmem:[#allocation2 + $0xe0] sm:$0xff]
    %v4956 = vld [vmem:[#allocation2 + $0xf0] sm:$0xff]
    %v4957 = vld [vmem:[#allocation2 + $0xf8] sm:$0xff]
    %v4958 = vld [vmem:[#allocation2 + $0x108] sm:$0xff]
    %v4959 = vld [vmem:[#allocation2 + $0x110] sm:$0xff]
    %v4960 = vld [vmem:[#allocation2 + $0x120] sm:$0xff]
    %v4961 = vld [vmem:[#allocation2 + $0x128] sm:$0xff]
    %v4962 = vld [vmem:[#allocation2 + $0x138] sm:$0xff]
    %v4963 = vld [vmem:[#allocation2 + $0x140] sm:$0xff]
    %v4964 = vld [vmem:[#allocation2 + $0x150] sm:$0xff]
    %v4965 = vld [vmem:[#allocation2 + $0x158] sm:$0xff]
    %v4966 = vld [vmem:[#allocation2 + $0x168] sm:$0xff]
    %v4967 = vld [vmem:[#allocation2 + $0x170] sm:$0xff]
    %v4968 = vld [vmem:[#allocation2 + $0x1b0] sm:$0xff]
    %v4969 = vld [vmem:[#allocation2 + $0x1b8] sm:$0xff]
    %v4970 = vld [vmem:[#allocation2 + $0x1c8] sm:$0xff]
    %v4971 = vld [vmem:[#allocation2 + $0x1d0] sm:$0xff]
    %v4972 = vld [vmem:[#allocation2 + $0x1e0] sm:$0xff]
    %v4973 = vld [vmem:[#allocation2 + $0x1e8] sm:$0xff]
    %v4974 = vld [vmem:[#allocation2 + $0x1f8] sm:$0xff]
    %v4975 = vld [vmem:[#allocation2 + $0x200] sm:$0xff]
    %v4976 = vld [vmem:[#allocation2 + $0x210] sm:$0xff]
    %v4977 = vld [vmem:[#allocation2 + $0x218] sm:$0xff]
    %v4978 = vld [vmem:[#allocation2 + $0x228] sm:$0xff]
    %v4979 = vld [vmem:[#allocation2 + $0x230] sm:$0xff]
    %v4980 = vld [vmem:[#allocation2 + $0x240] sm:$0xff]
    %v4981 = vld [vmem:[#allocation2 + $0x248] sm:$0xff]
    %v4982 = vld [vmem:[#allocation2 + $0x258] sm:$0xff]
    %v4983 = vld [vmem:[#allocation2 + $0x260] sm:$0xff]
    %v4984 = vld [vmem:[#allocation2 + $0x270] sm:$0xff]
    %v4985 = vld [vmem:[#allocation2 + $0x278] sm:$0xff]
    %v4986 = vld [vmem:[#allocation2 + $0x288] sm:$0xff]
    %v4987 = vld [vmem:[#allocation2 + $0x290] sm:$0xff]
    %v4988 = vld [vmem:[#allocation2 + $0x2a0] sm:$0xff]
    %v4989 = vld [vmem:[#allocation2 + $0x2a8] sm:$0xff]
    %v4990 = vld [vmem:[#allocation2 + $0x2b8] sm:$0xff]
    %v4991 = vld [vmem:[#allocation2 + $0x2c0] sm:$0xff]
    %v4992 = vld [vmem:[#allocation2 + $0x2d0] sm:$0xff]
    %v4993 = vld [vmem:[#allocation2 + $0x2d8] sm:$0xff]
    %v4994 = vld [vmem:[#allocation2 + $0x2e8] sm:$0xff]
    %v4995 = vld [vmem:[#allocation2 + $0x2f0] sm:$0xff]
    %v4996 = vld [vmem:[#allocation2 + $0x300] sm:$0xff]
    %v4997 = vld [vmem:[#allocation2 + $0x308] sm:$0xff]
    %v4998 = vld [vmem:[#allocation2 + $0x318] sm:$0xff]
    %v4999 = vld [vmem:[#allocation2 + $0x320] sm:$0xff]
    %v5000 = vld [vmem:[#allocation2 + $0x1] sm:$0xff]
    %v5001 = vld [vmem:[#allocation2 + $0x9] sm:$0xff]
    %v5002 = vld [vmem:[#allocation2 + $0x19] sm:$0xff]
    %v5003 = vld [vmem:[#allocation2 + $0x21] sm:$0xff]
    %v5004 = vld [vmem:[#allocation2 + $0x31] sm:$0xff]
    %v5005 = vld [vmem:[#allocation2 + $0x39] sm:$0xff]
    %v5006 = vld [vmem:[#allocation2 + $0x49] sm:$0xff]
    %v5007 = vld [vmem:[#allocation2 + $0x51] sm:$0xff]
    %v5008 = vld [vmem:[#allocation2 + $0x61] sm:$0xff]
    %v5009 = vld [vmem:[#allocation2 + $0x69] sm:$0xff]
    %v5010 = vld [vmem:[#allocation2 + $0x79] sm:$0xff]
    %v5011 = vld [vmem:[#allocation2 + $0x81] sm:$0xff]
    %v5012 = vld [vmem:[#allocation2 + $0x91] sm:$0xff]
    %v5013 = vld [vmem:[#allocation2 + $0x99] sm:$0xff]
    %v5014 = vld [vmem:[#allocation2 + $0xa9] sm:$0xff]
    %v5015 = vld [vmem:[#allocation2 + $0xb1] sm:$0xff]
    %v5016 = vld [vmem:[#allocation2 + $0xc1] sm:$0xff]
    %v5017 = vld [vmem:[#allocation2 + $0xc9] sm:$0xff]
    %v5018 = vld [vmem:[#allocation2 + $0xd9] sm:$0xff]
    %v5019 = vld [vmem:[#allocation2 + $0xe1] sm:$0xff]
    %v5020 = vld [vmem:[#allocation2 + $0xf1] sm:$0xff]
    %v5021 = vld [vmem:[#allocation2 + $0xf9] sm:$0xff]
    %v5022 = vld [vmem:[#allocation2 + $0x109] sm:$0xff]
    %v5023 = vld [vmem:[#allocation2 + $0x111] sm:$0xff]
    %v5024 = vld [vmem:[#allocation2 + $0x121] sm:$0xff]
    %v5025 = vld [vmem:[#allocation2 + $0x129] sm:$0xff]
    %v5026 = vld [vmem:[#allocation2 + $0x139] sm:$0xff]
    %v5027 = vld [vmem:[#allocation2 + $0x141] sm:$0xff]
    %v5028 = vld [vmem:[#allocation2 + $0x151] sm:$0xff]
    %v5029 = vld [vmem:[#allocation2 + $0x159] sm:$0xff]
    %v5030 = vld [vmem:[#allocation2 + $0x169] sm:$0xff]
    %v5031 = vld [vmem:[#allocation2 + $0x171] sm:$0xff]
    %v5032 = vld [vmem:[#allocation2 + $0x1b1] sm:$0xff]
    %v5033 = vld [vmem:[#allocation2 + $0x1b9] sm:$0xff]
    %v5034 = vld [vmem:[#allocation2 + $0x1c9] sm:$0xff]
    %v5035 = vld [vmem:[#allocation2 + $0x1d1] sm:$0xff]
    %v5036 = vld [vmem:[#allocation2 + $0x1e1] sm:$0xff]
    %v5037 = vld [vmem:[#allocation2 + $0x1e9] sm:$0xff]
    %v5038 = vld [vmem:[#allocation2 + $0x1f9] sm:$0xff]
    %v5039 = vld [vmem:[#allocation2 + $0x201] sm:$0xff]
    %v5040 = vld [vmem:[#allocation2 + $0x211] sm:$0xff]
    %v5041 = vld [vmem:[#allocation2 + $0x219] sm:$0xff]
    %v5042 = vld [vmem:[#allocation2 + $0x229] sm:$0xff]
    %v5043 = vld [vmem:[#allocation2 + $0x231] sm:$0xff]
    %v5044 = vld [vmem:[#allocation2 + $0x241] sm:$0xff]
    %v5045 = vld [vmem:[#allocation2 + $0x249] sm:$0xff]
    %v5046 = vld [vmem:[#allocation2 + $0x259] sm:$0xff]
    %v5047 = vld [vmem:[#allocation2 + $0x261] sm:$0xff]
    %v5048 = vld [vmem:[#allocation2 + $0x271] sm:$0xff]
    %v5049 = vld [vmem:[#allocation2 + $0x279] sm:$0xff]
    %v5050 = vld [vmem:[#allocation2 + $0x289] sm:$0xff]
    %v5051 = vld [vmem:[#allocation2 + $0x291] sm:$0xff]
    %v5052 = vld [vmem:[#allocation2 + $0x2a1] sm:$0xff]
    %v5053 = vld [vmem:[#allocation2 + $0x2a9] sm:$0xff]
    %v5054 = vld [vmem:[#allocation2 + $0x2b9] sm:$0xff]
    %v5055 = vld [vmem:[#allocation2 + $0x2c1] sm:$0xff]
    %v5056 = vld [vmem:[#allocation2 + $0x2d1] sm:$0xff]
    %v5057 = vld [vmem:[#allocation2 + $0x2d9] sm:$0xff]
    %v5058 = vld [vmem:[#allocation2 + $0x2e9] sm:$0xff]
    %v5059 = vld [vmem:[#allocation2 + $0x2f1] sm:$0xff]
    %v5060 = vld [vmem:[#allocation2 + $0x301] sm:$0xff]
    %v5061 = vld [vmem:[#allocation2 + $0x309] sm:$0xff]
    %v5062 = vld [vmem:[#allocation2 + $0x319] sm:$0xff]
    %v5063 = vld [vmem:[#allocation2 + $0x321] sm:$0xff]
    %v5064 = vld [vmem:[#allocation2 + $0x2] sm:$0xff]
    %v5065 = vld [vmem:[#allocation2 + $0xa] sm:$0xff]
    %v5066 = vld [vmem:[#allocation2 + $0x1a] sm:$0xff]
    %v5067 = vld [vmem:[#allocation2 + $0x22] sm:$0xff]
    %v5068 = vld [vmem:[#allocation2 + $0x32] sm:$0xff]
    %v5069 = vld [vmem:[#allocation2 + $0x3a] sm:$0xff]
    %v5070 = vld [vmem:[#allocation2 + $0x4a] sm:$0xff]
    %v5071 = vld [vmem:[#allocation2 + $0x52] sm:$0xff]
    %v5072 = vld [vmem:[#allocation2 + $0x62] sm:$0xff]
    %v5073 = vld [vmem:[#allocation2 + $0x6a] sm:$0xff]
    %v5074 = vld [vmem:[#allocation2 + $0x7a] sm:$0xff]
    %v5075 = vld [vmem:[#allocation2 + $0x82] sm:$0xff]
    %v5076 = vld [vmem:[#allocation2 + $0x92] sm:$0xff]
    %v5077 = vld [vmem:[#allocation2 + $0x9a] sm:$0xff]
    %v5078 = vld [vmem:[#allocation2 + $0xaa] sm:$0xff]
    %v5079 = vld [vmem:[#allocation2 + $0xb2] sm:$0xff]
    %v5080 = vld [vmem:[#allocation2 + $0xc2] sm:$0xff]
    %v5081 = vld [vmem:[#allocation2 + $0xca] sm:$0xff]
    %v5082 = vld [vmem:[#allocation2 + $0xda] sm:$0xff]
    %v5083 = vld [vmem:[#allocation2 + $0xe2] sm:$0xff]
    %v5084 = vld [vmem:[#allocation2 + $0xf2] sm:$0xff]
    %v5085 = vld [vmem:[#allocation2 + $0xfa] sm:$0xff]
    %v5086 = vld [vmem:[#allocation2 + $0x10a] sm:$0xff]
    %v5087 = vld [vmem:[#allocation2 + $0x112] sm:$0xff]
    %v5088 = vld [vmem:[#allocation2 + $0x122] sm:$0xff]
    %v5089 = vld [vmem:[#allocation2 + $0x12a] sm:$0xff]
    %v5090 = vld [vmem:[#allocation2 + $0x13a] sm:$0xff]
    %v5091 = vld [vmem:[#allocation2 + $0x142] sm:$0xff]
    %v5092 = vld [vmem:[#allocation2 + $0x152] sm:$0xff]
    %v5093 = vld [vmem:[#allocation2 + $0x15a] sm:$0xff]
    %v5094 = vld [vmem:[#allocation2 + $0x16a] sm:$0xff]
    %v5095 = vld [vmem:[#allocation2 + $0x172] sm:$0xff]
    %v5096 = vld [vmem:[#allocation2 + $0x1b2] sm:$0xff]
    %v5097 = vld [vmem:[#allocation2 + $0x1ba] sm:$0xff]
    %v5098 = vld [vmem:[#allocation2 + $0x1ca] sm:$0xff]
    %v5099 = vld [vmem:[#allocation2 + $0x1d2] sm:$0xff]
    %v5100 = vld [vmem:[#allocation2 + $0x1e2] sm:$0xff]
    %v5101 = vld [vmem:[#allocation2 + $0x1ea] sm:$0xff]
    %v5102 = vld [vmem:[#allocation2 + $0x1fa] sm:$0xff]
    %v5103 = vld [vmem:[#allocation2 + $0x202] sm:$0xff]
    %v5104 = vld [vmem:[#allocation2 + $0x212] sm:$0xff]
    %v5105 = vld [vmem:[#allocation2 + $0x21a] sm:$0xff]
    %v5106 = vld [vmem:[#allocation2 + $0x22a] sm:$0xff]
    %v5107 = vld [vmem:[#allocation2 + $0x232] sm:$0xff]
    %v5108 = vld [vmem:[#allocation2 + $0x242] sm:$0xff]
    %v5109 = vld [vmem:[#allocation2 + $0x24a] sm:$0xff]
    %v5110 = vld [vmem:[#allocation2 + $0x25a] sm:$0xff]
    %v5111 = vld [vmem:[#allocation2 + $0x262] sm:$0xff]
    %v5112 = vld [vmem:[#allocation2 + $0x272] sm:$0xff]
    %v5113 = vld [vmem:[#allocation2 + $0x27a] sm:$0xff]
    %v5114 = vld [vmem:[#allocation2 + $0x28a] sm:$0xff]
    %v5115 = vld [vmem:[#allocation2 + $0x292] sm:$0xff]
    %v5116 = vld [vmem:[#allocation2 + $0x2a2] sm:$0xff]
    %v5117 = vld [vmem:[#allocation2 + $0x2aa] sm:$0xff]
    %v5118 = vld [vmem:[#allocation2 + $0x2ba] sm:$0xff]
    %v5119 = vld [vmem:[#allocation2 + $0x2c2] sm:$0xff]
    %v5120 = vld [vmem:[#allocation2 + $0x2d2] sm:$0xff]
    %v5121 = vld [vmem:[#allocation2 + $0x2da] sm:$0xff]
    %v5122 = vld [vmem:[#allocation2 + $0x2ea] sm:$0xff]
    %v5123 = vld [vmem:[#allocation2 + $0x2f2] sm:$0xff]
    %v5124 = vld [vmem:[#allocation2 + $0x302] sm:$0xff]
    %v5125 = vld [vmem:[#allocation2 + $0x30a] sm:$0xff]
    %v5126 = vld [vmem:[#allocation2 + $0x31a] sm:$0xff]
    %v5127 = vld [vmem:[#allocation2 + $0x322] sm:$0xff]
    %v5128 = vld [vmem:[%s210] sm:$0xff]
    %v5129 = vld [vmem:[%s210 + $0x8] sm:$0xff]
    %v5130 = vld [vmem:[%s210 + $0x18] sm:$0xff]
    %v5131 = vld [vmem:[%s210 + $0x20] sm:$0xff]
    %v5132 = vld [vmem:[%s210 + $0x30] sm:$0xff]
    %v5133 = vld [vmem:[%s210 + $0x38] sm:$0xff]
    %v5134 = vld [vmem:[%s210 + $0x48] sm:$0xff]
    %v5135 = vld [vmem:[%s210 + $0x50] sm:$0xff]
    %v5136 = vld [vmem:[%s210 + $0x60] sm:$0xff]
    %v5137 = vld [vmem:[%s210 + $0x68] sm:$0xff]
    %v5138 = vld [vmem:[%s210 + $0x78] sm:$0xff]
    %v5139 = vld [vmem:[%s210 + $0x80] sm:$0xff]
    %v5140 = vld [vmem:[%s210 + $0x90] sm:$0xff]
    %v5141 = vld [vmem:[%s210 + $0x98] sm:$0xff]
    %v5142 = vld [vmem:[%s210 + $0xa8] sm:$0xff]
    %v5143 = vld [vmem:[%s210 + $0xb0] sm:$0xff]
    %v5144 = vld [vmem:[%s210 + $0xc0] sm:$0xff]
    %v5145 = vld [vmem:[%s210 + $0xc8] sm:$0xff]
    %v5146 = vld [vmem:[%s210 + $0xd8] sm:$0xff]
    %v5147 = vld [vmem:[%s210 + $0xe0] sm:$0xff]
    %v5148 = vld [vmem:[%s210 + $0xf0] sm:$0xff]
    %v5149 = vld [vmem:[%s210 + $0xf8] sm:$0xff]
    %v5150 = vld [vmem:[%s210 + $0x108] sm:$0xff]
    %v5151 = vld [vmem:[%s210 + $0x110] sm:$0xff]
    %v5152 = vld [vmem:[%s210 + $0x120] sm:$0xff]
    %v5153 = vld [vmem:[%s210 + $0x128] sm:$0xff]
    %v5154 = vld [vmem:[%s210 + $0x138] sm:$0xff]
    %v5155 = vld [vmem:[%s210 + $0x140] sm:$0xff]
    %v5156 = vld [vmem:[%s210 + $0x150] sm:$0xff]
    %v5157 = vld [vmem:[%s210 + $0x158] sm:$0xff]
    %v5158 = vld [vmem:[%s210 + $0x168] sm:$0xff]
    %v5159 = vld [vmem:[%s210 + $0x170] sm:$0xff]
    %v5160 = vld [vmem:[%s210 + $0x1b0] sm:$0xff]
    %v5161 = vld [vmem:[%s210 + $0x1b8] sm:$0xff]
    %v5162 = vld [vmem:[%s210 + $0x1c8] sm:$0xff]
    %v5163 = vld [vmem:[%s210 + $0x1d0] sm:$0xff]
    %v5164 = vld [vmem:[%s210 + $0x1e0] sm:$0xff]
    %v5165 = vld [vmem:[%s210 + $0x1e8] sm:$0xff]
    %v5166 = vld [vmem:[%s210 + $0x1f8] sm:$0xff]
    %v5167 = vld [vmem:[%s210 + $0x200] sm:$0xff]
    %v5168 = vld [vmem:[%s210 + $0x210] sm:$0xff]
    %v5169 = vld [vmem:[%s210 + $0x218] sm:$0xff]
    %v5170 = vld [vmem:[%s210 + $0x228] sm:$0xff]
    %v5171 = vld [vmem:[%s210 + $0x230] sm:$0xff]
    %v5172 = vld [vmem:[%s210 + $0x240] sm:$0xff]
    %v5173 = vld [vmem:[%s210 + $0x248] sm:$0xff]
    %v5174 = vld [vmem:[%s210 + $0x258] sm:$0xff]
    %v5175 = vld [vmem:[%s210 + $0x260] sm:$0xff]
    %v5176 = vld [vmem:[%s210 + $0x270] sm:$0xff]
    %v5177 = vld [vmem:[%s210 + $0x278] sm:$0xff]
    %v5178 = vld [vmem:[%s210 + $0x288] sm:$0xff]
    %v5179 = vld [vmem:[%s210 + $0x290] sm:$0xff]
    %v5180 = vld [vmem:[%s210 + $0x2a0] sm:$0xff]
    %v5181 = vld [vmem:[%s210 + $0x2a8] sm:$0xff]
    %v5182 = vld [vmem:[%s210 + $0x2b8] sm:$0xff]
    %v5183 = vld [vmem:[%s210 + $0x2c0] sm:$0xff]
    %v5184 = vld [vmem:[%s210 + $0x2d0] sm:$0xff]
    %v5185 = vld [vmem:[%s210 + $0x2d8] sm:$0xff]
    %v5186 = vld [vmem:[%s210 + $0x2e8] sm:$0xff]
    %v5187 = vld [vmem:[%s210 + $0x2f0] sm:$0xff]
    %v5188 = vld [vmem:[%s210 + $0x300] sm:$0xff]
    %v5189 = vld [vmem:[%s210 + $0x308] sm:$0xff]
    %v5190 = vld [vmem:[%s210 + $0x318] sm:$0xff]
    %v5191 = vld [vmem:[%s210 + $0x320] sm:$0xff]
    %v5192 = vld [vmem:[%s210 + $0x1] sm:$0xff]
    %v5193 = vld [vmem:[%s210 + $0x9] sm:$0xff]
    %v5194 = vld [vmem:[%s210 + $0x19] sm:$0xff]
    %v5195 = vld [vmem:[%s210 + $0x21] sm:$0xff]
    %v5196 = vld [vmem:[%s210 + $0x31] sm:$0xff]
    %v5197 = vld [vmem:[%s210 + $0x39] sm:$0xff]
    %v5198 = vld [vmem:[%s210 + $0x49] sm:$0xff]
    %v5199 = vld [vmem:[%s210 + $0x51] sm:$0xff]
    %v5200 = vld [vmem:[%s210 + $0x61] sm:$0xff]
    %v5201 = vld [vmem:[%s210 + $0x69] sm:$0xff]
    %v5202 = vld [vmem:[%s210 + $0x79] sm:$0xff]
    %v5203 = vld [vmem:[%s210 + $0x81] sm:$0xff]
    %v5204 = vld [vmem:[%s210 + $0x91] sm:$0xff]
    %v5205 = vld [vmem:[%s210 + $0x99] sm:$0xff]
    %v5206 = vld [vmem:[%s210 + $0xa9] sm:$0xff]
    %v5207 = vld [vmem:[%s210 + $0xb1] sm:$0xff]
    %v5208 = vld [vmem:[%s210 + $0xc1] sm:$0xff]
    %v5209 = vld [vmem:[%s210 + $0xc9] sm:$0xff]
    %v5210 = vld [vmem:[%s210 + $0xd9] sm:$0xff]
    %v5211 = vld [vmem:[%s210 + $0xe1] sm:$0xff]
    %v5212 = vld [vmem:[%s210 + $0xf1] sm:$0xff]
    %v5213 = vld [vmem:[%s210 + $0xf9] sm:$0xff]
    %v5214 = vld [vmem:[%s210 + $0x109] sm:$0xff]
    %v5215 = vld [vmem:[%s210 + $0x111] sm:$0xff]
    %v5216 = vld [vmem:[%s210 + $0x121] sm:$0xff]
    %v5217 = vld [vmem:[%s210 + $0x129] sm:$0xff]
    %v5218 = vld [vmem:[%s210 + $0x139] sm:$0xff]
    %v5219 = vld [vmem:[%s210 + $0x141] sm:$0xff]
    %v5220 = vld [vmem:[%s210 + $0x151] sm:$0xff]
    %v5221 = vld [vmem:[%s210 + $0x159] sm:$0xff]
    %v5222 = vld [vmem:[%s210 + $0x169] sm:$0xff]
    %v5223 = vld [vmem:[%s210 + $0x171] sm:$0xff]
    %v5224 = vld [vmem:[%s210 + $0x1b1] sm:$0xff]
    %v5225 = vld [vmem:[%s210 + $0x1b9] sm:$0xff]
    %v5226 = vld [vmem:[%s210 + $0x1c9] sm:$0xff]
    %v5227 = vld [vmem:[%s210 + $0x1d1] sm:$0xff]
    %v5228 = vld [vmem:[%s210 + $0x1e1] sm:$0xff]
    %v5229 = vld [vmem:[%s210 + $0x1e9] sm:$0xff]
    %v5230 = vld [vmem:[%s210 + $0x1f9] sm:$0xff]
    %v5231 = vld [vmem:[%s210 + $0x201] sm:$0xff]
    %v5232 = vld [vmem:[%s210 + $0x211] sm:$0xff]
    %v5233 = vld [vmem:[%s210 + $0x219] sm:$0xff]
    %v5234 = vld [vmem:[%s210 + $0x229] sm:$0xff]
    %v5235 = vld [vmem:[%s210 + $0x231] sm:$0xff]
    %v5236 = vld [vmem:[%s210 + $0x241] sm:$0xff]
    %v5237 = vld [vmem:[%s210 + $0x249] sm:$0xff]
    %v5238 = vld [vmem:[%s210 + $0x259] sm:$0xff]
    %v5239 = vld [vmem:[%s210 + $0x261] sm:$0xff]
    %v5240 = vld [vmem:[%s210 + $0x271] sm:$0xff]
    %v5241 = vld [vmem:[%s210 + $0x279] sm:$0xff]
    %v5242 = vld [vmem:[%s210 + $0x289] sm:$0xff]
    %v5243 = vld [vmem:[%s210 + $0x291] sm:$0xff]
    %v5244 = vld [vmem:[%s210 + $0x2a1] sm:$0xff]
    %v5245 = vld [vmem:[%s210 + $0x2a9] sm:$0xff]
    %v5246 = vld [vmem:[%s210 + $0x2b9] sm:$0xff]
    %v5247 = vld [vmem:[%s210 + $0x2c1] sm:$0xff]
    %v5248 = vld [vmem:[%s210 + $0x2d1] sm:$0xff]
    %v5249 = vld [vmem:[%s210 + $0x2d9] sm:$0xff]
    %v5250 = vld [vmem:[%s210 + $0x2e9] sm:$0xff]
    %v5251 = vld [vmem:[%s210 + $0x2f1] sm:$0xff]
    %v5252 = vld [vmem:[%s210 + $0x301] sm:$0xff]
    %v5253 = vld [vmem:[%s210 + $0x309] sm:$0xff]
    %v5254 = vld [vmem:[%s210 + $0x319] sm:$0xff]
    %v5255 = vld [vmem:[%s210 + $0x321] sm:$0xff]
    %v5256 = vld [vmem:[%s210 + $0x2] sm:$0xff]
    %v5257 = vld [vmem:[%s210 + $0xa] sm:$0xff]
    %v5258 = vld [vmem:[%s210 + $0x1a] sm:$0xff]
    %v5259 = vld [vmem:[%s210 + $0x22] sm:$0xff]
    %v5260 = vld [vmem:[%s210 + $0x32] sm:$0xff]
    %v5261 = vld [vmem:[%s210 + $0x3a] sm:$0xff]
    %v5262 = vld [vmem:[%s210 + $0x4a] sm:$0xff]
    %v5263 = vld [vmem:[%s210 + $0x52] sm:$0xff]
    %v5264 = vld [vmem:[%s210 + $0x62] sm:$0xff]
    %v5265 = vld [vmem:[%s210 + $0x6a] sm:$0xff]
    %v5266 = vld [vmem:[%s210 + $0x7a] sm:$0xff]
    %v5267 = vld [vmem:[%s210 + $0x82] sm:$0xff]
    %v5268 = vld [vmem:[%s210 + $0x92] sm:$0xff]
    %v5269 = vld [vmem:[%s210 + $0x9a] sm:$0xff]
    %v5270 = vld [vmem:[%s210 + $0xaa] sm:$0xff]
    %v5271 = vld [vmem:[%s210 + $0xb2] sm:$0xff]
    %v5272 = vld [vmem:[%s210 + $0xc2] sm:$0xff]
    %v5273 = vld [vmem:[%s210 + $0xca] sm:$0xff]
    %v5274 = vld [vmem:[%s210 + $0xda] sm:$0xff]
    %v5275 = vld [vmem:[%s210 + $0xe2] sm:$0xff]
    %v5276 = vld [vmem:[%s210 + $0xf2] sm:$0xff]
    %v5277 = vld [vmem:[%s210 + $0xfa] sm:$0xff]
    %v5278 = vld [vmem:[%s210 + $0x10a] sm:$0xff]
    %v5279 = vld [vmem:[%s210 + $0x112] sm:$0xff]
    %v5280 = vld [vmem:[%s210 + $0x122] sm:$0xff]
    %v5281 = vld [vmem:[%s210 + $0x12a] sm:$0xff]
    %v5282 = vld [vmem:[%s210 + $0x13a] sm:$0xff]
    %v5283 = vld [vmem:[%s210 + $0x142] sm:$0xff]
    %v5284 = vld [vmem:[%s210 + $0x152] sm:$0xff]
    %v5285 = vld [vmem:[%s210 + $0x15a] sm:$0xff]
    %v5286 = vld [vmem:[%s210 + $0x16a] sm:$0xff]
    %v5287 = vld [vmem:[%s210 + $0x172] sm:$0xff]
    %v5288 = vld [vmem:[%s210 + $0x1b2] sm:$0xff]
    %v5289 = vld [vmem:[%s210 + $0x1ba] sm:$0xff]
    %v5290 = vld [vmem:[%s210 + $0x1ca] sm:$0xff]
    %v5291 = vld [vmem:[%s210 + $0x1d2] sm:$0xff]
    %v5292 = vld [vmem:[%s210 + $0x1e2] sm:$0xff]
    %v5293 = vld [vmem:[%s210 + $0x1ea] sm:$0xff]
    %v5294 = vld [vmem:[%s210 + $0x1fa] sm:$0xff]
    %v5295 = vld [vmem:[%s210 + $0x202] sm:$0xff]
    %v5296 = vld [vmem:[%s210 + $0x212] sm:$0xff]
    %v5297 = vld [vmem:[%s210 + $0x21a] sm:$0xff]
    %v5298 = vld [vmem:[%s210 + $0x22a] sm:$0xff]
    %v5299 = vld [vmem:[%s210 + $0x232] sm:$0xff]
    %v5300 = vld [vmem:[%s210 + $0x242] sm:$0xff]
    %v5301 = vld [vmem:[%s210 + $0x24a] sm:$0xff]
    %v5302 = vld [vmem:[%s210 + $0x25a] sm:$0xff]
    %v5303 = vld [vmem:[%s210 + $0x262] sm:$0xff]
    %v5304 = vld [vmem:[%s210 + $0x272] sm:$0xff]
    %v5305 = vld [vmem:[%s210 + $0x27a] sm:$0xff]
    %v5306 = vld [vmem:[%s210 + $0x28a] sm:$0xff]
    %v5307 = vld [vmem:[%s210 + $0x292] sm:$0xff]
    %v5308 = vld [vmem:[%s210 + $0x2a2] sm:$0xff]
    %v5309 = vld [vmem:[%s210 + $0x2aa] sm:$0xff]
    %v5310 = vld [vmem:[%s210 + $0x2ba] sm:$0xff]
    %v5311 = vld [vmem:[%s210 + $0x2c2] sm:$0xff]
    %v5312 = vld [vmem:[%s210 + $0x2d2] sm:$0xff]
    %v5313 = vld [vmem:[%s210 + $0x2da] sm:$0xff]
    %v5314 = vld [vmem:[%s210 + $0x2ea] sm:$0xff]
    %v5315 = vld [vmem:[%s210 + $0x2f2] sm:$0xff]
    %v5316 = vld [vmem:[%s210 + $0x302] sm:$0xff]
    %v5317 = vld [vmem:[%s210 + $0x30a] sm:$0xff]
    %v5318 = vld [vmem:[%s210 + $0x31a] sm:$0xff]
    %v5319 = vld [vmem:[%s210 + $0x322] sm:$0xff]
    %v5320 = vld [vmem:[%s660] sm:$0xff]
    %v5321 = vld [vmem:[%s660 + $0x8] sm:$0xff]
    %v5322 = vld [vmem:[%s660 + $0x18] sm:$0xff]
    %v5323 = vld [vmem:[%s660 + $0x20] sm:$0xff]
    %v5324 = vld [vmem:[%s660 + $0x30] sm:$0xff]
    %v5325 = vld [vmem:[%s660 + $0x38] sm:$0xff]
    %v5326 = vld [vmem:[%s660 + $0x48] sm:$0xff]
    %v5327 = vld [vmem:[%s660 + $0x50] sm:$0xff]
    %v5328 = vld [vmem:[%s660 + $0x60] sm:$0xff]
    %v5329 = vld [vmem:[%s660 + $0x68] sm:$0xff]
    %v5330 = vld [vmem:[%s660 + $0x78] sm:$0xff]
    %v5331 = vld [vmem:[%s660 + $0x80] sm:$0xff]
    %v5332 = vld [vmem:[%s660 + $0x90] sm:$0xff]
    %v5333 = vld [vmem:[%s660 + $0x98] sm:$0xff]
    %v5334 = vld [vmem:[%s660 + $0xa8] sm:$0xff]
    %v5335 = vld [vmem:[%s660 + $0xb0] sm:$0xff]
    %v5336 = vld [vmem:[%s660 + $0xc0] sm:$0xff]
    %v5337 = vld [vmem:[%s660 + $0xc8] sm:$0xff]
    %v5338 = vld [vmem:[%s660 + $0xd8] sm:$0xff]
    %v5339 = vld [vmem:[%s660 + $0xe0] sm:$0xff]
    %v5340 = vld [vmem:[%s660 + $0xf0] sm:$0xff]
    %v5341 = vld [vmem:[%s660 + $0xf8] sm:$0xff]
    %v5342 = vld [vmem:[%s660 + $0x108] sm:$0xff]
    %v5343 = vld [vmem:[%s660 + $0x110] sm:$0xff]
    %v5344 = vld [vmem:[%s660 + $0x120] sm:$0xff]
    %v5345 = vld [vmem:[%s660 + $0x128] sm:$0xff]
    %v5346 = vld [vmem:[%s660 + $0x138] sm:$0xff]
    %v5347 = vld [vmem:[%s660 + $0x140] sm:$0xff]
    %v5348 = vld [vmem:[%s660 + $0x150] sm:$0xff]
    %v5349 = vld [vmem:[%s660 + $0x158] sm:$0xff]
    %v5350 = vld [vmem:[%s660 + $0x168] sm:$0xff]
    %v5351 = vld [vmem:[%s660 + $0x170] sm:$0xff]
    %v5352 = vld [vmem:[%s660 + $0x1b0] sm:$0xff]
    %v5353 = vld [vmem:[%s660 + $0x1b8] sm:$0xff]
    %v5354 = vld [vmem:[%s660 + $0x1c8] sm:$0xff]
    %v5355 = vld [vmem:[%s660 + $0x1d0] sm:$0xff]
    %v5356 = vld [vmem:[%s660 + $0x1e0] sm:$0xff]
    %v5357 = vld [vmem:[%s660 + $0x1e8] sm:$0xff]
    %v5358 = vld [vmem:[%s660 + $0x1f8] sm:$0xff]
    %v5359 = vld [vmem:[%s660 + $0x200] sm:$0xff]
    %v5360 = vld [vmem:[%s660 + $0x210] sm:$0xff]
    %v5361 = vld [vmem:[%s660 + $0x218] sm:$0xff]
    %v5362 = vld [vmem:[%s660 + $0x228] sm:$0xff]
    %v5363 = vld [vmem:[%s660 + $0x230] sm:$0xff]
    %v5364 = vld [vmem:[%s660 + $0x240] sm:$0xff]
    %v5365 = vld [vmem:[%s660 + $0x248] sm:$0xff]
    %v5366 = vld [vmem:[%s660 + $0x258] sm:$0xff]
    %v5367 = vld [vmem:[%s660 + $0x260] sm:$0xff]
    %v5368 = vld [vmem:[%s660 + $0x270] sm:$0xff]
    %v5369 = vld [vmem:[%s660 + $0x278] sm:$0xff]
    %v5370 = vld [vmem:[%s660 + $0x288] sm:$0xff]
    %v5371 = vld [vmem:[%s660 + $0x290] sm:$0xff]
    %v5372 = vld [vmem:[%s660 + $0x2a0] sm:$0xff]
    %v5373 = vld [vmem:[%s660 + $0x2a8] sm:$0xff]
    %v5374 = vld [vmem:[%s660 + $0x2b8] sm:$0xff]
    %v5375 = vld [vmem:[%s660 + $0x2c0] sm:$0xff]
    %v5376 = vld [vmem:[%s660 + $0x2d0] sm:$0xff]
    %v5377 = vld [vmem:[%s660 + $0x2d8] sm:$0xff]
    %v5378 = vld [vmem:[%s660 + $0x2e8] sm:$0xff]
    %v5379 = vld [vmem:[%s660 + $0x2f0] sm:$0xff]
    %v5380 = vld [vmem:[%s660 + $0x300] sm:$0xff]
    %v5381 = vld [vmem:[%s660 + $0x308] sm:$0xff]
    %v5382 = vld [vmem:[%s660 + $0x318] sm:$0xff]
    %v5383 = vld [vmem:[%s660 + $0x320] sm:$0xff]
    %v5384 = vld [vmem:[%s660 + $0x1] sm:$0xff]
    %v5385 = vld [vmem:[%s660 + $0x9] sm:$0xff]
    %v5386 = vld [vmem:[%s660 + $0x19] sm:$0xff]
    %v5387 = vld [vmem:[%s660 + $0x21] sm:$0xff]
    %v5388 = vld [vmem:[%s660 + $0x31] sm:$0xff]
    %v5389 = vld [vmem:[%s660 + $0x39] sm:$0xff]
    %v5390 = vld [vmem:[%s660 + $0x49] sm:$0xff]
    %v5391 = vld [vmem:[%s660 + $0x51] sm:$0xff]
    %v5392 = vld [vmem:[%s660 + $0x61] sm:$0xff]
    %v5393 = vld [vmem:[%s660 + $0x69] sm:$0xff]
    %v5394 = vld [vmem:[%s660 + $0x79] sm:$0xff]
    %v5395 = vld [vmem:[%s660 + $0x81] sm:$0xff]
    %v5396 = vld [vmem:[%s660 + $0x91] sm:$0xff]
    %v5397 = vld [vmem:[%s660 + $0x99] sm:$0xff]
    %v5398 = vld [vmem:[%s660 + $0xa9] sm:$0xff]
    %v5399 = vld [vmem:[%s660 + $0xb1] sm:$0xff]
    %v5400 = vld [vmem:[%s660 + $0xc1] sm:$0xff]
    %v5401 = vld [vmem:[%s660 + $0xc9] sm:$0xff]
    %v5402 = vld [vmem:[%s660 + $0xd9] sm:$0xff]
    %v5403 = vld [vmem:[%s660 + $0xe1] sm:$0xff]
    %v5404 = vld [vmem:[%s660 + $0xf1] sm:$0xff]
    %v5405 = vld [vmem:[%s660 + $0xf9] sm:$0xff]
    %v5406 = vld [vmem:[%s660 + $0x109] sm:$0xff]
    %v5407 = vld [vmem:[%s660 + $0x111] sm:$0xff]
    %v5408 = vld [vmem:[%s660 + $0x121] sm:$0xff]
    %v5409 = vld [vmem:[%s660 + $0x129] sm:$0xff]
    %v5410 = vld [vmem:[%s660 + $0x139] sm:$0xff]
    %v5411 = vld [vmem:[%s660 + $0x141] sm:$0xff]
    %v5412 = vld [vmem:[%s660 + $0x151] sm:$0xff]
    %v5413 = vld [vmem:[%s660 + $0x159] sm:$0xff]
    %v5414 = vld [vmem:[%s660 + $0x169] sm:$0xff]
    %v5415 = vld [vmem:[%s660 + $0x171] sm:$0xff]
    %v5416 = vld [vmem:[%s660 + $0x1b1] sm:$0xff]
    %v5417 = vld [vmem:[%s660 + $0x1b9] sm:$0xff]
    %v5418 = vld [vmem:[%s660 + $0x1c9] sm:$0xff]
    %v5419 = vld [vmem:[%s660 + $0x1d1] sm:$0xff]
    %v5420 = vld [vmem:[%s660 + $0x1e1] sm:$0xff]
    %v5421 = vld [vmem:[%s660 + $0x1e9] sm:$0xff]
    %v5422 = vld [vmem:[%s660 + $0x1f9] sm:$0xff]
    %v5423 = vld [vmem:[%s660 + $0x201] sm:$0xff]
    %v5424 = vld [vmem:[%s660 + $0x211] sm:$0xff]
    %v5425 = vld [vmem:[%s660 + $0x219] sm:$0xff]
    %v5426 = vld [vmem:[%s660 + $0x229] sm:$0xff]
    %v5427 = vld [vmem:[%s660 + $0x231] sm:$0xff]
    %v5428 = vld [vmem:[%s660 + $0x241] sm:$0xff]
    %v5429 = vld [vmem:[%s660 + $0x249] sm:$0xff]
    %v5430 = vld [vmem:[%s660 + $0x259] sm:$0xff]
    %v5431 = vld [vmem:[%s660 + $0x261] sm:$0xff]
    %v5432 = vld [vmem:[%s660 + $0x271] sm:$0xff]
    %v5433 = vld [vmem:[%s660 + $0x279] sm:$0xff]
    %v5434 = vld [vmem:[%s660 + $0x289] sm:$0xff]
    %v5435 = vld [vmem:[%s660 + $0x291] sm:$0xff]
    %v5436 = vld [vmem:[%s660 + $0x2a1] sm:$0xff]
    %v5437 = vld [vmem:[%s660 + $0x2a9] sm:$0xff]
    %v5438 = vld [vmem:[%s660 + $0x2b9] sm:$0xff]
    %v5439 = vld [vmem:[%s660 + $0x2c1] sm:$0xff]
    %v5440 = vld [vmem:[%s660 + $0x2d1] sm:$0xff]
    %v5441 = vld [vmem:[%s660 + $0x2d9] sm:$0xff]
    %v5442 = vld [vmem:[%s660 + $0x2e9] sm:$0xff]
    %v5443 = vld [vmem:[%s660 + $0x2f1] sm:$0xff]
    %v5444 = vld [vmem:[%s660 + $0x301] sm:$0xff]
    %v5445 = vld [vmem:[%s660 + $0x309] sm:$0xff]
    %v5446 = vld [vmem:[%s660 + $0x319] sm:$0xff]
    %v5447 = vld [vmem:[%s660 + $0x321] sm:$0xff]
    %v5448 = vld [vmem:[%s660 + $0x2] sm:$0xff]
    %v5449 = vld [vmem:[%s660 + $0xa] sm:$0xff]
    %v5450 = vld [vmem:[%s660 + $0x1a] sm:$0xff]
    %v5451 = vld [vmem:[%s660 + $0x22] sm:$0xff]
    %v5452 = vld [vmem:[%s660 + $0x32] sm:$0xff]
    %v5453 = vld [vmem:[%s660 + $0x3a] sm:$0xff]
    %v5454 = vld [vmem:[%s660 + $0x4a] sm:$0xff]
    %v5455 = vld [vmem:[%s660 + $0x52] sm:$0xff]
    %v5456 = vld [vmem:[%s660 + $0x62] sm:$0xff]
    %v5457 = vld [vmem:[%s660 + $0x6a] sm:$0xff]
    %v5458 = vld [vmem:[%s660 + $0x7a] sm:$0xff]
    %v5459 = vld [vmem:[%s660 + $0x82] sm:$0xff]
    %v5460 = vld [vmem:[%s660 + $0x92] sm:$0xff]
    %v5461 = vld [vmem:[%s660 + $0x9a] sm:$0xff]
    %v5462 = vld [vmem:[%s660 + $0xaa] sm:$0xff]
    %v5463 = vld [vmem:[%s660 + $0xb2] sm:$0xff]
    %v5464 = vld [vmem:[%s660 + $0xc2] sm:$0xff]
    %v5465 = vld [vmem:[%s660 + $0xca] sm:$0xff]
    %v5466 = vld [vmem:[%s660 + $0xda] sm:$0xff]
    %v5467 = vld [vmem:[%s660 + $0xe2] sm:$0xff]
    %v5468 = vld [vmem:[%s660 + $0xf2] sm:$0xff]
    %v5469 = vld [vmem:[%s660 + $0xfa] sm:$0xff]
    %v5470 = vld [vmem:[%s660 + $0x10a] sm:$0xff]
    %v5471 = vld [vmem:[%s660 + $0x112] sm:$0xff]
    %v5472 = vld [vmem:[%s660 + $0x122] sm:$0xff]
    %v5473 = vld [vmem:[%s660 + $0x12a] sm:$0xff]
    %v5474 = vld [vmem:[%s660 + $0x13a] sm:$0xff]
    %v5475 = vld [vmem:[%s660 + $0x142] sm:$0xff]
    %v5476 = vld [vmem:[%s660 + $0x152] sm:$0xff]
    %v5477 = vld [vmem:[%s660 + $0x15a] sm:$0xff]
    %v5478 = vld [vmem:[%s660 + $0x16a] sm:$0xff]
    %v5479 = vld [vmem:[%s660 + $0x172] sm:$0xff]
    %v5480 = vld [vmem:[%s660 + $0x1b2] sm:$0xff]
    %v5481 = vld [vmem:[%s660 + $0x1ba] sm:$0xff]
    %v5482 = vld [vmem:[%s660 + $0x1ca] sm:$0xff]
    %v5483 = vld [vmem:[%s660 + $0x1d2] sm:$0xff]
    %v5484 = vld [vmem:[%s660 + $0x1e2] sm:$0xff]
    %v5485 = vld [vmem:[%s660 + $0x1ea] sm:$0xff]
    %v5486 = vld [vmem:[%s660 + $0x1fa] sm:$0xff]
    %v5487 = vld [vmem:[%s660 + $0x202] sm:$0xff]
    %v5488 = vld [vmem:[%s660 + $0x212] sm:$0xff]
    %v5489 = vld [vmem:[%s660 + $0x21a] sm:$0xff]
    %v5490 = vld [vmem:[%s660 + $0x22a] sm:$0xff]
    %v5491 = vld [vmem:[%s660 + $0x232] sm:$0xff]
    %v5492 = vld [vmem:[%s660 + $0x242] sm:$0xff]
    %v5493 = vld [vmem:[%s660 + $0x24a] sm:$0xff]
    %v5494 = vld [vmem:[%s660 + $0x25a] sm:$0xff]
    %v5495 = vld [vmem:[%s660 + $0x262] sm:$0xff]
    %v5496 = vld [vmem:[%s660 + $0x272] sm:$0xff]
    %v5497 = vld [vmem:[%s660 + $0x27a] sm:$0xff]
    %v5498 = vld [vmem:[%s660 + $0x28a] sm:$0xff]
    %v5499 = vld [vmem:[%s660 + $0x292] sm:$0xff]
    %v5500 = vld [vmem:[%s660 + $0x2a2] sm:$0xff]
    %v5501 = vld [vmem:[%s660 + $0x2aa] sm:$0xff]
    %v5502 = vld [vmem:[%s660 + $0x2ba] sm:$0xff]
    %v5503 = vld [vmem:[%s660 + $0x2c2] sm:$0xff]
    %v5504 = vld [vmem:[%s660 + $0x2d2] sm:$0xff]
    %v5505 = vld [vmem:[%s660 + $0x2da] sm:$0xff]
    %v5506 = vld [vmem:[%s660 + $0x2ea] sm:$0xff]
    %v5507 = vld [vmem:[%s660 + $0x2f2] sm:$0xff]
    %v5508 = vld [vmem:[%s660 + $0x302] sm:$0xff]
    %v5509 = vld [vmem:[%s660 + $0x30a] sm:$0xff]
    %v5510 = vld [vmem:[%s660 + $0x31a] sm:$0xff]
    %v5511 = vld [vmem:[%s660 + $0x322] sm:$0xff]
    %5576 = vrot.lane.b32.xlu0 %v5000, 12
    %v5577 = vpop.permute.xlu0 %5576
    %5578 = vrot.lane.b32.xlu0 %v5001, 12
    %v5579 = vpop.permute.xlu0 %5578
    %5580 = vrot.lane.b32.xlu0 %v5002, 12
    %v5581 = vpop.permute.xlu0 %5580
    %5582 = vrot.lane.b32.xlu0 %v5003, 12
    %v5583 = vpop.permute.xlu0 %5582
    %5584 = vrot.lane.b32.xlu0 %v5004, 12
    %v5585 = vpop.permute.xlu0 %5584
    %5586 = vrot.lane.b32.xlu0 %v5005, 12
    %v5587 = vpop.permute.xlu0 %5586
    %5588 = vrot.lane.b32.xlu0 %v5006, 12
    %v5589 = vpop.permute.xlu0 %5588
    %5590 = vrot.lane.b32.xlu0 %v5007, 12
    %v5591 = vpop.permute.xlu0 %5590
    %5592 = vrot.lane.b32.xlu0 %v5008, 12
    %v5593 = vpop.permute.xlu0 %5592
    %5594 = vrot.lane.b32.xlu0 %v5009, 12
    %v5595 = vpop.permute.xlu0 %5594
    %5596 = vrot.lane.b32.xlu0 %v5010, 12
    %v5597 = vpop.permute.xlu0 %5596
    %5598 = vrot.lane.b32.xlu0 %v5011, 12
    %v5599 = vpop.permute.xlu0 %5598
    %5600 = vrot.lane.b32.xlu0 %v5012, 12
    %v5601 = vpop.permute.xlu0 %5600
    %5602 = vrot.lane.b32.xlu0 %v5013, 12
    %v5603 = vpop.permute.xlu0 %5602
    %5604 = vrot.lane.b32.xlu0 %v5014, 12
    %v5605 = vpop.permute.xlu0 %5604
    %5606 = vrot.lane.b32.xlu0 %v5015, 12
    %v5607 = vpop.permute.xlu0 %5606
    %5608 = vrot.lane.b32.xlu0 %v5016, 12
    %v5609 = vpop.permute.xlu0 %5608
    %5610 = vrot.lane.b32.xlu0 %v5017, 12
    %v5611 = vpop.permute.xlu0 %5610
    %5612 = vrot.lane.b32.xlu0 %v5018, 12
    %v5613 = vpop.permute.xlu0 %5612
    %5614 = vrot.lane.b32.xlu0 %v5019, 12
    %v5615 = vpop.permute.xlu0 %5614
    %5616 = vrot.lane.b32.xlu0 %v5020, 12
    %v5617 = vpop.permute.xlu0 %5616
    %5618 = vrot.lane.b32.xlu0 %v5021, 12
    %v5619 = vpop.permute.xlu0 %5618
    %5620 = vrot.lane.b32.xlu0 %v5022, 12
    %v5621 = vpop.permute.xlu0 %5620
    %5622 = vrot.lane.b32.xlu0 %v5023, 12
    %v5623 = vpop.permute.xlu0 %5622
    %5624 = vrot.lane.b32.xlu0 %v5024, 12
    %v5625 = vpop.permute.xlu0 %5624
    %5626 = vrot.lane.b32.xlu0 %v5025, 12
    %v5627 = vpop.permute.xlu0 %5626
    %5628 = vrot.lane.b32.xlu0 %v5026, 12
    %v5629 = vpop.permute.xlu0 %5628
    %5630 = vrot.lane.b32.xlu0 %v5027, 12
    %v5631 = vpop.permute.xlu0 %5630
    %5632 = vrot.lane.b32.xlu0 %v5028, 12
    %v5633 = vpop.permute.xlu0 %5632
    %5634 = vrot.lane.b32.xlu0 %v5029, 12
    %v5635 = vpop.permute.xlu0 %5634
    %5636 = vrot.lane.b32.xlu0 %v5030, 12
    %v5637 = vpop.permute.xlu0 %5636
    %5638 = vrot.lane.b32.xlu0 %v5031, 12
    %v5639 = vpop.permute.xlu0 %5638
    %5640 = vrot.lane.b32.xlu0 %v5032, 12
    %v5641 = vpop.permute.xlu0 %5640
    %5642 = vrot.lane.b32.xlu0 %v5033, 12
    %v5643 = vpop.permute.xlu0 %5642
    %5644 = vrot.lane.b32.xlu0 %v5034, 12
    %v5645 = vpop.permute.xlu0 %5644
    %5646 = vrot.lane.b32.xlu0 %v5035, 12
    %v5647 = vpop.permute.xlu0 %5646
    %5648 = vrot.lane.b32.xlu0 %v5036, 12
    %v5649 = vpop.permute.xlu0 %5648
    %5650 = vrot.lane.b32.xlu0 %v5037, 12
    %v5651 = vpop.permute.xlu0 %5650
    %5652 = vrot.lane.b32.xlu0 %v5038, 12
    %v5653 = vpop.permute.xlu0 %5652
    %5654 = vrot.lane.b32.xlu0 %v5039, 12
    %v5655 = vpop.permute.xlu0 %5654
    %5656 = vrot.lane.b32.xlu0 %v5040, 12
    %v5657 = vpop.permute.xlu0 %5656
    %5658 = vrot.lane.b32.xlu0 %v5041, 12
    %v5659 = vpop.permute.xlu0 %5658
    %5660 = vrot.lane.b32.xlu0 %v5042, 12
    %v5661 = vpop.permute.xlu0 %5660
    %5662 = vrot.lane.b32.xlu0 %v5043, 12
    %v5663 = vpop.permute.xlu0 %5662
    %5664 = vrot.lane.b32.xlu0 %v5044, 12
    %v5665 = vpop.permute.xlu0 %5664
    %5666 = vrot.lane.b32.xlu0 %v5045, 12
    %v5667 = vpop.permute.xlu0 %5666
    %5668 = vrot.lane.b32.xlu0 %v5046, 12
    %v5669 = vpop.permute.xlu0 %5668
    %5670 = vrot.lane.b32.xlu0 %v5047, 12
    %v5671 = vpop.permute.xlu0 %5670
    %5672 = vrot.lane.b32.xlu0 %v5048, 12
    %v5673 = vpop.permute.xlu0 %5672
    %5674 = vrot.lane.b32.xlu0 %v5049, 12
    %v5675 = vpop.permute.xlu0 %5674
    %5676 = vrot.lane.b32.xlu0 %v5050, 12
    %v5677 = vpop.permute.xlu0 %5676
    %5678 = vrot.lane.b32.xlu0 %v5051, 12
    %v5679 = vpop.permute.xlu0 %5678
    %5680 = vrot.lane.b32.xlu0 %v5052, 12
    %v5681 = vpop.permute.xlu0 %5680
    %5682 = vrot.lane.b32.xlu0 %v5053, 12
    %v5683 = vpop.permute.xlu0 %5682
    %5684 = vrot.lane.b32.xlu0 %v5054, 12
    %v5685 = vpop.permute.xlu0 %5684
    %5686 = vrot.lane.b32.xlu0 %v5055, 12
    %v5687 = vpop.permute.xlu0 %5686
    %5688 = vrot.lane.b32.xlu0 %v5056, 12
    %v5689 = vpop.permute.xlu0 %5688
    %5690 = vrot.lane.b32.xlu0 %v5057, 12
    %v5691 = vpop.permute.xlu0 %5690
    %5692 = vrot.lane.b32.xlu0 %v5058, 12
    %v5693 = vpop.permute.xlu0 %5692
    %5694 = vrot.lane.b32.xlu0 %v5059, 12
    %v5695 = vpop.permute.xlu0 %5694
    %5696 = vrot.lane.b32.xlu0 %v5060, 12
    %v5697 = vpop.permute.xlu0 %5696
    %5698 = vrot.lane.b32.xlu0 %v5061, 12
    %v5699 = vpop.permute.xlu0 %5698
    %5700 = vrot.lane.b32.xlu0 %v5062, 12
    %v5701 = vpop.permute.xlu0 %5700
    %5702 = vrot.lane.b32.xlu0 %v5063, 12
    %v5703 = vpop.permute.xlu0 %5702
    %5832 = vrot.lane.b32.xlu0 %v5064, 24
    %v5833 = vpop.permute.xlu0 %5832
    %5834 = vrot.lane.b32.xlu0 %v5065, 24
    %v5835 = vpop.permute.xlu0 %5834
    %5836 = vrot.lane.b32.xlu0 %v5066, 24
    %v5837 = vpop.permute.xlu0 %5836
    %5838 = vrot.lane.b32.xlu0 %v5067, 24
    %v5839 = vpop.permute.xlu0 %5838
    %5840 = vrot.lane.b32.xlu0 %v5068, 24
    %v5841 = vpop.permute.xlu0 %5840
    %5842 = vrot.lane.b32.xlu0 %v5069, 24
    %v5843 = vpop.permute.xlu0 %5842
    %5844 = vrot.lane.b32.xlu0 %v5070, 24
    %v5845 = vpop.permute.xlu0 %5844
    %5846 = vrot.lane.b32.xlu0 %v5071, 24
    %v5847 = vpop.permute.xlu0 %5846
    %5848 = vrot.lane.b32.xlu0 %v5072, 24
    %v5849 = vpop.permute.xlu0 %5848
    %5850 = vrot.lane.b32.xlu0 %v5073, 24
    %v5851 = vpop.permute.xlu0 %5850
    %5852 = vrot.lane.b32.xlu0 %v5074, 24
    %v5853 = vpop.permute.xlu0 %5852
    %5854 = vrot.lane.b32.xlu0 %v5075, 24
    %v5855 = vpop.permute.xlu0 %5854
    %5856 = vrot.lane.b32.xlu0 %v5076, 24
    %v5857 = vpop.permute.xlu0 %5856
    %5858 = vrot.lane.b32.xlu0 %v5077, 24
    %v5859 = vpop.permute.xlu0 %5858
    %5860 = vrot.lane.b32.xlu0 %v5078, 24
    %v5861 = vpop.permute.xlu0 %5860
    %5862 = vrot.lane.b32.xlu0 %v5079, 24
    %v5863 = vpop.permute.xlu0 %5862
    %5864 = vrot.lane.b32.xlu0 %v5080, 24
    %v5865 = vpop.permute.xlu0 %5864
    %5866 = vrot.lane.b32.xlu0 %v5081, 24
    %v5867 = vpop.permute.xlu0 %5866
    %5868 = vrot.lane.b32.xlu0 %v5082, 24
    %v5869 = vpop.permute.xlu0 %5868
    %5870 = vrot.lane.b32.xlu0 %v5083, 24
    %v5871 = vpop.permute.xlu0 %5870
    %5872 = vrot.lane.b32.xlu0 %v5084, 24
    %v5873 = vpop.permute.xlu0 %5872
    %5874 = vrot.lane.b32.xlu0 %v5085, 24
    %v5875 = vpop.permute.xlu0 %5874
    %5876 = vrot.lane.b32.xlu0 %v5086, 24
    %v5877 = vpop.permute.xlu0 %5876
    %5878 = vrot.lane.b32.xlu0 %v5087, 24
    %v5879 = vpop.permute.xlu0 %5878
    %5880 = vrot.lane.b32.xlu0 %v5088, 24
    %v5881 = vpop.permute.xlu0 %5880
    %5882 = vrot.lane.b32.xlu0 %v5089, 24
    %v5883 = vpop.permute.xlu0 %5882
    %5884 = vrot.lane.b32.xlu0 %v5090, 24
    %v5885 = vpop.permute.xlu0 %5884
    %5886 = vrot.lane.b32.xlu0 %v5091, 24
    %v5887 = vpop.permute.xlu0 %5886
    %5888 = vrot.lane.b32.xlu0 %v5092, 24
    %v5889 = vpop.permute.xlu0 %5888
    %5890 = vrot.lane.b32.xlu0 %v5093, 24
    %v5891 = vpop.permute.xlu0 %5890
    %5892 = vrot.lane.b32.xlu0 %v5094, 24
    %v5893 = vpop.permute.xlu0 %5892
    %5894 = vrot.lane.b32.xlu0 %v5095, 24
    %v5895 = vpop.permute.xlu0 %5894
    %5896 = vrot.lane.b32.xlu0 %v5096, 24
    %v5897 = vpop.permute.xlu0 %5896
    %5898 = vrot.lane.b32.xlu0 %v5097, 24
    %v5899 = vpop.permute.xlu0 %5898
    %5900 = vrot.lane.b32.xlu0 %v5098, 24
    %v5901 = vpop.permute.xlu0 %5900
    %5902 = vrot.lane.b32.xlu0 %v5099, 24
    %v5903 = vpop.permute.xlu0 %5902
    %5904 = vrot.lane.b32.xlu0 %v5100, 24
    %v5905 = vpop.permute.xlu0 %5904
    %5906 = vrot.lane.b32.xlu0 %v5101, 24
    %v5907 = vpop.permute.xlu0 %5906
    %5908 = vrot.lane.b32.xlu0 %v5102, 24
    %v5909 = vpop.permute.xlu0 %5908
    %5910 = vrot.lane.b32.xlu0 %v5103, 24
    %v5911 = vpop.permute.xlu0 %5910
    %5912 = vrot.lane.b32.xlu0 %v5104, 24
    %v5913 = vpop.permute.xlu0 %5912
    %5914 = vrot.lane.b32.xlu0 %v5105, 24
    %v5915 = vpop.permute.xlu0 %5914
    %5916 = vrot.lane.b32.xlu0 %v5106, 24
    %v5917 = vpop.permute.xlu0 %5916
    %5918 = vrot.lane.b32.xlu0 %v5107, 24
    %v5919 = vpop.permute.xlu0 %5918
    %5920 = vrot.lane.b32.xlu0 %v5108, 24
    %v5921 = vpop.permute.xlu0 %5920
    %5922 = vrot.lane.b32.xlu0 %v5109, 24
    %v5923 = vpop.permute.xlu0 %5922
    %5924 = vrot.lane.b32.xlu0 %v5110, 24
    %v5925 = vpop.permute.xlu0 %5924
    %5926 = vrot.lane.b32.xlu0 %v5111, 24
    %v5927 = vpop.permute.xlu0 %5926
    %5928 = vrot.lane.b32.xlu0 %v5112, 24
    %v5929 = vpop.permute.xlu0 %5928
    %5930 = vrot.lane.b32.xlu0 %v5113, 24
    %v5931 = vpop.permute.xlu0 %5930
    %5932 = vrot.lane.b32.xlu0 %v5114, 24
    %v5933 = vpop.permute.xlu0 %5932
    %5934 = vrot.lane.b32.xlu0 %v5115, 24
    %v5935 = vpop.permute.xlu0 %5934
    %5936 = vrot.lane.b32.xlu0 %v5116, 24
    %v5937 = vpop.permute.xlu0 %5936
    %5938 = vrot.lane.b32.xlu0 %v5117, 24
    %v5939 = vpop.permute.xlu0 %5938
    %5940 = vrot.lane.b32.xlu0 %v5118, 24
    %v5941 = vpop.permute.xlu0 %5940
    %5942 = vrot.lane.b32.xlu0 %v5119, 24
    %v5943 = vpop.permute.xlu0 %5942
    %5944 = vrot.lane.b32.xlu0 %v5120, 24
    %v5945 = vpop.permute.xlu0 %5944
    %5946 = vrot.lane.b32.xlu0 %v5121, 24
    %v5947 = vpop.permute.xlu0 %5946
    %5948 = vrot.lane.b32.xlu0 %v5122, 24
    %v5949 = vpop.permute.xlu0 %5948
    %5950 = vrot.lane.b32.xlu0 %v5123, 24
    %v5951 = vpop.permute.xlu0 %5950
    %5952 = vrot.lane.b32.xlu0 %v5124, 24
    %v5953 = vpop.permute.xlu0 %5952
    %5954 = vrot.lane.b32.xlu0 %v5125, 24
    %v5955 = vpop.permute.xlu0 %5954
    %5956 = vrot.lane.b32.xlu0 %v5126, 24
    %v5957 = vpop.permute.xlu0 %5956
    %5958 = vrot.lane.b32.xlu0 %v5127, 24
    %v5959 = vpop.permute.xlu0 %5958
    %6088 = vrot.lane.b32.xlu0 %v5128, 36
    %v6089 = vpop.permute.xlu0 %6088
    %6090 = vrot.lane.b32.xlu0 %v5129, 36
    %v6091 = vpop.permute.xlu0 %6090
    %6092 = vrot.lane.b32.xlu0 %v5130, 36
    %v6093 = vpop.permute.xlu0 %6092
    %6094 = vrot.lane.b32.xlu0 %v5131, 36
    %v6095 = vpop.permute.xlu0 %6094
    %6096 = vrot.lane.b32.xlu0 %v5132, 36
    %v6097 = vpop.permute.xlu0 %6096
    %6098 = vrot.lane.b32.xlu0 %v5133, 36
    %v6099 = vpop.permute.xlu0 %6098
    %6100 = vrot.lane.b32.xlu0 %v5134, 36
    %v6101 = vpop.permute.xlu0 %6100
    %6102 = vrot.lane.b32.xlu0 %v5135, 36
    %v6103 = vpop.permute.xlu0 %6102
    %6104 = vrot.lane.b32.xlu0 %v5136, 36
    %v6105 = vpop.permute.xlu0 %6104
    %6106 = vrot.lane.b32.xlu0 %v5137, 36
    %v6107 = vpop.permute.xlu0 %6106
    %6108 = vrot.lane.b32.xlu0 %v5138, 36
    %v6109 = vpop.permute.xlu0 %6108
    %6110 = vrot.lane.b32.xlu0 %v5139, 36
    %v6111 = vpop.permute.xlu0 %6110
    %6112 = vrot.lane.b32.xlu0 %v5140, 36
    %v6113 = vpop.permute.xlu0 %6112
    %6114 = vrot.lane.b32.xlu0 %v5141, 36
    %v6115 = vpop.permute.xlu0 %6114
    %6116 = vrot.lane.b32.xlu0 %v5142, 36
    %v6117 = vpop.permute.xlu0 %6116
    %6118 = vrot.lane.b32.xlu0 %v5143, 36
    %v6119 = vpop.permute.xlu0 %6118
    %6120 = vrot.lane.b32.xlu0 %v5144, 36
    %v6121 = vpop.permute.xlu0 %6120
    %6122 = vrot.lane.b32.xlu0 %v5145, 36
    %v6123 = vpop.permute.xlu0 %6122
    %6124 = vrot.lane.b32.xlu0 %v5146, 36
    %v6125 = vpop.permute.xlu0 %6124
    %6126 = vrot.lane.b32.xlu0 %v5147, 36
    %v6127 = vpop.permute.xlu0 %6126
    %6128 = vrot.lane.b32.xlu0 %v5148, 36
    %v6129 = vpop.permute.xlu0 %6128
    %6130 = vrot.lane.b32.xlu0 %v5149, 36
    %v6131 = vpop.permute.xlu0 %6130
    %6132 = vrot.lane.b32.xlu0 %v5150, 36
    %v6133 = vpop.permute.xlu0 %6132
    %6134 = vrot.lane.b32.xlu0 %v5151, 36
    %v6135 = vpop.permute.xlu0 %6134
    %6136 = vrot.lane.b32.xlu0 %v5152, 36
    %v6137 = vpop.permute.xlu0 %6136
    %6138 = vrot.lane.b32.xlu0 %v5153, 36
    %v6139 = vpop.permute.xlu0 %6138
    %6140 = vrot.lane.b32.xlu0 %v5154, 36
    %v6141 = vpop.permute.xlu0 %6140
    %6142 = vrot.lane.b32.xlu0 %v5155, 36
    %v6143 = vpop.permute.xlu0 %6142
    %6144 = vrot.lane.b32.xlu0 %v5156, 36
    %v6145 = vpop.permute.xlu0 %6144
    %6146 = vrot.lane.b32.xlu0 %v5157, 36
    %v6147 = vpop.permute.xlu0 %6146
    %6148 = vrot.lane.b32.xlu0 %v5158, 36
    %v6149 = vpop.permute.xlu0 %6148
    %6150 = vrot.lane.b32.xlu0 %v5159, 36
    %v6151 = vpop.permute.xlu0 %6150
    %6152 = vrot.lane.b32.xlu0 %v5160, 36
    %v6153 = vpop.permute.xlu0 %6152
    %6154 = vrot.lane.b32.xlu0 %v5161, 36
    %v6155 = vpop.permute.xlu0 %6154
    %6156 = vrot.lane.b32.xlu0 %v5162, 36
    %v6157 = vpop.permute.xlu0 %6156
    %6158 = vrot.lane.b32.xlu0 %v5163, 36
    %v6159 = vpop.permute.xlu0 %6158
    %6160 = vrot.lane.b32.xlu0 %v5164, 36
    %v6161 = vpop.permute.xlu0 %6160
    %6162 = vrot.lane.b32.xlu0 %v5165, 36
    %v6163 = vpop.permute.xlu0 %6162
    %6164 = vrot.lane.b32.xlu0 %v5166, 36
    %v6165 = vpop.permute.xlu0 %6164
    %6166 = vrot.lane.b32.xlu0 %v5167, 36
    %v6167 = vpop.permute.xlu0 %6166
    %6168 = vrot.lane.b32.xlu0 %v5168, 36
    %v6169 = vpop.permute.xlu0 %6168
    %6170 = vrot.lane.b32.xlu0 %v5169, 36
    %v6171 = vpop.permute.xlu0 %6170
    %6172 = vrot.lane.b32.xlu0 %v5170, 36
    %v6173 = vpop.permute.xlu0 %6172
    %6174 = vrot.lane.b32.xlu0 %v5171, 36
    %v6175 = vpop.permute.xlu0 %6174
    %6176 = vrot.lane.b32.xlu0 %v5172, 36
    %v6177 = vpop.permute.xlu0 %6176
    %6178 = vrot.lane.b32.xlu0 %v5173, 36
    %v6179 = vpop.permute.xlu0 %6178
    %6180 = vrot.lane.b32.xlu0 %v5174, 36
    %v6181 = vpop.permute.xlu0 %6180
    %6182 = vrot.lane.b32.xlu0 %v5175, 36
    %v6183 = vpop.permute.xlu0 %6182
    %6184 = vrot.lane.b32.xlu0 %v5176, 36
    %v6185 = vpop.permute.xlu0 %6184
    %6186 = vrot.lane.b32.xlu0 %v5177, 36
    %v6187 = vpop.permute.xlu0 %6186
    %6188 = vrot.lane.b32.xlu0 %v5178, 36
    %v6189 = vpop.permute.xlu0 %6188
    %6190 = vrot.lane.b32.xlu0 %v5179, 36
    %v6191 = vpop.permute.xlu0 %6190
    %6192 = vrot.lane.b32.xlu0 %v5180, 36
    %v6193 = vpop.permute.xlu0 %6192
    %6194 = vrot.lane.b32.xlu0 %v5181, 36
    %v6195 = vpop.permute.xlu0 %6194
    %6196 = vrot.lane.b32.xlu0 %v5182, 36
    %v6197 = vpop.permute.xlu0 %6196
    %6198 = vrot.lane.b32.xlu0 %v5183, 36
    %v6199 = vpop.permute.xlu0 %6198
    %6200 = vrot.lane.b32.xlu0 %v5184, 36
    %v6201 = vpop.permute.xlu0 %6200
    %6202 = vrot.lane.b32.xlu0 %v5185, 36
    %v6203 = vpop.permute.xlu0 %6202
    %6204 = vrot.lane.b32.xlu0 %v5186, 36
    %v6205 = vpop.permute.xlu0 %6204
    %6206 = vrot.lane.b32.xlu0 %v5187, 36
    %v6207 = vpop.permute.xlu0 %6206
    %6208 = vrot.lane.b32.xlu0 %v5188, 36
    %v6209 = vpop.permute.xlu0 %6208
    %6210 = vrot.lane.b32.xlu0 %v5189, 36
    %v6211 = vpop.permute.xlu0 %6210
    %6212 = vrot.lane.b32.xlu0 %v5190, 36
    %v6213 = vpop.permute.xlu0 %6212
    %6214 = vrot.lane.b32.xlu0 %v5191, 36
    %v6215 = vpop.permute.xlu0 %6214
    %6344 = vrot.lane.b32.xlu0 %v5192, 48
    %v6345 = vpop.permute.xlu0 %6344
    %6346 = vrot.lane.b32.xlu0 %v5193, 48
    %v6347 = vpop.permute.xlu0 %6346
    %6348 = vrot.lane.b32.xlu0 %v5194, 48
    %v6349 = vpop.permute.xlu0 %6348
    %6350 = vrot.lane.b32.xlu0 %v5195, 48
    %v6351 = vpop.permute.xlu0 %6350
    %6352 = vrot.lane.b32.xlu0 %v5196, 48
    %v6353 = vpop.permute.xlu0 %6352
    %6354 = vrot.lane.b32.xlu0 %v5197, 48
    %v6355 = vpop.permute.xlu0 %6354
    %6356 = vrot.lane.b32.xlu0 %v5198, 48
    %v6357 = vpop.permute.xlu0 %6356
    %6358 = vrot.lane.b32.xlu0 %v5199, 48
    %v6359 = vpop.permute.xlu0 %6358
    %6360 = vrot.lane.b32.xlu0 %v5200, 48
    %v6361 = vpop.permute.xlu0 %6360
    %6362 = vrot.lane.b32.xlu0 %v5201, 48
    %v6363 = vpop.permute.xlu0 %6362
    %6364 = vrot.lane.b32.xlu0 %v5202, 48
    %v6365 = vpop.permute.xlu0 %6364
    %6366 = vrot.lane.b32.xlu0 %v5203, 48
    %v6367 = vpop.permute.xlu0 %6366
    %6368 = vrot.lane.b32.xlu0 %v5204, 48
    %v6369 = vpop.permute.xlu0 %6368
    %6370 = vrot.lane.b32.xlu0 %v5205, 48
    %v6371 = vpop.permute.xlu0 %6370
    %6372 = vrot.lane.b32.xlu0 %v5206, 48
    %v6373 = vpop.permute.xlu0 %6372
    %6374 = vrot.lane.b32.xlu0 %v5207, 48
    %v6375 = vpop.permute.xlu0 %6374
    %6376 = vrot.lane.b32.xlu0 %v5208, 48
    %v6377 = vpop.permute.xlu0 %6376
    %6378 = vrot.lane.b32.xlu0 %v5209, 48
    %v6379 = vpop.permute.xlu0 %6378
    %6380 = vrot.lane.b32.xlu0 %v5210, 48
    %v6381 = vpop.permute.xlu0 %6380
    %6382 = vrot.lane.b32.xlu0 %v5211, 48
    %v6383 = vpop.permute.xlu0 %6382
    %6384 = vrot.lane.b32.xlu0 %v5212, 48
    %v6385 = vpop.permute.xlu0 %6384
    %6386 = vrot.lane.b32.xlu0 %v5213, 48
    %v6387 = vpop.permute.xlu0 %6386
    %6388 = vrot.lane.b32.xlu0 %v5214, 48
    %v6389 = vpop.permute.xlu0 %6388
    %6390 = vrot.lane.b32.xlu0 %v5215, 48
    %v6391 = vpop.permute.xlu0 %6390
    %6392 = vrot.lane.b32.xlu0 %v5216, 48
    %v6393 = vpop.permute.xlu0 %6392
    %6394 = vrot.lane.b32.xlu0 %v5217, 48
    %v6395 = vpop.permute.xlu0 %6394
    %6396 = vrot.lane.b32.xlu0 %v5218, 48
    %v6397 = vpop.permute.xlu0 %6396
    %6398 = vrot.lane.b32.xlu0 %v5219, 48
    %v6399 = vpop.permute.xlu0 %6398
    %6400 = vrot.lane.b32.xlu0 %v5220, 48
    %v6401 = vpop.permute.xlu0 %6400
    %6402 = vrot.lane.b32.xlu0 %v5221, 48
    %v6403 = vpop.permute.xlu0 %6402
    %6404 = vrot.lane.b32.xlu0 %v5222, 48
    %v6405 = vpop.permute.xlu0 %6404
    %6406 = vrot.lane.b32.xlu0 %v5223, 48
    %v6407 = vpop.permute.xlu0 %6406
    %6408 = vrot.lane.b32.xlu0 %v5224, 48
    %v6409 = vpop.permute.xlu0 %6408
    %6410 = vrot.lane.b32.xlu0 %v5225, 48
    %v6411 = vpop.permute.xlu0 %6410
    %6412 = vrot.lane.b32.xlu0 %v5226, 48
    %v6413 = vpop.permute.xlu0 %6412
    %6414 = vrot.lane.b32.xlu0 %v5227, 48
    %v6415 = vpop.permute.xlu0 %6414
    %6416 = vrot.lane.b32.xlu0 %v5228, 48
    %v6417 = vpop.permute.xlu0 %6416
    %6418 = vrot.lane.b32.xlu0 %v5229, 48
    %v6419 = vpop.permute.xlu0 %6418
    %6420 = vrot.lane.b32.xlu0 %v5230, 48
    %v6421 = vpop.permute.xlu0 %6420
    %6422 = vrot.lane.b32.xlu0 %v5231, 48
    %v6423 = vpop.permute.xlu0 %6422
    %6424 = vrot.lane.b32.xlu0 %v5232, 48
    %v6425 = vpop.permute.xlu0 %6424
    %6426 = vrot.lane.b32.xlu0 %v5233, 48
    %v6427 = vpop.permute.xlu0 %6426
    %6428 = vrot.lane.b32.xlu0 %v5234, 48
    %v6429 = vpop.permute.xlu0 %6428
    %6430 = vrot.lane.b32.xlu0 %v5235, 48
    %v6431 = vpop.permute.xlu0 %6430
    %6432 = vrot.lane.b32.xlu0 %v5236, 48
    %v6433 = vpop.permute.xlu0 %6432
    %6434 = vrot.lane.b32.xlu0 %v5237, 48
    %v6435 = vpop.permute.xlu0 %6434
    %6436 = vrot.lane.b32.xlu0 %v5238, 48
    %v6437 = vpop.permute.xlu0 %6436
    %6438 = vrot.lane.b32.xlu0 %v5239, 48
    %v6439 = vpop.permute.xlu0 %6438
    %6440 = vrot.lane.b32.xlu0 %v5240, 48
    %v6441 = vpop.permute.xlu0 %6440
    %6442 = vrot.lane.b32.xlu0 %v5241, 48
    %v6443 = vpop.permute.xlu0 %6442
    %6444 = vrot.lane.b32.xlu0 %v5242, 48
    %v6445 = vpop.permute.xlu0 %6444
    %6446 = vrot.lane.b32.xlu0 %v5243, 48
    %v6447 = vpop.permute.xlu0 %6446
    %6448 = vrot.lane.b32.xlu0 %v5244, 48
    %v6449 = vpop.permute.xlu0 %6448
    %6450 = vrot.lane.b32.xlu0 %v5245, 48
    %v6451 = vpop.permute.xlu0 %6450
    %6452 = vrot.lane.b32.xlu0 %v5246, 48
    %v6453 = vpop.permute.xlu0 %6452
    %6454 = vrot.lane.b32.xlu0 %v5247, 48
    %v6455 = vpop.permute.xlu0 %6454
    %6456 = vrot.lane.b32.xlu0 %v5248, 48
    %v6457 = vpop.permute.xlu0 %6456
    %6458 = vrot.lane.b32.xlu0 %v5249, 48
    %v6459 = vpop.permute.xlu0 %6458
    %6460 = vrot.lane.b32.xlu0 %v5250, 48
    %v6461 = vpop.permute.xlu0 %6460
    %6462 = vrot.lane.b32.xlu0 %v5251, 48
    %v6463 = vpop.permute.xlu0 %6462
    %6464 = vrot.lane.b32.xlu0 %v5252, 48
    %v6465 = vpop.permute.xlu0 %6464
    %6466 = vrot.lane.b32.xlu0 %v5253, 48
    %v6467 = vpop.permute.xlu0 %6466
    %6468 = vrot.lane.b32.xlu0 %v5254, 48
    %v6469 = vpop.permute.xlu0 %6468
    %6470 = vrot.lane.b32.xlu0 %v5255, 48
    %v6471 = vpop.permute.xlu0 %6470
    %6600 = vrot.lane.b32.xlu0 %v5256, 60
    %v6601 = vpop.permute.xlu0 %6600
    %6602 = vrot.lane.b32.xlu0 %v5257, 60
    %v6603 = vpop.permute.xlu0 %6602
    %6604 = vrot.lane.b32.xlu0 %v5258, 60
    %v6605 = vpop.permute.xlu0 %6604
    %6606 = vrot.lane.b32.xlu0 %v5259, 60
    %v6607 = vpop.permute.xlu0 %6606
    %6608 = vrot.lane.b32.xlu0 %v5260, 60
    %v6609 = vpop.permute.xlu0 %6608
    %6610 = vrot.lane.b32.xlu0 %v5261, 60
    %v6611 = vpop.permute.xlu0 %6610
    %6612 = vrot.lane.b32.xlu0 %v5262, 60
    %v6613 = vpop.permute.xlu0 %6612
    %6614 = vrot.lane.b32.xlu0 %v5263, 60
    %v6615 = vpop.permute.xlu0 %6614
    %6616 = vrot.lane.b32.xlu0 %v5264, 60
    %v6617 = vpop.permute.xlu0 %6616
    %6618 = vrot.lane.b32.xlu0 %v5265, 60
    %v6619 = vpop.permute.xlu0 %6618
    %6620 = vrot.lane.b32.xlu0 %v5266, 60
    %v6621 = vpop.permute.xlu0 %6620
    %6622 = vrot.lane.b32.xlu0 %v5267, 60
    %v6623 = vpop.permute.xlu0 %6622
    %6624 = vrot.lane.b32.xlu0 %v5268, 60
    %v6625 = vpop.permute.xlu0 %6624
    %6626 = vrot.lane.b32.xlu0 %v5269, 60
    %v6627 = vpop.permute.xlu0 %6626
    %6628 = vrot.lane.b32.xlu0 %v5270, 60
    %v6629 = vpop.permute.xlu0 %6628
    %6630 = vrot.lane.b32.xlu0 %v5271, 60
    %v6631 = vpop.permute.xlu0 %6630
    %6632 = vrot.lane.b32.xlu0 %v5272, 60
    %v6633 = vpop.permute.xlu0 %6632
    %6634 = vrot.lane.b32.xlu0 %v5273, 60
    %v6635 = vpop.permute.xlu0 %6634
    %6636 = vrot.lane.b32.xlu0 %v5274, 60
    %v6637 = vpop.permute.xlu0 %6636
    %6638 = vrot.lane.b32.xlu0 %v5275, 60
    %v6639 = vpop.permute.xlu0 %6638
    %6640 = vrot.lane.b32.xlu0 %v5276, 60
    %v6641 = vpop.permute.xlu0 %6640
    %6642 = vrot.lane.b32.xlu0 %v5277, 60
    %v6643 = vpop.permute.xlu0 %6642
    %6644 = vrot.lane.b32.xlu0 %v5278, 60
    %v6645 = vpop.permute.xlu0 %6644
    %6646 = vrot.lane.b32.xlu0 %v5279, 60
    %v6647 = vpop.permute.xlu0 %6646
    %6648 = vrot.lane.b32.xlu0 %v5280, 60
    %v6649 = vpop.permute.xlu0 %6648
    %6650 = vrot.lane.b32.xlu0 %v5281, 60
    %v6651 = vpop.permute.xlu0 %6650
    %6652 = vrot.lane.b32.xlu0 %v5282, 60
    %v6653 = vpop.permute.xlu0 %6652
    %6654 = vrot.lane.b32.xlu0 %v5283, 60
    %v6655 = vpop.permute.xlu0 %6654
    %6656 = vrot.lane.b32.xlu0 %v5284, 60
    %v6657 = vpop.permute.xlu0 %6656
    %6658 = vrot.lane.b32.xlu0 %v5285, 60
    %v6659 = vpop.permute.xlu0 %6658
    %6660 = vrot.lane.b32.xlu0 %v5286, 60
    %v6661 = vpop.permute.xlu0 %6660
    %6662 = vrot.lane.b32.xlu0 %v5287, 60
    %v6663 = vpop.permute.xlu0 %6662
    %6664 = vrot.lane.b32.xlu0 %v5288, 60
    %v6665 = vpop.permute.xlu0 %6664
    %6666 = vrot.lane.b32.xlu0 %v5289, 60
    %v6667 = vpop.permute.xlu0 %6666
    %6668 = vrot.lane.b32.xlu0 %v5290, 60
    %v6669 = vpop.permute.xlu0 %6668
    %6670 = vrot.lane.b32.xlu0 %v5291, 60
    %v6671 = vpop.permute.xlu0 %6670
    %6672 = vrot.lane.b32.xlu0 %v5292, 60
    %v6673 = vpop.permute.xlu0 %6672
    %6674 = vrot.lane.b32.xlu0 %v5293, 60
    %v6675 = vpop.permute.xlu0 %6674
    %6676 = vrot.lane.b32.xlu0 %v5294, 60
    %v6677 = vpop.permute.xlu0 %6676
    %6678 = vrot.lane.b32.xlu0 %v5295, 60
    %v6679 = vpop.permute.xlu0 %6678
    %6680 = vrot.lane.b32.xlu0 %v5296, 60
    %v6681 = vpop.permute.xlu0 %6680
    %6682 = vrot.lane.b32.xlu0 %v5297, 60
    %v6683 = vpop.permute.xlu0 %6682
    %6684 = vrot.lane.b32.xlu0 %v5298, 60
    %v6685 = vpop.permute.xlu0 %6684
    %6686 = vrot.lane.b32.xlu0 %v5299, 60
    %v6687 = vpop.permute.xlu0 %6686
    %6688 = vrot.lane.b32.xlu0 %v5300, 60
    %v6689 = vpop.permute.xlu0 %6688
    %6690 = vrot.lane.b32.xlu0 %v5301, 60
    %v6691 = vpop.permute.xlu0 %6690
    %6692 = vrot.lane.b32.xlu0 %v5302, 60
    %v6693 = vpop.permute.xlu0 %6692
    %6694 = vrot.lane.b32.xlu0 %v5303, 60
    %v6695 = vpop.permute.xlu0 %6694
    %6696 = vrot.lane.b32.xlu0 %v5304, 60
    %v6697 = vpop.permute.xlu0 %6696
    %6698 = vrot.lane.b32.xlu0 %v5305, 60
    %v6699 = vpop.permute.xlu0 %6698
    %6700 = vrot.lane.b32.xlu0 %v5306, 60
    %v6701 = vpop.permute.xlu0 %6700
    %6702 = vrot.lane.b32.xlu0 %v5307, 60
    %v6703 = vpop.permute.xlu0 %6702
    %6704 = vrot.lane.b32.xlu0 %v5308, 60
    %v6705 = vpop.permute.xlu0 %6704
    %6706 = vrot.lane.b32.xlu0 %v5309, 60
    %v6707 = vpop.permute.xlu0 %6706
    %6708 = vrot.lane.b32.xlu0 %v5310, 60
    %v6709 = vpop.permute.xlu0 %6708
    %6710 = vrot.lane.b32.xlu0 %v5311, 60
    %v6711 = vpop.permute.xlu0 %6710
    %6712 = vrot.lane.b32.xlu0 %v5312, 60
    %v6713 = vpop.permute.xlu0 %6712
    %6714 = vrot.lane.b32.xlu0 %v5313, 60
    %v6715 = vpop.permute.xlu0 %6714
    %6716 = vrot.lane.b32.xlu0 %v5314, 60
    %v6717 = vpop.permute.xlu0 %6716
    %6718 = vrot.lane.b32.xlu0 %v5315, 60
    %v6719 = vpop.permute.xlu0 %6718
    %6720 = vrot.lane.b32.xlu0 %v5316, 60
    %v6721 = vpop.permute.xlu0 %6720
    %6722 = vrot.lane.b32.xlu0 %v5317, 60
    %v6723 = vpop.permute.xlu0 %6722
    %6724 = vrot.lane.b32.xlu0 %v5318, 60
    %v6725 = vpop.permute.xlu0 %6724
    %6726 = vrot.lane.b32.xlu0 %v5319, 60
    %v6727 = vpop.permute.xlu0 %6726
    %6856 = vrot.lane.b32.xlu0 %v5320, 72
    %v6857 = vpop.permute.xlu0 %6856
    %6858 = vrot.lane.b32.xlu0 %v5321, 72
    %v6859 = vpop.permute.xlu0 %6858
    %6860 = vrot.lane.b32.xlu0 %v5322, 72
    %v6861 = vpop.permute.xlu0 %6860
    %6862 = vrot.lane.b32.xlu0 %v5323, 72
    %v6863 = vpop.permute.xlu0 %6862
    %6864 = vrot.lane.b32.xlu0 %v5324, 72
    %v6865 = vpop.permute.xlu0 %6864
    %6866 = vrot.lane.b32.xlu0 %v5325, 72
    %v6867 = vpop.permute.xlu0 %6866
    %6868 = vrot.lane.b32.xlu0 %v5326, 72
    %v6869 = vpop.permute.xlu0 %6868
    %6870 = vrot.lane.b32.xlu0 %v5327, 72
    %v6871 = vpop.permute.xlu0 %6870
    %6872 = vrot.lane.b32.xlu0 %v5328, 72
    %v6873 = vpop.permute.xlu0 %6872
    %6874 = vrot.lane.b32.xlu0 %v5329, 72
    %v6875 = vpop.permute.xlu0 %6874
    %6876 = vrot.lane.b32.xlu0 %v5330, 72
    %v6877 = vpop.permute.xlu0 %6876
    %6878 = vrot.lane.b32.xlu0 %v5331, 72
    %v6879 = vpop.permute.xlu0 %6878
    %6880 = vrot.lane.b32.xlu0 %v5332, 72
    %v6881 = vpop.permute.xlu0 %6880
    %6882 = vrot.lane.b32.xlu0 %v5333, 72
    %v6883 = vpop.permute.xlu0 %6882
    %6884 = vrot.lane.b32.xlu0 %v5334, 72
    %v6885 = vpop.permute.xlu0 %6884
    %6886 = vrot.lane.b32.xlu0 %v5335, 72
    %v6887 = vpop.permute.xlu0 %6886
    %6888 = vrot.lane.b32.xlu0 %v5336, 72
    %v6889 = vpop.permute.xlu0 %6888
    %6890 = vrot.lane.b32.xlu0 %v5337, 72
    %v6891 = vpop.permute.xlu0 %6890
    %6892 = vrot.lane.b32.xlu0 %v5338, 72
    %v6893 = vpop.permute.xlu0 %6892
    %6894 = vrot.lane.b32.xlu0 %v5339, 72
    %v6895 = vpop.permute.xlu0 %6894
    %6896 = vrot.lane.b32.xlu0 %v5340, 72
    %v6897 = vpop.permute.xlu0 %6896
    %6898 = vrot.lane.b32.xlu0 %v5341, 72
    %v6899 = vpop.permute.xlu0 %6898
    %6900 = vrot.lane.b32.xlu0 %v5342, 72
    %v6901 = vpop.permute.xlu0 %6900
    %6902 = vrot.lane.b32.xlu0 %v5343, 72
    %v6903 = vpop.permute.xlu0 %6902
    %6904 = vrot.lane.b32.xlu0 %v5344, 72
    %v6905 = vpop.permute.xlu0 %6904
    %6906 = vrot.lane.b32.xlu0 %v5345, 72
    %v6907 = vpop.permute.xlu0 %6906
    %6908 = vrot.lane.b32.xlu0 %v5346, 72
    %v6909 = vpop.permute.xlu0 %6908
    %6910 = vrot.lane.b32.xlu0 %v5347, 72
    %v6911 = vpop.permute.xlu0 %6910
    %6912 = vrot.lane.b32.xlu0 %v5348, 72
    %v6913 = vpop.permute.xlu0 %6912
    %6914 = vrot.lane.b32.xlu0 %v5349, 72
    %v6915 = vpop.permute.xlu0 %6914
    %6916 = vrot.lane.b32.xlu0 %v5350, 72
    %v6917 = vpop.permute.xlu0 %6916
    %6918 = vrot.lane.b32.xlu0 %v5351, 72
    %v6919 = vpop.permute.xlu0 %6918
    %6920 = vrot.lane.b32.xlu0 %v5352, 72
    %v6921 = vpop.permute.xlu0 %6920
    %6922 = vrot.lane.b32.xlu0 %v5353, 72
    %v6923 = vpop.permute.xlu0 %6922
    %6924 = vrot.lane.b32.xlu0 %v5354, 72
    %v6925 = vpop.permute.xlu0 %6924
    %6926 = vrot.lane.b32.xlu0 %v5355, 72
    %v6927 = vpop.permute.xlu0 %6926
    %6928 = vrot.lane.b32.xlu0 %v5356, 72
    %v6929 = vpop.permute.xlu0 %6928
    %6930 = vrot.lane.b32.xlu0 %v5357, 72
    %v6931 = vpop.permute.xlu0 %6930
    %6932 = vrot.lane.b32.xlu0 %v5358, 72
    %v6933 = vpop.permute.xlu0 %6932
    %6934 = vrot.lane.b32.xlu0 %v5359, 72
    %v6935 = vpop.permute.xlu0 %6934
    %6936 = vrot.lane.b32.xlu0 %v5360, 72
    %v6937 = vpop.permute.xlu0 %6936
    %6938 = vrot.lane.b32.xlu0 %v5361, 72
    %v6939 = vpop.permute.xlu0 %6938
    %6940 = vrot.lane.b32.xlu0 %v5362, 72
    %v6941 = vpop.permute.xlu0 %6940
    %6942 = vrot.lane.b32.xlu0 %v5363, 72
    %v6943 = vpop.permute.xlu0 %6942
    %6944 = vrot.lane.b32.xlu0 %v5364, 72
    %v6945 = vpop.permute.xlu0 %6944
    %6946 = vrot.lane.b32.xlu0 %v5365, 72
    %v6947 = vpop.permute.xlu0 %6946
    %6948 = vrot.lane.b32.xlu0 %v5366, 72
    %v6949 = vpop.permute.xlu0 %6948
    %6950 = vrot.lane.b32.xlu0 %v5367, 72
    %v6951 = vpop.permute.xlu0 %6950
    %6952 = vrot.lane.b32.xlu0 %v5368, 72
    %v6953 = vpop.permute.xlu0 %6952
    %6954 = vrot.lane.b32.xlu0 %v5369, 72
    %v6955 = vpop.permute.xlu0 %6954
    %6956 = vrot.lane.b32.xlu0 %v5370, 72
    %v6957 = vpop.permute.xlu0 %6956
    %6958 = vrot.lane.b32.xlu0 %v5371, 72
    %v6959 = vpop.permute.xlu0 %6958
    %6960 = vrot.lane.b32.xlu0 %v5372, 72
    %v6961 = vpop.permute.xlu0 %6960
    %6962 = vrot.lane.b32.xlu0 %v5373, 72
    %v6963 = vpop.permute.xlu0 %6962
    %6964 = vrot.lane.b32.xlu0 %v5374, 72
    %v6965 = vpop.permute.xlu0 %6964
    %6966 = vrot.lane.b32.xlu0 %v5375, 72
    %v6967 = vpop.permute.xlu0 %6966
    %6968 = vrot.lane.b32.xlu0 %v5376, 72
    %v6969 = vpop.permute.xlu0 %6968
    %6970 = vrot.lane.b32.xlu0 %v5377, 72
    %v6971 = vpop.permute.xlu0 %6970
    %6972 = vrot.lane.b32.xlu0 %v5378, 72
    %v6973 = vpop.permute.xlu0 %6972
    %6974 = vrot.lane.b32.xlu0 %v5379, 72
    %v6975 = vpop.permute.xlu0 %6974
    %6976 = vrot.lane.b32.xlu0 %v5380, 72
    %v6977 = vpop.permute.xlu0 %6976
    %6978 = vrot.lane.b32.xlu0 %v5381, 72
    %v6979 = vpop.permute.xlu0 %6978
    %6980 = vrot.lane.b32.xlu0 %v5382, 72
    %v6981 = vpop.permute.xlu0 %6980
    %6982 = vrot.lane.b32.xlu0 %v5383, 72
    %v6983 = vpop.permute.xlu0 %6982
    %7112 = vrot.lane.b32.xlu0 %v5384, 84
    %v7113 = vpop.permute.xlu0 %7112
    %7114 = vrot.lane.b32.xlu0 %v5385, 84
    %v7115 = vpop.permute.xlu0 %7114
    %7116 = vrot.lane.b32.xlu0 %v5386, 84
    %v7117 = vpop.permute.xlu0 %7116
    %7118 = vrot.lane.b32.xlu0 %v5387, 84
    %v7119 = vpop.permute.xlu0 %7118
    %7120 = vrot.lane.b32.xlu0 %v5388, 84
    %v7121 = vpop.permute.xlu0 %7120
    %7122 = vrot.lane.b32.xlu0 %v5389, 84
    %v7123 = vpop.permute.xlu0 %7122
    %7124 = vrot.lane.b32.xlu0 %v5390, 84
    %v7125 = vpop.permute.xlu0 %7124
    %7126 = vrot.lane.b32.xlu0 %v5391, 84
    %v7127 = vpop.permute.xlu0 %7126
    %7128 = vrot.lane.b32.xlu0 %v5392, 84
    %v7129 = vpop.permute.xlu0 %7128
    %7130 = vrot.lane.b32.xlu0 %v5393, 84
    %v7131 = vpop.permute.xlu0 %7130
    %7132 = vrot.lane.b32.xlu0 %v5394, 84
    %v7133 = vpop.permute.xlu0 %7132
    %7134 = vrot.lane.b32.xlu0 %v5395, 84
    %v7135 = vpop.permute.xlu0 %7134
    %7136 = vrot.lane.b32.xlu0 %v5396, 84
    %v7137 = vpop.permute.xlu0 %7136
    %7138 = vrot.lane.b32.xlu0 %v5397, 84
    %v7139 = vpop.permute.xlu0 %7138
    %7140 = vrot.lane.b32.xlu0 %v5398, 84
    %v7141 = vpop.permute.xlu0 %7140
    %7142 = vrot.lane.b32.xlu0 %v5399, 84
    %v7143 = vpop.permute.xlu0 %7142
    %7144 = vrot.lane.b32.xlu0 %v5400, 84
    %v7145 = vpop.permute.xlu0 %7144
    %7146 = vrot.lane.b32.xlu0 %v5401, 84
    %v7147 = vpop.permute.xlu0 %7146
    %7148 = vrot.lane.b32.xlu0 %v5402, 84
    %v7149 = vpop.permute.xlu0 %7148
    %7150 = vrot.lane.b32.xlu0 %v5403, 84
    %v7151 = vpop.permute.xlu0 %7150
    %7152 = vrot.lane.b32.xlu0 %v5404, 84
    %v7153 = vpop.permute.xlu0 %7152
    %7154 = vrot.lane.b32.xlu0 %v5405, 84
    %v7155 = vpop.permute.xlu0 %7154
    %7156 = vrot.lane.b32.xlu0 %v5406, 84
    %v7157 = vpop.permute.xlu0 %7156
    %7158 = vrot.lane.b32.xlu0 %v5407, 84
    %v7159 = vpop.permute.xlu0 %7158
    %7160 = vrot.lane.b32.xlu0 %v5408, 84
    %v7161 = vpop.permute.xlu0 %7160
    %7162 = vrot.lane.b32.xlu0 %v5409, 84
    %v7163 = vpop.permute.xlu0 %7162
    %7164 = vrot.lane.b32.xlu0 %v5410, 84
    %v7165 = vpop.permute.xlu0 %7164
    %7166 = vrot.lane.b32.xlu0 %v5411, 84
    %v7167 = vpop.permute.xlu0 %7166
    %7168 = vrot.lane.b32.xlu0 %v5412, 84
    %v7169 = vpop.permute.xlu0 %7168
    %7170 = vrot.lane.b32.xlu0 %v5413, 84
    %v7171 = vpop.permute.xlu0 %7170
    %7172 = vrot.lane.b32.xlu0 %v5414, 84
    %v7173 = vpop.permute.xlu0 %7172
    %7174 = vrot.lane.b32.xlu0 %v5415, 84
    %v7175 = vpop.permute.xlu0 %7174
    %7176 = vrot.lane.b32.xlu0 %v5416, 84
    %v7177 = vpop.permute.xlu0 %7176
    %7178 = vrot.lane.b32.xlu0 %v5417, 84
    %v7179 = vpop.permute.xlu0 %7178
    %7180 = vrot.lane.b32.xlu0 %v5418, 84
    %v7181 = vpop.permute.xlu0 %7180
    %7182 = vrot.lane.b32.xlu0 %v5419, 84
    %v7183 = vpop.permute.xlu0 %7182
    %7184 = vrot.lane.b32.xlu0 %v5420, 84
    %v7185 = vpop.permute.xlu0 %7184
    %7186 = vrot.lane.b32.xlu0 %v5421, 84
    %v7187 = vpop.permute.xlu0 %7186
    %7188 = vrot.lane.b32.xlu0 %v5422, 84
    %v7189 = vpop.permute.xlu0 %7188
    %7190 = vrot.lane.b32.xlu0 %v5423, 84
    %v7191 = vpop.permute.xlu0 %7190
    %7192 = vrot.lane.b32.xlu0 %v5424, 84
    %v7193 = vpop.permute.xlu0 %7192
    %7194 = vrot.lane.b32.xlu0 %v5425, 84
    %v7195 = vpop.permute.xlu0 %7194
    %7196 = vrot.lane.b32.xlu0 %v5426, 84
    %v7197 = vpop.permute.xlu0 %7196
    %7198 = vrot.lane.b32.xlu0 %v5427, 84
    %v7199 = vpop.permute.xlu0 %7198
    %7200 = vrot.lane.b32.xlu0 %v5428, 84
    %v7201 = vpop.permute.xlu0 %7200
    %7202 = vrot.lane.b32.xlu0 %v5429, 84
    %v7203 = vpop.permute.xlu0 %7202
    %7204 = vrot.lane.b32.xlu0 %v5430, 84
    %v7205 = vpop.permute.xlu0 %7204
    %7206 = vrot.lane.b32.xlu0 %v5431, 84
    %v7207 = vpop.permute.xlu0 %7206
    %7208 = vrot.lane.b32.xlu0 %v5432, 84
    %v7209 = vpop.permute.xlu0 %7208
    %7210 = vrot.lane.b32.xlu0 %v5433, 84
    %v7211 = vpop.permute.xlu0 %7210
    %7212 = vrot.lane.b32.xlu0 %v5434, 84
    %v7213 = vpop.permute.xlu0 %7212
    %7214 = vrot.lane.b32.xlu0 %v5435, 84
    %v7215 = vpop.permute.xlu0 %7214
    %7216 = vrot.lane.b32.xlu0 %v5436, 84
    %v7217 = vpop.permute.xlu0 %7216
    %7218 = vrot.lane.b32.xlu0 %v5437, 84
    %v7219 = vpop.permute.xlu0 %7218
    %7220 = vrot.lane.b32.xlu0 %v5438, 84
    %v7221 = vpop.permute.xlu0 %7220
    %7222 = vrot.lane.b32.xlu0 %v5439, 84
    %v7223 = vpop.permute.xlu0 %7222
    %7224 = vrot.lane.b32.xlu0 %v5440, 84
    %v7225 = vpop.permute.xlu0 %7224
    %7226 = vrot.lane.b32.xlu0 %v5441, 84
    %v7227 = vpop.permute.xlu0 %7226
    %7228 = vrot.lane.b32.xlu0 %v5442, 84
    %v7229 = vpop.permute.xlu0 %7228
    %7230 = vrot.lane.b32.xlu0 %v5443, 84
    %v7231 = vpop.permute.xlu0 %7230
    %7232 = vrot.lane.b32.xlu0 %v5444, 84
    %v7233 = vpop.permute.xlu0 %7232
    %7234 = vrot.lane.b32.xlu0 %v5445, 84
    %v7235 = vpop.permute.xlu0 %7234
    %7236 = vrot.lane.b32.xlu0 %v5446, 84
    %v7237 = vpop.permute.xlu0 %7236
    %7238 = vrot.lane.b32.xlu0 %v5447, 84
    %v7239 = vpop.permute.xlu0 %7238
    %7368 = vrot.lane.b32.xlu0 %v5448, 96
    %v7369 = vpop.permute.xlu0 %7368
    %7370 = vrot.lane.b32.xlu0 %v5449, 96
    %v7371 = vpop.permute.xlu0 %7370
    %7372 = vrot.lane.b32.xlu0 %v5450, 96
    %v7373 = vpop.permute.xlu0 %7372
    %7374 = vrot.lane.b32.xlu0 %v5451, 96
    %v7375 = vpop.permute.xlu0 %7374
    %7376 = vrot.lane.b32.xlu0 %v5452, 96
    %v7377 = vpop.permute.xlu0 %7376
    %7378 = vrot.lane.b32.xlu0 %v5453, 96
    %v7379 = vpop.permute.xlu0 %7378
    %7380 = vrot.lane.b32.xlu0 %v5454, 96
    %v7381 = vpop.permute.xlu0 %7380
    %7382 = vrot.lane.b32.xlu0 %v5455, 96
    %v7383 = vpop.permute.xlu0 %7382
    %7384 = vrot.lane.b32.xlu0 %v5456, 96
    %v7385 = vpop.permute.xlu0 %7384
    %7386 = vrot.lane.b32.xlu0 %v5457, 96
    %v7387 = vpop.permute.xlu0 %7386
    %7388 = vrot.lane.b32.xlu0 %v5458, 96
    %v7389 = vpop.permute.xlu0 %7388
    %7390 = vrot.lane.b32.xlu0 %v5459, 96
    %v7391 = vpop.permute.xlu0 %7390
    %7392 = vrot.lane.b32.xlu0 %v5460, 96
    %v7393 = vpop.permute.xlu0 %7392
    %7394 = vrot.lane.b32.xlu0 %v5461, 96
    %v7395 = vpop.permute.xlu0 %7394
    %7396 = vrot.lane.b32.xlu0 %v5462, 96
    %v7397 = vpop.permute.xlu0 %7396
    %7398 = vrot.lane.b32.xlu0 %v5463, 96
    %v7399 = vpop.permute.xlu0 %7398
    %7400 = vrot.lane.b32.xlu0 %v5464, 96
    %v7401 = vpop.permute.xlu0 %7400
    %7402 = vrot.lane.b32.xlu0 %v5465, 96
    %v7403 = vpop.permute.xlu0 %7402
    %7404 = vrot.lane.b32.xlu0 %v5466, 96
    %v7405 = vpop.permute.xlu0 %7404
    %7406 = vrot.lane.b32.xlu0 %v5467, 96
    %v7407 = vpop.permute.xlu0 %7406
    %7408 = vrot.lane.b32.xlu0 %v5468, 96
    %v7409 = vpop.permute.xlu0 %7408
    %7410 = vrot.lane.b32.xlu0 %v5469, 96
    %v7411 = vpop.permute.xlu0 %7410
    %7412 = vrot.lane.b32.xlu0 %v5470, 96
    %v7413 = vpop.permute.xlu0 %7412
    %7414 = vrot.lane.b32.xlu0 %v5471, 96
    %v7415 = vpop.permute.xlu0 %7414
    %7416 = vrot.lane.b32.xlu0 %v5472, 96
    %v7417 = vpop.permute.xlu0 %7416
    %7418 = vrot.lane.b32.xlu0 %v5473, 96
    %v7419 = vpop.permute.xlu0 %7418
    %7420 = vrot.lane.b32.xlu0 %v5474, 96
    %v7421 = vpop.permute.xlu0 %7420
    %7422 = vrot.lane.b32.xlu0 %v5475, 96
    %v7423 = vpop.permute.xlu0 %7422
    %7424 = vrot.lane.b32.xlu0 %v5476, 96
    %v7425 = vpop.permute.xlu0 %7424
    %7426 = vrot.lane.b32.xlu0 %v5477, 96
    %v7427 = vpop.permute.xlu0 %7426
    %7428 = vrot.lane.b32.xlu0 %v5478, 96
    %v7429 = vpop.permute.xlu0 %7428
    %7430 = vrot.lane.b32.xlu0 %v5479, 96
    %v7431 = vpop.permute.xlu0 %7430
    %7432 = vrot.lane.b32.xlu0 %v5480, 96
    %v7433 = vpop.permute.xlu0 %7432
    %7434 = vrot.lane.b32.xlu0 %v5481, 96
    %v7435 = vpop.permute.xlu0 %7434
    %7436 = vrot.lane.b32.xlu0 %v5482, 96
    %v7437 = vpop.permute.xlu0 %7436
    %7438 = vrot.lane.b32.xlu0 %v5483, 96
    %v7439 = vpop.permute.xlu0 %7438
    %7440 = vrot.lane.b32.xlu0 %v5484, 96
    %v7441 = vpop.permute.xlu0 %7440
    %7442 = vrot.lane.b32.xlu0 %v5485, 96
    %v7443 = vpop.permute.xlu0 %7442
    %7444 = vrot.lane.b32.xlu0 %v5486, 96
    %v7445 = vpop.permute.xlu0 %7444
    %7446 = vrot.lane.b32.xlu0 %v5487, 96
    %v7447 = vpop.permute.xlu0 %7446
    %7448 = vrot.lane.b32.xlu0 %v5488, 96
    %v7449 = vpop.permute.xlu0 %7448
    %7450 = vrot.lane.b32.xlu0 %v5489, 96
    %v7451 = vpop.permute.xlu0 %7450
    %7452 = vrot.lane.b32.xlu0 %v5490, 96
    %v7453 = vpop.permute.xlu0 %7452
    %7454 = vrot.lane.b32.xlu0 %v5491, 96
    %v7455 = vpop.permute.xlu0 %7454
    %7456 = vrot.lane.b32.xlu0 %v5492, 96
    %v7457 = vpop.permute.xlu0 %7456
    %7458 = vrot.lane.b32.xlu0 %v5493, 96
    %v7459 = vpop.permute.xlu0 %7458
    %7460 = vrot.lane.b32.xlu0 %v5494, 96
    %v7461 = vpop.permute.xlu0 %7460
    %7462 = vrot.lane.b32.xlu0 %v5495, 96
    %v7463 = vpop.permute.xlu0 %7462
    %7464 = vrot.lane.b32.xlu0 %v5496, 96
    %v7465 = vpop.permute.xlu0 %7464
    %7466 = vrot.lane.b32.xlu0 %v5497, 96
    %v7467 = vpop.permute.xlu0 %7466
    %7468 = vrot.lane.b32.xlu0 %v5498, 96
    %v7469 = vpop.permute.xlu0 %7468
    %7470 = vrot.lane.b32.xlu0 %v5499, 96
    %v7471 = vpop.permute.xlu0 %7470
    %7472 = vrot.lane.b32.xlu0 %v5500, 96
    %v7473 = vpop.permute.xlu0 %7472
    %7474 = vrot.lane.b32.xlu0 %v5501, 96
    %v7475 = vpop.permute.xlu0 %7474
    %7476 = vrot.lane.b32.xlu0 %v5502, 96
    %v7477 = vpop.permute.xlu0 %7476
    %7478 = vrot.lane.b32.xlu0 %v5503, 96
    %v7479 = vpop.permute.xlu0 %7478
    %7480 = vrot.lane.b32.xlu0 %v5504, 96
    %v7481 = vpop.permute.xlu0 %7480
    %7482 = vrot.lane.b32.xlu0 %v5505, 96
    %v7483 = vpop.permute.xlu0 %7482
    %7484 = vrot.lane.b32.xlu0 %v5506, 96
    %v7485 = vpop.permute.xlu0 %7484
    %7486 = vrot.lane.b32.xlu0 %v5507, 96
    %v7487 = vpop.permute.xlu0 %7486
    %7488 = vrot.lane.b32.xlu0 %v5508, 96
    %v7489 = vpop.permute.xlu0 %7488
    %7490 = vrot.lane.b32.xlu0 %v5509, 96
    %v7491 = vpop.permute.xlu0 %7490
    %7492 = vrot.lane.b32.xlu0 %v5510, 96
    %v7493 = vpop.permute.xlu0 %7492
    %7494 = vrot.lane.b32.xlu0 %v5511, 96
    %v7495 = vpop.permute.xlu0 %7494
    %v7560 = vsel %vm3030, %v4936, %v5577
    %v7561 = vsel %vm3030, %v4937, %v5579
    %v7562 = vsel %vm3030, %v4938, %v5581
    %v7563 = vsel %vm3030, %v4939, %v5583
    %v7564 = vsel %vm3030, %v4940, %v5585
    %v7565 = vsel %vm3030, %v4941, %v5587
    %v7566 = vsel %vm3030, %v4942, %v5589
    %v7567 = vsel %vm3030, %v4943, %v5591
    %v7568 = vsel %vm3030, %v4944, %v5593
    %v7569 = vsel %vm3030, %v4945, %v5595
    %v7570 = vsel %vm3030, %v4946, %v5597
    %v7571 = vsel %vm3030, %v4947, %v5599
    %v7572 = vsel %vm3030, %v4948, %v5601
    %v7573 = vsel %vm3030, %v4949, %v5603
    %v7574 = vsel %vm3030, %v4950, %v5605
    %v7575 = vsel %vm3030, %v4951, %v5607
    %v7576 = vsel %vm3030, %v4952, %v5609
    %v7577 = vsel %vm3030, %v4953, %v5611
    %v7578 = vsel %vm3030, %v4954, %v5613
    %v7579 = vsel %vm3030, %v4955, %v5615
    %v7580 = vsel %vm3030, %v4956, %v5617
    %v7581 = vsel %vm3030, %v4957, %v5619
    %v7582 = vsel %vm3030, %v4958, %v5621
    %v7583 = vsel %vm3030, %v4959, %v5623
    %v7584 = vsel %vm3030, %v4960, %v5625
    %v7585 = vsel %vm3030, %v4961, %v5627
    %v7586 = vsel %vm3030, %v4962, %v5629
    %v7587 = vsel %vm3030, %v4963, %v5631
    %v7588 = vsel %vm3030, %v4964, %v5633
    %v7589 = vsel %vm3030, %v4965, %v5635
    %v7590 = vsel %vm3030, %v4966, %v5637
    %v7591 = vsel %vm3030, %v4967, %v5639
    %v7592 = vsel %vm3030, %v4968, %v5641
    %v7593 = vsel %vm3030, %v4969, %v5643
    %v7594 = vsel %vm3030, %v4970, %v5645
    %v7595 = vsel %vm3030, %v4971, %v5647
    %v7596 = vsel %vm3030, %v4972, %v5649
    %v7597 = vsel %vm3030, %v4973, %v5651
    %v7598 = vsel %vm3030, %v4974, %v5653
    %v7599 = vsel %vm3030, %v4975, %v5655
    %v7600 = vsel %vm3030, %v4976, %v5657
    %v7601 = vsel %vm3030, %v4977, %v5659
    %v7602 = vsel %vm3030, %v4978, %v5661
    %v7603 = vsel %vm3030, %v4979, %v5663
    %v7604 = vsel %vm3030, %v4980, %v5665
    %v7605 = vsel %vm3030, %v4981, %v5667
    %v7606 = vsel %vm3030, %v4982, %v5669
    %v7607 = vsel %vm3030, %v4983, %v5671
    %v7608 = vsel %vm3030, %v4984, %v5673
    %v7609 = vsel %vm3030, %v4985, %v5675
    %v7610 = vsel %vm3030, %v4986, %v5677
    %v7611 = vsel %vm3030, %v4987, %v5679
    %v7612 = vsel %vm3030, %v4988, %v5681
    %v7613 = vsel %vm3030, %v4989, %v5683
    %v7614 = vsel %vm3030, %v4990, %v5685
    %v7615 = vsel %vm3030, %v4991, %v5687
    %v7616 = vsel %vm3030, %v4992, %v5689
    %v7617 = vsel %vm3030, %v4993, %v5691
    %v7618 = vsel %vm3030, %v4994, %v5693
    %v7619 = vsel %vm3030, %v4995, %v5695
    %v7620 = vsel %vm3030, %v4996, %v5697
    %v7621 = vsel %vm3030, %v4997, %v5699
    %v7622 = vsel %vm3030, %v4998, %v5701
    %v7623 = vsel %vm3030, %v4999, %v5703
    %v7624 = vsel %vm3225, %v7560, %v5833
    %v7625 = vsel %vm3225, %v7561, %v5835
    %v7626 = vsel %vm3225, %v7562, %v5837
    %v7627 = vsel %vm3225, %v7563, %v5839
    %v7628 = vsel %vm3225, %v7564, %v5841
    %v7629 = vsel %vm3225, %v7565, %v5843
    %v7630 = vsel %vm3225, %v7566, %v5845
    %v7631 = vsel %vm3225, %v7567, %v5847
    %v7632 = vsel %vm3225, %v7568, %v5849
    %v7633 = vsel %vm3225, %v7569, %v5851
    %v7634 = vsel %vm3225, %v7570, %v5853
    %v7635 = vsel %vm3225, %v7571, %v5855
    %v7636 = vsel %vm3225, %v7572, %v5857
    %v7637 = vsel %vm3225, %v7573, %v5859
    %v7638 = vsel %vm3225, %v7574, %v5861
    %v7639 = vsel %vm3225, %v7575, %v5863
    %v7640 = vsel %vm3225, %v7576, %v5865
    %v7641 = vsel %vm3225, %v7577, %v5867
    %v7642 = vsel %vm3225, %v7578, %v5869
    %v7643 = vsel %vm3225, %v7579, %v5871
    %v7644 = vsel %vm3225, %v7580, %v5873
    %v7645 = vsel %vm3225, %v7581, %v5875
    %v7646 = vsel %vm3225, %v7582, %v5877
    %v7647 = vsel %vm3225, %v7583, %v5879
    %v7648 = vsel %vm3225, %v7584, %v5881
    %v7649 = vsel %vm3225, %v7585, %v5883
    %v7650 = vsel %vm3225, %v7586, %v5885
    %v7651 = vsel %vm3225, %v7587, %v5887
    %v7652 = vsel %vm3225, %v7588, %v5889
    %v7653 = vsel %vm3225, %v7589, %v5891
    %v7654 = vsel %vm3225, %v7590, %v5893
    %v7655 = vsel %vm3225, %v7591, %v5895
    %v7656 = vsel %vm3225, %v7592, %v5897
    %v7657 = vsel %vm3225, %v7593, %v5899
    %v7658 = vsel %vm3225, %v7594, %v5901
    %v7659 = vsel %vm3225, %v7595, %v5903
    %v7660 = vsel %vm3225, %v7596, %v5905
    %v7661 = vsel %vm3225, %v7597, %v5907
    %v7662 = vsel %vm3225, %v7598, %v5909
    %v7663 = vsel %vm3225, %v7599, %v5911
    %v7664 = vsel %vm3225, %v7600, %v5913
    %v7665 = vsel %vm3225, %v7601, %v5915
    %v7666 = vsel %vm3225, %v7602, %v5917
    %v7667 = vsel %vm3225, %v7603, %v5919
    %v7668 = vsel %vm3225, %v7604, %v5921
    %v7669 = vsel %vm3225, %v7605, %v5923
    %v7670 = vsel %vm3225, %v7606, %v5925
    %v7671 = vsel %vm3225, %v7607, %v5927
    %v7672 = vsel %vm3225, %v7608, %v5929
    %v7673 = vsel %vm3225, %v7609, %v5931
    %v7674 = vsel %vm3225, %v7610, %v5933
    %v7675 = vsel %vm3225, %v7611, %v5935
    %v7676 = vsel %vm3225, %v7612, %v5937
    %v7677 = vsel %vm3225, %v7613, %v5939
    %v7678 = vsel %vm3225, %v7614, %v5941
    %v7679 = vsel %vm3225, %v7615, %v5943
    %v7680 = vsel %vm3225, %v7616, %v5945
    %v7681 = vsel %vm3225, %v7617, %v5947
    %v7682 = vsel %vm3225, %v7618, %v5949
    %v7683 = vsel %vm3225, %v7619, %v5951
    %v7684 = vsel %vm3225, %v7620, %v5953
    %v7685 = vsel %vm3225, %v7621, %v5955
    %v7686 = vsel %vm3225, %v7622, %v5957
    %v7687 = vsel %vm3225, %v7623, %v5959
    %v7688 = vsel %vm3424, %v7624, %v6089
    %v7689 = vsel %vm3424, %v7625, %v6091
    %v7690 = vsel %vm3424, %v7626, %v6093
    %v7691 = vsel %vm3424, %v7627, %v6095
    %v7692 = vsel %vm3424, %v7628, %v6097
    %v7693 = vsel %vm3424, %v7629, %v6099
    %v7694 = vsel %vm3424, %v7630, %v6101
    %v7695 = vsel %vm3424, %v7631, %v6103
    %v7696 = vsel %vm3424, %v7632, %v6105
    %v7697 = vsel %vm3424, %v7633, %v6107
    %v7698 = vsel %vm3424, %v7634, %v6109
    %v7699 = vsel %vm3424, %v7635, %v6111
    %v7700 = vsel %vm3424, %v7636, %v6113
    %v7701 = vsel %vm3424, %v7637, %v6115
    %v7702 = vsel %vm3424, %v7638, %v6117
    %v7703 = vsel %vm3424, %v7639, %v6119
    %v7704 = vsel %vm3424, %v7640, %v6121
    %v7705 = vsel %vm3424, %v7641, %v6123
    %v7706 = vsel %vm3424, %v7642, %v6125
    %v7707 = vsel %vm3424, %v7643, %v6127
    %v7708 = vsel %vm3424, %v7644, %v6129
    %v7709 = vsel %vm3424, %v7645, %v6131
    %v7710 = vsel %vm3424, %v7646, %v6133
    %v7711 = vsel %vm3424, %v7647, %v6135
    %v7712 = vsel %vm3424, %v7648, %v6137
    %v7713 = vsel %vm3424, %v7649, %v6139
    %v7714 = vsel %vm3424, %v7650, %v6141
    %v7715 = vsel %vm3424, %v7651, %v6143
    %v7716 = vsel %vm3424, %v7652, %v6145
    %v7717 = vsel %vm3424, %v7653, %v6147
    %v7718 = vsel %vm3424, %v7654, %v6149
    %v7719 = vsel %vm3424, %v7655, %v6151
    %v7720 = vsel %vm3424, %v7656, %v6153
    %v7721 = vsel %vm3424, %v7657, %v6155
    %v7722 = vsel %vm3424, %v7658, %v6157
    %v7723 = vsel %vm3424, %v7659, %v6159
    %v7724 = vsel %vm3424, %v7660, %v6161
    %v7725 = vsel %vm3424, %v7661, %v6163
    %v7726 = vsel %vm3424, %v7662, %v6165
    %v7727 = vsel %vm3424, %v7663, %v6167
    %v7728 = vsel %vm3424, %v7664, %v6169
    %v7729 = vsel %vm3424, %v7665, %v6171
    %v7730 = vsel %vm3424, %v7666, %v6173
    %v7731 = vsel %vm3424, %v7667, %v6175
    %v7732 = vsel %vm3424, %v7668, %v6177
    %v7733 = vsel %vm3424, %v7669, %v6179
    %v7734 = vsel %vm3424, %v7670, %v6181
    %v7735 = vsel %vm3424, %v7671, %v6183
    %v7736 = vsel %vm3424, %v7672, %v6185
    %v7737 = vsel %vm3424, %v7673, %v6187
    %v7738 = vsel %vm3424, %v7674, %v6189
    %v7739 = vsel %vm3424, %v7675, %v6191
    %v7740 = vsel %vm3424, %v7676, %v6193
    %v7741 = vsel %vm3424, %v7677, %v6195
    %v7742 = vsel %vm3424, %v7678, %v6197
    %v7743 = vsel %vm3424, %v7679, %v6199
    %v7744 = vsel %vm3424, %v7680, %v6201
    %v7745 = vsel %vm3424, %v7681, %v6203
    %v7746 = vsel %vm3424, %v7682, %v6205
    %v7747 = vsel %vm3424, %v7683, %v6207
    %v7748 = vsel %vm3424, %v7684, %v6209
    %v7749 = vsel %vm3424, %v7685, %v6211
    %v7750 = vsel %vm3424, %v7686, %v6213
    %v7751 = vsel %vm3424, %v7687, %v6215
    %vm7752 = vcmask 392192
    %v7753 = vsel %vm7752, %v7688, %v6345
    %v7754 = vsel %vm7752, %v7689, %v6347
    %v7755 = vsel %vm7752, %v7690, %v6349
    %v7756 = vsel %vm7752, %v7691, %v6351
    %v7757 = vsel %vm7752, %v7692, %v6353
    %v7758 = vsel %vm7752, %v7693, %v6355
    %v7759 = vsel %vm7752, %v7694, %v6357
    %v7760 = vsel %vm7752, %v7695, %v6359
    %v7761 = vsel %vm7752, %v7696, %v6361
    %v7762 = vsel %vm7752, %v7697, %v6363
    %v7763 = vsel %vm7752, %v7698, %v6365
    %v7764 = vsel %vm7752, %v7699, %v6367
    %v7765 = vsel %vm7752, %v7700, %v6369
    %v7766 = vsel %vm7752, %v7701, %v6371
    %v7767 = vsel %vm7752, %v7702, %v6373
    %v7768 = vsel %vm7752, %v7703, %v6375
    %v7769 = vsel %vm7752, %v7704, %v6377
    %v7770 = vsel %vm7752, %v7705, %v6379
    %v7771 = vsel %vm7752, %v7706, %v6381
    %v7772 = vsel %vm7752, %v7707, %v6383
    %v7773 = vsel %vm7752, %v7708, %v6385
    %v7774 = vsel %vm7752, %v7709, %v6387
    %v7775 = vsel %vm7752, %v7710, %v6389
    %v7776 = vsel %vm7752, %v7711, %v6391
    %v7777 = vsel %vm7752, %v7712, %v6393
    %v7778 = vsel %vm7752, %v7713, %v6395
    %v7779 = vsel %vm7752, %v7714, %v6397
    %v7780 = vsel %vm7752, %v7715, %v6399
    %v7781 = vsel %vm7752, %v7716, %v6401
    %v7782 = vsel %vm7752, %v7717, %v6403
    %v7783 = vsel %vm7752, %v7718, %v6405
    %v7784 = vsel %vm7752, %v7719, %v6407
    %v7785 = vsel %vm7752, %v7720, %v6409
    %v7786 = vsel %vm7752, %v7721, %v6411
    %v7787 = vsel %vm7752, %v7722, %v6413
    %v7788 = vsel %vm7752, %v7723, %v6415
    %v7789 = vsel %vm7752, %v7724, %v6417
    %v7790 = vsel %vm7752, %v7725, %v6419
    %v7791 = vsel %vm7752, %v7726, %v6421
    %v7792 = vsel %vm7752, %v7727, %v6423
    %v7793 = vsel %vm7752, %v7728, %v6425
    %v7794 = vsel %vm7752, %v7729, %v6427
    %v7795 = vsel %vm7752, %v7730, %v6429
    %v7796 = vsel %vm7752, %v7731, %v6431
    %v7797 = vsel %vm7752, %v7732, %v6433
    %v7798 = vsel %vm7752, %v7733, %v6435
    %v7799 = vsel %vm7752, %v7734, %v6437
    %v7800 = vsel %vm7752, %v7735, %v6439
    %v7801 = vsel %vm7752, %v7736, %v6441
    %v7802 = vsel %vm7752, %v7737, %v6443
    %v7803 = vsel %vm7752, %v7738, %v6445
    %v7804 = vsel %vm7752, %v7739, %v6447
    %v7805 = vsel %vm7752, %v7740, %v6449
    %v7806 = vsel %vm7752, %v7741, %v6451
    %v7807 = vsel %vm7752, %v7742, %v6453
    %v7808 = vsel %vm7752, %v7743, %v6455
    %v7809 = vsel %vm7752, %v7744, %v6457
    %v7810 = vsel %vm7752, %v7745, %v6459
    %v7811 = vsel %vm7752, %v7746, %v6461
    %v7812 = vsel %vm7752, %v7747, %v6463
    %v7813 = vsel %vm7752, %v7748, %v6465
    %v7814 = vsel %vm7752, %v7749, %v6467
    %v7815 = vsel %vm7752, %v7750, %v6469
    %v7816 = vsel %vm7752, %v7751, %v6471
    %vm7817 = vcmask 490496
    %v7818 = vsel %vm7817, %v7753, %v6601
    %v7819 = vsel %vm7817, %v7754, %v6603
    %v7820 = vsel %vm7817, %v7755, %v6605
    %v7821 = vsel %vm7817, %v7756, %v6607
    %v7822 = vsel %vm7817, %v7757, %v6609
    %v7823 = vsel %vm7817, %v7758, %v6611
    %v7824 = vsel %vm7817, %v7759, %v6613
    %v7825 = vsel %vm7817, %v7760, %v6615
    %v7826 = vsel %vm7817, %v7761, %v6617
    %v7827 = vsel %vm7817, %v7762, %v6619
    %v7828 = vsel %vm7817, %v7763, %v6621
    %v7829 = vsel %vm7817, %v7764, %v6623
    %v7830 = vsel %vm7817, %v7765, %v6625
    %v7831 = vsel %vm7817, %v7766, %v6627
    %v7832 = vsel %vm7817, %v7767, %v6629
    %v7833 = vsel %vm7817, %v7768, %v6631
    %v7834 = vsel %vm7817, %v7769, %v6633
    %v7835 = vsel %vm7817, %v7770, %v6635
    %v7836 = vsel %vm7817, %v7771, %v6637
    %v7837 = vsel %vm7817, %v7772, %v6639
    %v7838 = vsel %vm7817, %v7773, %v6641
    %v7839 = vsel %vm7817, %v7774, %v6643
    %v7840 = vsel %vm7817, %v7775, %v6645
    %v7841 = vsel %vm7817, %v7776, %v6647
    %v7842 = vsel %vm7817, %v7777, %v6649
    %v7843 = vsel %vm7817, %v7778, %v6651
    %v7844 = vsel %vm7817, %v7779, %v6653
    %v7845 = vsel %vm7817, %v7780, %v6655
    %v7846 = vsel %vm7817, %v7781, %v6657
    %v7847 = vsel %vm7817, %v7782, %v6659
    %v7848 = vsel %vm7817, %v7783, %v6661
    %v7849 = vsel %vm7817, %v7784, %v6663
    %v7850 = vsel %vm7817, %v7785, %v6665
    %v7851 = vsel %vm7817, %v7786, %v6667
    %v7852 = vsel %vm7817, %v7787, %v6669
    %v7853 = vsel %vm7817, %v7788, %v6671
    %v7854 = vsel %vm7817, %v7789, %v6673
    %v7855 = vsel %vm7817, %v7790, %v6675
    %v7856 = vsel %vm7817, %v7791, %v6677
    %v7857 = vsel %vm7817, %v7792, %v6679
    %v7858 = vsel %vm7817, %v7793, %v6681
    %v7859 = vsel %vm7817, %v7794, %v6683
    %v7860 = vsel %vm7817, %v7795, %v6685
    %v7861 = vsel %vm7817, %v7796, %v6687
    %v7862 = vsel %vm7817, %v7797, %v6689
    %v7863 = vsel %vm7817, %v7798, %v6691
    %v7864 = vsel %vm7817, %v7799, %v6693
    %v7865 = vsel %vm7817, %v7800, %v6695
    %v7866 = vsel %vm7817, %v7801, %v6697
    %v7867 = vsel %vm7817, %v7802, %v6699
    %v7868 = vsel %vm7817, %v7803, %v6701
    %v7869 = vsel %vm7817, %v7804, %v6703
    %v7870 = vsel %vm7817, %v7805, %v6705
    %v7871 = vsel %vm7817, %v7806, %v6707
    %v7872 = vsel %vm7817, %v7807, %v6709
    %v7873 = vsel %vm7817, %v7808, %v6711
    %v7874 = vsel %vm7817, %v7809, %v6713
    %v7875 = vsel %vm7817, %v7810, %v6715
    %v7876 = vsel %vm7817, %v7811, %v6717
    %v7877 = vsel %vm7817, %v7812, %v6719
    %v7878 = vsel %vm7817, %v7813, %v6721
    %v7879 = vsel %vm7817, %v7814, %v6723
    %v7880 = vsel %vm7817, %v7815, %v6725
    %v7881 = vsel %vm7817, %v7816, %v6727
    %vm7882 = vcmask 588800
    %v7883 = vsel %vm7882, %v7818, %v6857
    %v7884 = vsel %vm7882, %v7819, %v6859
    %v7885 = vsel %vm7882, %v7820, %v6861
    %v7886 = vsel %vm7882, %v7821, %v6863
    %v7887 = vsel %vm7882, %v7822, %v6865
    %v7888 = vsel %vm7882, %v7823, %v6867
    %v7889 = vsel %vm7882, %v7824, %v6869
    %v7890 = vsel %vm7882, %v7825, %v6871
    %v7891 = vsel %vm7882, %v7826, %v6873
    %v7892 = vsel %vm7882, %v7827, %v6875
    %v7893 = vsel %vm7882, %v7828, %v6877
    %v7894 = vsel %vm7882, %v7829, %v6879
    %v7895 = vsel %vm7882, %v7830, %v6881
    %v7896 = vsel %vm7882, %v7831, %v6883
    %v7897 = vsel %vm7882, %v7832, %v6885
    %v7898 = vsel %vm7882, %v7833, %v6887
    %v7899 = vsel %vm7882, %v7834, %v6889
    %v7900 = vsel %vm7882, %v7835, %v6891
    %v7901 = vsel %vm7882, %v7836, %v6893
    %v7902 = vsel %vm7882, %v7837, %v6895
    %v7903 = vsel %vm7882, %v7838, %v6897
    %v7904 = vsel %vm7882, %v7839, %v6899
    %v7905 = vsel %vm7882, %v7840, %v6901
    %v7906 = vsel %vm7882, %v7841, %v6903
    %v7907 = vsel %vm7882, %v7842, %v6905
    %v7908 = vsel %vm7882, %v7843, %v6907
    %v7909 = vsel %vm7882, %v7844, %v6909
    %v7910 = vsel %vm7882, %v7845, %v6911
    %v7911 = vsel %vm7882, %v7846, %v6913
    %v7912 = vsel %vm7882, %v7847, %v6915
    %v7913 = vsel %vm7882, %v7848, %v6917
    %v7914 = vsel %vm7882, %v7849, %v6919
    %v7915 = vsel %vm7882, %v7850, %v6921
    %v7916 = vsel %vm7882, %v7851, %v6923
    %v7917 = vsel %vm7882, %v7852, %v6925
    %v7918 = vsel %vm7882, %v7853, %v6927
    %v7919 = vsel %vm7882, %v7854, %v6929
    %v7920 = vsel %vm7882, %v7855, %v6931
    %v7921 = vsel %vm7882, %v7856, %v6933
    %v7922 = vsel %vm7882, %v7857, %v6935
    %v7923 = vsel %vm7882, %v7858, %v6937
    %v7924 = vsel %vm7882, %v7859, %v6939
    %v7925 = vsel %vm7882, %v7860, %v6941
    %v7926 = vsel %vm7882, %v7861, %v6943
    %v7927 = vsel %vm7882, %v7862, %v6945
    %v7928 = vsel %vm7882, %v7863, %v6947
    %v7929 = vsel %vm7882, %v7864, %v6949
    %v7930 = vsel %vm7882, %v7865, %v6951
    %v7931 = vsel %vm7882, %v7866, %v6953
    %v7932 = vsel %vm7882, %v7867, %v6955
    %v7933 = vsel %vm7882, %v7868, %v6957
    %v7934 = vsel %vm7882, %v7869, %v6959
    %v7935 = vsel %vm7882, %v7870, %v6961
    %v7936 = vsel %vm7882, %v7871, %v6963
    %v7937 = vsel %vm7882, %v7872, %v6965
    %v7938 = vsel %vm7882, %v7873, %v6967
    %v7939 = vsel %vm7882, %v7874, %v6969
    %v7940 = vsel %vm7882, %v7875, %v6971
    %v7941 = vsel %vm7882, %v7876, %v6973
    %v7942 = vsel %vm7882, %v7877, %v6975
    %v7943 = vsel %vm7882, %v7878, %v6977
    %v7944 = vsel %vm7882, %v7879, %v6979
    %v7945 = vsel %vm7882, %v7880, %v6981
    %v7946 = vsel %vm7882, %v7881, %v6983
    %vm7947 = vcmask 687104
    %v7948 = vsel %vm7947, %v7883, %v7113
    %v7949 = vsel %vm7947, %v7884, %v7115
    %v7950 = vsel %vm7947, %v7885, %v7117
    %v7951 = vsel %vm7947, %v7886, %v7119
    %v7952 = vsel %vm7947, %v7887, %v7121
    %v7953 = vsel %vm7947, %v7888, %v7123
    %v7954 = vsel %vm7947, %v7889, %v7125
    %v7955 = vsel %vm7947, %v7890, %v7127
    %v7956 = vsel %vm7947, %v7891, %v7129
    %v7957 = vsel %vm7947, %v7892, %v7131
    %v7958 = vsel %vm7947, %v7893, %v7133
    %v7959 = vsel %vm7947, %v7894, %v7135
    %v7960 = vsel %vm7947, %v7895, %v7137
    %v7961 = vsel %vm7947, %v7896, %v7139
    %v7962 = vsel %vm7947, %v7897, %v7141
    %v7963 = vsel %vm7947, %v7898, %v7143
    %v7964 = vsel %vm7947, %v7899, %v7145
    %v7965 = vsel %vm7947, %v7900, %v7147
    %v7966 = vsel %vm7947, %v7901, %v7149
    %v7967 = vsel %vm7947, %v7902, %v7151
    %v7968 = vsel %vm7947, %v7903, %v7153
    %v7969 = vsel %vm7947, %v7904, %v7155
    %v7970 = vsel %vm7947, %v7905, %v7157
    %v7971 = vsel %vm7947, %v7906, %v7159
    %v7972 = vsel %vm7947, %v7907, %v7161
    %v7973 = vsel %vm7947, %v7908, %v7163
    %v7974 = vsel %vm7947, %v7909, %v7165
    %v7975 = vsel %vm7947, %v7910, %v7167
    %v7976 = vsel %vm7947, %v7911, %v7169
    %v7977 = vsel %vm7947, %v7912, %v7171
    %v7978 = vsel %vm7947, %v7913, %v7173
    %v7979 = vsel %vm7947, %v7914, %v7175
    %v7980 = vsel %vm7947, %v7915, %v7177
    %v7981 = vsel %vm7947, %v7916, %v7179
    %v7982 = vsel %vm7947, %v7917, %v7181
    %v7983 = vsel %vm7947, %v7918, %v7183
    %v7984 = vsel %vm7947, %v7919, %v7185
    %v7985 = vsel %vm7947, %v7920, %v7187
    %v7986 = vsel %vm7947, %v7921, %v7189
    %v7987 = vsel %vm7947, %v7922, %v7191
    %v7988 = vsel %vm7947, %v7923, %v7193
    %v7989 = vsel %vm7947, %v7924, %v7195
    %v7990 = vsel %vm7947, %v7925, %v7197
    %v7991 = vsel %vm7947, %v7926, %v7199
    %v7992 = vsel %vm7947, %v7927, %v7201
    %v7993 = vsel %vm7947, %v7928, %v7203
    %v7994 = vsel %vm7947, %v7929, %v7205
    %v7995 = vsel %vm7947, %v7930, %v7207
    %v7996 = vsel %vm7947, %v7931, %v7209
    %v7997 = vsel %vm7947, %v7932, %v7211
    %v7998 = vsel %vm7947, %v7933, %v7213
    %v7999 = vsel %vm7947, %v7934, %v7215
    %v8000 = vsel %vm7947, %v7935, %v7217
    %v8001 = vsel %vm7947, %v7936, %v7219
    %v8002 = vsel %vm7947, %v7937, %v7221
    %v8003 = vsel %vm7947, %v7938, %v7223
    %v8004 = vsel %vm7947, %v7939, %v7225
    %v8005 = vsel %vm7947, %v7940, %v7227
    %v8006 = vsel %vm7947, %v7941, %v7229
    %v8007 = vsel %vm7947, %v7942, %v7231
    %v8008 = vsel %vm7947, %v7943, %v7233
    %v8009 = vsel %vm7947, %v7944, %v7235
    %v8010 = vsel %vm7947, %v7945, %v7237
    %v8011 = vsel %vm7947, %v7946, %v7239
    %vm8012 = vcmask 785408
    %v8013 = vsel %vm8012, %v7948, %v7369
    %v8014 = vsel %vm8012, %v7949, %v7371
    %v8015 = vsel %vm8012, %v7950, %v7373
    %v8016 = vsel %vm8012, %v7951, %v7375
    %v8017 = vsel %vm8012, %v7952, %v7377
    %v8018 = vsel %vm8012, %v7953, %v7379
    %v8019 = vsel %vm8012, %v7954, %v7381
    %v8020 = vsel %vm8012, %v7955, %v7383
    %v8021 = vsel %vm8012, %v7956, %v7385
    %v8022 = vsel %vm8012, %v7957, %v7387
    %v8023 = vsel %vm8012, %v7958, %v7389
    %v8024 = vsel %vm8012, %v7959, %v7391
    %v8025 = vsel %vm8012, %v7960, %v7393
    %v8026 = vsel %vm8012, %v7961, %v7395
    %v8027 = vsel %vm8012, %v7962, %v7397
    %v8028 = vsel %vm8012, %v7963, %v7399
    %v8029 = vsel %vm8012, %v7964, %v7401
    %v8030 = vsel %vm8012, %v7965, %v7403
    %v8031 = vsel %vm8012, %v7966, %v7405
    %v8032 = vsel %vm8012, %v7967, %v7407
    %v8033 = vsel %vm8012, %v7968, %v7409
    %v8034 = vsel %vm8012, %v7969, %v7411
    %v8035 = vsel %vm8012, %v7970, %v7413
    %v8036 = vsel %vm8012, %v7971, %v7415
    %v8037 = vsel %vm8012, %v7972, %v7417
    %v8038 = vsel %vm8012, %v7973, %v7419
    %v8039 = vsel %vm8012, %v7974, %v7421
    %v8040 = vsel %vm8012, %v7975, %v7423
    %v8041 = vsel %vm8012, %v7976, %v7425
    %v8042 = vsel %vm8012, %v7977, %v7427
    %v8043 = vsel %vm8012, %v7978, %v7429
    %v8044 = vsel %vm8012, %v7979, %v7431
    %v8045 = vsel %vm8012, %v7980, %v7433
    %v8046 = vsel %vm8012, %v7981, %v7435
    %v8047 = vsel %vm8012, %v7982, %v7437
    %v8048 = vsel %vm8012, %v7983, %v7439
    %v8049 = vsel %vm8012, %v7984, %v7441
    %v8050 = vsel %vm8012, %v7985, %v7443
    %v8051 = vsel %vm8012, %v7986, %v7445
    %v8052 = vsel %vm8012, %v7987, %v7447
    %v8053 = vsel %vm8012, %v7988, %v7449
    %v8054 = vsel %vm8012, %v7989, %v7451
    %v8055 = vsel %vm8012, %v7990, %v7453
    %v8056 = vsel %vm8012, %v7991, %v7455
    %v8057 = vsel %vm8012, %v7992, %v7457
    %v8058 = vsel %vm8012, %v7993, %v7459
    %v8059 = vsel %vm8012, %v7994, %v7461
    %v8060 = vsel %vm8012, %v7995, %v7463
    %v8061 = vsel %vm8012, %v7996, %v7465
    %v8062 = vsel %vm8012, %v7997, %v7467
    %v8063 = vsel %vm8012, %v7998, %v7469
    %v8064 = vsel %vm8012, %v7999, %v7471
    %v8065 = vsel %vm8012, %v8000, %v7473
    %v8066 = vsel %vm8012, %v8001, %v7475
    %v8067 = vsel %vm8012, %v8002, %v7477
    %v8068 = vsel %vm8012, %v8003, %v7479
    %v8069 = vsel %vm8012, %v8004, %v7481
    %v8070 = vsel %vm8012, %v8005, %v7483
    %v8071 = vsel %vm8012, %v8006, %v7485
    %v8072 = vsel %vm8012, %v8007, %v7487
    %v8073 = vsel %vm8012, %v8008, %v7489
    %v8074 = vsel %vm8012, %v8009, %v7491
    %v8075 = vsel %vm8012, %v8010, %v7493
    %v8076 = vsel %vm8012, %v8011, %v7495
    %v8077 = vld [vmem:[%s4] sm:$0xff]
    %v8078 = vld [vmem:[%s4 + $0x8] sm:$0xff]
    %v8079 = vld [vmem:[%s4 + $0x10] sm:$0xff]
    %v8080 = vld [vmem:[%s4 + $0x18] sm:$0xff]
    %v8081 = vld [vmem:[%s4 + $0x20] sm:$0xff]
    %v8082 = vld [vmem:[%s4 + $0x28] sm:$0xff]
    %v8083 = vld [vmem:[%s4 + $0x30] sm:$0xff]
    %v8084 = vld [vmem:[%s4 + $0x38] sm:$0xff]
    %v8085 = vld [vmem:[%s4 + $0x40] sm:$0xff]
    %v8086 = vld [vmem:[%s4 + $0x48] sm:$0xff]
    %v8087 = vld [vmem:[%s4 + $0x50] sm:$0xff]
    %v8088 = vld [vmem:[%s4 + $0x58] sm:$0xff]
    %v8089 = vld [vmem:[%s4 + $0x60] sm:$0xff]
    %v8090 = vld [vmem:[%s4 + $0x68] sm:$0xf]
    %vm8091 = vcmask 883712
    %v8093 = vsel %vm8091, %v8013, 0
    %v8096 = vsel %vm8091, %v8014, 0
    %v8099 = vsel %vm8091, %v8015, 0
    %v8102 = vsel %vm8091, %v8016, 0
    %v8105 = vsel %vm8091, %v8017, 0
    %v8108 = vsel %vm8091, %v8018, 0
    %v8111 = vsel %vm8091, %v8019, 0
    %v8114 = vsel %vm8091, %v8020, 0
    %v8117 = vsel %vm8091, %v8021, 0
    %v8120 = vsel %vm8091, %v8022, 0
    %v8123 = vsel %vm8091, %v8023, 0
    %v8126 = vsel %vm8091, %v8024, 0
    %v8129 = vsel %vm8091, %v8025, 0
    %v8132 = vsel %vm8091, %v8026, 0
    %v8135 = vsel %vm8091, %v8027, 0
    %v8138 = vsel %vm8091, %v8028, 0
    %v8141 = vsel %vm8091, %v8029, 0
    %v8144 = vsel %vm8091, %v8030, 0
    %v8147 = vsel %vm8091, %v8031, 0
    %v8150 = vsel %vm8091, %v8032, 0
    %v8153 = vsel %vm8091, %v8033, 0
    %v8156 = vsel %vm8091, %v8034, 0
    %v8159 = vsel %vm8091, %v8035, 0
    %v8162 = vsel %vm8091, %v8036, 0
    %v8165 = vsel %vm8091, %v8037, 0
    %v8168 = vsel %vm8091, %v8038, 0
    %v8171 = vsel %vm8091, %v8039, 0
    %v8174 = vsel %vm8091, %v8040, 0
    %v8177 = vsel %vm8091, %v8041, 0
    %v8180 = vsel %vm8091, %v8042, 0
    %v8183 = vsel %vm8091, %v8043, 0
    %v8186 = vsel %vm8091, %v8044, 0
    %v8189 = vsel %vm8091, %v8045, 0
    %v8192 = vsel %vm8091, %v8046, 0
    %v8195 = vsel %vm8091, %v8047, 0
    %v8198 = vsel %vm8091, %v8048, 0
    %v8201 = vsel %vm8091, %v8049, 0
    %v8204 = vsel %vm8091, %v8050, 0
    %v8207 = vsel %vm8091, %v8051, 0
    %v8210 = vsel %vm8091, %v8052, 0
    %v8213 = vsel %vm8091, %v8053, 0
    %v8216 = vsel %vm8091, %v8054, 0
    %v8219 = vsel %vm8091, %v8055, 0
    %v8222 = vsel %vm8091, %v8056, 0
    %v8225 = vsel %vm8091, %v8057, 0
    %v8228 = vsel %vm8091, %v8058, 0
    %v8231 = vsel %vm8091, %v8059, 0
    %v8234 = vsel %vm8091, %v8060, 0
    %v8237 = vsel %vm8091, %v8061, 0
    %v8240 = vsel %vm8091, %v8062, 0
    %v8243 = vsel %vm8091, %v8063, 0
    %v8246 = vsel %vm8091, %v8064, 0
    %v8249 = vsel %vm8091, %v8065, 0
    %v8252 = vsel %vm8091, %v8066, 0
    %v8255 = vsel %vm8091, %v8067, 0
    %v8258 = vsel %vm8091, %v8068, 0
    %v8261 = vsel %vm8091, %v8069, 0
    %v8264 = vsel %vm8091, %v8070, 0
    %v8267 = vsel %vm8091, %v8071, 0
    %v8270 = vsel %vm8091, %v8072, 0
    %v8273 = vsel %vm8091, %v8073, 0
    %v8276 = vsel %vm8091, %v8074, 0
    %v8279 = vsel %vm8091, %v8075, 0
    %v8282 = vsel %vm8091, %v8076, 0
    %v8285 = vsel %vm3617, %v8090, 0
    %8287 = vmatprep.subr.mxu0 0.0
    %8288 = vmatpush1.msra.mxu0 0.0
    %8289 = vmatprep.subr.mxu0 0.0
    %8290 = vmatpush1.msra.mxu0 0.0
    %8291 = vmatprep.subr.mxu0 0.0
    %8292 = vmatpush1.msra.mxu0 %v8285
    %8293 = vmatprep.subr.mxu0 0.0
    %8294 = vmatpush1.msra.mxu0 %v8089
    %8295 = vmatprep.subr.mxu0 0.0
    %8296 = vmatpush1.msra.mxu0 %v8088
    %8297 = vmatprep.subr.mxu0 0.0
    %8298 = vmatpush1.msra.mxu0 %v8087
    %8299 = vmatprep.subr.mxu0 0.0
    %8300 = vmatpush1.msra.mxu0 %v8086
    %8301 = vmatprep.subr.mxu0 0.0
    %8302 = vmatpush1.msra.mxu0 %v8085
    %8303 = vmatprep.subr.mxu0 0.0
    %8304 = vmatpush1.msra.mxu0 %v8084
    %8305 = vmatprep.subr.mxu0 0.0
    %8306 = vmatpush1.msra.mxu0 %v8083
    %8307 = vmatprep.subr.mxu0 0.0
    %8308 = vmatpush1.msra.mxu0 %v8082
    %8309 = vmatprep.subr.mxu0 0.0
    %8310 = vmatpush1.msra.mxu0 %v8081
    %8311 = vmatprep.subr.mxu0 0.0
    %8312 = vmatpush1.msra.mxu0 %v8080
    %8313 = vmatprep.subr.mxu0 0.0
    %8314 = vmatpush1.msra.mxu0 %v8079
    %8315 = vmatprep.subr.mxu0 0.0
    %8316 = vmatpush1.msra.mxu0 %v8078
    %8317 = vmatprep.subr.mxu0 0.0
    %8318 = vmatpush1.msra.mxu0 %v8077
    %8319 = vmatprep.subr.mxu0 0.0
    %8320 = vmatpush2.msra.mxu0 0.0
    %8321 = vmatprep.subr.mxu0 0.0
    %8322 = vmatpush2.msra.mxu0 0.0
    %8323 = vmatprep.subr.mxu0 0.0
    %8324 = vmatpush2.msra.mxu0 0.0
    %8325 = vmatprep.subr.mxu0 0.0
    %8326 = vmatpush2.msra.mxu0 0.0
    %8327 = vmatprep.subr.mxu0 0.0
    %8328 = vmatpush2.msra.mxu0 0.0
    %8329 = vmatprep.subr.mxu0 0.0
    %8330 = vmatpush2.msra.mxu0 0.0
    %8331 = vmatprep.subr.mxu0 0.0
    %8332 = vmatpush2.msra.mxu0 0.0
    %8333 = vmatprep.subr.mxu0 0.0
    %8334 = vmatpush2.msra.mxu0 0.0
    %8335 = vmatprep.subr.mxu0 0.0
    %8336 = vmatpush2.msra.mxu0 0.0
    %8337 = vmatprep.subr.mxu0 0.0
    %8338 = vmatpush2.msra.mxu0 0.0
    %8339 = vmatprep.subr.mxu0 0.0
    %8340 = vmatpush2.msra.mxu0 0.0
    %8341 = vmatprep.subr.mxu0 0.0
    %8342 = vmatpush2.msra.mxu0 0.0
    %8343 = vmatprep.subr.mxu0 0.0
    %8344 = vmatpush2.msra.mxu0 0.0
    %8345 = vmatprep.subr.mxu0 0.0
    %8346 = vmatpush2.msra.mxu0 0.0
    %8347 = vmatprep.subr.mxu0 0.0
    %8348 = vmatpush2.msra.mxu0 0.0
    %8349 = vmatprep.subr.mxu0 0.0
    %8350 = vmatpush2.msra.mxu0 0.0
    %8351 = vmatprep.mubr.f32.mxu0 0.0
    %8352 = vmatmul.mubr.f32.gmra.mxu0 %v8093
    %v8353 = vpop.f32.mrf.mxu0
    %v8354 = vadd.f32 0.0, %v8353
    %v8355 = vpop.f32.mrf.mxu0
    %8356 = vmatprep.mubr.f32.mxu0 0.0
    %8357 = vmatmul.mubr.f32.gmra.mxu0 %v8096
    %v8358 = vpop.f32.mrf.mxu0
    %v8359 = vadd.f32 0.0, %v8358
    %v8360 = vpop.f32.mrf.mxu0
    %8361 = vmatprep.mubr.f32.mxu0 0.0
    %8362 = vmatmul.mubr.f32.gmra.mxu0 %v8099
    %v8363 = vpop.f32.mrf.mxu0
    %v8364 = vadd.f32 0.0, %v8363
    %v8365 = vpop.f32.mrf.mxu0
    %8366 = vmatprep.mubr.f32.mxu0 0.0
    %8367 = vmatmul.mubr.f32.gmra.mxu0 %v8102
    %v8368 = vpop.f32.mrf.mxu0
    %v8369 = vadd.f32 0.0, %v8368
    %v8370 = vpop.f32.mrf.mxu0
    %8371 = vmatprep.mubr.f32.mxu0 0.0
    %8372 = vmatmul.mubr.f32.gmra.mxu0 %v8105
    %v8373 = vpop.f32.mrf.mxu0
    %v8374 = vadd.f32 0.0, %v8373
    %v8375 = vpop.f32.mrf.mxu0
    %8376 = vmatprep.mubr.f32.mxu0 0.0
    %8377 = vmatmul.mubr.f32.gmra.mxu0 %v8108
    %v8378 = vpop.f32.mrf.mxu0
    %v8379 = vadd.f32 0.0, %v8378
    %v8380 = vpop.f32.mrf.mxu0
    %8381 = vmatprep.mubr.f32.mxu0 0.0
    %8382 = vmatmul.mubr.f32.gmra.mxu0 %v8111
    %v8383 = vpop.f32.mrf.mxu0
    %v8384 = vadd.f32 0.0, %v8383
    %v8385 = vpop.f32.mrf.mxu0
    %8386 = vmatprep.mubr.f32.mxu0 0.0
    %8387 = vmatmul.mubr.f32.gmra.mxu0 %v8114
    %v8388 = vpop.f32.mrf.mxu0
    %v8389 = vadd.f32 0.0, %v8388
    %v8390 = vpop.f32.mrf.mxu0
    %8391 = vmatprep.mubr.f32.mxu0 0.0
    %8392 = vmatmul.mubr.f32.gmra.mxu0 %v8117
    %v8393 = vpop.f32.mrf.mxu0
    %v8394 = vadd.f32 0.0, %v8393
    %v8395 = vpop.f32.mrf.mxu0
    %8396 = vmatprep.mubr.f32.mxu0 0.0
    %8397 = vmatmul.mubr.f32.gmra.mxu0 %v8120
    %v8398 = vpop.f32.mrf.mxu0
    %v8399 = vadd.f32 0.0, %v8398
    %v8400 = vpop.f32.mrf.mxu0
    %8401 = vmatprep.mubr.f32.mxu0 0.0
    %8402 = vmatmul.mubr.f32.gmra.mxu0 %v8123
    %v8403 = vpop.f32.mrf.mxu0
    %v8404 = vadd.f32 0.0, %v8403
    %v8405 = vpop.f32.mrf.mxu0
    %8406 = vmatprep.mubr.f32.mxu0 0.0
    %8407 = vmatmul.mubr.f32.gmra.mxu0 %v8126
    %v8408 = vpop.f32.mrf.mxu0
    %v8409 = vadd.f32 0.0, %v8408
    %v8410 = vpop.f32.mrf.mxu0
    %8411 = vmatprep.mubr.f32.mxu0 0.0
    %8412 = vmatmul.mubr.f32.gmra.mxu0 %v8129
    %v8413 = vpop.f32.mrf.mxu0
    %v8414 = vadd.f32 0.0, %v8413
    %v8415 = vpop.f32.mrf.mxu0
    %8416 = vmatprep.mubr.f32.mxu0 0.0
    %8417 = vmatmul.mubr.f32.gmra.mxu0 %v8132
    %v8418 = vpop.f32.mrf.mxu0
    %v8419 = vadd.f32 0.0, %v8418
    %v8420 = vpop.f32.mrf.mxu0
    %8421 = vmatprep.mubr.f32.mxu0 0.0
    %8422 = vmatmul.mubr.f32.gmra.mxu0 %v8135
    %v8423 = vpop.f32.mrf.mxu0
    %v8424 = vadd.f32 0.0, %v8423
    %v8425 = vpop.f32.mrf.mxu0
    %8426 = vmatprep.mubr.f32.mxu0 0.0
    %8427 = vmatmul.mubr.f32.gmra.mxu0 %v8138
    %v8428 = vpop.f32.mrf.mxu0
    %v8429 = vadd.f32 0.0, %v8428
    %v8430 = vpop.f32.mrf.mxu0
    %8431 = vmatprep.mubr.f32.mxu0 0.0
    %8432 = vmatmul.mubr.f32.gmra.mxu0 %v8141
    %v8433 = vpop.f32.mrf.mxu0
    %v8434 = vadd.f32 0.0, %v8433
    %v8435 = vpop.f32.mrf.mxu0
    %8436 = vmatprep.mubr.f32.mxu0 0.0
    %8437 = vmatmul.mubr.f32.gmra.mxu0 %v8144
    %v8438 = vpop.f32.mrf.mxu0
    %v8439 = vadd.f32 0.0, %v8438
    %v8440 = vpop.f32.mrf.mxu0
    %8441 = vmatprep.mubr.f32.mxu0 0.0
    %8442 = vmatmul.mubr.f32.gmra.mxu0 %v8147
    %v8443 = vpop.f32.mrf.mxu0
    %v8444 = vadd.f32 0.0, %v8443
    %v8445 = vpop.f32.mrf.mxu0
    %8446 = vmatprep.mubr.f32.mxu0 0.0
    %8447 = vmatmul.mubr.f32.gmra.mxu0 %v8150
    %v8448 = vpop.f32.mrf.mxu0
    %v8449 = vadd.f32 0.0, %v8448
    %v8450 = vpop.f32.mrf.mxu0
    %8451 = vmatprep.mubr.f32.mxu0 0.0
    %8452 = vmatmul.mubr.f32.gmra.mxu0 %v8153
    %v8453 = vpop.f32.mrf.mxu0
    %v8454 = vadd.f32 0.0, %v8453
    %v8455 = vpop.f32.mrf.mxu0
    %8456 = vmatprep.mubr.f32.mxu0 0.0
    %8457 = vmatmul.mubr.f32.gmra.mxu0 %v8156
    %v8458 = vpop.f32.mrf.mxu0
    %v8459 = vadd.f32 0.0, %v8458
    %v8460 = vpop.f32.mrf.mxu0
    %8461 = vmatprep.mubr.f32.mxu0 0.0
    %8462 = vmatmul.mubr.f32.gmra.mxu0 %v8159
    %v8463 = vpop.f32.mrf.mxu0
    %v8464 = vadd.f32 0.0, %v8463
    %v8465 = vpop.f32.mrf.mxu0
    %8466 = vmatprep.mubr.f32.mxu0 0.0
    %8467 = vmatmul.mubr.f32.gmra.mxu0 %v8162
    %v8468 = vpop.f32.mrf.mxu0
    %v8469 = vadd.f32 0.0, %v8468
    %v8470 = vpop.f32.mrf.mxu0
    %8471 = vmatprep.mubr.f32.mxu0 0.0
    %8472 = vmatmul.mubr.f32.gmra.mxu0 %v8165
    %v8473 = vpop.f32.mrf.mxu0
    %v8474 = vadd.f32 0.0, %v8473
    %v8475 = vpop.f32.mrf.mxu0
    %8476 = vmatprep.mubr.f32.mxu0 0.0
    %8477 = vmatmul.mubr.f32.gmra.mxu0 %v8168
    %v8478 = vpop.f32.mrf.mxu0
    %v8479 = vadd.f32 0.0, %v8478
    %v8480 = vpop.f32.mrf.mxu0
    %8481 = vmatprep.mubr.f32.mxu0 0.0
    %8482 = vmatmul.mubr.f32.gmra.mxu0 %v8171
    %v8483 = vpop.f32.mrf.mxu0
    %v8484 = vadd.f32 0.0, %v8483
    %v8485 = vpop.f32.mrf.mxu0
    %8486 = vmatprep.mubr.f32.mxu0 0.0
    %8487 = vmatmul.mubr.f32.gmra.mxu0 %v8174
    %v8488 = vpop.f32.mrf.mxu0
    %v8489 = vadd.f32 0.0, %v8488
    %v8490 = vpop.f32.mrf.mxu0
    %8491 = vmatprep.mubr.f32.mxu0 0.0
    %8492 = vmatmul.mubr.f32.gmra.mxu0 %v8177
    %v8493 = vpop.f32.mrf.mxu0
    %v8494 = vadd.f32 0.0, %v8493
    %v8495 = vpop.f32.mrf.mxu0
    %8496 = vmatprep.mubr.f32.mxu0 0.0
    %8497 = vmatmul.mubr.f32.gmra.mxu0 %v8180
    %v8498 = vpop.f32.mrf.mxu0
    %v8499 = vadd.f32 0.0, %v8498
    %v8500 = vpop.f32.mrf.mxu0
    %8501 = vmatprep.mubr.f32.mxu0 0.0
    %8502 = vmatmul.mubr.f32.gmra.mxu0 %v8183
    %v8503 = vpop.f32.mrf.mxu0
    %v8504 = vadd.f32 0.0, %v8503
    %v8505 = vpop.f32.mrf.mxu0
    %8506 = vmatprep.mubr.f32.mxu0 0.0
    %8507 = vmatmul.mubr.f32.gmra.mxu0 %v8186
    %v8508 = vpop.f32.mrf.mxu0
    %v8509 = vadd.f32 0.0, %v8508
    %v8510 = vpop.f32.mrf.mxu0
    %8511 = vmatprep.mubr.f32.mxu0 0.0
    %8512 = vmatmul.mubr.f32.gmra.mxu0 %v8189
    %v8513 = vpop.f32.mrf.mxu0
    %v8514 = vadd.f32 0.0, %v8513
    %v8515 = vpop.f32.mrf.mxu0
    %8516 = vmatprep.mubr.f32.mxu0 0.0
    %8517 = vmatmul.mubr.f32.gmra.mxu0 %v8192
    %v8518 = vpop.f32.mrf.mxu0
    %v8519 = vadd.f32 0.0, %v8518
    %v8520 = vpop.f32.mrf.mxu0
    %8521 = vmatprep.mubr.f32.mxu0 0.0
    %8522 = vmatmul.mubr.f32.gmra.mxu0 %v8195
    %v8523 = vpop.f32.mrf.mxu0
    %v8524 = vadd.f32 0.0, %v8523
    %v8525 = vpop.f32.mrf.mxu0
    %8526 = vmatprep.mubr.f32.mxu0 0.0
    %8527 = vmatmul.mubr.f32.gmra.mxu0 %v8198
    %v8528 = vpop.f32.mrf.mxu0
    %v8529 = vadd.f32 0.0, %v8528
    %v8530 = vpop.f32.mrf.mxu0
    %8531 = vmatprep.mubr.f32.mxu0 0.0
    %8532 = vmatmul.mubr.f32.gmra.mxu0 %v8201
    %v8533 = vpop.f32.mrf.mxu0
    %v8534 = vadd.f32 0.0, %v8533
    %v8535 = vpop.f32.mrf.mxu0
    %8536 = vmatprep.mubr.f32.mxu0 0.0
    %8537 = vmatmul.mubr.f32.gmra.mxu0 %v8204
    %v8538 = vpop.f32.mrf.mxu0
    %v8539 = vadd.f32 0.0, %v8538
    %v8540 = vpop.f32.mrf.mxu0
    %8541 = vmatprep.mubr.f32.mxu0 0.0
    %8542 = vmatmul.mubr.f32.gmra.mxu0 %v8207
    %v8543 = vpop.f32.mrf.mxu0
    %v8544 = vadd.f32 0.0, %v8543
    %v8545 = vpop.f32.mrf.mxu0
    %8546 = vmatprep.mubr.f32.mxu0 0.0
    %8547 = vmatmul.mubr.f32.gmra.mxu0 %v8210
    %v8548 = vpop.f32.mrf.mxu0
    %v8549 = vadd.f32 0.0, %v8548
    %v8550 = vpop.f32.mrf.mxu0
    %8551 = vmatprep.mubr.f32.mxu0 0.0
    %8552 = vmatmul.mubr.f32.gmra.mxu0 %v8213
    %v8553 = vpop.f32.mrf.mxu0
    %v8554 = vadd.f32 0.0, %v8553
    %v8555 = vpop.f32.mrf.mxu0
    %8556 = vmatprep.mubr.f32.mxu0 0.0
    %8557 = vmatmul.mubr.f32.gmra.mxu0 %v8216
    %v8558 = vpop.f32.mrf.mxu0
    %v8559 = vadd.f32 0.0, %v8558
    %v8560 = vpop.f32.mrf.mxu0
    %8561 = vmatprep.mubr.f32.mxu0 0.0
    %8562 = vmatmul.mubr.f32.gmra.mxu0 %v8219
    %v8563 = vpop.f32.mrf.mxu0
    %v8564 = vadd.f32 0.0, %v8563
    %v8565 = vpop.f32.mrf.mxu0
    %8566 = vmatprep.mubr.f32.mxu0 0.0
    %8567 = vmatmul.mubr.f32.gmra.mxu0 %v8222
    %v8568 = vpop.f32.mrf.mxu0
    %v8569 = vadd.f32 0.0, %v8568
    %v8570 = vpop.f32.mrf.mxu0
    %8571 = vmatprep.mubr.f32.mxu0 0.0
    %8572 = vmatmul.mubr.f32.gmra.mxu0 %v8225
    %v8573 = vpop.f32.mrf.mxu0
    %v8574 = vadd.f32 0.0, %v8573
    %v8575 = vpop.f32.mrf.mxu0
    %8576 = vmatprep.mubr.f32.mxu0 0.0
    %8577 = vmatmul.mubr.f32.gmra.mxu0 %v8228
    %v8578 = vpop.f32.mrf.mxu0
    %v8579 = vadd.f32 0.0, %v8578
    %v8580 = vpop.f32.mrf.mxu0
    %8581 = vmatprep.mubr.f32.mxu0 0.0
    %8582 = vmatmul.mubr.f32.gmra.mxu0 %v8231
    %v8583 = vpop.f32.mrf.mxu0
    %v8584 = vadd.f32 0.0, %v8583
    %v8585 = vpop.f32.mrf.mxu0
    %8586 = vmatprep.mubr.f32.mxu0 0.0
    %8587 = vmatmul.mubr.f32.gmra.mxu0 %v8234
    %v8588 = vpop.f32.mrf.mxu0
    %v8589 = vadd.f32 0.0, %v8588
    %v8590 = vpop.f32.mrf.mxu0
    %8591 = vmatprep.mubr.f32.mxu0 0.0
    %8592 = vmatmul.mubr.f32.gmra.mxu0 %v8237
    %v8593 = vpop.f32.mrf.mxu0
    %v8594 = vadd.f32 0.0, %v8593
    %v8595 = vpop.f32.mrf.mxu0
    %8596 = vmatprep.mubr.f32.mxu0 0.0
    %8597 = vmatmul.mubr.f32.gmra.mxu0 %v8240
    %v8598 = vpop.f32.mrf.mxu0
    %v8599 = vadd.f32 0.0, %v8598
    %v8600 = vpop.f32.mrf.mxu0
    %8601 = vmatprep.mubr.f32.mxu0 0.0
    %8602 = vmatmul.mubr.f32.gmra.mxu0 %v8243
    %v8603 = vpop.f32.mrf.mxu0
    %v8604 = vadd.f32 0.0, %v8603
    %v8605 = vpop.f32.mrf.mxu0
    %8606 = vmatprep.mubr.f32.mxu0 0.0
    %8607 = vmatmul.mubr.f32.gmra.mxu0 %v8246
    %v8608 = vpop.f32.mrf.mxu0
    %v8609 = vadd.f32 0.0, %v8608
    %v8610 = vpop.f32.mrf.mxu0
    %8611 = vmatprep.mubr.f32.mxu0 0.0
    %8612 = vmatmul.mubr.f32.gmra.mxu0 %v8249
    %v8613 = vpop.f32.mrf.mxu0
    %v8614 = vadd.f32 0.0, %v8613
    %v8615 = vpop.f32.mrf.mxu0
    %8616 = vmatprep.mubr.f32.mxu0 0.0
    %8617 = vmatmul.mubr.f32.gmra.mxu0 %v8252
    %v8618 = vpop.f32.mrf.mxu0
    %v8619 = vadd.f32 0.0, %v8618
    %v8620 = vpop.f32.mrf.mxu0
    %8621 = vmatprep.mubr.f32.mxu0 0.0
    %8622 = vmatmul.mubr.f32.gmra.mxu0 %v8255
    %v8623 = vpop.f32.mrf.mxu0
    %v8624 = vadd.f32 0.0, %v8623
    %v8625 = vpop.f32.mrf.mxu0
    %8626 = vmatprep.mubr.f32.mxu0 0.0
    %8627 = vmatmul.mubr.f32.gmra.mxu0 %v8258
    %v8628 = vpop.f32.mrf.mxu0
    %v8629 = vadd.f32 0.0, %v8628
    %v8630 = vpop.f32.mrf.mxu0
    %8631 = vmatprep.mubr.f32.mxu0 0.0
    %8632 = vmatmul.mubr.f32.gmra.mxu0 %v8261
    %v8633 = vpop.f32.mrf.mxu0
    %v8634 = vadd.f32 0.0, %v8633
    %v8635 = vpop.f32.mrf.mxu0
    %8636 = vmatprep.mubr.f32.mxu0 0.0
    %8637 = vmatmul.mubr.f32.gmra.mxu0 %v8264
    %v8638 = vpop.f32.mrf.mxu0
    %v8639 = vadd.f32 0.0, %v8638
    %v8640 = vpop.f32.mrf.mxu0
    %8641 = vmatprep.mubr.f32.mxu0 0.0
    %8642 = vmatmul.mubr.f32.gmra.mxu0 %v8267
    %v8643 = vpop.f32.mrf.mxu0
    %v8644 = vadd.f32 0.0, %v8643
    %v8645 = vpop.f32.mrf.mxu0
    %8646 = vmatprep.mubr.f32.mxu0 0.0
    %8647 = vmatmul.mubr.f32.gmra.mxu0 %v8270
    %v8648 = vpop.f32.mrf.mxu0
    %v8649 = vadd.f32 0.0, %v8648
    %v8650 = vpop.f32.mrf.mxu0
    %8651 = vmatprep.mubr.f32.mxu0 0.0
    %8652 = vmatmul.mubr.f32.gmra.mxu0 %v8273
    %v8653 = vpop.f32.mrf.mxu0
    %v8654 = vadd.f32 0.0, %v8653
    %v8655 = vpop.f32.mrf.mxu0
    %8656 = vmatprep.mubr.f32.mxu0 0.0
    %8657 = vmatmul.mubr.f32.gmra.mxu0 %v8276
    %v8658 = vpop.f32.mrf.mxu0
    %v8659 = vadd.f32 0.0, %v8658
    %v8660 = vpop.f32.mrf.mxu0
    %8661 = vmatprep.mubr.f32.mxu0 0.0
    %8662 = vmatmul.mubr.f32.gmra.mxu0 %v8279
    %v8663 = vpop.f32.mrf.mxu0
    %v8664 = vadd.f32 0.0, %v8663
    %v8665 = vpop.f32.mrf.mxu0
    %8666 = vmatprep.mubr.f32.mxu0 0.0
    %8667 = vmatmul.mubr.f32.gmra.mxu0 %v8282
    %v8668 = vpop.f32.mrf.mxu0
    %v8669 = vadd.f32 0.0, %v8668
    %v8670 = vpop.f32.mrf.mxu0
    %8671 = vdwg.mxu0
    %v8672 = vsel %vm2965, %v8354, 0.0
    %v8673 = vsel %vm2965, %v8359, 0.0
    %v8674 = vadd.f32 %v8672, %v8673
    %v8675 = vsel %vm2965, %v8364, 0.0
    %v8676 = vadd.f32 %v8674, %v8675
    %v8677 = vsel %vm2965, %v8369, 0.0
    %v8678 = vadd.f32 %v8676, %v8677
    %v8679 = vsel %vm2965, %v8374, 0.0
    %v8680 = vadd.f32 %v8678, %v8679
    %v8681 = vsel %vm2965, %v8379, 0.0
    %v8682 = vadd.f32 %v8680, %v8681
    %v8683 = vsel %vm2965, %v8384, 0.0
    %v8684 = vadd.f32 %v8682, %v8683
    %v8685 = vsel %vm2965, %v8389, 0.0
    %v8686 = vadd.f32 %v8684, %v8685
    %v8687 = vsel %vm2965, %v8394, 0.0
    %v8688 = vadd.f32 %v8686, %v8687
    %v8689 = vsel %vm2965, %v8399, 0.0
    %v8690 = vadd.f32 %v8688, %v8689
    %v8691 = vsel %vm2965, %v8404, 0.0
    %v8692 = vadd.f32 %v8690, %v8691
    %v8693 = vsel %vm2965, %v8409, 0.0
    %v8694 = vadd.f32 %v8692, %v8693
    %v8695 = vsel %vm2965, %v8414, 0.0
    %v8696 = vadd.f32 %v8694, %v8695
    %v8697 = vsel %vm2965, %v8419, 0.0
    %v8698 = vadd.f32 %v8696, %v8697
    %v8699 = vsel %vm2965, %v8424, 0.0
    %v8700 = vadd.f32 %v8698, %v8699
    %v8701 = vsel %vm2965, %v8429, 0.0
    %v8702 = vadd.f32 %v8700, %v8701
    %v8703 = vsel %vm2965, %v8434, 0.0
    %v8704 = vadd.f32 %v8702, %v8703
    %v8705 = vsel %vm2965, %v8439, 0.0
    %v8706 = vadd.f32 %v8704, %v8705
    %v8707 = vsel %vm2965, %v8444, 0.0
    %v8708 = vadd.f32 %v8706, %v8707
    %v8709 = vsel %vm2965, %v8449, 0.0
    %v8710 = vadd.f32 %v8708, %v8709
    %v8711 = vsel %vm2965, %v8454, 0.0
    %v8712 = vadd.f32 %v8710, %v8711
    %v8713 = vsel %vm2965, %v8459, 0.0
    %v8714 = vadd.f32 %v8712, %v8713
    %v8715 = vsel %vm2965, %v8464, 0.0
    %v8716 = vadd.f32 %v8714, %v8715
    %v8717 = vsel %vm2965, %v8469, 0.0
    %v8718 = vadd.f32 %v8716, %v8717
    %v8719 = vsel %vm2965, %v8474, 0.0
    %v8720 = vadd.f32 %v8718, %v8719
    %v8721 = vsel %vm2965, %v8479, 0.0
    %v8722 = vadd.f32 %v8720, %v8721
    %v8723 = vsel %vm2965, %v8484, 0.0
    %v8724 = vadd.f32 %v8722, %v8723
    %v8725 = vsel %vm2965, %v8489, 0.0
    %v8726 = vadd.f32 %v8724, %v8725
    %v8727 = vsel %vm2965, %v8494, 0.0
    %v8728 = vadd.f32 %v8726, %v8727
    %v8729 = vsel %vm2965, %v8499, 0.0
    %v8730 = vadd.f32 %v8728, %v8729
    %v8731 = vsel %vm2965, %v8504, 0.0
    %v8732 = vadd.f32 %v8730, %v8731
    %v8733 = vsel %vm2965, %v8509, 0.0
    %v8734 = vadd.f32 %v8732, %v8733
    %v8735 = vsel %vm2965, %v8514, 0.0
    %v8736 = vadd.f32 %v8734, %v8735
    %v8737 = vsel %vm2965, %v8519, 0.0
    %v8738 = vadd.f32 %v8736, %v8737
    %v8739 = vsel %vm2965, %v8524, 0.0
    %v8740 = vadd.f32 %v8738, %v8739
    %v8741 = vsel %vm2965, %v8529, 0.0
    %v8742 = vadd.f32 %v8740, %v8741
    %v8743 = vsel %vm2965, %v8534, 0.0
    %v8744 = vadd.f32 %v8742, %v8743
    %v8745 = vsel %vm2965, %v8539, 0.0
    %v8746 = vadd.f32 %v8744, %v8745
    %v8747 = vsel %vm2965, %v8544, 0.0
    %v8748 = vadd.f32 %v8746, %v8747
    %v8749 = vsel %vm2965, %v8549, 0.0
    %v8750 = vadd.f32 %v8748, %v8749
    %v8751 = vsel %vm2965, %v8554, 0.0
    %v8752 = vadd.f32 %v8750, %v8751
    %v8753 = vsel %vm2965, %v8559, 0.0
    %v8754 = vadd.f32 %v8752, %v8753
    %v8755 = vsel %vm2965, %v8564, 0.0
    %v8756 = vadd.f32 %v8754, %v8755
    %v8757 = vsel %vm2965, %v8569, 0.0
    %v8758 = vadd.f32 %v8756, %v8757
    %v8759 = vsel %vm2965, %v8574, 0.0
    %v8760 = vadd.f32 %v8758, %v8759
    %v8761 = vsel %vm2965, %v8579, 0.0
    %v8762 = vadd.f32 %v8760, %v8761
    %v8763 = vsel %vm2965, %v8584, 0.0
    %v8764 = vadd.f32 %v8762, %v8763
    %v8765 = vsel %vm2965, %v8589, 0.0
    %v8766 = vadd.f32 %v8764, %v8765
    %v8767 = vsel %vm2965, %v8594, 0.0
    %v8768 = vadd.f32 %v8766, %v8767
    %v8769 = vsel %vm2965, %v8599, 0.0
    %v8770 = vadd.f32 %v8768, %v8769
    %v8771 = vsel %vm2965, %v8604, 0.0
    %v8772 = vadd.f32 %v8770, %v8771
    %v8773 = vsel %vm2965, %v8609, 0.0
    %v8774 = vadd.f32 %v8772, %v8773
    %v8775 = vsel %vm2965, %v8614, 0.0
    %v8776 = vadd.f32 %v8774, %v8775
    %v8777 = vsel %vm2965, %v8619, 0.0
    %v8778 = vadd.f32 %v8776, %v8777
    %v8779 = vsel %vm2965, %v8624, 0.0
    %v8780 = vadd.f32 %v8778, %v8779
    %v8781 = vsel %vm2965, %v8629, 0.0
    %v8782 = vadd.f32 %v8780, %v8781
    %v8783 = vsel %vm2965, %v8634, 0.0
    %v8784 = vadd.f32 %v8782, %v8783
    %v8785 = vsel %vm2965, %v8639, 0.0
    %v8786 = vadd.f32 %v8784, %v8785
    %v8787 = vsel %vm2965, %v8644, 0.0
    %v8788 = vadd.f32 %v8786, %v8787
    %v8789 = vsel %vm2965, %v8649, 0.0
    %v8790 = vadd.f32 %v8788, %v8789
    %v8791 = vsel %vm2965, %v8654, 0.0
    %v8792 = vadd.f32 %v8790, %v8791
    %v8793 = vsel %vm2965, %v8659, 0.0
    %v8794 = vadd.f32 %v8792, %v8793
    %v8795 = vsel %vm2965, %v8664, 0.0
    %v8796 = vadd.f32 %v8794, %v8795
    %v8797 = vsel %vm2965, %v8669, 0.0
    %v8798 = vadd.f32 %v8796, %v8797
    %v8799 = vrot.slane %v8798, 4
    %v8800 = vadd.f32 %v8798, %v8799
    %v8801 = vrot.slane %v8800, 2
    %v8802 = vadd.f32 %v8800, %v8801
    %v8803 = vrot.slane %v8802, 1
    %v8804 = vadd.f32 %v8802, %v8803
    %v8805 = vmul.f32 %v8354, %v8354
    %v8806 = vmul.f32 %v8359, %v8359
    %v8807 = vmul.f32 %v8364, %v8364
    %v8808 = vmul.f32 %v8369, %v8369
    %v8809 = vmul.f32 %v8374, %v8374
    %v8810 = vmul.f32 %v8379, %v8379
    %v8811 = vmul.f32 %v8384, %v8384
    %v8812 = vmul.f32 %v8389, %v8389
    %v8813 = vmul.f32 %v8394, %v8394
    %v8814 = vmul.f32 %v8399, %v8399
    %v8815 = vmul.f32 %v8404, %v8404
    %v8816 = vmul.f32 %v8409, %v8409
    %v8817 = vmul.f32 %v8414, %v8414
    %v8818 = vmul.f32 %v8419, %v8419
    %v8819 = vmul.f32 %v8424, %v8424
    %v8820 = vmul.f32 %v8429, %v8429
    %v8821 = vmul.f32 %v8434, %v8434
    %v8822 = vmul.f32 %v8439, %v8439
    %v8823 = vmul.f32 %v8444, %v8444
    %v8824 = vmul.f32 %v8449, %v8449
    %v8825 = vmul.f32 %v8454, %v8454
    %v8826 = vmul.f32 %v8459, %v8459
    %v8827 = vmul.f32 %v8464, %v8464
    %v8828 = vmul.f32 %v8469, %v8469
    %v8829 = vmul.f32 %v8474, %v8474
    %v8830 = vmul.f32 %v8479, %v8479
    %v8831 = vmul.f32 %v8484, %v8484
    %v8832 = vmul.f32 %v8489, %v8489
    %v8833 = vmul.f32 %v8494, %v8494
    %v8834 = vmul.f32 %v8499, %v8499
    %v8835 = vmul.f32 %v8504, %v8504
    %v8836 = vmul.f32 %v8509, %v8509
    %v8837 = vmul.f32 %v8514, %v8514
    %v8838 = vmul.f32 %v8519, %v8519
    %v8839 = vmul.f32 %v8524, %v8524
    %v8840 = vmul.f32 %v8529, %v8529
    %v8841 = vmul.f32 %v8534, %v8534
    %v8842 = vmul.f32 %v8539, %v8539
    %v8843 = vmul.f32 %v8544, %v8544
    %v8844 = vmul.f32 %v8549, %v8549
    %v8845 = vmul.f32 %v8554, %v8554
    %v8846 = vmul.f32 %v8559, %v8559
    %v8847 = vmul.f32 %v8564, %v8564
    %v8848 = vmul.f32 %v8569, %v8569
    %v8849 = vmul.f32 %v8574, %v8574
    %v8850 = vmul.f32 %v8579, %v8579
    %v8851 = vmul.f32 %v8584, %v8584
    %v8852 = vmul.f32 %v8589, %v8589
    %v8853 = vmul.f32 %v8594, %v8594
    %v8854 = vmul.f32 %v8599, %v8599
    %v8855 = vmul.f32 %v8604, %v8604
    %v8856 = vmul.f32 %v8609, %v8609
    %v8857 = vmul.f32 %v8614, %v8614
    %v8858 = vmul.f32 %v8619, %v8619
    %v8859 = vmul.f32 %v8624, %v8624
    %v8860 = vmul.f32 %v8629, %v8629
    %v8861 = vmul.f32 %v8634, %v8634
    %v8862 = vmul.f32 %v8639, %v8639
    %v8863 = vmul.f32 %v8644, %v8644
    %v8864 = vmul.f32 %v8649, %v8649
    %v8865 = vmul.f32 %v8654, %v8654
    %v8866 = vmul.f32 %v8659, %v8659
    %v8867 = vmul.f32 %v8664, %v8664
    %v8868 = vmul.f32 %v8669, %v8669
    %v8869 = vsel %vm2965, %v8805, 0.0
    %v8870 = vsel %vm2965, %v8806, 0.0
    %v8871 = vadd.f32 %v8869, %v8870
    %v8872 = vsel %vm2965, %v8807, 0.0
    %v8873 = vadd.f32 %v8871, %v8872
    %v8874 = vsel %vm2965, %v8808, 0.0
    %v8875 = vadd.f32 %v8873, %v8874
    %v8876 = vsel %vm2965, %v8809, 0.0
    %v8877 = vadd.f32 %v8875, %v8876
    %v8878 = vsel %vm2965, %v8810, 0.0
    %v8879 = vadd.f32 %v8877, %v8878
    %v8880 = vsel %vm2965, %v8811, 0.0
    %v8881 = vadd.f32 %v8879, %v8880
    %v8882 = vsel %vm2965, %v8812, 0.0
    %v8883 = vadd.f32 %v8881, %v8882
    %v8884 = vsel %vm2965, %v8813, 0.0
    %v8885 = vadd.f32 %v8883, %v8884
    %v8886 = vsel %vm2965, %v8814, 0.0
    %v8887 = vadd.f32 %v8885, %v8886
    %v8888 = vsel %vm2965, %v8815, 0.0
    %v8889 = vadd.f32 %v8887, %v8888
    %v8890 = vsel %vm2965, %v8816, 0.0
    %v8891 = vadd.f32 %v8889, %v8890
    %v8892 = vsel %vm2965, %v8817, 0.0
    %v8893 = vadd.f32 %v8891, %v8892
    %v8894 = vsel %vm2965, %v8818, 0.0
    %v8895 = vadd.f32 %v8893, %v8894
    %v8896 = vsel %vm2965, %v8819, 0.0
    %v8897 = vadd.f32 %v8895, %v8896
    %v8898 = vsel %vm2965, %v8820, 0.0
    %v8899 = vadd.f32 %v8897, %v8898
    %v8900 = vsel %vm2965, %v8821, 0.0
    %v8901 = vadd.f32 %v8899, %v8900
    %v8902 = vsel %vm2965, %v8822, 0.0
    %v8903 = vadd.f32 %v8901, %v8902
    %v8904 = vsel %vm2965, %v8823, 0.0
    %v8905 = vadd.f32 %v8903, %v8904
    %v8906 = vsel %vm2965, %v8824, 0.0
    %v8907 = vadd.f32 %v8905, %v8906
    %v8908 = vsel %vm2965, %v8825, 0.0
    %v8909 = vadd.f32 %v8907, %v8908
    %v8910 = vsel %vm2965, %v8826, 0.0
    %v8911 = vadd.f32 %v8909, %v8910
    %v8912 = vsel %vm2965, %v8827, 0.0
    %v8913 = vadd.f32 %v8911, %v8912
    %v8914 = vsel %vm2965, %v8828, 0.0
    %v8915 = vadd.f32 %v8913, %v8914
    %v8916 = vsel %vm2965, %v8829, 0.0
    %v8917 = vadd.f32 %v8915, %v8916
    %v8918 = vsel %vm2965, %v8830, 0.0
    %v8919 = vadd.f32 %v8917, %v8918
    %v8920 = vsel %vm2965, %v8831, 0.0
    %v8921 = vadd.f32 %v8919, %v8920
    %v8922 = vsel %vm2965, %v8832, 0.0
    %v8923 = vadd.f32 %v8921, %v8922
    %v8924 = vsel %vm2965, %v8833, 0.0
    %v8925 = vadd.f32 %v8923, %v8924
    %v8926 = vsel %vm2965, %v8834, 0.0
    %v8927 = vadd.f32 %v8925, %v8926
    %v8928 = vsel %vm2965, %v8835, 0.0
    %v8929 = vadd.f32 %v8927, %v8928
    %v8930 = vsel %vm2965, %v8836, 0.0
    %v8931 = vadd.f32 %v8929, %v8930
    %v8932 = vsel %vm2965, %v8837, 0.0
    %v8933 = vadd.f32 %v8931, %v8932
    %v8934 = vsel %vm2965, %v8838, 0.0
    %v8935 = vadd.f32 %v8933, %v8934
    %v8936 = vsel %vm2965, %v8839, 0.0
    %v8937 = vadd.f32 %v8935, %v8936
    %v8938 = vsel %vm2965, %v8840, 0.0
    %v8939 = vadd.f32 %v8937, %v8938
    %v8940 = vsel %vm2965, %v8841, 0.0
    %v8941 = vadd.f32 %v8939, %v8940
    %v8942 = vsel %vm2965, %v8842, 0.0
    %v8943 = vadd.f32 %v8941, %v8942
    %v8944 = vsel %vm2965, %v8843, 0.0
    %v8945 = vadd.f32 %v8943, %v8944
    %v8946 = vsel %vm2965, %v8844, 0.0
    %v8947 = vadd.f32 %v8945, %v8946
    %v8948 = vsel %vm2965, %v8845, 0.0
    %v8949 = vadd.f32 %v8947, %v8948
    %v8950 = vsel %vm2965, %v8846, 0.0
    %v8951 = vadd.f32 %v8949, %v8950
    %v8952 = vsel %vm2965, %v8847, 0.0
    %v8953 = vadd.f32 %v8951, %v8952
    %v8954 = vsel %vm2965, %v8848, 0.0
    %v8955 = vadd.f32 %v8953, %v8954
    %v8956 = vsel %vm2965, %v8849, 0.0
    %v8957 = vadd.f32 %v8955, %v8956
    %v8958 = vsel %vm2965, %v8850, 0.0
    %v8959 = vadd.f32 %v8957, %v8958
    %v8960 = vsel %vm2965, %v8851, 0.0
    %v8961 = vadd.f32 %v8959, %v8960
    %v8962 = vsel %vm2965, %v8852, 0.0
    %v8963 = vadd.f32 %v8961, %v8962
    %v8964 = vsel %vm2965, %v8853, 0.0
    %v8965 = vadd.f32 %v8963, %v8964
    %v8966 = vsel %vm2965, %v8854, 0.0
    %v8967 = vadd.f32 %v8965, %v8966
    %v8968 = vsel %vm2965, %v8855, 0.0
    %v8969 = vadd.f32 %v8967, %v8968
    %v8970 = vsel %vm2965, %v8856, 0.0
    %v8971 = vadd.f32 %v8969, %v8970
    %v8972 = vsel %vm2965, %v8857, 0.0
    %v8973 = vadd.f32 %v8971, %v8972
    %v8974 = vsel %vm2965, %v8858, 0.0
    %v8975 = vadd.f32 %v8973, %v8974
    %v8976 = vsel %vm2965, %v8859, 0.0
    %v8977 = vadd.f32 %v8975, %v8976
    %v8978 = vsel %vm2965, %v8860, 0.0
    %v8979 = vadd.f32 %v8977, %v8978
    %v8980 = vsel %vm2965, %v8861, 0.0
    %v8981 = vadd.f32 %v8979, %v8980
    %v8982 = vsel %vm2965, %v8862, 0.0
    %v8983 = vadd.f32 %v8981, %v8982
    %v8984 = vsel %vm2965, %v8863, 0.0
    %v8985 = vadd.f32 %v8983, %v8984
    %v8986 = vsel %vm2965, %v8864, 0.0
    %v8987 = vadd.f32 %v8985, %v8986
    %v8988 = vsel %vm2965, %v8865, 0.0
    %v8989 = vadd.f32 %v8987, %v8988
    %v8990 = vsel %vm2965, %v8866, 0.0
    %v8991 = vadd.f32 %v8989, %v8990
    %v8992 = vsel %vm2965, %v8867, 0.0
    %v8993 = vadd.f32 %v8991, %v8992
    %v8994 = vsel %vm2965, %v8868, 0.0
    %v8995 = vadd.f32 %v8993, %v8994
    %v8996 = vrot.slane %v8995, 4
    %v8997 = vadd.f32 %v8995, %v8996
    %v8998 = vrot.slane %v8997, 2
    %v8999 = vadd.f32 %v8997, %v8998
    %v9000 = vrot.slane %v8999, 1
    %v9001 = vadd.f32 %v8999, %v9000
    %v9002 = vmul.f32 %v8804, 0.001953125
    %v9003 = vmul.f32 %v9001, 0.001953125
    %v9004 = vmul.f32 %v9002, %v9002
    %v9005 = vsub.f32 %v9003, %v9004
    %v9006 = vmax.f32 %v9005, 0.0
    %v9007 = vld [vmem:[%s5] sm:$0x1]
    %v9008 = vadd.f32 %v9006, 1e-05
    %v9009 = vrsqrt.pop %v9008
    %v9010 = vmul.f32 %v9007, %v9009
    %v9011 = vld [vmem:[%s6] sm:$0x1]
    %v9012 = vmul.f32 %v9002, %v9010
    %v9013 = vsub.f32 %v9011, %v9012
    %v9015 = vlaneseq
    %v9016 = vshrl.u32 %v9015, 7
    %v9017 = vsub.s32 0, %v9016
    %v9018 = vrot.slane %v9010, %v9017
    %v9020 = vmul.f32 %v8354, %v9018
    %v9021 = vmul.f32 %v8359, %v9018
    %v9022 = vmul.f32 %v8364, %v9018
    %v9023 = vmul.f32 %v8369, %v9018
    %v9024 = vmul.f32 %v8374, %v9018
    %v9025 = vmul.f32 %v8379, %v9018
    %v9026 = vmul.f32 %v8384, %v9018
    %v9027 = vmul.f32 %v8389, %v9018
    %v9028 = vmul.f32 %v8394, %v9018
    %v9029 = vmul.f32 %v8399, %v9018
    %v9030 = vmul.f32 %v8404, %v9018
    %v9031 = vmul.f32 %v8409, %v9018
    %v9032 = vmul.f32 %v8414, %v9018
    %v9033 = vmul.f32 %v8419, %v9018
    %v9034 = vmul.f32 %v8424, %v9018
    %v9035 = vmul.f32 %v8429, %v9018
    %v9036 = vmul.f32 %v8434, %v9018
    %v9037 = vmul.f32 %v8439, %v9018
    %v9038 = vmul.f32 %v8444, %v9018
    %v9039 = vmul.f32 %v8449, %v9018
    %v9040 = vmul.f32 %v8454, %v9018
    %v9041 = vmul.f32 %v8459, %v9018
    %v9042 = vmul.f32 %v8464, %v9018
    %v9043 = vmul.f32 %v8469, %v9018
    %v9044 = vmul.f32 %v8474, %v9018
    %v9045 = vmul.f32 %v8479, %v9018
    %v9046 = vmul.f32 %v8484, %v9018
    %v9047 = vmul.f32 %v8489, %v9018
    %v9048 = vmul.f32 %v8494, %v9018
    %v9049 = vmul.f32 %v8499, %v9018
    %v9050 = vmul.f32 %v8504, %v9018
    %v9051 = vmul.f32 %v8509, %v9018
    %v9052 = vmul.f32 %v8514, %v9018
    %v9053 = vmul.f32 %v8519, %v9018
    %v9054 = vmul.f32 %v8524, %v9018
    %v9055 = vmul.f32 %v8529, %v9018
    %v9056 = vmul.f32 %v8534, %v9018
    %v9057 = vmul.f32 %v8539, %v9018
    %v9058 = vmul.f32 %v8544, %v9018
    %v9059 = vmul.f32 %v8549, %v9018
    %v9060 = vmul.f32 %v8554, %v9018
    %v9061 = vmul.f32 %v8559, %v9018
    %v9062 = vmul.f32 %v8564, %v9018
    %v9063 = vmul.f32 %v8569, %v9018
    %v9064 = vmul.f32 %v8574, %v9018
    %v9065 = vmul.f32 %v8579, %v9018
    %v9066 = vmul.f32 %v8584, %v9018
    %v9067 = vmul.f32 %v8589, %v9018
    %v9068 = vmul.f32 %v8594, %v9018
    %v9069 = vmul.f32 %v8599, %v9018
    %v9070 = vmul.f32 %v8604, %v9018
    %v9071 = vmul.f32 %v8609, %v9018
    %v9072 = vmul.f32 %v8614, %v9018
    %v9073 = vmul.f32 %v8619, %v9018
    %v9074 = vmul.f32 %v8624, %v9018
    %v9075 = vmul.f32 %v8629, %v9018
    %v9076 = vmul.f32 %v8634, %v9018
    %v9077 = vmul.f32 %v8639, %v9018
    %v9078 = vmul.f32 %v8644, %v9018
    %v9079 = vmul.f32 %v8649, %v9018
    %v9080 = vmul.f32 %v8654, %v9018
    %v9081 = vmul.f32 %v8659, %v9018
    %v9082 = vmul.f32 %v8664, %v9018
    %v9083 = vmul.f32 %v8669, %v9018
    %v9085 = vlaneseq
    %v9086 = vshrl.u32 %v9085, 7
    %v9087 = vsub.s32 0, %v9086
    %v9088 = vrot.slane %v9013, %v9087
    %v9090 = vadd.f32 %v9020, %v9088
    %v9091 = vadd.f32 %v9021, %v9088
    %v9092 = vadd.f32 %v9022, %v9088
    %v9093 = vadd.f32 %v9023, %v9088
    %v9094 = vadd.f32 %v9024, %v9088
    %v9095 = vadd.f32 %v9025, %v9088
    %v9096 = vadd.f32 %v9026, %v9088
    %v9097 = vadd.f32 %v9027, %v9088
    %v9098 = vadd.f32 %v9028, %v9088
    %v9099 = vadd.f32 %v9029, %v9088
    %v9100 = vadd.f32 %v9030, %v9088
    %v9101 = vadd.f32 %v9031, %v9088
    %v9102 = vadd.f32 %v9032, %v9088
    %v9103 = vadd.f32 %v9033, %v9088
    %v9104 = vadd.f32 %v9034, %v9088
    %v9105 = vadd.f32 %v9035, %v9088
    %v9106 = vadd.f32 %v9036, %v9088
    %v9107 = vadd.f32 %v9037, %v9088
    %v9108 = vadd.f32 %v9038, %v9088
    %v9109 = vadd.f32 %v9039, %v9088
    %v9110 = vadd.f32 %v9040, %v9088
    %v9111 = vadd.f32 %v9041, %v9088
    %v9112 = vadd.f32 %v9042, %v9088
    %v9113 = vadd.f32 %v9043, %v9088
    %v9114 = vadd.f32 %v9044, %v9088
    %v9115 = vadd.f32 %v9045, %v9088
    %v9116 = vadd.f32 %v9046, %v9088
    %v9117 = vadd.f32 %v9047, %v9088
    %v9118 = vadd.f32 %v9048, %v9088
    %v9119 = vadd.f32 %v9049, %v9088
    %v9120 = vadd.f32 %v9050, %v9088
    %v9121 = vadd.f32 %v9051, %v9088
    %v9122 = vadd.f32 %v9052, %v9088
    %v9123 = vadd.f32 %v9053, %v9088
    %v9124 = vadd.f32 %v9054, %v9088
    %v9125 = vadd.f32 %v9055, %v9088
    %v9126 = vadd.f32 %v9056, %v9088
    %v9127 = vadd.f32 %v9057, %v9088
    %v9128 = vadd.f32 %v9058, %v9088
    %v9129 = vadd.f32 %v9059, %v9088
    %v9130 = vadd.f32 %v9060, %v9088
    %v9131 = vadd.f32 %v9061, %v9088
    %v9132 = vadd.f32 %v9062, %v9088
    %v9133 = vadd.f32 %v9063, %v9088
    %v9134 = vadd.f32 %v9064, %v9088
    %v9135 = vadd.f32 %v9065, %v9088
    %v9136 = vadd.f32 %v9066, %v9088
    %v9137 = vadd.f32 %v9067, %v9088
    %v9138 = vadd.f32 %v9068, %v9088
    %v9139 = vadd.f32 %v9069, %v9088
    %v9140 = vadd.f32 %v9070, %v9088
    %v9141 = vadd.f32 %v9071, %v9088
    %v9142 = vadd.f32 %v9072, %v9088
    %v9143 = vadd.f32 %v9073, %v9088
    %v9144 = vadd.f32 %v9074, %v9088
    %v9145 = vadd.f32 %v9075, %v9088
    %v9146 = vadd.f32 %v9076, %v9088
    %v9147 = vadd.f32 %v9077, %v9088
    %v9148 = vadd.f32 %v9078, %v9088
    %v9149 = vadd.f32 %v9079, %v9088
    %v9150 = vadd.f32 %v9080, %v9088
    %v9151 = vadd.f32 %v9081, %v9088
    %v9152 = vadd.f32 %v9082, %v9088
    %v9153 = vadd.f32 %v9083, %v9088
    %v9154 = vmax.f32 %v9090, 0.0
    %v9155 = vmax.f32 %v9091, 0.0
    %v9156 = vmax.f32 %v9092, 0.0
    %v9157 = vmax.f32 %v9093, 0.0
    %v9158 = vmax.f32 %v9094, 0.0
    %v9159 = vmax.f32 %v9095, 0.0
    %v9160 = vmax.f32 %v9096, 0.0
    %v9161 = vmax.f32 %v9097, 0.0
    %v9162 = vmax.f32 %v9098, 0.0
    %v9163 = vmax.f32 %v9099, 0.0
    %v9164 = vmax.f32 %v9100, 0.0
    %v9165 = vmax.f32 %v9101, 0.0
    %v9166 = vmax.f32 %v9102, 0.0
    %v9167 = vmax.f32 %v9103, 0.0
    %v9168 = vmax.f32 %v9104, 0.0
    %v9169 = vmax.f32 %v9105, 0.0
    %v9170 = vmax.f32 %v9106, 0.0
    %v9171 = vmax.f32 %v9107, 0.0
    %v9172 = vmax.f32 %v9108, 0.0
    %v9173 = vmax.f32 %v9109, 0.0
    %v9174 = vmax.f32 %v9110, 0.0
    %v9175 = vmax.f32 %v9111, 0.0
    %v9176 = vmax.f32 %v9112, 0.0
    %v9177 = vmax.f32 %v9113, 0.0
    %v9178 = vmax.f32 %v9114, 0.0
    %v9179 = vmax.f32 %v9115, 0.0
    %v9180 = vmax.f32 %v9116, 0.0
    %v9181 = vmax.f32 %v9117, 0.0
    %v9182 = vmax.f32 %v9118, 0.0
    %v9183 = vmax.f32 %v9119, 0.0
    %v9184 = vmax.f32 %v9120, 0.0
    %v9185 = vmax.f32 %v9121, 0.0
    %v9186 = vmax.f32 %v9122, 0.0
    %v9187 = vmax.f32 %v9123, 0.0
    %v9188 = vmax.f32 %v9124, 0.0
    %v9189 = vmax.f32 %v9125, 0.0
    %v9190 = vmax.f32 %v9126, 0.0
    %v9191 = vmax.f32 %v9127, 0.0
    %v9192 = vmax.f32 %v9128, 0.0
    %v9193 = vmax.f32 %v9129, 0.0
    %v9194 = vmax.f32 %v9130, 0.0
    %v9195 = vmax.f32 %v9131, 0.0
    %v9196 = vmax.f32 %v9132, 0.0
    %v9197 = vmax.f32 %v9133, 0.0
    %v9198 = vmax.f32 %v9134, 0.0
    %v9199 = vmax.f32 %v9135, 0.0
    %v9200 = vmax.f32 %v9136, 0.0
    %v9201 = vmax.f32 %v9137, 0.0
    %v9202 = vmax.f32 %v9138, 0.0
    %v9203 = vmax.f32 %v9139, 0.0
    %v9204 = vmax.f32 %v9140, 0.0
    %v9205 = vmax.f32 %v9141, 0.0
    %v9206 = vmax.f32 %v9142, 0.0
    %v9207 = vmax.f32 %v9143, 0.0
    %v9208 = vmax.f32 %v9144, 0.0
    %v9209 = vmax.f32 %v9145, 0.0
    %v9210 = vmax.f32 %v9146, 0.0
    %v9211 = vmax.f32 %v9147, 0.0
    %v9212 = vmax.f32 %v9148, 0.0
    %v9213 = vmax.f32 %v9149, 0.0
    %v9214 = vmax.f32 %v9150, 0.0
    %v9215 = vmax.f32 %v9151, 0.0
    %v9216 = vmax.f32 %v9152, 0.0
    %v9217 = vmax.f32 %v9153, 0.0
    %9282 = vrot.lane.b32.xlu0 %v9154, 12
    %v9283 = vpop.permute.xlu0 %9282
    %9284 = vrot.lane.b32.xlu0 %v9155, 12
    %v9285 = vpop.permute.xlu0 %9284
    %9286 = vrot.lane.b32.xlu0 %v9156, 12
    %v9287 = vpop.permute.xlu0 %9286
    %9288 = vrot.lane.b32.xlu0 %v9157, 12
    %v9289 = vpop.permute.xlu0 %9288
    %9290 = vrot.lane.b32.xlu0 %v9158, 12
    %v9291 = vpop.permute.xlu0 %9290
    %9292 = vrot.lane.b32.xlu0 %v9159, 12
    %v9293 = vpop.permute.xlu0 %9292
    %9294 = vrot.lane.b32.xlu0 %v9160, 12
    %v9295 = vpop.permute.xlu0 %9294
    %9296 = vrot.lane.b32.xlu0 %v9161, 12
    %v9297 = vpop.permute.xlu0 %9296
    %9298 = vrot.lane.b32.xlu0 %v9162, 12
    %v9299 = vpop.permute.xlu0 %9298
    %9300 = vrot.lane.b32.xlu0 %v9163, 12
    %v9301 = vpop.permute.xlu0 %9300
    %9302 = vrot.lane.b32.xlu0 %v9164, 12
    %v9303 = vpop.permute.xlu0 %9302
    %9304 = vrot.lane.b32.xlu0 %v9165, 12
    %v9305 = vpop.permute.xlu0 %9304
    %9306 = vrot.lane.b32.xlu0 %v9166, 12
    %v9307 = vpop.permute.xlu0 %9306
    %9308 = vrot.lane.b32.xlu0 %v9167, 12
    %v9309 = vpop.permute.xlu0 %9308
    %9310 = vrot.lane.b32.xlu0 %v9168, 12
    %v9311 = vpop.permute.xlu0 %9310
    %9312 = vrot.lane.b32.xlu0 %v9169, 12
    %v9313 = vpop.permute.xlu0 %9312
    %9314 = vrot.lane.b32.xlu0 %v9170, 12
    %v9315 = vpop.permute.xlu0 %9314
    %9316 = vrot.lane.b32.xlu0 %v9171, 12
    %v9317 = vpop.permute.xlu0 %9316
    %9318 = vrot.lane.b32.xlu0 %v9172, 12
    %v9319 = vpop.permute.xlu0 %9318
    %9320 = vrot.lane.b32.xlu0 %v9173, 12
    %v9321 = vpop.permute.xlu0 %9320
    %9322 = vrot.lane.b32.xlu0 %v9174, 12
    %v9323 = vpop.permute.xlu0 %9322
    %9324 = vrot.lane.b32.xlu0 %v9175, 12
    %v9325 = vpop.permute.xlu0 %9324
    %9326 = vrot.lane.b32.xlu0 %v9176, 12
    %v9327 = vpop.permute.xlu0 %9326
    %9328 = vrot.lane.b32.xlu0 %v9177, 12
    %v9329 = vpop.permute.xlu0 %9328
    %9330 = vrot.lane.b32.xlu0 %v9178, 12
    %v9331 = vpop.permute.xlu0 %9330
    %9332 = vrot.lane.b32.xlu0 %v9179, 12
    %v9333 = vpop.permute.xlu0 %9332
    %9334 = vrot.lane.b32.xlu0 %v9180, 12
    %v9335 = vpop.permute.xlu0 %9334
    %9336 = vrot.lane.b32.xlu0 %v9181, 12
    %v9337 = vpop.permute.xlu0 %9336
    %9338 = vrot.lane.b32.xlu0 %v9182, 12
    %v9339 = vpop.permute.xlu0 %9338
    %9340 = vrot.lane.b32.xlu0 %v9183, 12
    %v9341 = vpop.permute.xlu0 %9340
    %9342 = vrot.lane.b32.xlu0 %v9184, 12
    %v9343 = vpop.permute.xlu0 %9342
    %9344 = vrot.lane.b32.xlu0 %v9185, 12
    %v9345 = vpop.permute.xlu0 %9344
    %9346 = vrot.lane.b32.xlu0 %v9186, 12
    %v9347 = vpop.permute.xlu0 %9346
    %9348 = vrot.lane.b32.xlu0 %v9187, 12
    %v9349 = vpop.permute.xlu0 %9348
    %9350 = vrot.lane.b32.xlu0 %v9188, 12
    %v9351 = vpop.permute.xlu0 %9350
    %9352 = vrot.lane.b32.xlu0 %v9189, 12
    %v9353 = vpop.permute.xlu0 %9352
    %9354 = vrot.lane.b32.xlu0 %v9190, 12
    %v9355 = vpop.permute.xlu0 %9354
    %9356 = vrot.lane.b32.xlu0 %v9191, 12
    %v9357 = vpop.permute.xlu0 %9356
    %9358 = vrot.lane.b32.xlu0 %v9192, 12
    %v9359 = vpop.permute.xlu0 %9358
    %9360 = vrot.lane.b32.xlu0 %v9193, 12
    %v9361 = vpop.permute.xlu0 %9360
    %9362 = vrot.lane.b32.xlu0 %v9194, 12
    %v9363 = vpop.permute.xlu0 %9362
    %9364 = vrot.lane.b32.xlu0 %v9195, 12
    %v9365 = vpop.permute.xlu0 %9364
    %9366 = vrot.lane.b32.xlu0 %v9196, 12
    %v9367 = vpop.permute.xlu0 %9366
    %9368 = vrot.lane.b32.xlu0 %v9197, 12
    %v9369 = vpop.permute.xlu0 %9368
    %9370 = vrot.lane.b32.xlu0 %v9198, 12
    %v9371 = vpop.permute.xlu0 %9370
    %9372 = vrot.lane.b32.xlu0 %v9199, 12
    %v9373 = vpop.permute.xlu0 %9372
    %9374 = vrot.lane.b32.xlu0 %v9200, 12
    %v9375 = vpop.permute.xlu0 %9374
    %9376 = vrot.lane.b32.xlu0 %v9201, 12
    %v9377 = vpop.permute.xlu0 %9376
    %9378 = vrot.lane.b32.xlu0 %v9202, 12
    %v9379 = vpop.permute.xlu0 %9378
    %9380 = vrot.lane.b32.xlu0 %v9203, 12
    %v9381 = vpop.permute.xlu0 %9380
    %9382 = vrot.lane.b32.xlu0 %v9204, 12
    %v9383 = vpop.permute.xlu0 %9382
    %9384 = vrot.lane.b32.xlu0 %v9205, 12
    %v9385 = vpop.permute.xlu0 %9384
    %9386 = vrot.lane.b32.xlu0 %v9206, 12
    %v9387 = vpop.permute.xlu0 %9386
    %9388 = vrot.lane.b32.xlu0 %v9207, 12
    %v9389 = vpop.permute.xlu0 %9388
    %9390 = vrot.lane.b32.xlu0 %v9208, 12
    %v9391 = vpop.permute.xlu0 %9390
    %9392 = vrot.lane.b32.xlu0 %v9209, 12
    %v9393 = vpop.permute.xlu0 %9392
    %9394 = vrot.lane.b32.xlu0 %v9210, 12
    %v9395 = vpop.permute.xlu0 %9394
    %9396 = vrot.lane.b32.xlu0 %v9211, 12
    %v9397 = vpop.permute.xlu0 %9396
    %9398 = vrot.lane.b32.xlu0 %v9212, 12
    %v9399 = vpop.permute.xlu0 %9398
    %9400 = vrot.lane.b32.xlu0 %v9213, 12
    %v9401 = vpop.permute.xlu0 %9400
    %9402 = vrot.lane.b32.xlu0 %v9214, 12
    %v9403 = vpop.permute.xlu0 %9402
    %9404 = vrot.lane.b32.xlu0 %v9215, 12
    %v9405 = vpop.permute.xlu0 %9404
    %9406 = vrot.lane.b32.xlu0 %v9216, 12
    %v9407 = vpop.permute.xlu0 %9406
    %9408 = vrot.lane.b32.xlu0 %v9217, 12
    %v9409 = vpop.permute.xlu0 %9408
    %v9474 = vsel %vm3030, %v4808, %v9283
    %v9475 = vsel %vm3030, %v4809, %v9285
    %v9476 = vsel %vm3030, %v4810, %v9287
    %v9477 = vsel %vm3030, %v4811, %v9289
    %v9478 = vsel %vm3030, %v4812, %v9291
    %v9479 = vsel %vm3030, %v4813, %v9293
    %v9480 = vsel %vm3030, %v4814, %v9295
    %v9481 = vsel %vm3030, %v4815, %v9297
    %v9482 = vsel %vm3030, %v4816, %v9299
    %v9483 = vsel %vm3030, %v4817, %v9301
    %v9484 = vsel %vm3030, %v4818, %v9303
    %v9485 = vsel %vm3030, %v4819, %v9305
    %v9486 = vsel %vm3030, %v4820, %v9307
    %v9487 = vsel %vm3030, %v4821, %v9309
    %v9488 = vsel %vm3030, %v4822, %v9311
    %v9489 = vsel %vm3030, %v4823, %v9313
    %v9490 = vsel %vm3030, %v4824, %v9315
    %v9491 = vsel %vm3030, %v4825, %v9317
    %v9492 = vsel %vm3030, %v4826, %v9319
    %v9493 = vsel %vm3030, %v4827, %v9321
    %v9494 = vsel %vm3030, %v4828, %v9323
    %v9495 = vsel %vm3030, %v4829, %v9325
    %v9496 = vsel %vm3030, %v4830, %v9327
    %v9497 = vsel %vm3030, %v4831, %v9329
    %v9498 = vsel %vm3030, %v4832, %v9331
    %v9499 = vsel %vm3030, %v4833, %v9333
    %v9500 = vsel %vm3030, %v4834, %v9335
    %v9501 = vsel %vm3030, %v4835, %v9337
    %v9502 = vsel %vm3030, %v4836, %v9339
    %v9503 = vsel %vm3030, %v4837, %v9341
    %v9504 = vsel %vm3030, %v4838, %v9343
    %v9505 = vsel %vm3030, %v4839, %v9345
    %v9506 = vsel %vm3030, %v4840, %v9347
    %v9507 = vsel %vm3030, %v4841, %v9349
    %v9508 = vsel %vm3030, %v4842, %v9351
    %v9509 = vsel %vm3030, %v4843, %v9353
    %v9510 = vsel %vm3030, %v4844, %v9355
    %v9511 = vsel %vm3030, %v4845, %v9357
    %v9512 = vsel %vm3030, %v4846, %v9359
    %v9513 = vsel %vm3030, %v4847, %v9361
    %v9514 = vsel %vm3030, %v4848, %v9363
    %v9515 = vsel %vm3030, %v4849, %v9365
    %v9516 = vsel %vm3030, %v4850, %v9367
    %v9517 = vsel %vm3030, %v4851, %v9369
    %v9518 = vsel %vm3030, %v4852, %v9371
    %v9519 = vsel %vm3030, %v4853, %v9373
    %v9520 = vsel %vm3030, %v4854, %v9375
    %v9521 = vsel %vm3030, %v4855, %v9377
    %v9522 = vsel %vm3030, %v4856, %v9379
    %v9523 = vsel %vm3030, %v4857, %v9381
    %v9524 = vsel %vm3030, %v4858, %v9383
    %v9525 = vsel %vm3030, %v4859, %v9385
    %v9526 = vsel %vm3030, %v4860, %v9387
    %v9527 = vsel %vm3030, %v4861, %v9389
    %v9528 = vsel %vm3030, %v4862, %v9391
    %v9529 = vsel %vm3030, %v4863, %v9393
    %v9530 = vsel %vm3030, %v4864, %v9395
    %v9531 = vsel %vm3030, %v4865, %v9397
    %v9532 = vsel %vm3030, %v4866, %v9399
    %v9533 = vsel %vm3030, %v4867, %v9401
    %v9534 = vsel %vm3030, %v4868, %v9403
    %v9535 = vsel %vm3030, %v4869, %v9405
    %v9536 = vsel %vm3030, %v4870, %v9407
    %v9537 = vsel %vm3030, %v4871, %v9409
    %9538 = vst.msk [vmem:[%s210 + $0x1] sm:$0xff] %vm3160, %v9474
    %9539 = vst.msk [vmem:[%s210 + $0x9] sm:$0xff] %vm3160, %v9475
    %9540 = vst.msk [vmem:[%s210 + $0x19] sm:$0xff] %vm3160, %v9476
    %9541 = vst.msk [vmem:[%s210 + $0x21] sm:$0xff] %vm3160, %v9477
    %9542 = vst.msk [vmem:[%s210 + $0x31] sm:$0xff] %vm3160, %v9478
    %9543 = vst.msk [vmem:[%s210 + $0x39] sm:$0xff] %vm3160, %v9479
    %9544 = vst.msk [vmem:[%s210 + $0x49] sm:$0xff] %vm3160, %v9480
    %9545 = vst.msk [vmem:[%s210 + $0x51] sm:$0xff] %vm3160, %v9481
    %9546 = vst.msk [vmem:[%s210 + $0x61] sm:$0xff] %vm3160, %v9482
    %9547 = vst.msk [vmem:[%s210 + $0x69] sm:$0xff] %vm3160, %v9483
    %9548 = vst.msk [vmem:[%s210 + $0x79] sm:$0xff] %vm3160, %v9484
    %9549 = vst.msk [vmem:[%s210 + $0x81] sm:$0xff] %vm3160, %v9485
    %9550 = vst.msk [vmem:[%s210 + $0x91] sm:$0xff] %vm3160, %v9486
    %9551 = vst.msk [vmem:[%s210 + $0x99] sm:$0xff] %vm3160, %v9487
    %9552 = vst.msk [vmem:[%s210 + $0xa9] sm:$0xff] %vm3160, %v9488
    %9553 = vst.msk [vmem:[%s210 + $0xb1] sm:$0xff] %vm3160, %v9489
    %9554 = vst.msk [vmem:[%s210 + $0xc1] sm:$0xff] %vm3160, %v9490
    %9555 = vst.msk [vmem:[%s210 + $0xc9] sm:$0xff] %vm3160, %v9491
    %9556 = vst.msk [vmem:[%s210 + $0xd9] sm:$0xff] %vm3160, %v9492
    %9557 = vst.msk [vmem:[%s210 + $0xe1] sm:$0xff] %vm3160, %v9493
    %9558 = vst.msk [vmem:[%s210 + $0xf1] sm:$0xff] %vm3160, %v9494
    %9559 = vst.msk [vmem:[%s210 + $0xf9] sm:$0xff] %vm3160, %v9495
    %9560 = vst.msk [vmem:[%s210 + $0x109] sm:$0xff] %vm3160, %v9496
    %9561 = vst.msk [vmem:[%s210 + $0x111] sm:$0xff] %vm3160, %v9497
    %9562 = vst.msk [vmem:[%s210 + $0x121] sm:$0xff] %vm3160, %v9498
    %9563 = vst.msk [vmem:[%s210 + $0x129] sm:$0xff] %vm3160, %v9499
    %9564 = vst.msk [vmem:[%s210 + $0x139] sm:$0xff] %vm3160, %v9500
    %9565 = vst.msk [vmem:[%s210 + $0x141] sm:$0xff] %vm3160, %v9501
    %9566 = vst.msk [vmem:[%s210 + $0x151] sm:$0xff] %vm3160, %v9502
    %9567 = vst.msk [vmem:[%s210 + $0x159] sm:$0xff] %vm3160, %v9503
    %9568 = vst.msk [vmem:[%s210 + $0x169] sm:$0xff] %vm3160, %v9504
    %9569 = vst.msk [vmem:[%s210 + $0x171] sm:$0xff] %vm3160, %v9505
    %9570 = vst.msk [vmem:[%s210 + $0x1b1] sm:$0xff] %vm3160, %v9506
    %9571 = vst.msk [vmem:[%s210 + $0x1b9] sm:$0xff] %vm3160, %v9507
    %9572 = vst.msk [vmem:[%s210 + $0x1c9] sm:$0xff] %vm3160, %v9508
    %9573 = vst.msk [vmem:[%s210 + $0x1d1] sm:$0xff] %vm3160, %v9509
    %9574 = vst.msk [vmem:[%s210 + $0x1e1] sm:$0xff] %vm3160, %v9510
    %9575 = vst.msk [vmem:[%s210 + $0x1e9] sm:$0xff] %vm3160, %v9511
    %9576 = vst.msk [vmem:[%s210 + $0x1f9] sm:$0xff] %vm3160, %v9512
    %9577 = vst.msk [vmem:[%s210 + $0x201] sm:$0xff] %vm3160, %v9513
    %9578 = vst.msk [vmem:[%s210 + $0x211] sm:$0xff] %vm3160, %v9514
    %9579 = vst.msk [vmem:[%s210 + $0x219] sm:$0xff] %vm3160, %v9515
    %9580 = vst.msk [vmem:[%s210 + $0x229] sm:$0xff] %vm3160, %v9516
    %9581 = vst.msk [vmem:[%s210 + $0x231] sm:$0xff] %vm3160, %v9517
    %9582 = vst.msk [vmem:[%s210 + $0x241] sm:$0xff] %vm3160, %v9518
    %9583 = vst.msk [vmem:[%s210 + $0x249] sm:$0xff] %vm3160, %v9519
    %9584 = vst.msk [vmem:[%s210 + $0x259] sm:$0xff] %vm3160, %v9520
    %9585 = vst.msk [vmem:[%s210 + $0x261] sm:$0xff] %vm3160, %v9521
    %9586 = vst.msk [vmem:[%s210 + $0x271] sm:$0xff] %vm3160, %v9522
    %9587 = vst.msk [vmem:[%s210 + $0x279] sm:$0xff] %vm3160, %v9523
    %9588 = vst.msk [vmem:[%s210 + $0x289] sm:$0xff] %vm3160, %v9524
    %9589 = vst.msk [vmem:[%s210 + $0x291] sm:$0xff] %vm3160, %v9525
    %9590 = vst.msk [vmem:[%s210 + $0x2a1] sm:$0xff] %vm3160, %v9526
    %9591 = vst.msk [vmem:[%s210 + $0x2a9] sm:$0xff] %vm3160, %v9527
    %9592 = vst.msk [vmem:[%s210 + $0x2b9] sm:$0xff] %vm3160, %v9528
    %9593 = vst.msk [vmem:[%s210 + $0x2c1] sm:$0xff] %vm3160, %v9529
    %9594 = vst.msk [vmem:[%s210 + $0x2d1] sm:$0xff] %vm3160, %v9530
    %9595 = vst.msk [vmem:[%s210 + $0x2d9] sm:$0xff] %vm3160, %v9531
    %9596 = vst.msk [vmem:[%s210 + $0x2e9] sm:$0xff] %vm3160, %v9532
    %9597 = vst.msk [vmem:[%s210 + $0x2f1] sm:$0xff] %vm3160, %v9533
    %9598 = vst.msk [vmem:[%s210 + $0x301] sm:$0xff] %vm3160, %v9534
    %9599 = vst.msk [vmem:[%s210 + $0x309] sm:$0xff] %vm3160, %v9535
    %9600 = vst.msk [vmem:[%s210 + $0x319] sm:$0xff] %vm3160, %v9536
    %9601 = vst.msk [vmem:[%s210 + $0x321] sm:$0xff] %vm3160, %v9537
    %v9602 = vld [vmem:[#allocation2] sm:$0xff]
    %v9603 = vld [vmem:[#allocation2 + $0x8] sm:$0xff]
    %v9604 = vld [vmem:[#allocation2 + $0x18] sm:$0xff]
    %v9605 = vld [vmem:[#allocation2 + $0x20] sm:$0xff]
    %v9606 = vld [vmem:[#allocation2 + $0x30] sm:$0xff]
    %v9607 = vld [vmem:[#allocation2 + $0x38] sm:$0xff]
    %v9608 = vld [vmem:[#allocation2 + $0x48] sm:$0xff]
    %v9609 = vld [vmem:[#allocation2 + $0x50] sm:$0xff]
    %v9610 = vld [vmem:[#allocation2 + $0x60] sm:$0xff]
    %v9611 = vld [vmem:[#allocation2 + $0x68] sm:$0xff]
    %v9612 = vld [vmem:[#allocation2 + $0x78] sm:$0xff]
    %v9613 = vld [vmem:[#allocation2 + $0x80] sm:$0xff]
    %v9614 = vld [vmem:[#allocation2 + $0x90] sm:$0xff]
    %v9615 = vld [vmem:[#allocation2 + $0x98] sm:$0xff]
    %v9616 = vld [vmem:[#allocation2 + $0xa8] sm:$0xff]
    %v9617 = vld [vmem:[#allocation2 + $0xb0] sm:$0xff]
    %v9618 = vld [vmem:[#allocation2 + $0xc0] sm:$0xff]
    %v9619 = vld [vmem:[#allocation2 + $0xc8] sm:$0xff]
    %v9620 = vld [vmem:[#allocation2 + $0xd8] sm:$0xff]
    %v9621 = vld [vmem:[#allocation2 + $0xe0] sm:$0xff]
    %v9622 = vld [vmem:[#allocation2 + $0xf0] sm:$0xff]
    %v9623 = vld [vmem:[#allocation2 + $0xf8] sm:$0xff]
    %v9624 = vld [vmem:[#allocation2 + $0x108] sm:$0xff]
    %v9625 = vld [vmem:[#allocation2 + $0x110] sm:$0xff]
    %v9626 = vld [vmem:[#allocation2 + $0x120] sm:$0xff]
    %v9627 = vld [vmem:[#allocation2 + $0x128] sm:$0xff]
    %v9628 = vld [vmem:[#allocation2 + $0x138] sm:$0xff]
    %v9629 = vld [vmem:[#allocation2 + $0x140] sm:$0xff]
    %v9630 = vld [vmem:[#allocation2 + $0x150] sm:$0xff]
    %v9631 = vld [vmem:[#allocation2 + $0x158] sm:$0xff]
    %v9632 = vld [vmem:[#allocation2 + $0x168] sm:$0xff]
    %v9633 = vld [vmem:[#allocation2 + $0x170] sm:$0xff]
    %v9634 = vld [vmem:[#allocation2 + $0x1b0] sm:$0xff]
    %v9635 = vld [vmem:[#allocation2 + $0x1b8] sm:$0xff]
    %v9636 = vld [vmem:[#allocation2 + $0x1c8] sm:$0xff]
    %v9637 = vld [vmem:[#allocation2 + $0x1d0] sm:$0xff]
    %v9638 = vld [vmem:[#allocation2 + $0x1e0] sm:$0xff]
    %v9639 = vld [vmem:[#allocation2 + $0x1e8] sm:$0xff]
    %v9640 = vld [vmem:[#allocation2 + $0x1f8] sm:$0xff]
    %v9641 = vld [vmem:[#allocation2 + $0x200] sm:$0xff]
    %v9642 = vld [vmem:[#allocation2 + $0x210] sm:$0xff]
    %v9643 = vld [vmem:[#allocation2 + $0x218] sm:$0xff]
    %v9644 = vld [vmem:[#allocation2 + $0x228] sm:$0xff]
    %v9645 = vld [vmem:[#allocation2 + $0x230] sm:$0xff]
    %v9646 = vld [vmem:[#allocation2 + $0x240] sm:$0xff]
    %v9647 = vld [vmem:[#allocation2 + $0x248] sm:$0xff]
    %v9648 = vld [vmem:[#allocation2 + $0x258] sm:$0xff]
    %v9649 = vld [vmem:[#allocation2 + $0x260] sm:$0xff]
    %v9650 = vld [vmem:[#allocation2 + $0x270] sm:$0xff]
    %v9651 = vld [vmem:[#allocation2 + $0x278] sm:$0xff]
    %v9652 = vld [vmem:[#allocation2 + $0x288] sm:$0xff]
    %v9653 = vld [vmem:[#allocation2 + $0x290] sm:$0xff]
    %v9654 = vld [vmem:[#allocation2 + $0x2a0] sm:$0xff]
    %v9655 = vld [vmem:[#allocation2 + $0x2a8] sm:$0xff]
    %v9656 = vld [vmem:[#allocation2 + $0x2b8] sm:$0xff]
    %v9657 = vld [vmem:[#allocation2 + $0x2c0] sm:$0xff]
    %v9658 = vld [vmem:[#allocation2 + $0x2d0] sm:$0xff]
    %v9659 = vld [vmem:[#allocation2 + $0x2d8] sm:$0xff]
    %v9660 = vld [vmem:[#allocation2 + $0x2e8] sm:$0xff]
    %v9661 = vld [vmem:[#allocation2 + $0x2f0] sm:$0xff]
    %v9662 = vld [vmem:[#allocation2 + $0x300] sm:$0xff]
    %v9663 = vld [vmem:[#allocation2 + $0x308] sm:$0xff]
    %v9664 = vld [vmem:[#allocation2 + $0x318] sm:$0xff]
    %v9665 = vld [vmem:[#allocation2 + $0x320] sm:$0xff]
    %v9666 = vld [vmem:[#allocation2 + $0x1] sm:$0xff]
    %v9667 = vld [vmem:[#allocation2 + $0x9] sm:$0xff]
    %v9668 = vld [vmem:[#allocation2 + $0x19] sm:$0xff]
    %v9669 = vld [vmem:[#allocation2 + $0x21] sm:$0xff]
    %v9670 = vld [vmem:[#allocation2 + $0x31] sm:$0xff]
    %v9671 = vld [vmem:[#allocation2 + $0x39] sm:$0xff]
    %v9672 = vld [vmem:[#allocation2 + $0x49] sm:$0xff]
    %v9673 = vld [vmem:[#allocation2 + $0x51] sm:$0xff]
    %v9674 = vld [vmem:[#allocation2 + $0x61] sm:$0xff]
    %v9675 = vld [vmem:[#allocation2 + $0x69] sm:$0xff]
    %v9676 = vld [vmem:[#allocation2 + $0x79] sm:$0xff]
    %v9677 = vld [vmem:[#allocation2 + $0x81] sm:$0xff]
    %v9678 = vld [vmem:[#allocation2 + $0x91] sm:$0xff]
    %v9679 = vld [vmem:[#allocation2 + $0x99] sm:$0xff]
    %v9680 = vld [vmem:[#allocation2 + $0xa9] sm:$0xff]
    %v9681 = vld [vmem:[#allocation2 + $0xb1] sm:$0xff]
    %v9682 = vld [vmem:[#allocation2 + $0xc1] sm:$0xff]
    %v9683 = vld [vmem:[#allocation2 + $0xc9] sm:$0xff]
    %v9684 = vld [vmem:[#allocation2 + $0xd9] sm:$0xff]
    %v9685 = vld [vmem:[#allocation2 + $0xe1] sm:$0xff]
    %v9686 = vld [vmem:[#allocation2 + $0xf1] sm:$0xff]
    %v9687 = vld [vmem:[#allocation2 + $0xf9] sm:$0xff]
    %v9688 = vld [vmem:[#allocation2 + $0x109] sm:$0xff]
    %v9689 = vld [vmem:[#allocation2 + $0x111] sm:$0xff]
    %v9690 = vld [vmem:[#allocation2 + $0x121] sm:$0xff]
    %v9691 = vld [vmem:[#allocation2 + $0x129] sm:$0xff]
    %v9692 = vld [vmem:[#allocation2 + $0x139] sm:$0xff]
    %v9693 = vld [vmem:[#allocation2 + $0x141] sm:$0xff]
    %v9694 = vld [vmem:[#allocation2 + $0x151] sm:$0xff]
    %v9695 = vld [vmem:[#allocation2 + $0x159] sm:$0xff]
    %v9696 = vld [vmem:[#allocation2 + $0x169] sm:$0xff]
    %v9697 = vld [vmem:[#allocation2 + $0x171] sm:$0xff]
    %v9698 = vld [vmem:[#allocation2 + $0x1b1] sm:$0xff]
    %v9699 = vld [vmem:[#allocation2 + $0x1b9] sm:$0xff]
    %v9700 = vld [vmem:[#allocation2 + $0x1c9] sm:$0xff]
    %v9701 = vld [vmem:[#allocation2 + $0x1d1] sm:$0xff]
    %v9702 = vld [vmem:[#allocation2 + $0x1e1] sm:$0xff]
    %v9703 = vld [vmem:[#allocation2 + $0x1e9] sm:$0xff]
    %v9704 = vld [vmem:[#allocation2 + $0x1f9] sm:$0xff]
    %v9705 = vld [vmem:[#allocation2 + $0x201] sm:$0xff]
    %v9706 = vld [vmem:[#allocation2 + $0x211] sm:$0xff]
    %v9707 = vld [vmem:[#allocation2 + $0x219] sm:$0xff]
    %v9708 = vld [vmem:[#allocation2 + $0x229] sm:$0xff]
    %v9709 = vld [vmem:[#allocation2 + $0x231] sm:$0xff]
    %v9710 = vld [vmem:[#allocation2 + $0x241] sm:$0xff]
    %v9711 = vld [vmem:[#allocation2 + $0x249] sm:$0xff]
    %v9712 = vld [vmem:[#allocation2 + $0x259] sm:$0xff]
    %v9713 = vld [vmem:[#allocation2 + $0x261] sm:$0xff]
    %v9714 = vld [vmem:[#allocation2 + $0x271] sm:$0xff]
    %v9715 = vld [vmem:[#allocation2 + $0x279] sm:$0xff]
    %v9716 = vld [vmem:[#allocation2 + $0x289] sm:$0xff]
    %v9717 = vld [vmem:[#allocation2 + $0x291] sm:$0xff]
    %v9718 = vld [vmem:[#allocation2 + $0x2a1] sm:$0xff]
    %v9719 = vld [vmem:[#allocation2 + $0x2a9] sm:$0xff]
    %v9720 = vld [vmem:[#allocation2 + $0x2b9] sm:$0xff]
    %v9721 = vld [vmem:[#allocation2 + $0x2c1] sm:$0xff]
    %v9722 = vld [vmem:[#allocation2 + $0x2d1] sm:$0xff]
    %v9723 = vld [vmem:[#allocation2 + $0x2d9] sm:$0xff]
    %v9724 = vld [vmem:[#allocation2 + $0x2e9] sm:$0xff]
    %v9725 = vld [vmem:[#allocation2 + $0x2f1] sm:$0xff]
    %v9726 = vld [vmem:[#allocation2 + $0x301] sm:$0xff]
    %v9727 = vld [vmem:[#allocation2 + $0x309] sm:$0xff]
    %v9728 = vld [vmem:[#allocation2 + $0x319] sm:$0xff]
    %v9729 = vld [vmem:[#allocation2 + $0x321] sm:$0xff]
    %v9730 = vld [vmem:[#allocation2 + $0x2] sm:$0xff]
    %v9731 = vld [vmem:[#allocation2 + $0xa] sm:$0xff]
    %v9732 = vld [vmem:[#allocation2 + $0x1a] sm:$0xff]
    %v9733 = vld [vmem:[#allocation2 + $0x22] sm:$0xff]
    %v9734 = vld [vmem:[#allocation2 + $0x32] sm:$0xff]
    %v9735 = vld [vmem:[#allocation2 + $0x3a] sm:$0xff]
    %v9736 = vld [vmem:[#allocation2 + $0x4a] sm:$0xff]
    %v9737 = vld [vmem:[#allocation2 + $0x52] sm:$0xff]
    %v9738 = vld [vmem:[#allocation2 + $0x62] sm:$0xff]
    %v9739 = vld [vmem:[#allocation2 + $0x6a] sm:$0xff]
    %v9740 = vld [vmem:[#allocation2 + $0x7a] sm:$0xff]
    %v9741 = vld [vmem:[#allocation2 + $0x82] sm:$0xff]
    %v9742 = vld [vmem:[#allocation2 + $0x92] sm:$0xff]
    %v9743 = vld [vmem:[#allocation2 + $0x9a] sm:$0xff]
    %v9744 = vld [vmem:[#allocation2 + $0xaa] sm:$0xff]
    %v9745 = vld [vmem:[#allocation2 + $0xb2] sm:$0xff]
    %v9746 = vld [vmem:[#allocation2 + $0xc2] sm:$0xff]
    %v9747 = vld [vmem:[#allocation2 + $0xca] sm:$0xff]
    %v9748 = vld [vmem:[#allocation2 + $0xda] sm:$0xff]
    %v9749 = vld [vmem:[#allocation2 + $0xe2] sm:$0xff]
    %v9750 = vld [vmem:[#allocation2 + $0xf2] sm:$0xff]
    %v9751 = vld [vmem:[#allocation2 + $0xfa] sm:$0xff]
    %v9752 = vld [vmem:[#allocation2 + $0x10a] sm:$0xff]
    %v9753 = vld [vmem:[#allocation2 + $0x112] sm:$0xff]
    %v9754 = vld [vmem:[#allocation2 + $0x122] sm:$0xff]
    %v9755 = vld [vmem:[#allocation2 + $0x12a] sm:$0xff]
    %v9756 = vld [vmem:[#allocation2 + $0x13a] sm:$0xff]
    %v9757 = vld [vmem:[#allocation2 + $0x142] sm:$0xff]
    %v9758 = vld [vmem:[#allocation2 + $0x152] sm:$0xff]
    %v9759 = vld [vmem:[#allocation2 + $0x15a] sm:$0xff]
    %v9760 = vld [vmem:[#allocation2 + $0x16a] sm:$0xff]
    %v9761 = vld [vmem:[#allocation2 + $0x172] sm:$0xff]
    %v9762 = vld [vmem:[#allocation2 + $0x1b2] sm:$0xff]
    %v9763 = vld [vmem:[#allocation2 + $0x1ba] sm:$0xff]
    %v9764 = vld [vmem:[#allocation2 + $0x1ca] sm:$0xff]
    %v9765 = vld [vmem:[#allocation2 + $0x1d2] sm:$0xff]
    %v9766 = vld [vmem:[#allocation2 + $0x1e2] sm:$0xff]
    %v9767 = vld [vmem:[#allocation2 + $0x1ea] sm:$0xff]
    %v9768 = vld [vmem:[#allocation2 + $0x1fa] sm:$0xff]
    %v9769 = vld [vmem:[#allocation2 + $0x202] sm:$0xff]
    %v9770 = vld [vmem:[#allocation2 + $0x212] sm:$0xff]
    %v9771 = vld [vmem:[#allocation2 + $0x21a] sm:$0xff]
    %v9772 = vld [vmem:[#allocation2 + $0x22a] sm:$0xff]
    %v9773 = vld [vmem:[#allocation2 + $0x232] sm:$0xff]
    %v9774 = vld [vmem:[#allocation2 + $0x242] sm:$0xff]
    %v9775 = vld [vmem:[#allocation2 + $0x24a] sm:$0xff]
    %v9776 = vld [vmem:[#allocation2 + $0x25a] sm:$0xff]
    %v9777 = vld [vmem:[#allocation2 + $0x262] sm:$0xff]
    %v9778 = vld [vmem:[#allocation2 + $0x272] sm:$0xff]
    %v9779 = vld [vmem:[#allocation2 + $0x27a] sm:$0xff]
    %v9780 = vld [vmem:[#allocation2 + $0x28a] sm:$0xff]
    %v9781 = vld [vmem:[#allocation2 + $0x292] sm:$0xff]
    %v9782 = vld [vmem:[#allocation2 + $0x2a2] sm:$0xff]
    %v9783 = vld [vmem:[#allocation2 + $0x2aa] sm:$0xff]
    %v9784 = vld [vmem:[#allocation2 + $0x2ba] sm:$0xff]
    %v9785 = vld [vmem:[#allocation2 + $0x2c2] sm:$0xff]
    %v9786 = vld [vmem:[#allocation2 + $0x2d2] sm:$0xff]
    %v9787 = vld [vmem:[#allocation2 + $0x2da] sm:$0xff]
    %v9788 = vld [vmem:[#allocation2 + $0x2ea] sm:$0xff]
    %v9789 = vld [vmem:[#allocation2 + $0x2f2] sm:$0xff]
    %v9790 = vld [vmem:[#allocation2 + $0x302] sm:$0xff]
    %v9791 = vld [vmem:[#allocation2 + $0x30a] sm:$0xff]
    %v9792 = vld [vmem:[#allocation2 + $0x31a] sm:$0xff]
    %v9793 = vld [vmem:[#allocation2 + $0x322] sm:$0xff]
    %v9794 = vld [vmem:[%s210] sm:$0xff]
    %v9795 = vld [vmem:[%s210 + $0x8] sm:$0xff]
    %v9796 = vld [vmem:[%s210 + $0x18] sm:$0xff]
    %v9797 = vld [vmem:[%s210 + $0x20] sm:$0xff]
    %v9798 = vld [vmem:[%s210 + $0x30] sm:$0xff]
    %v9799 = vld [vmem:[%s210 + $0x38] sm:$0xff]
    %v9800 = vld [vmem:[%s210 + $0x48] sm:$0xff]
    %v9801 = vld [vmem:[%s210 + $0x50] sm:$0xff]
    %v9802 = vld [vmem:[%s210 + $0x60] sm:$0xff]
    %v9803 = vld [vmem:[%s210 + $0x68] sm:$0xff]
    %v9804 = vld [vmem:[%s210 + $0x78] sm:$0xff]
    %v9805 = vld [vmem:[%s210 + $0x80] sm:$0xff]
    %v9806 = vld [vmem:[%s210 + $0x90] sm:$0xff]
    %v9807 = vld [vmem:[%s210 + $0x98] sm:$0xff]
    %v9808 = vld [vmem:[%s210 + $0xa8] sm:$0xff]
    %v9809 = vld [vmem:[%s210 + $0xb0] sm:$0xff]
    %v9810 = vld [vmem:[%s210 + $0xc0] sm:$0xff]
    %v9811 = vld [vmem:[%s210 + $0xc8] sm:$0xff]
    %v9812 = vld [vmem:[%s210 + $0xd8] sm:$0xff]
    %v9813 = vld [vmem:[%s210 + $0xe0] sm:$0xff]
    %v9814 = vld [vmem:[%s210 + $0xf0] sm:$0xff]
    %v9815 = vld [vmem:[%s210 + $0xf8] sm:$0xff]
    %v9816 = vld [vmem:[%s210 + $0x108] sm:$0xff]
    %v9817 = vld [vmem:[%s210 + $0x110] sm:$0xff]
    %v9818 = vld [vmem:[%s210 + $0x120] sm:$0xff]
    %v9819 = vld [vmem:[%s210 + $0x128] sm:$0xff]
    %v9820 = vld [vmem:[%s210 + $0x138] sm:$0xff]
    %v9821 = vld [vmem:[%s210 + $0x140] sm:$0xff]
    %v9822 = vld [vmem:[%s210 + $0x150] sm:$0xff]
    %v9823 = vld [vmem:[%s210 + $0x158] sm:$0xff]
    %v9824 = vld [vmem:[%s210 + $0x168] sm:$0xff]
    %v9825 = vld [vmem:[%s210 + $0x170] sm:$0xff]
    %v9826 = vld [vmem:[%s210 + $0x1b0] sm:$0xff]
    %v9827 = vld [vmem:[%s210 + $0x1b8] sm:$0xff]
    %v9828 = vld [vmem:[%s210 + $0x1c8] sm:$0xff]
    %v9829 = vld [vmem:[%s210 + $0x1d0] sm:$0xff]
    %v9830 = vld [vmem:[%s210 + $0x1e0] sm:$0xff]
    %v9831 = vld [vmem:[%s210 + $0x1e8] sm:$0xff]
    %v9832 = vld [vmem:[%s210 + $0x1f8] sm:$0xff]
    %v9833 = vld [vmem:[%s210 + $0x200] sm:$0xff]
    %v9834 = vld [vmem:[%s210 + $0x210] sm:$0xff]
    %v9835 = vld [vmem:[%s210 + $0x218] sm:$0xff]
    %v9836 = vld [vmem:[%s210 + $0x228] sm:$0xff]
    %v9837 = vld [vmem:[%s210 + $0x230] sm:$0xff]
    %v9838 = vld [vmem:[%s210 + $0x240] sm:$0xff]
    %v9839 = vld [vmem:[%s210 + $0x248] sm:$0xff]
    %v9840 = vld [vmem:[%s210 + $0x258] sm:$0xff]
    %v9841 = vld [vmem:[%s210 + $0x260] sm:$0xff]
    %v9842 = vld [vmem:[%s210 + $0x270] sm:$0xff]
    %v9843 = vld [vmem:[%s210 + $0x278] sm:$0xff]
    %v9844 = vld [vmem:[%s210 + $0x288] sm:$0xff]
    %v9845 = vld [vmem:[%s210 + $0x290] sm:$0xff]
    %v9846 = vld [vmem:[%s210 + $0x2a0] sm:$0xff]
    %v9847 = vld [vmem:[%s210 + $0x2a8] sm:$0xff]
    %v9848 = vld [vmem:[%s210 + $0x2b8] sm:$0xff]
    %v9849 = vld [vmem:[%s210 + $0x2c0] sm:$0xff]
    %v9850 = vld [vmem:[%s210 + $0x2d0] sm:$0xff]
    %v9851 = vld [vmem:[%s210 + $0x2d8] sm:$0xff]
    %v9852 = vld [vmem:[%s210 + $0x2e8] sm:$0xff]
    %v9853 = vld [vmem:[%s210 + $0x2f0] sm:$0xff]
    %v9854 = vld [vmem:[%s210 + $0x300] sm:$0xff]
    %v9855 = vld [vmem:[%s210 + $0x308] sm:$0xff]
    %v9856 = vld [vmem:[%s210 + $0x318] sm:$0xff]
    %v9857 = vld [vmem:[%s210 + $0x320] sm:$0xff]
    %v9858 = vld [vmem:[%s210 + $0x1] sm:$0xff]
    %v9859 = vld [vmem:[%s210 + $0x9] sm:$0xff]
    %v9860 = vld [vmem:[%s210 + $0x19] sm:$0xff]
    %v9861 = vld [vmem:[%s210 + $0x21] sm:$0xff]
    %v9862 = vld [vmem:[%s210 + $0x31] sm:$0xff]
    %v9863 = vld [vmem:[%s210 + $0x39] sm:$0xff]
    %v9864 = vld [vmem:[%s210 + $0x49] sm:$0xff]
    %v9865 = vld [vmem:[%s210 + $0x51] sm:$0xff]
    %v9866 = vld [vmem:[%s210 + $0x61] sm:$0xff]
    %v9867 = vld [vmem:[%s210 + $0x69] sm:$0xff]
    %v9868 = vld [vmem:[%s210 + $0x79] sm:$0xff]
    %v9869 = vld [vmem:[%s210 + $0x81] sm:$0xff]
    %v9870 = vld [vmem:[%s210 + $0x91] sm:$0xff]
    %v9871 = vld [vmem:[%s210 + $0x99] sm:$0xff]
    %v9872 = vld [vmem:[%s210 + $0xa9] sm:$0xff]
    %v9873 = vld [vmem:[%s210 + $0xb1] sm:$0xff]
    %v9874 = vld [vmem:[%s210 + $0xc1] sm:$0xff]
    %v9875 = vld [vmem:[%s210 + $0xc9] sm:$0xff]
    %v9876 = vld [vmem:[%s210 + $0xd9] sm:$0xff]
    %v9877 = vld [vmem:[%s210 + $0xe1] sm:$0xff]
    %v9878 = vld [vmem:[%s210 + $0xf1] sm:$0xff]
    %v9879 = vld [vmem:[%s210 + $0xf9] sm:$0xff]
    %v9880 = vld [vmem:[%s210 + $0x109] sm:$0xff]
    %v9881 = vld [vmem:[%s210 + $0x111] sm:$0xff]
    %v9882 = vld [vmem:[%s210 + $0x121] sm:$0xff]
    %v9883 = vld [vmem:[%s210 + $0x129] sm:$0xff]
    %v9884 = vld [vmem:[%s210 + $0x139] sm:$0xff]
    %v9885 = vld [vmem:[%s210 + $0x141] sm:$0xff]
    %v9886 = vld [vmem:[%s210 + $0x151] sm:$0xff]
    %v9887 = vld [vmem:[%s210 + $0x159] sm:$0xff]
    %v9888 = vld [vmem:[%s210 + $0x169] sm:$0xff]
    %v9889 = vld [vmem:[%s210 + $0x171] sm:$0xff]
    %v9890 = vld [vmem:[%s210 + $0x1b1] sm:$0xff]
    %v9891 = vld [vmem:[%s210 + $0x1b9] sm:$0xff]
    %v9892 = vld [vmem:[%s210 + $0x1c9] sm:$0xff]
    %v9893 = vld [vmem:[%s210 + $0x1d1] sm:$0xff]
    %v9894 = vld [vmem:[%s210 + $0x1e1] sm:$0xff]
    %v9895 = vld [vmem:[%s210 + $0x1e9] sm:$0xff]
    %v9896 = vld [vmem:[%s210 + $0x1f9] sm:$0xff]
    %v9897 = vld [vmem:[%s210 + $0x201] sm:$0xff]
    %v9898 = vld [vmem:[%s210 + $0x211] sm:$0xff]
    %v9899 = vld [vmem:[%s210 + $0x219] sm:$0xff]
    %v9900 = vld [vmem:[%s210 + $0x229] sm:$0xff]
    %v9901 = vld [vmem:[%s210 + $0x231] sm:$0xff]
    %v9902 = vld [vmem:[%s210 + $0x241] sm:$0xff]
    %v9903 = vld [vmem:[%s210 + $0x249] sm:$0xff]
    %v9904 = vld [vmem:[%s210 + $0x259] sm:$0xff]
    %v9905 = vld [vmem:[%s210 + $0x261] sm:$0xff]
    %v9906 = vld [vmem:[%s210 + $0x271] sm:$0xff]
    %v9907 = vld [vmem:[%s210 + $0x279] sm:$0xff]
    %v9908 = vld [vmem:[%s210 + $0x289] sm:$0xff]
    %v9909 = vld [vmem:[%s210 + $0x291] sm:$0xff]
    %v9910 = vld [vmem:[%s210 + $0x2a1] sm:$0xff]
    %v9911 = vld [vmem:[%s210 + $0x2a9] sm:$0xff]
    %v9912 = vld [vmem:[%s210 + $0x2b9] sm:$0xff]
    %v9913 = vld [vmem:[%s210 + $0x2c1] sm:$0xff]
    %v9914 = vld [vmem:[%s210 + $0x2d1] sm:$0xff]
    %v9915 = vld [vmem:[%s210 + $0x2d9] sm:$0xff]
    %v9916 = vld [vmem:[%s210 + $0x2e9] sm:$0xff]
    %v9917 = vld [vmem:[%s210 + $0x2f1] sm:$0xff]
    %v9918 = vld [vmem:[%s210 + $0x301] sm:$0xff]
    %v9919 = vld [vmem:[%s210 + $0x309] sm:$0xff]
    %v9920 = vld [vmem:[%s210 + $0x319] sm:$0xff]
    %v9921 = vld [vmem:[%s210 + $0x321] sm:$0xff]
    %v9922 = vld [vmem:[%s210 + $0x2] sm:$0xff]
    %v9923 = vld [vmem:[%s210 + $0xa] sm:$0xff]
    %v9924 = vld [vmem:[%s210 + $0x1a] sm:$0xff]
    %v9925 = vld [vmem:[%s210 + $0x22] sm:$0xff]
    %v9926 = vld [vmem:[%s210 + $0x32] sm:$0xff]
    %v9927 = vld [vmem:[%s210 + $0x3a] sm:$0xff]
    %v9928 = vld [vmem:[%s210 + $0x4a] sm:$0xff]
    %v9929 = vld [vmem:[%s210 + $0x52] sm:$0xff]
    %v9930 = vld [vmem:[%s210 + $0x62] sm:$0xff]
    %v9931 = vld [vmem:[%s210 + $0x6a] sm:$0xff]
    %v9932 = vld [vmem:[%s210 + $0x7a] sm:$0xff]
    %v9933 = vld [vmem:[%s210 + $0x82] sm:$0xff]
    %v9934 = vld [vmem:[%s210 + $0x92] sm:$0xff]
    %v9935 = vld [vmem:[%s210 + $0x9a] sm:$0xff]
    %v9936 = vld [vmem:[%s210 + $0xaa] sm:$0xff]
    %v9937 = vld [vmem:[%s210 + $0xb2] sm:$0xff]
    %v9938 = vld [vmem:[%s210 + $0xc2] sm:$0xff]
    %v9939 = vld [vmem:[%s210 + $0xca] sm:$0xff]
    %v9940 = vld [vmem:[%s210 + $0xda] sm:$0xff]
    %v9941 = vld [vmem:[%s210 + $0xe2] sm:$0xff]
    %v9942 = vld [vmem:[%s210 + $0xf2] sm:$0xff]
    %v9943 = vld [vmem:[%s210 + $0xfa] sm:$0xff]
    %v9944 = vld [vmem:[%s210 + $0x10a] sm:$0xff]
    %v9945 = vld [vmem:[%s210 + $0x112] sm:$0xff]
    %v9946 = vld [vmem:[%s210 + $0x122] sm:$0xff]
    %v9947 = vld [vmem:[%s210 + $0x12a] sm:$0xff]
    %v9948 = vld [vmem:[%s210 + $0x13a] sm:$0xff]
    %v9949 = vld [vmem:[%s210 + $0x142] sm:$0xff]
    %v9950 = vld [vmem:[%s210 + $0x152] sm:$0xff]
    %v9951 = vld [vmem:[%s210 + $0x15a] sm:$0xff]
    %v9952 = vld [vmem:[%s210 + $0x16a] sm:$0xff]
    %v9953 = vld [vmem:[%s210 + $0x172] sm:$0xff]
    %v9954 = vld [vmem:[%s210 + $0x1b2] sm:$0xff]
    %v9955 = vld [vmem:[%s210 + $0x1ba] sm:$0xff]
    %v9956 = vld [vmem:[%s210 + $0x1ca] sm:$0xff]
    %v9957 = vld [vmem:[%s210 + $0x1d2] sm:$0xff]
    %v9958 = vld [vmem:[%s210 + $0x1e2] sm:$0xff]
    %v9959 = vld [vmem:[%s210 + $0x1ea] sm:$0xff]
    %v9960 = vld [vmem:[%s210 + $0x1fa] sm:$0xff]
    %v9961 = vld [vmem:[%s210 + $0x202] sm:$0xff]
    %v9962 = vld [vmem:[%s210 + $0x212] sm:$0xff]
    %v9963 = vld [vmem:[%s210 + $0x21a] sm:$0xff]
    %v9964 = vld [vmem:[%s210 + $0x22a] sm:$0xff]
    %v9965 = vld [vmem:[%s210 + $0x232] sm:$0xff]
    %v9966 = vld [vmem:[%s210 + $0x242] sm:$0xff]
    %v9967 = vld [vmem:[%s210 + $0x24a] sm:$0xff]
    %v9968 = vld [vmem:[%s210 + $0x25a] sm:$0xff]
    %v9969 = vld [vmem:[%s210 + $0x262] sm:$0xff]
    %v9970 = vld [vmem:[%s210 + $0x272] sm:$0xff]
    %v9971 = vld [vmem:[%s210 + $0x27a] sm:$0xff]
    %v9972 = vld [vmem:[%s210 + $0x28a] sm:$0xff]
    %v9973 = vld [vmem:[%s210 + $0x292] sm:$0xff]
    %v9974 = vld [vmem:[%s210 + $0x2a2] sm:$0xff]
    %v9975 = vld [vmem:[%s210 + $0x2aa] sm:$0xff]
    %v9976 = vld [vmem:[%s210 + $0x2ba] sm:$0xff]
    %v9977 = vld [vmem:[%s210 + $0x2c2] sm:$0xff]
    %v9978 = vld [vmem:[%s210 + $0x2d2] sm:$0xff]
    %v9979 = vld [vmem:[%s210 + $0x2da] sm:$0xff]
    %v9980 = vld [vmem:[%s210 + $0x2ea] sm:$0xff]
    %v9981 = vld [vmem:[%s210 + $0x2f2] sm:$0xff]
    %v9982 = vld [vmem:[%s210 + $0x302] sm:$0xff]
    %v9983 = vld [vmem:[%s210 + $0x30a] sm:$0xff]
    %v9984 = vld [vmem:[%s210 + $0x31a] sm:$0xff]
    %v9985 = vld [vmem:[%s210 + $0x322] sm:$0xff]
    %v9986 = vld [vmem:[%s660] sm:$0xff]
    %v9987 = vld [vmem:[%s660 + $0x8] sm:$0xff]
    %v9988 = vld [vmem:[%s660 + $0x18] sm:$0xff]
    %v9989 = vld [vmem:[%s660 + $0x20] sm:$0xff]
    %v9990 = vld [vmem:[%s660 + $0x30] sm:$0xff]
    %v9991 = vld [vmem:[%s660 + $0x38] sm:$0xff]
    %v9992 = vld [vmem:[%s660 + $0x48] sm:$0xff]
    %v9993 = vld [vmem:[%s660 + $0x50] sm:$0xff]
    %v9994 = vld [vmem:[%s660 + $0x60] sm:$0xff]
    %v9995 = vld [vmem:[%s660 + $0x68] sm:$0xff]
    %v9996 = vld [vmem:[%s660 + $0x78] sm:$0xff]
    %v9997 = vld [vmem:[%s660 + $0x80] sm:$0xff]
    %v9998 = vld [vmem:[%s660 + $0x90] sm:$0xff]
    %v9999 = vld [vmem:[%s660 + $0x98] sm:$0xff]
    %v10000 = vld [vmem:[%s660 + $0xa8] sm:$0xff]
    %v10001 = vld [vmem:[%s660 + $0xb0] sm:$0xff]
    %v10002 = vld [vmem:[%s660 + $0xc0] sm:$0xff]
    %v10003 = vld [vmem:[%s660 + $0xc8] sm:$0xff]
    %v10004 = vld [vmem:[%s660 + $0xd8] sm:$0xff]
    %v10005 = vld [vmem:[%s660 + $0xe0] sm:$0xff]
    %v10006 = vld [vmem:[%s660 + $0xf0] sm:$0xff]
    %v10007 = vld [vmem:[%s660 + $0xf8] sm:$0xff]
    %v10008 = vld [vmem:[%s660 + $0x108] sm:$0xff]
    %v10009 = vld [vmem:[%s660 + $0x110] sm:$0xff]
    %v10010 = vld [vmem:[%s660 + $0x120] sm:$0xff]
    %v10011 = vld [vmem:[%s660 + $0x128] sm:$0xff]
    %v10012 = vld [vmem:[%s660 + $0x138] sm:$0xff]
    %v10013 = vld [vmem:[%s660 + $0x140] sm:$0xff]
    %v10014 = vld [vmem:[%s660 + $0x150] sm:$0xff]
    %v10015 = vld [vmem:[%s660 + $0x158] sm:$0xff]
    %v10016 = vld [vmem:[%s660 + $0x168] sm:$0xff]
    %v10017 = vld [vmem:[%s660 + $0x170] sm:$0xff]
    %v10018 = vld [vmem:[%s660 + $0x1b0] sm:$0xff]
    %v10019 = vld [vmem:[%s660 + $0x1b8] sm:$0xff]
    %v10020 = vld [vmem:[%s660 + $0x1c8] sm:$0xff]
    %v10021 = vld [vmem:[%s660 + $0x1d0] sm:$0xff]
    %v10022 = vld [vmem:[%s660 + $0x1e0] sm:$0xff]
    %v10023 = vld [vmem:[%s660 + $0x1e8] sm:$0xff]
    %v10024 = vld [vmem:[%s660 + $0x1f8] sm:$0xff]
    %v10025 = vld [vmem:[%s660 + $0x200] sm:$0xff]
    %v10026 = vld [vmem:[%s660 + $0x210] sm:$0xff]
    %v10027 = vld [vmem:[%s660 + $0x218] sm:$0xff]
    %v10028 = vld [vmem:[%s660 + $0x228] sm:$0xff]
    %v10029 = vld [vmem:[%s660 + $0x230] sm:$0xff]
    %v10030 = vld [vmem:[%s660 + $0x240] sm:$0xff]
    %v10031 = vld [vmem:[%s660 + $0x248] sm:$0xff]
    %v10032 = vld [vmem:[%s660 + $0x258] sm:$0xff]
    %v10033 = vld [vmem:[%s660 + $0x260] sm:$0xff]
    %v10034 = vld [vmem:[%s660 + $0x270] sm:$0xff]
    %v10035 = vld [vmem:[%s660 + $0x278] sm:$0xff]
    %v10036 = vld [vmem:[%s660 + $0x288] sm:$0xff]
    %v10037 = vld [vmem:[%s660 + $0x290] sm:$0xff]
    %v10038 = vld [vmem:[%s660 + $0x2a0] sm:$0xff]
    %v10039 = vld [vmem:[%s660 + $0x2a8] sm:$0xff]
    %v10040 = vld [vmem:[%s660 + $0x2b8] sm:$0xff]
    %v10041 = vld [vmem:[%s660 + $0x2c0] sm:$0xff]
    %v10042 = vld [vmem:[%s660 + $0x2d0] sm:$0xff]
    %v10043 = vld [vmem:[%s660 + $0x2d8] sm:$0xff]
    %v10044 = vld [vmem:[%s660 + $0x2e8] sm:$0xff]
    %v10045 = vld [vmem:[%s660 + $0x2f0] sm:$0xff]
    %v10046 = vld [vmem:[%s660 + $0x300] sm:$0xff]
    %v10047 = vld [vmem:[%s660 + $0x308] sm:$0xff]
    %v10048 = vld [vmem:[%s660 + $0x318] sm:$0xff]
    %v10049 = vld [vmem:[%s660 + $0x320] sm:$0xff]
    %v10050 = vld [vmem:[%s660 + $0x1] sm:$0xff]
    %v10051 = vld [vmem:[%s660 + $0x9] sm:$0xff]
    %v10052 = vld [vmem:[%s660 + $0x19] sm:$0xff]
    %v10053 = vld [vmem:[%s660 + $0x21] sm:$0xff]
    %v10054 = vld [vmem:[%s660 + $0x31] sm:$0xff]
    %v10055 = vld [vmem:[%s660 + $0x39] sm:$0xff]
    %v10056 = vld [vmem:[%s660 + $0x49] sm:$0xff]
    %v10057 = vld [vmem:[%s660 + $0x51] sm:$0xff]
    %v10058 = vld [vmem:[%s660 + $0x61] sm:$0xff]
    %v10059 = vld [vmem:[%s660 + $0x69] sm:$0xff]
    %v10060 = vld [vmem:[%s660 + $0x79] sm:$0xff]
    %v10061 = vld [vmem:[%s660 + $0x81] sm:$0xff]
    %v10062 = vld [vmem:[%s660 + $0x91] sm:$0xff]
    %v10063 = vld [vmem:[%s660 + $0x99] sm:$0xff]
    %v10064 = vld [vmem:[%s660 + $0xa9] sm:$0xff]
    %v10065 = vld [vmem:[%s660 + $0xb1] sm:$0xff]
    %v10066 = vld [vmem:[%s660 + $0xc1] sm:$0xff]
    %v10067 = vld [vmem:[%s660 + $0xc9] sm:$0xff]
    %v10068 = vld [vmem:[%s660 + $0xd9] sm:$0xff]
    %v10069 = vld [vmem:[%s660 + $0xe1] sm:$0xff]
    %v10070 = vld [vmem:[%s660 + $0xf1] sm:$0xff]
    %v10071 = vld [vmem:[%s660 + $0xf9] sm:$0xff]
    %v10072 = vld [vmem:[%s660 + $0x109] sm:$0xff]
    %v10073 = vld [vmem:[%s660 + $0x111] sm:$0xff]
    %v10074 = vld [vmem:[%s660 + $0x121] sm:$0xff]
    %v10075 = vld [vmem:[%s660 + $0x129] sm:$0xff]
    %v10076 = vld [vmem:[%s660 + $0x139] sm:$0xff]
    %v10077 = vld [vmem:[%s660 + $0x141] sm:$0xff]
    %v10078 = vld [vmem:[%s660 + $0x151] sm:$0xff]
    %v10079 = vld [vmem:[%s660 + $0x159] sm:$0xff]
    %v10080 = vld [vmem:[%s660 + $0x169] sm:$0xff]
    %v10081 = vld [vmem:[%s660 + $0x171] sm:$0xff]
    %v10082 = vld [vmem:[%s660 + $0x1b1] sm:$0xff]
    %v10083 = vld [vmem:[%s660 + $0x1b9] sm:$0xff]
    %v10084 = vld [vmem:[%s660 + $0x1c9] sm:$0xff]
    %v10085 = vld [vmem:[%s660 + $0x1d1] sm:$0xff]
    %v10086 = vld [vmem:[%s660 + $0x1e1] sm:$0xff]
    %v10087 = vld [vmem:[%s660 + $0x1e9] sm:$0xff]
    %v10088 = vld [vmem:[%s660 + $0x1f9] sm:$0xff]
    %v10089 = vld [vmem:[%s660 + $0x201] sm:$0xff]
    %v10090 = vld [vmem:[%s660 + $0x211] sm:$0xff]
    %v10091 = vld [vmem:[%s660 + $0x219] sm:$0xff]
    %v10092 = vld [vmem:[%s660 + $0x229] sm:$0xff]
    %v10093 = vld [vmem:[%s660 + $0x231] sm:$0xff]
    %v10094 = vld [vmem:[%s660 + $0x241] sm:$0xff]
    %v10095 = vld [vmem:[%s660 + $0x249] sm:$0xff]
    %v10096 = vld [vmem:[%s660 + $0x259] sm:$0xff]
    %v10097 = vld [vmem:[%s660 + $0x261] sm:$0xff]
    %v10098 = vld [vmem:[%s660 + $0x271] sm:$0xff]
    %v10099 = vld [vmem:[%s660 + $0x279] sm:$0xff]
    %v10100 = vld [vmem:[%s660 + $0x289] sm:$0xff]
    %v10101 = vld [vmem:[%s660 + $0x291] sm:$0xff]
    %v10102 = vld [vmem:[%s660 + $0x2a1] sm:$0xff]
    %v10103 = vld [vmem:[%s660 + $0x2a9] sm:$0xff]
    %v10104 = vld [vmem:[%s660 + $0x2b9] sm:$0xff]
    %v10105 = vld [vmem:[%s660 + $0x2c1] sm:$0xff]
    %v10106 = vld [vmem:[%s660 + $0x2d1] sm:$0xff]
    %v10107 = vld [vmem:[%s660 + $0x2d9] sm:$0xff]
    %v10108 = vld [vmem:[%s660 + $0x2e9] sm:$0xff]
    %v10109 = vld [vmem:[%s660 + $0x2f1] sm:$0xff]
    %v10110 = vld [vmem:[%s660 + $0x301] sm:$0xff]
    %v10111 = vld [vmem:[%s660 + $0x309] sm:$0xff]
    %v10112 = vld [vmem:[%s660 + $0x319] sm:$0xff]
    %v10113 = vld [vmem:[%s660 + $0x321] sm:$0xff]
    %v10114 = vld [vmem:[%s660 + $0x2] sm:$0xff]
    %v10115 = vld [vmem:[%s660 + $0xa] sm:$0xff]
    %v10116 = vld [vmem:[%s660 + $0x1a] sm:$0xff]
    %v10117 = vld [vmem:[%s660 + $0x22] sm:$0xff]
    %v10118 = vld [vmem:[%s660 + $0x32] sm:$0xff]
    %v10119 = vld [vmem:[%s660 + $0x3a] sm:$0xff]
    %v10120 = vld [vmem:[%s660 + $0x4a] sm:$0xff]
    %v10121 = vld [vmem:[%s660 + $0x52] sm:$0xff]
    %v10122 = vld [vmem:[%s660 + $0x62] sm:$0xff]
    %v10123 = vld [vmem:[%s660 + $0x6a] sm:$0xff]
    %v10124 = vld [vmem:[%s660 + $0x7a] sm:$0xff]
    %v10125 = vld [vmem:[%s660 + $0x82] sm:$0xff]
    %v10126 = vld [vmem:[%s660 + $0x92] sm:$0xff]
    %v10127 = vld [vmem:[%s660 + $0x9a] sm:$0xff]
    %v10128 = vld [vmem:[%s660 + $0xaa] sm:$0xff]
    %v10129 = vld [vmem:[%s660 + $0xb2] sm:$0xff]
    %v10130 = vld [vmem:[%s660 + $0xc2] sm:$0xff]
    %v10131 = vld [vmem:[%s660 + $0xca] sm:$0xff]
    %v10132 = vld [vmem:[%s660 + $0xda] sm:$0xff]
    %v10133 = vld [vmem:[%s660 + $0xe2] sm:$0xff]
    %v10134 = vld [vmem:[%s660 + $0xf2] sm:$0xff]
    %v10135 = vld [vmem:[%s660 + $0xfa] sm:$0xff]
    %v10136 = vld [vmem:[%s660 + $0x10a] sm:$0xff]
    %v10137 = vld [vmem:[%s660 + $0x112] sm:$0xff]
    %v10138 = vld [vmem:[%s660 + $0x122] sm:$0xff]
    %v10139 = vld [vmem:[%s660 + $0x12a] sm:$0xff]
    %v10140 = vld [vmem:[%s660 + $0x13a] sm:$0xff]
    %v10141 = vld [vmem:[%s660 + $0x142] sm:$0xff]
    %v10142 = vld [vmem:[%s660 + $0x152] sm:$0xff]
    %v10143 = vld [vmem:[%s660 + $0x15a] sm:$0xff]
    %v10144 = vld [vmem:[%s660 + $0x16a] sm:$0xff]
    %v10145 = vld [vmem:[%s660 + $0x172] sm:$0xff]
    %v10146 = vld [vmem:[%s660 + $0x1b2] sm:$0xff]
    %v10147 = vld [vmem:[%s660 + $0x1ba] sm:$0xff]
    %v10148 = vld [vmem:[%s660 + $0x1ca] sm:$0xff]
    %v10149 = vld [vmem:[%s660 + $0x1d2] sm:$0xff]
    %v10150 = vld [vmem:[%s660 + $0x1e2] sm:$0xff]
    %v10151 = vld [vmem:[%s660 + $0x1ea] sm:$0xff]
    %v10152 = vld [vmem:[%s660 + $0x1fa] sm:$0xff]
    %v10153 = vld [vmem:[%s660 + $0x202] sm:$0xff]
    %v10154 = vld [vmem:[%s660 + $0x212] sm:$0xff]
    %v10155 = vld [vmem:[%s660 + $0x21a] sm:$0xff]
    %v10156 = vld [vmem:[%s660 + $0x22a] sm:$0xff]
    %v10157 = vld [vmem:[%s660 + $0x232] sm:$0xff]
    %v10158 = vld [vmem:[%s660 + $0x242] sm:$0xff]
    %v10159 = vld [vmem:[%s660 + $0x24a] sm:$0xff]
    %v10160 = vld [vmem:[%s660 + $0x25a] sm:$0xff]
    %v10161 = vld [vmem:[%s660 + $0x262] sm:$0xff]
    %v10162 = vld [vmem:[%s660 + $0x272] sm:$0xff]
    %v10163 = vld [vmem:[%s660 + $0x27a] sm:$0xff]
    %v10164 = vld [vmem:[%s660 + $0x28a] sm:$0xff]
    %v10165 = vld [vmem:[%s660 + $0x292] sm:$0xff]
    %v10166 = vld [vmem:[%s660 + $0x2a2] sm:$0xff]
    %v10167 = vld [vmem:[%s660 + $0x2aa] sm:$0xff]
    %v10168 = vld [vmem:[%s660 + $0x2ba] sm:$0xff]
    %v10169 = vld [vmem:[%s660 + $0x2c2] sm:$0xff]
    %v10170 = vld [vmem:[%s660 + $0x2d2] sm:$0xff]
    %v10171 = vld [vmem:[%s660 + $0x2da] sm:$0xff]
    %v10172 = vld [vmem:[%s660 + $0x2ea] sm:$0xff]
    %v10173 = vld [vmem:[%s660 + $0x2f2] sm:$0xff]
    %v10174 = vld [vmem:[%s660 + $0x302] sm:$0xff]
    %v10175 = vld [vmem:[%s660 + $0x30a] sm:$0xff]
    %v10176 = vld [vmem:[%s660 + $0x31a] sm:$0xff]
    %v10177 = vld [vmem:[%s660 + $0x322] sm:$0xff]
    %10242 = vrot.lane.b32.xlu0 %v9666, 20
    %v10243 = vpop.permute.xlu0 %10242
    %10244 = vrot.lane.b32.xlu0 %v9667, 20
    %v10245 = vpop.permute.xlu0 %10244
    %10246 = vrot.lane.b32.xlu0 %v9668, 20
    %v10247 = vpop.permute.xlu0 %10246
    %10248 = vrot.lane.b32.xlu0 %v9669, 20
    %v10249 = vpop.permute.xlu0 %10248
    %10250 = vrot.lane.b32.xlu0 %v9670, 20
    %v10251 = vpop.permute.xlu0 %10250
    %10252 = vrot.lane.b32.xlu0 %v9671, 20
    %v10253 = vpop.permute.xlu0 %10252
    %10254 = vrot.lane.b32.xlu0 %v9672, 20
    %v10255 = vpop.permute.xlu0 %10254
    %10256 = vrot.lane.b32.xlu0 %v9673, 20
    %v10257 = vpop.permute.xlu0 %10256
    %10258 = vrot.lane.b32.xlu0 %v9674, 20
    %v10259 = vpop.permute.xlu0 %10258
    %10260 = vrot.lane.b32.xlu0 %v9675, 20
    %v10261 = vpop.permute.xlu0 %10260
    %10262 = vrot.lane.b32.xlu0 %v9676, 20
    %v10263 = vpop.permute.xlu0 %10262
    %10264 = vrot.lane.b32.xlu0 %v9677, 20
    %v10265 = vpop.permute.xlu0 %10264
    %10266 = vrot.lane.b32.xlu0 %v9678, 20
    %v10267 = vpop.permute.xlu0 %10266
    %10268 = vrot.lane.b32.xlu0 %v9679, 20
    %v10269 = vpop.permute.xlu0 %10268
    %10270 = vrot.lane.b32.xlu0 %v9680, 20
    %v10271 = vpop.permute.xlu0 %10270
    %10272 = vrot.lane.b32.xlu0 %v9681, 20
    %v10273 = vpop.permute.xlu0 %10272
    %10274 = vrot.lane.b32.xlu0 %v9682, 20
    %v10275 = vpop.permute.xlu0 %10274
    %10276 = vrot.lane.b32.xlu0 %v9683, 20
    %v10277 = vpop.permute.xlu0 %10276
    %10278 = vrot.lane.b32.xlu0 %v9684, 20
    %v10279 = vpop.permute.xlu0 %10278
    %10280 = vrot.lane.b32.xlu0 %v9685, 20
    %v10281 = vpop.permute.xlu0 %10280
    %10282 = vrot.lane.b32.xlu0 %v9686, 20
    %v10283 = vpop.permute.xlu0 %10282
    %10284 = vrot.lane.b32.xlu0 %v9687, 20
    %v10285 = vpop.permute.xlu0 %10284
    %10286 = vrot.lane.b32.xlu0 %v9688, 20
    %v10287 = vpop.permute.xlu0 %10286
    %10288 = vrot.lane.b32.xlu0 %v9689, 20
    %v10289 = vpop.permute.xlu0 %10288
    %10290 = vrot.lane.b32.xlu0 %v9690, 20
    %v10291 = vpop.permute.xlu0 %10290
    %10292 = vrot.lane.b32.xlu0 %v9691, 20
    %v10293 = vpop.permute.xlu0 %10292
    %10294 = vrot.lane.b32.xlu0 %v9692, 20
    %v10295 = vpop.permute.xlu0 %10294
    %10296 = vrot.lane.b32.xlu0 %v9693, 20
    %v10297 = vpop.permute.xlu0 %10296
    %10298 = vrot.lane.b32.xlu0 %v9694, 20
    %v10299 = vpop.permute.xlu0 %10298
    %10300 = vrot.lane.b32.xlu0 %v9695, 20
    %v10301 = vpop.permute.xlu0 %10300
    %10302 = vrot.lane.b32.xlu0 %v9696, 20
    %v10303 = vpop.permute.xlu0 %10302
    %10304 = vrot.lane.b32.xlu0 %v9697, 20
    %v10305 = vpop.permute.xlu0 %10304
    %10306 = vrot.lane.b32.xlu0 %v9698, 20
    %v10307 = vpop.permute.xlu0 %10306
    %10308 = vrot.lane.b32.xlu0 %v9699, 20
    %v10309 = vpop.permute.xlu0 %10308
    %10310 = vrot.lane.b32.xlu0 %v9700, 20
    %v10311 = vpop.permute.xlu0 %10310
    %10312 = vrot.lane.b32.xlu0 %v9701, 20
    %v10313 = vpop.permute.xlu0 %10312
    %10314 = vrot.lane.b32.xlu0 %v9702, 20
    %v10315 = vpop.permute.xlu0 %10314
    %10316 = vrot.lane.b32.xlu0 %v9703, 20
    %v10317 = vpop.permute.xlu0 %10316
    %10318 = vrot.lane.b32.xlu0 %v9704, 20
    %v10319 = vpop.permute.xlu0 %10318
    %10320 = vrot.lane.b32.xlu0 %v9705, 20
    %v10321 = vpop.permute.xlu0 %10320
    %10322 = vrot.lane.b32.xlu0 %v9706, 20
    %v10323 = vpop.permute.xlu0 %10322
    %10324 = vrot.lane.b32.xlu0 %v9707, 20
    %v10325 = vpop.permute.xlu0 %10324
    %10326 = vrot.lane.b32.xlu0 %v9708, 20
    %v10327 = vpop.permute.xlu0 %10326
    %10328 = vrot.lane.b32.xlu0 %v9709, 20
    %v10329 = vpop.permute.xlu0 %10328
    %10330 = vrot.lane.b32.xlu0 %v9710, 20
    %v10331 = vpop.permute.xlu0 %10330
    %10332 = vrot.lane.b32.xlu0 %v9711, 20
    %v10333 = vpop.permute.xlu0 %10332
    %10334 = vrot.lane.b32.xlu0 %v9712, 20
    %v10335 = vpop.permute.xlu0 %10334
    %10336 = vrot.lane.b32.xlu0 %v9713, 20
    %v10337 = vpop.permute.xlu0 %10336
    %10338 = vrot.lane.b32.xlu0 %v9714, 20
    %v10339 = vpop.permute.xlu0 %10338
    %10340 = vrot.lane.b32.xlu0 %v9715, 20
    %v10341 = vpop.permute.xlu0 %10340
    %10342 = vrot.lane.b32.xlu0 %v9716, 20
    %v10343 = vpop.permute.xlu0 %10342
    %10344 = vrot.lane.b32.xlu0 %v9717, 20
    %v10345 = vpop.permute.xlu0 %10344
    %10346 = vrot.lane.b32.xlu0 %v9718, 20
    %v10347 = vpop.permute.xlu0 %10346
    %10348 = vrot.lane.b32.xlu0 %v9719, 20
    %v10349 = vpop.permute.xlu0 %10348
    %10350 = vrot.lane.b32.xlu0 %v9720, 20
    %v10351 = vpop.permute.xlu0 %10350
    %10352 = vrot.lane.b32.xlu0 %v9721, 20
    %v10353 = vpop.permute.xlu0 %10352
    %10354 = vrot.lane.b32.xlu0 %v9722, 20
    %v10355 = vpop.permute.xlu0 %10354
    %10356 = vrot.lane.b32.xlu0 %v9723, 20
    %v10357 = vpop.permute.xlu0 %10356
    %10358 = vrot.lane.b32.xlu0 %v9724, 20
    %v10359 = vpop.permute.xlu0 %10358
    %10360 = vrot.lane.b32.xlu0 %v9725, 20
    %v10361 = vpop.permute.xlu0 %10360
    %10362 = vrot.lane.b32.xlu0 %v9726, 20
    %v10363 = vpop.permute.xlu0 %10362
    %10364 = vrot.lane.b32.xlu0 %v9727, 20
    %v10365 = vpop.permute.xlu0 %10364
    %10366 = vrot.lane.b32.xlu0 %v9728, 20
    %v10367 = vpop.permute.xlu0 %10366
    %10368 = vrot.lane.b32.xlu0 %v9729, 20
    %v10369 = vpop.permute.xlu0 %10368
    %10498 = vrot.lane.b32.xlu0 %v9730, 40
    %v10499 = vpop.permute.xlu0 %10498
    %10500 = vrot.lane.b32.xlu0 %v9731, 40
    %v10501 = vpop.permute.xlu0 %10500
    %10502 = vrot.lane.b32.xlu0 %v9732, 40
    %v10503 = vpop.permute.xlu0 %10502
    %10504 = vrot.lane.b32.xlu0 %v9733, 40
    %v10505 = vpop.permute.xlu0 %10504
    %10506 = vrot.lane.b32.xlu0 %v9734, 40
    %v10507 = vpop.permute.xlu0 %10506
    %10508 = vrot.lane.b32.xlu0 %v9735, 40
    %v10509 = vpop.permute.xlu0 %10508
    %10510 = vrot.lane.b32.xlu0 %v9736, 40
    %v10511 = vpop.permute.xlu0 %10510
    %10512 = vrot.lane.b32.xlu0 %v9737, 40
    %v10513 = vpop.permute.xlu0 %10512
    %10514 = vrot.lane.b32.xlu0 %v9738, 40
    %v10515 = vpop.permute.xlu0 %10514
    %10516 = vrot.lane.b32.xlu0 %v9739, 40
    %v10517 = vpop.permute.xlu0 %10516
    %10518 = vrot.lane.b32.xlu0 %v9740, 40
    %v10519 = vpop.permute.xlu0 %10518
    %10520 = vrot.lane.b32.xlu0 %v9741, 40
    %v10521 = vpop.permute.xlu0 %10520
    %10522 = vrot.lane.b32.xlu0 %v9742, 40
    %v10523 = vpop.permute.xlu0 %10522
    %10524 = vrot.lane.b32.xlu0 %v9743, 40
    %v10525 = vpop.permute.xlu0 %10524
    %10526 = vrot.lane.b32.xlu0 %v9744, 40
    %v10527 = vpop.permute.xlu0 %10526
    %10528 = vrot.lane.b32.xlu0 %v9745, 40
    %v10529 = vpop.permute.xlu0 %10528
    %10530 = vrot.lane.b32.xlu0 %v9746, 40
    %v10531 = vpop.permute.xlu0 %10530
    %10532 = vrot.lane.b32.xlu0 %v9747, 40
    %v10533 = vpop.permute.xlu0 %10532
    %10534 = vrot.lane.b32.xlu0 %v9748, 40
    %v10535 = vpop.permute.xlu0 %10534
    %10536 = vrot.lane.b32.xlu0 %v9749, 40
    %v10537 = vpop.permute.xlu0 %10536
    %10538 = vrot.lane.b32.xlu0 %v9750, 40
    %v10539 = vpop.permute.xlu0 %10538
    %10540 = vrot.lane.b32.xlu0 %v9751, 40
    %v10541 = vpop.permute.xlu0 %10540
    %10542 = vrot.lane.b32.xlu0 %v9752, 40
    %v10543 = vpop.permute.xlu0 %10542
    %10544 = vrot.lane.b32.xlu0 %v9753, 40
    %v10545 = vpop.permute.xlu0 %10544
    %10546 = vrot.lane.b32.xlu0 %v9754, 40
    %v10547 = vpop.permute.xlu0 %10546
    %10548 = vrot.lane.b32.xlu0 %v9755, 40
    %v10549 = vpop.permute.xlu0 %10548
    %10550 = vrot.lane.b32.xlu0 %v9756, 40
    %v10551 = vpop.permute.xlu0 %10550
    %10552 = vrot.lane.b32.xlu0 %v9757, 40
    %v10553 = vpop.permute.xlu0 %10552
    %10554 = vrot.lane.b32.xlu0 %v9758, 40
    %v10555 = vpop.permute.xlu0 %10554
    %10556 = vrot.lane.b32.xlu0 %v9759, 40
    %v10557 = vpop.permute.xlu0 %10556
    %10558 = vrot.lane.b32.xlu0 %v9760, 40
    %v10559 = vpop.permute.xlu0 %10558
    %10560 = vrot.lane.b32.xlu0 %v9761, 40
    %v10561 = vpop.permute.xlu0 %10560
    %10562 = vrot.lane.b32.xlu0 %v9762, 40
    %v10563 = vpop.permute.xlu0 %10562
    %10564 = vrot.lane.b32.xlu0 %v9763, 40
    %v10565 = vpop.permute.xlu0 %10564
    %10566 = vrot.lane.b32.xlu0 %v9764, 40
    %v10567 = vpop.permute.xlu0 %10566
    %10568 = vrot.lane.b32.xlu0 %v9765, 40
    %v10569 = vpop.permute.xlu0 %10568
    %10570 = vrot.lane.b32.xlu0 %v9766, 40
    %v10571 = vpop.permute.xlu0 %10570
    %10572 = vrot.lane.b32.xlu0 %v9767, 40
    %v10573 = vpop.permute.xlu0 %10572
    %10574 = vrot.lane.b32.xlu0 %v9768, 40
    %v10575 = vpop.permute.xlu0 %10574
    %10576 = vrot.lane.b32.xlu0 %v9769, 40
    %v10577 = vpop.permute.xlu0 %10576
    %10578 = vrot.lane.b32.xlu0 %v9770, 40
    %v10579 = vpop.permute.xlu0 %10578
    %10580 = vrot.lane.b32.xlu0 %v9771, 40
    %v10581 = vpop.permute.xlu0 %10580
    %10582 = vrot.lane.b32.xlu0 %v9772, 40
    %v10583 = vpop.permute.xlu0 %10582
    %10584 = vrot.lane.b32.xlu0 %v9773, 40
    %v10585 = vpop.permute.xlu0 %10584
    %10586 = vrot.lane.b32.xlu0 %v9774, 40
    %v10587 = vpop.permute.xlu0 %10586
    %10588 = vrot.lane.b32.xlu0 %v9775, 40
    %v10589 = vpop.permute.xlu0 %10588
    %10590 = vrot.lane.b32.xlu0 %v9776, 40
    %v10591 = vpop.permute.xlu0 %10590
    %10592 = vrot.lane.b32.xlu0 %v9777, 40
    %v10593 = vpop.permute.xlu0 %10592
    %10594 = vrot.lane.b32.xlu0 %v9778, 40
    %v10595 = vpop.permute.xlu0 %10594
    %10596 = vrot.lane.b32.xlu0 %v9779, 40
    %v10597 = vpop.permute.xlu0 %10596
    %10598 = vrot.lane.b32.xlu0 %v9780, 40
    %v10599 = vpop.permute.xlu0 %10598
    %10600 = vrot.lane.b32.xlu0 %v9781, 40
    %v10601 = vpop.permute.xlu0 %10600
    %10602 = vrot.lane.b32.xlu0 %v9782, 40
    %v10603 = vpop.permute.xlu0 %10602
    %10604 = vrot.lane.b32.xlu0 %v9783, 40
    %v10605 = vpop.permute.xlu0 %10604
    %10606 = vrot.lane.b32.xlu0 %v9784, 40
    %v10607 = vpop.permute.xlu0 %10606
    %10608 = vrot.lane.b32.xlu0 %v9785, 40
    %v10609 = vpop.permute.xlu0 %10608
    %10610 = vrot.lane.b32.xlu0 %v9786, 40
    %v10611 = vpop.permute.xlu0 %10610
    %10612 = vrot.lane.b32.xlu0 %v9787, 40
    %v10613 = vpop.permute.xlu0 %10612
    %10614 = vrot.lane.b32.xlu0 %v9788, 40
    %v10615 = vpop.permute.xlu0 %10614
    %10616 = vrot.lane.b32.xlu0 %v9789, 40
    %v10617 = vpop.permute.xlu0 %10616
    %10618 = vrot.lane.b32.xlu0 %v9790, 40
    %v10619 = vpop.permute.xlu0 %10618
    %10620 = vrot.lane.b32.xlu0 %v9791, 40
    %v10621 = vpop.permute.xlu0 %10620
    %10622 = vrot.lane.b32.xlu0 %v9792, 40
    %v10623 = vpop.permute.xlu0 %10622
    %10624 = vrot.lane.b32.xlu0 %v9793, 40
    %v10625 = vpop.permute.xlu0 %10624
    %10754 = vrot.lane.b32.xlu0 %v9794, 60
    %v10755 = vpop.permute.xlu0 %10754
    %10756 = vrot.lane.b32.xlu0 %v9795, 60
    %v10757 = vpop.permute.xlu0 %10756
    %10758 = vrot.lane.b32.xlu0 %v9796, 60
    %v10759 = vpop.permute.xlu0 %10758
    %10760 = vrot.lane.b32.xlu0 %v9797, 60
    %v10761 = vpop.permute.xlu0 %10760
    %10762 = vrot.lane.b32.xlu0 %v9798, 60
    %v10763 = vpop.permute.xlu0 %10762
    %10764 = vrot.lane.b32.xlu0 %v9799, 60
    %v10765 = vpop.permute.xlu0 %10764
    %10766 = vrot.lane.b32.xlu0 %v9800, 60
    %v10767 = vpop.permute.xlu0 %10766
    %10768 = vrot.lane.b32.xlu0 %v9801, 60
    %v10769 = vpop.permute.xlu0 %10768
    %10770 = vrot.lane.b32.xlu0 %v9802, 60
    %v10771 = vpop.permute.xlu0 %10770
    %10772 = vrot.lane.b32.xlu0 %v9803, 60
    %v10773 = vpop.permute.xlu0 %10772
    %10774 = vrot.lane.b32.xlu0 %v9804, 60
    %v10775 = vpop.permute.xlu0 %10774
    %10776 = vrot.lane.b32.xlu0 %v9805, 60
    %v10777 = vpop.permute.xlu0 %10776
    %10778 = vrot.lane.b32.xlu0 %v9806, 60
    %v10779 = vpop.permute.xlu0 %10778
    %10780 = vrot.lane.b32.xlu0 %v9807, 60
    %v10781 = vpop.permute.xlu0 %10780
    %10782 = vrot.lane.b32.xlu0 %v9808, 60
    %v10783 = vpop.permute.xlu0 %10782
    %10784 = vrot.lane.b32.xlu0 %v9809, 60
    %v10785 = vpop.permute.xlu0 %10784
    %10786 = vrot.lane.b32.xlu0 %v9810, 60
    %v10787 = vpop.permute.xlu0 %10786
    %10788 = vrot.lane.b32.xlu0 %v9811, 60
    %v10789 = vpop.permute.xlu0 %10788
    %10790 = vrot.lane.b32.xlu0 %v9812, 60
    %v10791 = vpop.permute.xlu0 %10790
    %10792 = vrot.lane.b32.xlu0 %v9813, 60
    %v10793 = vpop.permute.xlu0 %10792
    %10794 = vrot.lane.b32.xlu0 %v9814, 60
    %v10795 = vpop.permute.xlu0 %10794
    %10796 = vrot.lane.b32.xlu0 %v9815, 60
    %v10797 = vpop.permute.xlu0 %10796
    %10798 = vrot.lane.b32.xlu0 %v9816, 60
    %v10799 = vpop.permute.xlu0 %10798
    %10800 = vrot.lane.b32.xlu0 %v9817, 60
    %v10801 = vpop.permute.xlu0 %10800
    %10802 = vrot.lane.b32.xlu0 %v9818, 60
    %v10803 = vpop.permute.xlu0 %10802
    %10804 = vrot.lane.b32.xlu0 %v9819, 60
    %v10805 = vpop.permute.xlu0 %10804
    %10806 = vrot.lane.b32.xlu0 %v9820, 60
    %v10807 = vpop.permute.xlu0 %10806
    %10808 = vrot.lane.b32.xlu0 %v9821, 60
    %v10809 = vpop.permute.xlu0 %10808
    %10810 = vrot.lane.b32.xlu0 %v9822, 60
    %v10811 = vpop.permute.xlu0 %10810
    %10812 = vrot.lane.b32.xlu0 %v9823, 60
    %v10813 = vpop.permute.xlu0 %10812
    %10814 = vrot.lane.b32.xlu0 %v9824, 60
    %v10815 = vpop.permute.xlu0 %10814
    %10816 = vrot.lane.b32.xlu0 %v9825, 60
    %v10817 = vpop.permute.xlu0 %10816
    %10818 = vrot.lane.b32.xlu0 %v9826, 60
    %v10819 = vpop.permute.xlu0 %10818
    %10820 = vrot.lane.b32.xlu0 %v9827, 60
    %v10821 = vpop.permute.xlu0 %10820
    %10822 = vrot.lane.b32.xlu0 %v9828, 60
    %v10823 = vpop.permute.xlu0 %10822
    %10824 = vrot.lane.b32.xlu0 %v9829, 60
    %v10825 = vpop.permute.xlu0 %10824
    %10826 = vrot.lane.b32.xlu0 %v9830, 60
    %v10827 = vpop.permute.xlu0 %10826
    %10828 = vrot.lane.b32.xlu0 %v9831, 60
    %v10829 = vpop.permute.xlu0 %10828
    %10830 = vrot.lane.b32.xlu0 %v9832, 60
    %v10831 = vpop.permute.xlu0 %10830
    %10832 = vrot.lane.b32.xlu0 %v9833, 60
    %v10833 = vpop.permute.xlu0 %10832
    %10834 = vrot.lane.b32.xlu0 %v9834, 60
    %v10835 = vpop.permute.xlu0 %10834
    %10836 = vrot.lane.b32.xlu0 %v9835, 60
    %v10837 = vpop.permute.xlu0 %10836
    %10838 = vrot.lane.b32.xlu0 %v9836, 60
    %v10839 = vpop.permute.xlu0 %10838
    %10840 = vrot.lane.b32.xlu0 %v9837, 60
    %v10841 = vpop.permute.xlu0 %10840
    %10842 = vrot.lane.b32.xlu0 %v9838, 60
    %v10843 = vpop.permute.xlu0 %10842
    %10844 = vrot.lane.b32.xlu0 %v9839, 60
    %v10845 = vpop.permute.xlu0 %10844
    %10846 = vrot.lane.b32.xlu0 %v9840, 60
    %v10847 = vpop.permute.xlu0 %10846
    %10848 = vrot.lane.b32.xlu0 %v9841, 60
    %v10849 = vpop.permute.xlu0 %10848
    %10850 = vrot.lane.b32.xlu0 %v9842, 60
    %v10851 = vpop.permute.xlu0 %10850
    %10852 = vrot.lane.b32.xlu0 %v9843, 60
    %v10853 = vpop.permute.xlu0 %10852
    %10854 = vrot.lane.b32.xlu0 %v9844, 60
    %v10855 = vpop.permute.xlu0 %10854
    %10856 = vrot.lane.b32.xlu0 %v9845, 60
    %v10857 = vpop.permute.xlu0 %10856
    %10858 = vrot.lane.b32.xlu0 %v9846, 60
    %v10859 = vpop.permute.xlu0 %10858
    %10860 = vrot.lane.b32.xlu0 %v9847, 60
    %v10861 = vpop.permute.xlu0 %10860
    %10862 = vrot.lane.b32.xlu0 %v9848, 60
    %v10863 = vpop.permute.xlu0 %10862
    %10864 = vrot.lane.b32.xlu0 %v9849, 60
    %v10865 = vpop.permute.xlu0 %10864
    %10866 = vrot.lane.b32.xlu0 %v9850, 60
    %v10867 = vpop.permute.xlu0 %10866
    %10868 = vrot.lane.b32.xlu0 %v9851, 60
    %v10869 = vpop.permute.xlu0 %10868
    %10870 = vrot.lane.b32.xlu0 %v9852, 60
    %v10871 = vpop.permute.xlu0 %10870
    %10872 = vrot.lane.b32.xlu0 %v9853, 60
    %v10873 = vpop.permute.xlu0 %10872
    %10874 = vrot.lane.b32.xlu0 %v9854, 60
    %v10875 = vpop.permute.xlu0 %10874
    %10876 = vrot.lane.b32.xlu0 %v9855, 60
    %v10877 = vpop.permute.xlu0 %10876
    %10878 = vrot.lane.b32.xlu0 %v9856, 60
    %v10879 = vpop.permute.xlu0 %10878
    %10880 = vrot.lane.b32.xlu0 %v9857, 60
    %v10881 = vpop.permute.xlu0 %10880
    %11010 = vrot.lane.b32.xlu0 %v9858, 80
    %v11011 = vpop.permute.xlu0 %11010
    %11012 = vrot.lane.b32.xlu0 %v9859, 80
    %v11013 = vpop.permute.xlu0 %11012
    %11014 = vrot.lane.b32.xlu0 %v9860, 80
    %v11015 = vpop.permute.xlu0 %11014
    %11016 = vrot.lane.b32.xlu0 %v9861, 80
    %v11017 = vpop.permute.xlu0 %11016
    %11018 = vrot.lane.b32.xlu0 %v9862, 80
    %v11019 = vpop.permute.xlu0 %11018
    %11020 = vrot.lane.b32.xlu0 %v9863, 80
    %v11021 = vpop.permute.xlu0 %11020
    %11022 = vrot.lane.b32.xlu0 %v9864, 80
    %v11023 = vpop.permute.xlu0 %11022
    %11024 = vrot.lane.b32.xlu0 %v9865, 80
    %v11025 = vpop.permute.xlu0 %11024
    %11026 = vrot.lane.b32.xlu0 %v9866, 80
    %v11027 = vpop.permute.xlu0 %11026
    %11028 = vrot.lane.b32.xlu0 %v9867, 80
    %v11029 = vpop.permute.xlu0 %11028
    %11030 = vrot.lane.b32.xlu0 %v9868, 80
    %v11031 = vpop.permute.xlu0 %11030
    %11032 = vrot.lane.b32.xlu0 %v9869, 80
    %v11033 = vpop.permute.xlu0 %11032
    %11034 = vrot.lane.b32.xlu0 %v9870, 80
    %v11035 = vpop.permute.xlu0 %11034
    %11036 = vrot.lane.b32.xlu0 %v9871, 80
    %v11037 = vpop.permute.xlu0 %11036
    %11038 = vrot.lane.b32.xlu0 %v9872, 80
    %v11039 = vpop.permute.xlu0 %11038
    %11040 = vrot.lane.b32.xlu0 %v9873, 80
    %v11041 = vpop.permute.xlu0 %11040
    %11042 = vrot.lane.b32.xlu0 %v9874, 80
    %v11043 = vpop.permute.xlu0 %11042
    %11044 = vrot.lane.b32.xlu0 %v9875, 80
    %v11045 = vpop.permute.xlu0 %11044
    %11046 = vrot.lane.b32.xlu0 %v9876, 80
    %v11047 = vpop.permute.xlu0 %11046
    %11048 = vrot.lane.b32.xlu0 %v9877, 80
    %v11049 = vpop.permute.xlu0 %11048
    %11050 = vrot.lane.b32.xlu0 %v9878, 80
    %v11051 = vpop.permute.xlu0 %11050
    %11052 = vrot.lane.b32.xlu0 %v9879, 80
    %v11053 = vpop.permute.xlu0 %11052
    %11054 = vrot.lane.b32.xlu0 %v9880, 80
    %v11055 = vpop.permute.xlu0 %11054
    %11056 = vrot.lane.b32.xlu0 %v9881, 80
    %v11057 = vpop.permute.xlu0 %11056
    %11058 = vrot.lane.b32.xlu0 %v9882, 80
    %v11059 = vpop.permute.xlu0 %11058
    %11060 = vrot.lane.b32.xlu0 %v9883, 80
    %v11061 = vpop.permute.xlu0 %11060
    %11062 = vrot.lane.b32.xlu0 %v9884, 80
    %v11063 = vpop.permute.xlu0 %11062
    %11064 = vrot.lane.b32.xlu0 %v9885, 80
    %v11065 = vpop.permute.xlu0 %11064
    %11066 = vrot.lane.b32.xlu0 %v9886, 80
    %v11067 = vpop.permute.xlu0 %11066
    %11068 = vrot.lane.b32.xlu0 %v9887, 80
    %v11069 = vpop.permute.xlu0 %11068
    %11070 = vrot.lane.b32.xlu0 %v9888, 80
    %v11071 = vpop.permute.xlu0 %11070
    %11072 = vrot.lane.b32.xlu0 %v9889, 80
    %v11073 = vpop.permute.xlu0 %11072
    %11074 = vrot.lane.b32.xlu0 %v9890, 80
    %v11075 = vpop.permute.xlu0 %11074
    %11076 = vrot.lane.b32.xlu0 %v9891, 80
    %v11077 = vpop.permute.xlu0 %11076
    %11078 = vrot.lane.b32.xlu0 %v9892, 80
    %v11079 = vpop.permute.xlu0 %11078
    %11080 = vrot.lane.b32.xlu0 %v9893, 80
    %v11081 = vpop.permute.xlu0 %11080
    %11082 = vrot.lane.b32.xlu0 %v9894, 80
    %v11083 = vpop.permute.xlu0 %11082
    %11084 = vrot.lane.b32.xlu0 %v9895, 80
    %v11085 = vpop.permute.xlu0 %11084
    %11086 = vrot.lane.b32.xlu0 %v9896, 80
    %v11087 = vpop.permute.xlu0 %11086
    %11088 = vrot.lane.b32.xlu0 %v9897, 80
    %v11089 = vpop.permute.xlu0 %11088
    %11090 = vrot.lane.b32.xlu0 %v9898, 80
    %v11091 = vpop.permute.xlu0 %11090
    %11092 = vrot.lane.b32.xlu0 %v9899, 80
    %v11093 = vpop.permute.xlu0 %11092
    %11094 = vrot.lane.b32.xlu0 %v9900, 80
    %v11095 = vpop.permute.xlu0 %11094
    %11096 = vrot.lane.b32.xlu0 %v9901, 80
    %v11097 = vpop.permute.xlu0 %11096
    %11098 = vrot.lane.b32.xlu0 %v9902, 80
    %v11099 = vpop.permute.xlu0 %11098
    %11100 = vrot.lane.b32.xlu0 %v9903, 80
    %v11101 = vpop.permute.xlu0 %11100
    %11102 = vrot.lane.b32.xlu0 %v9904, 80
    %v11103 = vpop.permute.xlu0 %11102
    %11104 = vrot.lane.b32.xlu0 %v9905, 80
    %v11105 = vpop.permute.xlu0 %11104
    %11106 = vrot.lane.b32.xlu0 %v9906, 80
    %v11107 = vpop.permute.xlu0 %11106
    %11108 = vrot.lane.b32.xlu0 %v9907, 80
    %v11109 = vpop.permute.xlu0 %11108
    %11110 = vrot.lane.b32.xlu0 %v9908, 80
    %v11111 = vpop.permute.xlu0 %11110
    %11112 = vrot.lane.b32.xlu0 %v9909, 80
    %v11113 = vpop.permute.xlu0 %11112
    %11114 = vrot.lane.b32.xlu0 %v9910, 80
    %v11115 = vpop.permute.xlu0 %11114
    %11116 = vrot.lane.b32.xlu0 %v9911, 80
    %v11117 = vpop.permute.xlu0 %11116
    %11118 = vrot.lane.b32.xlu0 %v9912, 80
    %v11119 = vpop.permute.xlu0 %11118
    %11120 = vrot.lane.b32.xlu0 %v9913, 80
    %v11121 = vpop.permute.xlu0 %11120
    %11122 = vrot.lane.b32.xlu0 %v9914, 80
    %v11123 = vpop.permute.xlu0 %11122
    %11124 = vrot.lane.b32.xlu0 %v9915, 80
    %v11125 = vpop.permute.xlu0 %11124
    %11126 = vrot.lane.b32.xlu0 %v9916, 80
    %v11127 = vpop.permute.xlu0 %11126
    %11128 = vrot.lane.b32.xlu0 %v9917, 80
    %v11129 = vpop.permute.xlu0 %11128
    %11130 = vrot.lane.b32.xlu0 %v9918, 80
    %v11131 = vpop.permute.xlu0 %11130
    %11132 = vrot.lane.b32.xlu0 %v9919, 80
    %v11133 = vpop.permute.xlu0 %11132
    %11134 = vrot.lane.b32.xlu0 %v9920, 80
    %v11135 = vpop.permute.xlu0 %11134
    %11136 = vrot.lane.b32.xlu0 %v9921, 80
    %v11137 = vpop.permute.xlu0 %11136
    %11266 = vrot.lane.b32.xlu0 %v9922, 100
    %v11267 = vpop.permute.xlu0 %11266
    %11268 = vrot.lane.b32.xlu0 %v9923, 100
    %v11269 = vpop.permute.xlu0 %11268
    %11270 = vrot.lane.b32.xlu0 %v9924, 100
    %v11271 = vpop.permute.xlu0 %11270
    %11272 = vrot.lane.b32.xlu0 %v9925, 100
    %v11273 = vpop.permute.xlu0 %11272
    %11274 = vrot.lane.b32.xlu0 %v9926, 100
    %v11275 = vpop.permute.xlu0 %11274
    %11276 = vrot.lane.b32.xlu0 %v9927, 100
    %v11277 = vpop.permute.xlu0 %11276
    %11278 = vrot.lane.b32.xlu0 %v9928, 100
    %v11279 = vpop.permute.xlu0 %11278
    %11280 = vrot.lane.b32.xlu0 %v9929, 100
    %v11281 = vpop.permute.xlu0 %11280
    %11282 = vrot.lane.b32.xlu0 %v9930, 100
    %v11283 = vpop.permute.xlu0 %11282
    %11284 = vrot.lane.b32.xlu0 %v9931, 100
    %v11285 = vpop.permute.xlu0 %11284
    %11286 = vrot.lane.b32.xlu0 %v9932, 100
    %v11287 = vpop.permute.xlu0 %11286
    %11288 = vrot.lane.b32.xlu0 %v9933, 100
    %v11289 = vpop.permute.xlu0 %11288
    %11290 = vrot.lane.b32.xlu0 %v9934, 100
    %v11291 = vpop.permute.xlu0 %11290
    %11292 = vrot.lane.b32.xlu0 %v9935, 100
    %v11293 = vpop.permute.xlu0 %11292
    %11294 = vrot.lane.b32.xlu0 %v9936, 100
    %v11295 = vpop.permute.xlu0 %11294
    %11296 = vrot.lane.b32.xlu0 %v9937, 100
    %v11297 = vpop.permute.xlu0 %11296
    %11298 = vrot.lane.b32.xlu0 %v9938, 100
    %v11299 = vpop.permute.xlu0 %11298
    %11300 = vrot.lane.b32.xlu0 %v9939, 100
    %v11301 = vpop.permute.xlu0 %11300
    %11302 = vrot.lane.b32.xlu0 %v9940, 100
    %v11303 = vpop.permute.xlu0 %11302
    %11304 = vrot.lane.b32.xlu0 %v9941, 100
    %v11305 = vpop.permute.xlu0 %11304
    %11306 = vrot.lane.b32.xlu0 %v9942, 100
    %v11307 = vpop.permute.xlu0 %11306
    %11308 = vrot.lane.b32.xlu0 %v9943, 100
    %v11309 = vpop.permute.xlu0 %11308
    %11310 = vrot.lane.b32.xlu0 %v9944, 100
    %v11311 = vpop.permute.xlu0 %11310
    %11312 = vrot.lane.b32.xlu0 %v9945, 100
    %v11313 = vpop.permute.xlu0 %11312
    %11314 = vrot.lane.b32.xlu0 %v9946, 100
    %v11315 = vpop.permute.xlu0 %11314
    %11316 = vrot.lane.b32.xlu0 %v9947, 100
    %v11317 = vpop.permute.xlu0 %11316
    %11318 = vrot.lane.b32.xlu0 %v9948, 100
    %v11319 = vpop.permute.xlu0 %11318
    %11320 = vrot.lane.b32.xlu0 %v9949, 100
    %v11321 = vpop.permute.xlu0 %11320
    %11322 = vrot.lane.b32.xlu0 %v9950, 100
    %v11323 = vpop.permute.xlu0 %11322
    %11324 = vrot.lane.b32.xlu0 %v9951, 100
    %v11325 = vpop.permute.xlu0 %11324
    %11326 = vrot.lane.b32.xlu0 %v9952, 100
    %v11327 = vpop.permute.xlu0 %11326
    %11328 = vrot.lane.b32.xlu0 %v9953, 100
    %v11329 = vpop.permute.xlu0 %11328
    %11330 = vrot.lane.b32.xlu0 %v9954, 100
    %v11331 = vpop.permute.xlu0 %11330
    %11332 = vrot.lane.b32.xlu0 %v9955, 100
    %v11333 = vpop.permute.xlu0 %11332
    %11334 = vrot.lane.b32.xlu0 %v9956, 100
    %v11335 = vpop.permute.xlu0 %11334
    %11336 = vrot.lane.b32.xlu0 %v9957, 100
    %v11337 = vpop.permute.xlu0 %11336
    %11338 = vrot.lane.b32.xlu0 %v9958, 100
    %v11339 = vpop.permute.xlu0 %11338
    %11340 = vrot.lane.b32.xlu0 %v9959, 100
    %v11341 = vpop.permute.xlu0 %11340
    %11342 = vrot.lane.b32.xlu0 %v9960, 100
    %v11343 = vpop.permute.xlu0 %11342
    %11344 = vrot.lane.b32.xlu0 %v9961, 100
    %v11345 = vpop.permute.xlu0 %11344
    %11346 = vrot.lane.b32.xlu0 %v9962, 100
    %v11347 = vpop.permute.xlu0 %11346
    %11348 = vrot.lane.b32.xlu0 %v9963, 100
    %v11349 = vpop.permute.xlu0 %11348
    %11350 = vrot.lane.b32.xlu0 %v9964, 100
    %v11351 = vpop.permute.xlu0 %11350
    %11352 = vrot.lane.b32.xlu0 %v9965, 100
    %v11353 = vpop.permute.xlu0 %11352
    %11354 = vrot.lane.b32.xlu0 %v9966, 100
    %v11355 = vpop.permute.xlu0 %11354
    %11356 = vrot.lane.b32.xlu0 %v9967, 100
    %v11357 = vpop.permute.xlu0 %11356
    %11358 = vrot.lane.b32.xlu0 %v9968, 100
    %v11359 = vpop.permute.xlu0 %11358
    %11360 = vrot.lane.b32.xlu0 %v9969, 100
    %v11361 = vpop.permute.xlu0 %11360
    %11362 = vrot.lane.b32.xlu0 %v9970, 100
    %v11363 = vpop.permute.xlu0 %11362
    %11364 = vrot.lane.b32.xlu0 %v9971, 100
    %v11365 = vpop.permute.xlu0 %11364
    %11366 = vrot.lane.b32.xlu0 %v9972, 100
    %v11367 = vpop.permute.xlu0 %11366
    %11368 = vrot.lane.b32.xlu0 %v9973, 100
    %v11369 = vpop.permute.xlu0 %11368
    %11370 = vrot.lane.b32.xlu0 %v9974, 100
    %v11371 = vpop.permute.xlu0 %11370
    %11372 = vrot.lane.b32.xlu0 %v9975, 100
    %v11373 = vpop.permute.xlu0 %11372
    %11374 = vrot.lane.b32.xlu0 %v9976, 100
    %v11375 = vpop.permute.xlu0 %11374
    %11376 = vrot.lane.b32.xlu0 %v9977, 100
    %v11377 = vpop.permute.xlu0 %11376
    %11378 = vrot.lane.b32.xlu0 %v9978, 100
    %v11379 = vpop.permute.xlu0 %11378
    %11380 = vrot.lane.b32.xlu0 %v9979, 100
    %v11381 = vpop.permute.xlu0 %11380
    %11382 = vrot.lane.b32.xlu0 %v9980, 100
    %v11383 = vpop.permute.xlu0 %11382
    %11384 = vrot.lane.b32.xlu0 %v9981, 100
    %v11385 = vpop.permute.xlu0 %11384
    %11386 = vrot.lane.b32.xlu0 %v9982, 100
    %v11387 = vpop.permute.xlu0 %11386
    %11388 = vrot.lane.b32.xlu0 %v9983, 100
    %v11389 = vpop.permute.xlu0 %11388
    %11390 = vrot.lane.b32.xlu0 %v9984, 100
    %v11391 = vpop.permute.xlu0 %11390
    %11392 = vrot.lane.b32.xlu0 %v9985, 100
    %v11393 = vpop.permute.xlu0 %11392
    %11522 = vrot.lane.b32.xlu0 %v9986, 120
    %v11523 = vpop.permute.xlu0 %11522
    %11524 = vrot.lane.b32.xlu0 %v9987, 120
    %v11525 = vpop.permute.xlu0 %11524
    %11526 = vrot.lane.b32.xlu0 %v9988, 120
    %v11527 = vpop.permute.xlu0 %11526
    %11528 = vrot.lane.b32.xlu0 %v9989, 120
    %v11529 = vpop.permute.xlu0 %11528
    %11530 = vrot.lane.b32.xlu0 %v9990, 120
    %v11531 = vpop.permute.xlu0 %11530
    %11532 = vrot.lane.b32.xlu0 %v9991, 120
    %v11533 = vpop.permute.xlu0 %11532
    %11534 = vrot.lane.b32.xlu0 %v9992, 120
    %v11535 = vpop.permute.xlu0 %11534
    %11536 = vrot.lane.b32.xlu0 %v9993, 120
    %v11537 = vpop.permute.xlu0 %11536
    %11538 = vrot.lane.b32.xlu0 %v9994, 120
    %v11539 = vpop.permute.xlu0 %11538
    %11540 = vrot.lane.b32.xlu0 %v9995, 120
    %v11541 = vpop.permute.xlu0 %11540
    %11542 = vrot.lane.b32.xlu0 %v9996, 120
    %v11543 = vpop.permute.xlu0 %11542
    %11544 = vrot.lane.b32.xlu0 %v9997, 120
    %v11545 = vpop.permute.xlu0 %11544
    %11546 = vrot.lane.b32.xlu0 %v9998, 120
    %v11547 = vpop.permute.xlu0 %11546
    %11548 = vrot.lane.b32.xlu0 %v9999, 120
    %v11549 = vpop.permute.xlu0 %11548
    %11550 = vrot.lane.b32.xlu0 %v10000, 120
    %v11551 = vpop.permute.xlu0 %11550
    %11552 = vrot.lane.b32.xlu0 %v10001, 120
    %v11553 = vpop.permute.xlu0 %11552
    %11554 = vrot.lane.b32.xlu0 %v10002, 120
    %v11555 = vpop.permute.xlu0 %11554
    %11556 = vrot.lane.b32.xlu0 %v10003, 120
    %v11557 = vpop.permute.xlu0 %11556
    %11558 = vrot.lane.b32.xlu0 %v10004, 120
    %v11559 = vpop.permute.xlu0 %11558
    %11560 = vrot.lane.b32.xlu0 %v10005, 120
    %v11561 = vpop.permute.xlu0 %11560
    %11562 = vrot.lane.b32.xlu0 %v10006, 120
    %v11563 = vpop.permute.xlu0 %11562
    %11564 = vrot.lane.b32.xlu0 %v10007, 120
    %v11565 = vpop.permute.xlu0 %11564
    %11566 = vrot.lane.b32.xlu0 %v10008, 120
    %v11567 = vpop.permute.xlu0 %11566
    %11568 = vrot.lane.b32.xlu0 %v10009, 120
    %v11569 = vpop.permute.xlu0 %11568
    %11570 = vrot.lane.b32.xlu0 %v10010, 120
    %v11571 = vpop.permute.xlu0 %11570
    %11572 = vrot.lane.b32.xlu0 %v10011, 120
    %v11573 = vpop.permute.xlu0 %11572
    %11574 = vrot.lane.b32.xlu0 %v10012, 120
    %v11575 = vpop.permute.xlu0 %11574
    %11576 = vrot.lane.b32.xlu0 %v10013, 120
    %v11577 = vpop.permute.xlu0 %11576
    %11578 = vrot.lane.b32.xlu0 %v10014, 120
    %v11579 = vpop.permute.xlu0 %11578
    %11580 = vrot.lane.b32.xlu0 %v10015, 120
    %v11581 = vpop.permute.xlu0 %11580
    %11582 = vrot.lane.b32.xlu0 %v10016, 120
    %v11583 = vpop.permute.xlu0 %11582
    %11584 = vrot.lane.b32.xlu0 %v10017, 120
    %v11585 = vpop.permute.xlu0 %11584
    %11586 = vrot.lane.b32.xlu0 %v10018, 120
    %v11587 = vpop.permute.xlu0 %11586
    %11588 = vrot.lane.b32.xlu0 %v10019, 120
    %v11589 = vpop.permute.xlu0 %11588
    %11590 = vrot.lane.b32.xlu0 %v10020, 120
    %v11591 = vpop.permute.xlu0 %11590
    %11592 = vrot.lane.b32.xlu0 %v10021, 120
    %v11593 = vpop.permute.xlu0 %11592
    %11594 = vrot.lane.b32.xlu0 %v10022, 120
    %v11595 = vpop.permute.xlu0 %11594
    %11596 = vrot.lane.b32.xlu0 %v10023, 120
    %v11597 = vpop.permute.xlu0 %11596
    %11598 = vrot.lane.b32.xlu0 %v10024, 120
    %v11599 = vpop.permute.xlu0 %11598
    %11600 = vrot.lane.b32.xlu0 %v10025, 120
    %v11601 = vpop.permute.xlu0 %11600
    %11602 = vrot.lane.b32.xlu0 %v10026, 120
    %v11603 = vpop.permute.xlu0 %11602
    %11604 = vrot.lane.b32.xlu0 %v10027, 120
    %v11605 = vpop.permute.xlu0 %11604
    %11606 = vrot.lane.b32.xlu0 %v10028, 120
    %v11607 = vpop.permute.xlu0 %11606
    %11608 = vrot.lane.b32.xlu0 %v10029, 120
    %v11609 = vpop.permute.xlu0 %11608
    %11610 = vrot.lane.b32.xlu0 %v10030, 120
    %v11611 = vpop.permute.xlu0 %11610
    %11612 = vrot.lane.b32.xlu0 %v10031, 120
    %v11613 = vpop.permute.xlu0 %11612
    %11614 = vrot.lane.b32.xlu0 %v10032, 120
    %v11615 = vpop.permute.xlu0 %11614
    %11616 = vrot.lane.b32.xlu0 %v10033, 120
    %v11617 = vpop.permute.xlu0 %11616
    %11618 = vrot.lane.b32.xlu0 %v10034, 120
    %v11619 = vpop.permute.xlu0 %11618
    %11620 = vrot.lane.b32.xlu0 %v10035, 120
    %v11621 = vpop.permute.xlu0 %11620
    %11622 = vrot.lane.b32.xlu0 %v10036, 120
    %v11623 = vpop.permute.xlu0 %11622
    %11624 = vrot.lane.b32.xlu0 %v10037, 120
    %v11625 = vpop.permute.xlu0 %11624
    %11626 = vrot.lane.b32.xlu0 %v10038, 120
    %v11627 = vpop.permute.xlu0 %11626
    %11628 = vrot.lane.b32.xlu0 %v10039, 120
    %v11629 = vpop.permute.xlu0 %11628
    %11630 = vrot.lane.b32.xlu0 %v10040, 120
    %v11631 = vpop.permute.xlu0 %11630
    %11632 = vrot.lane.b32.xlu0 %v10041, 120
    %v11633 = vpop.permute.xlu0 %11632
    %11634 = vrot.lane.b32.xlu0 %v10042, 120
    %v11635 = vpop.permute.xlu0 %11634
    %11636 = vrot.lane.b32.xlu0 %v10043, 120
    %v11637 = vpop.permute.xlu0 %11636
    %11638 = vrot.lane.b32.xlu0 %v10044, 120
    %v11639 = vpop.permute.xlu0 %11638
    %11640 = vrot.lane.b32.xlu0 %v10045, 120
    %v11641 = vpop.permute.xlu0 %11640
    %11642 = vrot.lane.b32.xlu0 %v10046, 120
    %v11643 = vpop.permute.xlu0 %11642
    %11644 = vrot.lane.b32.xlu0 %v10047, 120
    %v11645 = vpop.permute.xlu0 %11644
    %11646 = vrot.lane.b32.xlu0 %v10048, 120
    %v11647 = vpop.permute.xlu0 %11646
    %11648 = vrot.lane.b32.xlu0 %v10049, 120
    %v11649 = vpop.permute.xlu0 %11648
    %11778 = vrot.lane.b32.xlu0 %v10050, 12
    %v11779 = vpop.permute.xlu0 %11778
    %11780 = vrot.lane.b32.xlu0 %v10051, 12
    %v11781 = vpop.permute.xlu0 %11780
    %11782 = vrot.lane.b32.xlu0 %v10052, 12
    %v11783 = vpop.permute.xlu0 %11782
    %11784 = vrot.lane.b32.xlu0 %v10053, 12
    %v11785 = vpop.permute.xlu0 %11784
    %11786 = vrot.lane.b32.xlu0 %v10054, 12
    %v11787 = vpop.permute.xlu0 %11786
    %11788 = vrot.lane.b32.xlu0 %v10055, 12
    %v11789 = vpop.permute.xlu0 %11788
    %11790 = vrot.lane.b32.xlu0 %v10056, 12
    %v11791 = vpop.permute.xlu0 %11790
    %11792 = vrot.lane.b32.xlu0 %v10057, 12
    %v11793 = vpop.permute.xlu0 %11792
    %11794 = vrot.lane.b32.xlu0 %v10058, 12
    %v11795 = vpop.permute.xlu0 %11794
    %11796 = vrot.lane.b32.xlu0 %v10059, 12
    %v11797 = vpop.permute.xlu0 %11796
    %11798 = vrot.lane.b32.xlu0 %v10060, 12
    %v11799 = vpop.permute.xlu0 %11798
    %11800 = vrot.lane.b32.xlu0 %v10061, 12
    %v11801 = vpop.permute.xlu0 %11800
    %11802 = vrot.lane.b32.xlu0 %v10062, 12
    %v11803 = vpop.permute.xlu0 %11802
    %11804 = vrot.lane.b32.xlu0 %v10063, 12
    %v11805 = vpop.permute.xlu0 %11804
    %11806 = vrot.lane.b32.xlu0 %v10064, 12
    %v11807 = vpop.permute.xlu0 %11806
    %11808 = vrot.lane.b32.xlu0 %v10065, 12
    %v11809 = vpop.permute.xlu0 %11808
    %11810 = vrot.lane.b32.xlu0 %v10066, 12
    %v11811 = vpop.permute.xlu0 %11810
    %11812 = vrot.lane.b32.xlu0 %v10067, 12
    %v11813 = vpop.permute.xlu0 %11812
    %11814 = vrot.lane.b32.xlu0 %v10068, 12
    %v11815 = vpop.permute.xlu0 %11814
    %11816 = vrot.lane.b32.xlu0 %v10069, 12
    %v11817 = vpop.permute.xlu0 %11816
    %11818 = vrot.lane.b32.xlu0 %v10070, 12
    %v11819 = vpop.permute.xlu0 %11818
    %11820 = vrot.lane.b32.xlu0 %v10071, 12
    %v11821 = vpop.permute.xlu0 %11820
    %11822 = vrot.lane.b32.xlu0 %v10072, 12
    %v11823 = vpop.permute.xlu0 %11822
    %11824 = vrot.lane.b32.xlu0 %v10073, 12
    %v11825 = vpop.permute.xlu0 %11824
    %11826 = vrot.lane.b32.xlu0 %v10074, 12
    %v11827 = vpop.permute.xlu0 %11826
    %11828 = vrot.lane.b32.xlu0 %v10075, 12
    %v11829 = vpop.permute.xlu0 %11828
    %11830 = vrot.lane.b32.xlu0 %v10076, 12
    %v11831 = vpop.permute.xlu0 %11830
    %11832 = vrot.lane.b32.xlu0 %v10077, 12
    %v11833 = vpop.permute.xlu0 %11832
    %11834 = vrot.lane.b32.xlu0 %v10078, 12
    %v11835 = vpop.permute.xlu0 %11834
    %11836 = vrot.lane.b32.xlu0 %v10079, 12
    %v11837 = vpop.permute.xlu0 %11836
    %11838 = vrot.lane.b32.xlu0 %v10080, 12
    %v11839 = vpop.permute.xlu0 %11838
    %11840 = vrot.lane.b32.xlu0 %v10081, 12
    %v11841 = vpop.permute.xlu0 %11840
    %11842 = vrot.lane.b32.xlu0 %v10082, 12
    %v11843 = vpop.permute.xlu0 %11842
    %11844 = vrot.lane.b32.xlu0 %v10083, 12
    %v11845 = vpop.permute.xlu0 %11844
    %11846 = vrot.lane.b32.xlu0 %v10084, 12
    %v11847 = vpop.permute.xlu0 %11846
    %11848 = vrot.lane.b32.xlu0 %v10085, 12
    %v11849 = vpop.permute.xlu0 %11848
    %11850 = vrot.lane.b32.xlu0 %v10086, 12
    %v11851 = vpop.permute.xlu0 %11850
    %11852 = vrot.lane.b32.xlu0 %v10087, 12
    %v11853 = vpop.permute.xlu0 %11852
    %11854 = vrot.lane.b32.xlu0 %v10088, 12
    %v11855 = vpop.permute.xlu0 %11854
    %11856 = vrot.lane.b32.xlu0 %v10089, 12
    %v11857 = vpop.permute.xlu0 %11856
    %11858 = vrot.lane.b32.xlu0 %v10090, 12
    %v11859 = vpop.permute.xlu0 %11858
    %11860 = vrot.lane.b32.xlu0 %v10091, 12
    %v11861 = vpop.permute.xlu0 %11860
    %11862 = vrot.lane.b32.xlu0 %v10092, 12
    %v11863 = vpop.permute.xlu0 %11862
    %11864 = vrot.lane.b32.xlu0 %v10093, 12
    %v11865 = vpop.permute.xlu0 %11864
    %11866 = vrot.lane.b32.xlu0 %v10094, 12
    %v11867 = vpop.permute.xlu0 %11866
    %11868 = vrot.lane.b32.xlu0 %v10095, 12
    %v11869 = vpop.permute.xlu0 %11868
    %11870 = vrot.lane.b32.xlu0 %v10096, 12
    %v11871 = vpop.permute.xlu0 %11870
    %11872 = vrot.lane.b32.xlu0 %v10097, 12
    %v11873 = vpop.permute.xlu0 %11872
    %11874 = vrot.lane.b32.xlu0 %v10098, 12
    %v11875 = vpop.permute.xlu0 %11874
    %11876 = vrot.lane.b32.xlu0 %v10099, 12
    %v11877 = vpop.permute.xlu0 %11876
    %11878 = vrot.lane.b32.xlu0 %v10100, 12
    %v11879 = vpop.permute.xlu0 %11878
    %11880 = vrot.lane.b32.xlu0 %v10101, 12
    %v11881 = vpop.permute.xlu0 %11880
    %11882 = vrot.lane.b32.xlu0 %v10102, 12
    %v11883 = vpop.permute.xlu0 %11882
    %11884 = vrot.lane.b32.xlu0 %v10103, 12
    %v11885 = vpop.permute.xlu0 %11884
    %11886 = vrot.lane.b32.xlu0 %v10104, 12
    %v11887 = vpop.permute.xlu0 %11886
    %11888 = vrot.lane.b32.xlu0 %v10105, 12
    %v11889 = vpop.permute.xlu0 %11888
    %11890 = vrot.lane.b32.xlu0 %v10106, 12
    %v11891 = vpop.permute.xlu0 %11890
    %11892 = vrot.lane.b32.xlu0 %v10107, 12
    %v11893 = vpop.permute.xlu0 %11892
    %11894 = vrot.lane.b32.xlu0 %v10108, 12
    %v11895 = vpop.permute.xlu0 %11894
    %11896 = vrot.lane.b32.xlu0 %v10109, 12
    %v11897 = vpop.permute.xlu0 %11896
    %11898 = vrot.lane.b32.xlu0 %v10110, 12
    %v11899 = vpop.permute.xlu0 %11898
    %11900 = vrot.lane.b32.xlu0 %v10111, 12
    %v11901 = vpop.permute.xlu0 %11900
    %11902 = vrot.lane.b32.xlu0 %v10112, 12
    %v11903 = vpop.permute.xlu0 %11902
    %11904 = vrot.lane.b32.xlu0 %v10113, 12
    %v11905 = vpop.permute.xlu0 %11904
    %12034 = vrot.lane.b32.xlu0 %v10114, 32
    %v12035 = vpop.permute.xlu0 %12034
    %12036 = vrot.lane.b32.xlu0 %v10115, 32
    %v12037 = vpop.permute.xlu0 %12036
    %12038 = vrot.lane.b32.xlu0 %v10116, 32
    %v12039 = vpop.permute.xlu0 %12038
    %12040 = vrot.lane.b32.xlu0 %v10117, 32
    %v12041 = vpop.permute.xlu0 %12040
    %12042 = vrot.lane.b32.xlu0 %v10118, 32
    %v12043 = vpop.permute.xlu0 %12042
    %12044 = vrot.lane.b32.xlu0 %v10119, 32
    %v12045 = vpop.permute.xlu0 %12044
    %12046 = vrot.lane.b32.xlu0 %v10120, 32
    %v12047 = vpop.permute.xlu0 %12046
    %12048 = vrot.lane.b32.xlu0 %v10121, 32
    %v12049 = vpop.permute.xlu0 %12048
    %12050 = vrot.lane.b32.xlu0 %v10122, 32
    %v12051 = vpop.permute.xlu0 %12050
    %12052 = vrot.lane.b32.xlu0 %v10123, 32
    %v12053 = vpop.permute.xlu0 %12052
    %12054 = vrot.lane.b32.xlu0 %v10124, 32
    %v12055 = vpop.permute.xlu0 %12054
    %12056 = vrot.lane.b32.xlu0 %v10125, 32
    %v12057 = vpop.permute.xlu0 %12056
    %12058 = vrot.lane.b32.xlu0 %v10126, 32
    %v12059 = vpop.permute.xlu0 %12058
    %12060 = vrot.lane.b32.xlu0 %v10127, 32
    %v12061 = vpop.permute.xlu0 %12060
    %12062 = vrot.lane.b32.xlu0 %v10128, 32
    %v12063 = vpop.permute.xlu0 %12062
    %12064 = vrot.lane.b32.xlu0 %v10129, 32
    %v12065 = vpop.permute.xlu0 %12064
    %12066 = vrot.lane.b32.xlu0 %v10130, 32
    %v12067 = vpop.permute.xlu0 %12066
    %12068 = vrot.lane.b32.xlu0 %v10131, 32
    %v12069 = vpop.permute.xlu0 %12068
    %12070 = vrot.lane.b32.xlu0 %v10132, 32
    %v12071 = vpop.permute.xlu0 %12070
    %12072 = vrot.lane.b32.xlu0 %v10133, 32
    %v12073 = vpop.permute.xlu0 %12072
    %12074 = vrot.lane.b32.xlu0 %v10134, 32
    %v12075 = vpop.permute.xlu0 %12074
    %12076 = vrot.lane.b32.xlu0 %v10135, 32
    %v12077 = vpop.permute.xlu0 %12076
    %12078 = vrot.lane.b32.xlu0 %v10136, 32
    %v12079 = vpop.permute.xlu0 %12078
    %12080 = vrot.lane.b32.xlu0 %v10137, 32
    %v12081 = vpop.permute.xlu0 %12080
    %12082 = vrot.lane.b32.xlu0 %v10138, 32
    %v12083 = vpop.permute.xlu0 %12082
    %12084 = vrot.lane.b32.xlu0 %v10139, 32
    %v12085 = vpop.permute.xlu0 %12084
    %12086 = vrot.lane.b32.xlu0 %v10140, 32
    %v12087 = vpop.permute.xlu0 %12086
    %12088 = vrot.lane.b32.xlu0 %v10141, 32
    %v12089 = vpop.permute.xlu0 %12088
    %12090 = vrot.lane.b32.xlu0 %v10142, 32
    %v12091 = vpop.permute.xlu0 %12090
    %12092 = vrot.lane.b32.xlu0 %v10143, 32
    %v12093 = vpop.permute.xlu0 %12092
    %12094 = vrot.lane.b32.xlu0 %v10144, 32
    %v12095 = vpop.permute.xlu0 %12094
    %12096 = vrot.lane.b32.xlu0 %v10145, 32
    %v12097 = vpop.permute.xlu0 %12096
    %12098 = vrot.lane.b32.xlu0 %v10146, 32
    %v12099 = vpop.permute.xlu0 %12098
    %12100 = vrot.lane.b32.xlu0 %v10147, 32
    %v12101 = vpop.permute.xlu0 %12100
    %12102 = vrot.lane.b32.xlu0 %v10148, 32
    %v12103 = vpop.permute.xlu0 %12102
    %12104 = vrot.lane.b32.xlu0 %v10149, 32
    %v12105 = vpop.permute.xlu0 %12104
    %12106 = vrot.lane.b32.xlu0 %v10150, 32
    %v12107 = vpop.permute.xlu0 %12106
    %12108 = vrot.lane.b32.xlu0 %v10151, 32
    %v12109 = vpop.permute.xlu0 %12108
    %12110 = vrot.lane.b32.xlu0 %v10152, 32
    %v12111 = vpop.permute.xlu0 %12110
    %12112 = vrot.lane.b32.xlu0 %v10153, 32
    %v12113 = vpop.permute.xlu0 %12112
    %12114 = vrot.lane.b32.xlu0 %v10154, 32
    %v12115 = vpop.permute.xlu0 %12114
    %12116 = vrot.lane.b32.xlu0 %v10155, 32
    %v12117 = vpop.permute.xlu0 %12116
    %12118 = vrot.lane.b32.xlu0 %v10156, 32
    %v12119 = vpop.permute.xlu0 %12118
    %12120 = vrot.lane.b32.xlu0 %v10157, 32
    %v12121 = vpop.permute.xlu0 %12120
    %12122 = vrot.lane.b32.xlu0 %v10158, 32
    %v12123 = vpop.permute.xlu0 %12122
    %12124 = vrot.lane.b32.xlu0 %v10159, 32
    %v12125 = vpop.permute.xlu0 %12124
    %12126 = vrot.lane.b32.xlu0 %v10160, 32
    %v12127 = vpop.permute.xlu0 %12126
    %12128 = vrot.lane.b32.xlu0 %v10161, 32
    %v12129 = vpop.permute.xlu0 %12128
    %12130 = vrot.lane.b32.xlu0 %v10162, 32
    %v12131 = vpop.permute.xlu0 %12130
    %12132 = vrot.lane.b32.xlu0 %v10163, 32
    %v12133 = vpop.permute.xlu0 %12132
    %12134 = vrot.lane.b32.xlu0 %v10164, 32
    %v12135 = vpop.permute.xlu0 %12134
    %12136 = vrot.lane.b32.xlu0 %v10165, 32
    %v12137 = vpop.permute.xlu0 %12136
    %12138 = vrot.lane.b32.xlu0 %v10166, 32
    %v12139 = vpop.permute.xlu0 %12138
    %12140 = vrot.lane.b32.xlu0 %v10167, 32
    %v12141 = vpop.permute.xlu0 %12140
    %12142 = vrot.lane.b32.xlu0 %v10168, 32
    %v12143 = vpop.permute.xlu0 %12142
    %12144 = vrot.lane.b32.xlu0 %v10169, 32
    %v12145 = vpop.permute.xlu0 %12144
    %12146 = vrot.lane.b32.xlu0 %v10170, 32
    %v12147 = vpop.permute.xlu0 %12146
    %12148 = vrot.lane.b32.xlu0 %v10171, 32
    %v12149 = vpop.permute.xlu0 %12148
    %12150 = vrot.lane.b32.xlu0 %v10172, 32
    %v12151 = vpop.permute.xlu0 %12150
    %12152 = vrot.lane.b32.xlu0 %v10173, 32
    %v12153 = vpop.permute.xlu0 %12152
    %12154 = vrot.lane.b32.xlu0 %v10174, 32
    %v12155 = vpop.permute.xlu0 %12154
    %12156 = vrot.lane.b32.xlu0 %v10175, 32
    %v12157 = vpop.permute.xlu0 %12156
    %12158 = vrot.lane.b32.xlu0 %v10176, 32
    %v12159 = vpop.permute.xlu0 %12158
    %12160 = vrot.lane.b32.xlu0 %v10177, 32
    %v12161 = vpop.permute.xlu0 %12160
    %v12226 = vsel %vm3160, %v9602, %v10243
    %v12227 = vsel %vm3160, %v9603, %v10245
    %v12228 = vsel %vm3160, %v9604, %v10247
    %v12229 = vsel %vm3160, %v9605, %v10249
    %v12230 = vsel %vm3160, %v9606, %v10251
    %v12231 = vsel %vm3160, %v9607, %v10253
    %v12232 = vsel %vm3160, %v9608, %v10255
    %v12233 = vsel %vm3160, %v9609, %v10257
    %v12234 = vsel %vm3160, %v9610, %v10259
    %v12235 = vsel %vm3160, %v9611, %v10261
    %v12236 = vsel %vm3160, %v9612, %v10263
    %v12237 = vsel %vm3160, %v9613, %v10265
    %v12238 = vsel %vm3160, %v9614, %v10267
    %v12239 = vsel %vm3160, %v9615, %v10269
    %v12240 = vsel %vm3160, %v9616, %v10271
    %v12241 = vsel %vm3160, %v9617, %v10273
    %v12242 = vsel %vm3160, %v9618, %v10275
    %v12243 = vsel %vm3160, %v9619, %v10277
    %v12244 = vsel %vm3160, %v9620, %v10279
    %v12245 = vsel %vm3160, %v9621, %v10281
    %v12246 = vsel %vm3160, %v9622, %v10283
    %v12247 = vsel %vm3160, %v9623, %v10285
    %v12248 = vsel %vm3160, %v9624, %v10287
    %v12249 = vsel %vm3160, %v9625, %v10289
    %v12250 = vsel %vm3160, %v9626, %v10291
    %v12251 = vsel %vm3160, %v9627, %v10293
    %v12252 = vsel %vm3160, %v9628, %v10295
    %v12253 = vsel %vm3160, %v9629, %v10297
    %v12254 = vsel %vm3160, %v9630, %v10299
    %v12255 = vsel %vm3160, %v9631, %v10301
    %v12256 = vsel %vm3160, %v9632, %v10303
    %v12257 = vsel %vm3160, %v9633, %v10305
    %v12258 = vsel %vm3160, %v9634, %v10307
    %v12259 = vsel %vm3160, %v9635, %v10309
    %v12260 = vsel %vm3160, %v9636, %v10311
    %v12261 = vsel %vm3160, %v9637, %v10313
    %v12262 = vsel %vm3160, %v9638, %v10315
    %v12263 = vsel %vm3160, %v9639, %v10317
    %v12264 = vsel %vm3160, %v9640, %v10319
    %v12265 = vsel %vm3160, %v9641, %v10321
    %v12266 = vsel %vm3160, %v9642, %v10323
    %v12267 = vsel %vm3160, %v9643, %v10325
    %v12268 = vsel %vm3160, %v9644, %v10327
    %v12269 = vsel %vm3160, %v9645, %v10329
    %v12270 = vsel %vm3160, %v9646, %v10331
    %v12271 = vsel %vm3160, %v9647, %v10333
    %v12272 = vsel %vm3160, %v9648, %v10335
    %v12273 = vsel %vm3160, %v9649, %v10337
    %v12274 = vsel %vm3160, %v9650, %v10339
    %v12275 = vsel %vm3160, %v9651, %v10341
    %v12276 = vsel %vm3160, %v9652, %v10343
    %v12277 = vsel %vm3160, %v9653, %v10345
    %v12278 = vsel %vm3160, %v9654, %v10347
    %v12279 = vsel %vm3160, %v9655, %v10349
    %v12280 = vsel %vm3160, %v9656, %v10351
    %v12281 = vsel %vm3160, %v9657, %v10353
    %v12282 = vsel %vm3160, %v9658, %v10355
    %v12283 = vsel %vm3160, %v9659, %v10357
    %v12284 = vsel %vm3160, %v9660, %v10359
    %v12285 = vsel %vm3160, %v9661, %v10361
    %v12286 = vsel %vm3160, %v9662, %v10363
    %v12287 = vsel %vm3160, %v9663, %v10365
    %v12288 = vsel %vm3160, %v9664, %v10367
    %v12289 = vsel %vm3160, %v9665, %v10369
    %vm12290 = vcmask 326656
    %v12291 = vsel %vm12290, %v12226, %v10499
    %v12292 = vsel %vm12290, %v12227, %v10501
    %v12293 = vsel %vm12290, %v12228, %v10503
    %v12294 = vsel %vm12290, %v12229, %v10505
    %v12295 = vsel %vm12290, %v12230, %v10507
    %v12296 = vsel %vm12290, %v12231, %v10509
    %v12297 = vsel %vm12290, %v12232, %v10511
    %v12298 = vsel %vm12290, %v12233, %v10513
    %v12299 = vsel %vm12290, %v12234, %v10515
    %v12300 = vsel %vm12290, %v12235, %v10517
    %v12301 = vsel %vm12290, %v12236, %v10519
    %v12302 = vsel %vm12290, %v12237, %v10521
    %v12303 = vsel %vm12290, %v12238, %v10523
    %v12304 = vsel %vm12290, %v12239, %v10525
    %v12305 = vsel %vm12290, %v12240, %v10527
    %v12306 = vsel %vm12290, %v12241, %v10529
    %v12307 = vsel %vm12290, %v12242, %v10531
    %v12308 = vsel %vm12290, %v12243, %v10533
    %v12309 = vsel %vm12290, %v12244, %v10535
    %v12310 = vsel %vm12290, %v12245, %v10537
    %v12311 = vsel %vm12290, %v12246, %v10539
    %v12312 = vsel %vm12290, %v12247, %v10541
    %v12313 = vsel %vm12290, %v12248, %v10543
    %v12314 = vsel %vm12290, %v12249, %v10545
    %v12315 = vsel %vm12290, %v12250, %v10547
    %v12316 = vsel %vm12290, %v12251, %v10549
    %v12317 = vsel %vm12290, %v12252, %v10551
    %v12318 = vsel %vm12290, %v12253, %v10553
    %v12319 = vsel %vm12290, %v12254, %v10555
    %v12320 = vsel %vm12290, %v12255, %v10557
    %v12321 = vsel %vm12290, %v12256, %v10559
    %v12322 = vsel %vm12290, %v12257, %v10561
    %v12323 = vsel %vm12290, %v12258, %v10563
    %v12324 = vsel %vm12290, %v12259, %v10565
    %v12325 = vsel %vm12290, %v12260, %v10567
    %v12326 = vsel %vm12290, %v12261, %v10569
    %v12327 = vsel %vm12290, %v12262, %v10571
    %v12328 = vsel %vm12290, %v12263, %v10573
    %v12329 = vsel %vm12290, %v12264, %v10575
    %v12330 = vsel %vm12290, %v12265, %v10577
    %v12331 = vsel %vm12290, %v12266, %v10579
    %v12332 = vsel %vm12290, %v12267, %v10581
    %v12333 = vsel %vm12290, %v12268, %v10583
    %v12334 = vsel %vm12290, %v12269, %v10585
    %v12335 = vsel %vm12290, %v12270, %v10587
    %v12336 = vsel %vm12290, %v12271, %v10589
    %v12337 = vsel %vm12290, %v12272, %v10591
    %v12338 = vsel %vm12290, %v12273, %v10593
    %v12339 = vsel %vm12290, %v12274, %v10595
    %v12340 = vsel %vm12290, %v12275, %v10597
    %v12341 = vsel %vm12290, %v12276, %v10599
    %v12342 = vsel %vm12290, %v12277, %v10601
    %v12343 = vsel %vm12290, %v12278, %v10603
    %v12344 = vsel %vm12290, %v12279, %v10605
    %v12345 = vsel %vm12290, %v12280, %v10607
    %v12346 = vsel %vm12290, %v12281, %v10609
    %v12347 = vsel %vm12290, %v12282, %v10611
    %v12348 = vsel %vm12290, %v12283, %v10613
    %v12349 = vsel %vm12290, %v12284, %v10615
    %v12350 = vsel %vm12290, %v12285, %v10617
    %v12351 = vsel %vm12290, %v12286, %v10619
    %v12352 = vsel %vm12290, %v12287, %v10621
    %v12353 = vsel %vm12290, %v12288, %v10623
    %v12354 = vsel %vm12290, %v12289, %v10625
    %v12355 = vsel %vm7817, %v12291, %v10755
    %v12356 = vsel %vm7817, %v12292, %v10757
    %v12357 = vsel %vm7817, %v12293, %v10759
    %v12358 = vsel %vm7817, %v12294, %v10761
    %v12359 = vsel %vm7817, %v12295, %v10763
    %v12360 = vsel %vm7817, %v12296, %v10765
    %v12361 = vsel %vm7817, %v12297, %v10767
    %v12362 = vsel %vm7817, %v12298, %v10769
    %v12363 = vsel %vm7817, %v12299, %v10771
    %v12364 = vsel %vm7817, %v12300, %v10773
    %v12365 = vsel %vm7817, %v12301, %v10775
    %v12366 = vsel %vm7817, %v12302, %v10777
    %v12367 = vsel %vm7817, %v12303, %v10779
    %v12368 = vsel %vm7817, %v12304, %v10781
    %v12369 = vsel %vm7817, %v12305, %v10783
    %v12370 = vsel %vm7817, %v12306, %v10785
    %v12371 = vsel %vm7817, %v12307, %v10787
    %v12372 = vsel %vm7817, %v12308, %v10789
    %v12373 = vsel %vm7817, %v12309, %v10791
    %v12374 = vsel %vm7817, %v12310, %v10793
    %v12375 = vsel %vm7817, %v12311, %v10795
    %v12376 = vsel %vm7817, %v12312, %v10797
    %v12377 = vsel %vm7817, %v12313, %v10799
    %v12378 = vsel %vm7817, %v12314, %v10801
    %v12379 = vsel %vm7817, %v12315, %v10803
    %v12380 = vsel %vm7817, %v12316, %v10805
    %v12381 = vsel %vm7817, %v12317, %v10807
    %v12382 = vsel %vm7817, %v12318, %v10809
    %v12383 = vsel %vm7817, %v12319, %v10811
    %v12384 = vsel %vm7817, %v12320, %v10813
    %v12385 = vsel %vm7817, %v12321, %v10815
    %v12386 = vsel %vm7817, %v12322, %v10817
    %v12387 = vsel %vm7817, %v12323, %v10819
    %v12388 = vsel %vm7817, %v12324, %v10821
    %v12389 = vsel %vm7817, %v12325, %v10823
    %v12390 = vsel %vm7817, %v12326, %v10825
    %v12391 = vsel %vm7817, %v12327, %v10827
    %v12392 = vsel %vm7817, %v12328, %v10829
    %v12393 = vsel %vm7817, %v12329, %v10831
    %v12394 = vsel %vm7817, %v12330, %v10833
    %v12395 = vsel %vm7817, %v12331, %v10835
    %v12396 = vsel %vm7817, %v12332, %v10837
    %v12397 = vsel %vm7817, %v12333, %v10839
    %v12398 = vsel %vm7817, %v12334, %v10841
    %v12399 = vsel %vm7817, %v12335, %v10843
    %v12400 = vsel %vm7817, %v12336, %v10845
    %v12401 = vsel %vm7817, %v12337, %v10847
    %v12402 = vsel %vm7817, %v12338, %v10849
    %v12403 = vsel %vm7817, %v12339, %v10851
    %v12404 = vsel %vm7817, %v12340, %v10853
    %v12405 = vsel %vm7817, %v12341, %v10855
    %v12406 = vsel %vm7817, %v12342, %v10857
    %v12407 = vsel %vm7817, %v12343, %v10859
    %v12408 = vsel %vm7817, %v12344, %v10861
    %v12409 = vsel %vm7817, %v12345, %v10863
    %v12410 = vsel %vm7817, %v12346, %v10865
    %v12411 = vsel %vm7817, %v12347, %v10867
    %v12412 = vsel %vm7817, %v12348, %v10869
    %v12413 = vsel %vm7817, %v12349, %v10871
    %v12414 = vsel %vm7817, %v12350, %v10873
    %v12415 = vsel %vm7817, %v12351, %v10875
    %v12416 = vsel %vm7817, %v12352, %v10877
    %v12417 = vsel %vm7817, %v12353, %v10879
    %v12418 = vsel %vm7817, %v12354, %v10881
    %vm12419 = vcmask 654336
    %v12420 = vsel %vm12419, %v12355, %v11011
    %v12421 = vsel %vm12419, %v12356, %v11013
    %v12422 = vsel %vm12419, %v12357, %v11015
    %v12423 = vsel %vm12419, %v12358, %v11017
    %v12424 = vsel %vm12419, %v12359, %v11019
    %v12425 = vsel %vm12419, %v12360, %v11021
    %v12426 = vsel %vm12419, %v12361, %v11023
    %v12427 = vsel %vm12419, %v12362, %v11025
    %v12428 = vsel %vm12419, %v12363, %v11027
    %v12429 = vsel %vm12419, %v12364, %v11029
    %v12430 = vsel %vm12419, %v12365, %v11031
    %v12431 = vsel %vm12419, %v12366, %v11033
    %v12432 = vsel %vm12419, %v12367, %v11035
    %v12433 = vsel %vm12419, %v12368, %v11037
    %v12434 = vsel %vm12419, %v12369, %v11039
    %v12435 = vsel %vm12419, %v12370, %v11041
    %v12436 = vsel %vm12419, %v12371, %v11043
    %v12437 = vsel %vm12419, %v12372, %v11045
    %v12438 = vsel %vm12419, %v12373, %v11047
    %v12439 = vsel %vm12419, %v12374, %v11049
    %v12440 = vsel %vm12419, %v12375, %v11051
    %v12441 = vsel %vm12419, %v12376, %v11053
    %v12442 = vsel %vm12419, %v12377, %v11055
    %v12443 = vsel %vm12419, %v12378, %v11057
    %v12444 = vsel %vm12419, %v12379, %v11059
    %v12445 = vsel %vm12419, %v12380, %v11061
    %v12446 = vsel %vm12419, %v12381, %v11063
    %v12447 = vsel %vm12419, %v12382, %v11065
    %v12448 = vsel %vm12419, %v12383, %v11067
    %v12449 = vsel %vm12419, %v12384, %v11069
    %v12450 = vsel %vm12419, %v12385, %v11071
    %v12451 = vsel %vm12419, %v12386, %v11073
    %v12452 = vsel %vm12419, %v12387, %v11075
    %v12453 = vsel %vm12419, %v12388, %v11077
    %v12454 = vsel %vm12419, %v12389, %v11079
    %v12455 = vsel %vm12419, %v12390, %v11081
    %v12456 = vsel %vm12419, %v12391, %v11083
    %v12457 = vsel %vm12419, %v12392, %v11085
    %v12458 = vsel %vm12419, %v12393, %v11087
    %v12459 = vsel %vm12419, %v12394, %v11089
    %v12460 = vsel %vm12419, %v12395, %v11091
    %v12461 = vsel %vm12419, %v12396, %v11093
    %v12462 = vsel %vm12419, %v12397, %v11095
    %v12463 = vsel %vm12419, %v12398, %v11097
    %v12464 = vsel %vm12419, %v12399, %v11099
    %v12465 = vsel %vm12419, %v12400, %v11101
    %v12466 = vsel %vm12419, %v12401, %v11103
    %v12467 = vsel %vm12419, %v12402, %v11105
    %v12468 = vsel %vm12419, %v12403, %v11107
    %v12469 = vsel %vm12419, %v12404, %v11109
    %v12470 = vsel %vm12419, %v12405, %v11111
    %v12471 = vsel %vm12419, %v12406, %v11113
    %v12472 = vsel %vm12419, %v12407, %v11115
    %v12473 = vsel %vm12419, %v12408, %v11117
    %v12474 = vsel %vm12419, %v12409, %v11119
    %v12475 = vsel %vm12419, %v12410, %v11121
    %v12476 = vsel %vm12419, %v12411, %v11123
    %v12477 = vsel %vm12419, %v12412, %v11125
    %v12478 = vsel %vm12419, %v12413, %v11127
    %v12479 = vsel %vm12419, %v12414, %v11129
    %v12480 = vsel %vm12419, %v12415, %v11131
    %v12481 = vsel %vm12419, %v12416, %v11133
    %v12482 = vsel %vm12419, %v12417, %v11135
    %v12483 = vsel %vm12419, %v12418, %v11137
    %vm12484 = vcmask 818176
    %v12485 = vsel %vm12484, %v12420, %v11267
    %v12486 = vsel %vm12484, %v12421, %v11269
    %v12487 = vsel %vm12484, %v12422, %v11271
    %v12488 = vsel %vm12484, %v12423, %v11273
    %v12489 = vsel %vm12484, %v12424, %v11275
    %v12490 = vsel %vm12484, %v12425, %v11277
    %v12491 = vsel %vm12484, %v12426, %v11279
    %v12492 = vsel %vm12484, %v12427, %v11281
    %v12493 = vsel %vm12484, %v12428, %v11283
    %v12494 = vsel %vm12484, %v12429, %v11285
    %v12495 = vsel %vm12484, %v12430, %v11287
    %v12496 = vsel %vm12484, %v12431, %v11289
    %v12497 = vsel %vm12484, %v12432, %v11291
    %v12498 = vsel %vm12484, %v12433, %v11293
    %v12499 = vsel %vm12484, %v12434, %v11295
    %v12500 = vsel %vm12484, %v12435, %v11297
    %v12501 = vsel %vm12484, %v12436, %v11299
    %v12502 = vsel %vm12484, %v12437, %v11301
    %v12503 = vsel %vm12484, %v12438, %v11303
    %v12504 = vsel %vm12484, %v12439, %v11305
    %v12505 = vsel %vm12484, %v12440, %v11307
    %v12506 = vsel %vm12484, %v12441, %v11309
    %v12507 = vsel %vm12484, %v12442, %v11311
    %v12508 = vsel %vm12484, %v12443, %v11313
    %v12509 = vsel %vm12484, %v12444, %v11315
    %v12510 = vsel %vm12484, %v12445, %v11317
    %v12511 = vsel %vm12484, %v12446, %v11319
    %v12512 = vsel %vm12484, %v12447, %v11321
    %v12513 = vsel %vm12484, %v12448, %v11323
    %v12514 = vsel %vm12484, %v12449, %v11325
    %v12515 = vsel %vm12484, %v12450, %v11327
    %v12516 = vsel %vm12484, %v12451, %v11329
    %v12517 = vsel %vm12484, %v12452, %v11331
    %v12518 = vsel %vm12484, %v12453, %v11333
    %v12519 = vsel %vm12484, %v12454, %v11335
    %v12520 = vsel %vm12484, %v12455, %v11337
    %v12521 = vsel %vm12484, %v12456, %v11339
    %v12522 = vsel %vm12484, %v12457, %v11341
    %v12523 = vsel %vm12484, %v12458, %v11343
    %v12524 = vsel %vm12484, %v12459, %v11345
    %v12525 = vsel %vm12484, %v12460, %v11347
    %v12526 = vsel %vm12484, %v12461, %v11349
    %v12527 = vsel %vm12484, %v12462, %v11351
    %v12528 = vsel %vm12484, %v12463, %v11353
    %v12529 = vsel %vm12484, %v12464, %v11355
    %v12530 = vsel %vm12484, %v12465, %v11357
    %v12531 = vsel %vm12484, %v12466, %v11359
    %v12532 = vsel %vm12484, %v12467, %v11361
    %v12533 = vsel %vm12484, %v12468, %v11363
    %v12534 = vsel %vm12484, %v12469, %v11365
    %v12535 = vsel %vm12484, %v12470, %v11367
    %v12536 = vsel %vm12484, %v12471, %v11369
    %v12537 = vsel %vm12484, %v12472, %v11371
    %v12538 = vsel %vm12484, %v12473, %v11373
    %v12539 = vsel %vm12484, %v12474, %v11375
    %v12540 = vsel %vm12484, %v12475, %v11377
    %v12541 = vsel %vm12484, %v12476, %v11379
    %v12542 = vsel %vm12484, %v12477, %v11381
    %v12543 = vsel %vm12484, %v12478, %v11383
    %v12544 = vsel %vm12484, %v12479, %v11385
    %v12545 = vsel %vm12484, %v12480, %v11387
    %v12546 = vsel %vm12484, %v12481, %v11389
    %v12547 = vsel %vm12484, %v12482, %v11391
    %v12548 = vsel %vm12484, %v12483, %v11393
    %vm12549 = vcmask 982016
    %v12550 = vsel %vm12549, %v12485, %v11523
    %v12551 = vsel %vm12549, %v12486, %v11525
    %v12552 = vsel %vm12549, %v12487, %v11527
    %v12553 = vsel %vm12549, %v12488, %v11529
    %v12554 = vsel %vm12549, %v12489, %v11531
    %v12555 = vsel %vm12549, %v12490, %v11533
    %v12556 = vsel %vm12549, %v12491, %v11535
    %v12557 = vsel %vm12549, %v12492, %v11537
    %v12558 = vsel %vm12549, %v12493, %v11539
    %v12559 = vsel %vm12549, %v12494, %v11541
    %v12560 = vsel %vm12549, %v12495, %v11543
    %v12561 = vsel %vm12549, %v12496, %v11545
    %v12562 = vsel %vm12549, %v12497, %v11547
    %v12563 = vsel %vm12549, %v12498, %v11549
    %v12564 = vsel %vm12549, %v12499, %v11551
    %v12565 = vsel %vm12549, %v12500, %v11553
    %v12566 = vsel %vm12549, %v12501, %v11555
    %v12567 = vsel %vm12549, %v12502, %v11557
    %v12568 = vsel %vm12549, %v12503, %v11559
    %v12569 = vsel %vm12549, %v12504, %v11561
    %v12570 = vsel %vm12549, %v12505, %v11563
    %v12571 = vsel %vm12549, %v12506, %v11565
    %v12572 = vsel %vm12549, %v12507, %v11567
    %v12573 = vsel %vm12549, %v12508, %v11569
    %v12574 = vsel %vm12549, %v12509, %v11571
    %v12575 = vsel %vm12549, %v12510, %v11573
    %v12576 = vsel %vm12549, %v12511, %v11575
    %v12577 = vsel %vm12549, %v12512, %v11577
    %v12578 = vsel %vm12549, %v12513, %v11579
    %v12579 = vsel %vm12549, %v12514, %v11581
    %v12580 = vsel %vm12549, %v12515, %v11583
    %v12581 = vsel %vm12549, %v12516, %v11585
    %v12582 = vsel %vm12549, %v12517, %v11587
    %v12583 = vsel %vm12549, %v12518, %v11589
    %v12584 = vsel %vm12549, %v12519, %v11591
    %v12585 = vsel %vm12549, %v12520, %v11593
    %v12586 = vsel %vm12549, %v12521, %v11595
    %v12587 = vsel %vm12549, %v12522, %v11597
    %v12588 = vsel %vm12549, %v12523, %v11599
    %v12589 = vsel %vm12549, %v12524, %v11601
    %v12590 = vsel %vm12549, %v12525, %v11603
    %v12591 = vsel %vm12549, %v12526, %v11605
    %v12592 = vsel %vm12549, %v12527, %v11607
    %v12593 = vsel %vm12549, %v12528, %v11609
    %v12594 = vsel %vm12549, %v12529, %v11611
    %v12595 = vsel %vm12549, %v12530, %v11613
    %v12596 = vsel %vm12549, %v12531, %v11615
    %v12597 = vsel %vm12549, %v12532, %v11617
    %v12598 = vsel %vm12549, %v12533, %v11619
    %v12599 = vsel %vm12549, %v12534, %v11621
    %v12600 = vsel %vm12549, %v12535, %v11623
    %v12601 = vsel %vm12549, %v12536, %v11625
    %v12602 = vsel %vm12549, %v12537, %v11627
    %v12603 = vsel %vm12549, %v12538, %v11629
    %v12604 = vsel %vm12549, %v12539, %v11631
    %v12605 = vsel %vm12549, %v12540, %v11633
    %v12606 = vsel %vm12549, %v12541, %v11635
    %v12607 = vsel %vm12549, %v12542, %v11637
    %v12608 = vsel %vm12549, %v12543, %v11639
    %v12609 = vsel %vm12549, %v12544, %v11641
    %v12610 = vsel %vm12549, %v12545, %v11643
    %v12611 = vsel %vm12549, %v12546, %v11645
    %v12612 = vsel %vm12549, %v12547, %v11647
    %v12613 = vsel %vm12549, %v12548, %v11649
    %v12614 = vsel %vm3030, %v11523, %v11779
    %v12615 = vsel %vm3030, %v11525, %v11781
    %v12616 = vsel %vm3030, %v11527, %v11783
    %v12617 = vsel %vm3030, %v11529, %v11785
    %v12618 = vsel %vm3030, %v11531, %v11787
    %v12619 = vsel %vm3030, %v11533, %v11789
    %v12620 = vsel %vm3030, %v11535, %v11791
    %v12621 = vsel %vm3030, %v11537, %v11793
    %v12622 = vsel %vm3030, %v11539, %v11795
    %v12623 = vsel %vm3030, %v11541, %v11797
    %v12624 = vsel %vm3030, %v11543, %v11799
    %v12625 = vsel %vm3030, %v11545, %v11801
    %v12626 = vsel %vm3030, %v11547, %v11803
    %v12627 = vsel %vm3030, %v11549, %v11805
    %v12628 = vsel %vm3030, %v11551, %v11807
    %v12629 = vsel %vm3030, %v11553, %v11809
    %v12630 = vsel %vm3030, %v11555, %v11811
    %v12631 = vsel %vm3030, %v11557, %v11813
    %v12632 = vsel %vm3030, %v11559, %v11815
    %v12633 = vsel %vm3030, %v11561, %v11817
    %v12634 = vsel %vm3030, %v11563, %v11819
    %v12635 = vsel %vm3030, %v11565, %v11821
    %v12636 = vsel %vm3030, %v11567, %v11823
    %v12637 = vsel %vm3030, %v11569, %v11825
    %v12638 = vsel %vm3030, %v11571, %v11827
    %v12639 = vsel %vm3030, %v11573, %v11829
    %v12640 = vsel %vm3030, %v11575, %v11831
    %v12641 = vsel %vm3030, %v11577, %v11833
    %v12642 = vsel %vm3030, %v11579, %v11835
    %v12643 = vsel %vm3030, %v11581, %v11837
    %v12644 = vsel %vm3030, %v11583, %v11839
    %v12645 = vsel %vm3030, %v11585, %v11841
    %v12646 = vsel %vm3030, %v11587, %v11843
    %v12647 = vsel %vm3030, %v11589, %v11845
    %v12648 = vsel %vm3030, %v11591, %v11847
    %v12649 = vsel %vm3030, %v11593, %v11849
    %v12650 = vsel %vm3030, %v11595, %v11851
    %v12651 = vsel %vm3030, %v11597, %v11853
    %v12652 = vsel %vm3030, %v11599, %v11855
    %v12653 = vsel %vm3030, %v11601, %v11857
    %v12654 = vsel %vm3030, %v11603, %v11859
    %v12655 = vsel %vm3030, %v11605, %v11861
    %v12656 = vsel %vm3030, %v11607, %v11863
    %v12657 = vsel %vm3030, %v11609, %v11865
    %v12658 = vsel %vm3030, %v11611, %v11867
    %v12659 = vsel %vm3030, %v11613, %v11869
    %v12660 = vsel %vm3030, %v11615, %v11871
    %v12661 = vsel %vm3030, %v11617, %v11873
    %v12662 = vsel %vm3030, %v11619, %v11875
    %v12663 = vsel %vm3030, %v11621, %v11877
    %v12664 = vsel %vm3030, %v11623, %v11879
    %v12665 = vsel %vm3030, %v11625, %v11881
    %v12666 = vsel %vm3030, %v11627, %v11883
    %v12667 = vsel %vm3030, %v11629, %v11885
    %v12668 = vsel %vm3030, %v11631, %v11887
    %v12669 = vsel %vm3030, %v11633, %v11889
    %v12670 = vsel %vm3030, %v11635, %v11891
    %v12671 = vsel %vm3030, %v11637, %v11893
    %v12672 = vsel %vm3030, %v11639, %v11895
    %v12673 = vsel %vm3030, %v11641, %v11897
    %v12674 = vsel %vm3030, %v11643, %v11899
    %v12675 = vsel %vm3030, %v11645, %v11901
    %v12676 = vsel %vm3030, %v11647, %v11903
    %v12677 = vsel %vm3030, %v11649, %v11905
    %v12678 = vsel %vm3354, %v12614, %v12035
    %v12679 = vsel %vm3354, %v12615, %v12037
    %v12680 = vsel %vm3354, %v12616, %v12039
    %v12681 = vsel %vm3354, %v12617, %v12041
    %v12682 = vsel %vm3354, %v12618, %v12043
    %v12683 = vsel %vm3354, %v12619, %v12045
    %v12684 = vsel %vm3354, %v12620, %v12047
    %v12685 = vsel %vm3354, %v12621, %v12049
    %v12686 = vsel %vm3354, %v12622, %v12051
    %v12687 = vsel %vm3354, %v12623, %v12053
    %v12688 = vsel %vm3354, %v12624, %v12055
    %v12689 = vsel %vm3354, %v12625, %v12057
    %v12690 = vsel %vm3354, %v12626, %v12059
    %v12691 = vsel %vm3354, %v12627, %v12061
    %v12692 = vsel %vm3354, %v12628, %v12063
    %v12693 = vsel %vm3354, %v12629, %v12065
    %v12694 = vsel %vm3354, %v12630, %v12067
    %v12695 = vsel %vm3354, %v12631, %v12069
    %v12696 = vsel %vm3354, %v12632, %v12071
    %v12697 = vsel %vm3354, %v12633, %v12073
    %v12698 = vsel %vm3354, %v12634, %v12075
    %v12699 = vsel %vm3354, %v12635, %v12077
    %v12700 = vsel %vm3354, %v12636, %v12079
    %v12701 = vsel %vm3354, %v12637, %v12081
    %v12702 = vsel %vm3354, %v12638, %v12083
    %v12703 = vsel %vm3354, %v12639, %v12085
    %v12704 = vsel %vm3354, %v12640, %v12087
    %v12705 = vsel %vm3354, %v12641, %v12089
    %v12706 = vsel %vm3354, %v12642, %v12091
    %v12707 = vsel %vm3354, %v12643, %v12093
    %v12708 = vsel %vm3354, %v12644, %v12095
    %v12709 = vsel %vm3354, %v12645, %v12097
    %v12710 = vsel %vm3354, %v12646, %v12099
    %v12711 = vsel %vm3354, %v12647, %v12101
    %v12712 = vsel %vm3354, %v12648, %v12103
    %v12713 = vsel %vm3354, %v12649, %v12105
    %v12714 = vsel %vm3354, %v12650, %v12107
    %v12715 = vsel %vm3354, %v12651, %v12109
    %v12716 = vsel %vm3354, %v12652, %v12111
    %v12717 = vsel %vm3354, %v12653, %v12113
    %v12718 = vsel %vm3354, %v12654, %v12115
    %v12719 = vsel %vm3354, %v12655, %v12117
    %v12720 = vsel %vm3354, %v12656, %v12119
    %v12721 = vsel %vm3354, %v12657, %v12121
    %v12722 = vsel %vm3354, %v12658, %v12123
    %v12723 = vsel %vm3354, %v12659, %v12125
    %v12724 = vsel %vm3354, %v12660, %v12127
    %v12725 = vsel %vm3354, %v12661, %v12129
    %v12726 = vsel %vm3354, %v12662, %v12131
    %v12727 = vsel %vm3354, %v12663, %v12133
    %v12728 = vsel %vm3354, %v12664, %v12135
    %v12729 = vsel %vm3354, %v12665, %v12137
    %v12730 = vsel %vm3354, %v12666, %v12139
    %v12731 = vsel %vm3354, %v12667, %v12141
    %v12732 = vsel %vm3354, %v12668, %v12143
    %v12733 = vsel %vm3354, %v12669, %v12145
    %v12734 = vsel %vm3354, %v12670, %v12147
    %v12735 = vsel %vm3354, %v12671, %v12149
    %v12736 = vsel %vm3354, %v12672, %v12151
    %v12737 = vsel %vm3354, %v12673, %v12153
    %v12738 = vsel %vm3354, %v12674, %v12155
    %v12739 = vsel %vm3354, %v12675, %v12157
    %v12740 = vsel %vm3354, %v12676, %v12159
    %v12741 = vsel %vm3354, %v12677, %v12161
    %v12742 = vld [vmem:[%s7] sm:$0xff]
    %v12743 = vld [vmem:[%s7 + $0x8] sm:$0xff]
    %v12744 = vld [vmem:[%s7 + $0x10] sm:$0xff]
    %v12745 = vld [vmem:[%s7 + $0x18] sm:$0xff]
    %v12746 = vld [vmem:[%s7 + $0x20] sm:$0xff]
    %v12747 = vld [vmem:[%s7 + $0x28] sm:$0xff]
    %v12748 = vld [vmem:[%s7 + $0x30] sm:$0xff]
    %v12749 = vld [vmem:[%s7 + $0x38] sm:$0xff]
    %v12750 = vld [vmem:[%s7 + $0x40] sm:$0xff]
    %v12751 = vld [vmem:[%s7 + $0x48] sm:$0xff]
    %v12752 = vld [vmem:[%s7 + $0x50] sm:$0xff]
    %v12753 = vld [vmem:[%s7 + $0x58] sm:$0xff]
    %v12754 = vld [vmem:[%s7 + $0x60] sm:$0xff]
    %v12755 = vld [vmem:[%s7 + $0x68] sm:$0xff]
    %v12756 = vld [vmem:[%s7 + $0x70] sm:$0xff]
    %v12757 = vld [vmem:[%s7 + $0x78] sm:$0xff]
    %v12758 = vld [vmem:[%s7 + $0x80] sm:$0xff]
    %v12759 = vld [vmem:[%s7 + $0x88] sm:$0xff]
    %v12760 = vld [vmem:[%s7 + $0x90] sm:$0xff]
    %v12761 = vld [vmem:[%s7 + $0x98] sm:$0xff]
    %v12762 = vld [vmem:[%s7 + $0xa0] sm:$0xff]
    %v12763 = vld [vmem:[%s7 + $0xa8] sm:$0xff]
    %v12764 = vld [vmem:[%s7 + $0xb0] sm:$0xf]
    %vm12765 = vcmask 424960
    %v12767 = vsel %vm12765, %v12678, 0
    %v12770 = vsel %vm12765, %v12679, 0
    %v12773 = vsel %vm12765, %v12680, 0
    %v12776 = vsel %vm12765, %v12681, 0
    %v12779 = vsel %vm12765, %v12682, 0
    %v12782 = vsel %vm12765, %v12683, 0
    %v12785 = vsel %vm12765, %v12684, 0
    %v12788 = vsel %vm12765, %v12685, 0
    %v12791 = vsel %vm12765, %v12686, 0
    %v12794 = vsel %vm12765, %v12687, 0
    %v12797 = vsel %vm12765, %v12688, 0
    %v12800 = vsel %vm12765, %v12689, 0
    %v12803 = vsel %vm12765, %v12690, 0
    %v12806 = vsel %vm12765, %v12691, 0
    %v12809 = vsel %vm12765, %v12692, 0
    %v12812 = vsel %vm12765, %v12693, 0
    %v12815 = vsel %vm12765, %v12694, 0
    %v12818 = vsel %vm12765, %v12695, 0
    %v12821 = vsel %vm12765, %v12696, 0
    %v12824 = vsel %vm12765, %v12697, 0
    %v12827 = vsel %vm12765, %v12698, 0
    %v12830 = vsel %vm12765, %v12699, 0
    %v12833 = vsel %vm12765, %v12700, 0
    %v12836 = vsel %vm12765, %v12701, 0
    %v12839 = vsel %vm12765, %v12702, 0
    %v12842 = vsel %vm12765, %v12703, 0
    %v12845 = vsel %vm12765, %v12704, 0
    %v12848 = vsel %vm12765, %v12705, 0
    %v12851 = vsel %vm12765, %v12706, 0
    %v12854 = vsel %vm12765, %v12707, 0
    %v12857 = vsel %vm12765, %v12708, 0
    %v12860 = vsel %vm12765, %v12709, 0
    %v12863 = vsel %vm12765, %v12710, 0
    %v12866 = vsel %vm12765, %v12711, 0
    %v12869 = vsel %vm12765, %v12712, 0
    %v12872 = vsel %vm12765, %v12713, 0
    %v12875 = vsel %vm12765, %v12714, 0
    %v12878 = vsel %vm12765, %v12715, 0
    %v12881 = vsel %vm12765, %v12716, 0
    %v12884 = vsel %vm12765, %v12717, 0
    %v12887 = vsel %vm12765, %v12718, 0
    %v12890 = vsel %vm12765, %v12719, 0
    %v12893 = vsel %vm12765, %v12720, 0
    %v12896 = vsel %vm12765, %v12721, 0
    %v12899 = vsel %vm12765, %v12722, 0
    %v12902 = vsel %vm12765, %v12723, 0
    %v12905 = vsel %vm12765, %v12724, 0
    %v12908 = vsel %vm12765, %v12725, 0
    %v12911 = vsel %vm12765, %v12726, 0
    %v12914 = vsel %vm12765, %v12727, 0
    %v12917 = vsel %vm12765, %v12728, 0
    %v12920 = vsel %vm12765, %v12729, 0
    %v12923 = vsel %vm12765, %v12730, 0
    %v12926 = vsel %vm12765, %v12731, 0
    %v12929 = vsel %vm12765, %v12732, 0
    %v12932 = vsel %vm12765, %v12733, 0
    %v12935 = vsel %vm12765, %v12734, 0
    %v12938 = vsel %vm12765, %v12735, 0
    %v12941 = vsel %vm12765, %v12736, 0
    %v12944 = vsel %vm12765, %v12737, 0
    %v12947 = vsel %vm12765, %v12738, 0
    %v12950 = vsel %vm12765, %v12739, 0
    %v12953 = vsel %vm12765, %v12740, 0
    %v12956 = vsel %vm12765, %v12741, 0
    %v12959 = vsel %vm3617, %v12764, 0
    %12961 = vmatprep.subr.mxu0 0.0
    %12962 = vmatpush1.msra.mxu0 %v12757
    %12963 = vmatprep.subr.mxu0 0.0
    %12964 = vmatpush1.msra.mxu0 %v12756
    %12965 = vmatprep.subr.mxu0 0.0
    %12966 = vmatpush1.msra.mxu0 %v12755
    %12967 = vmatprep.subr.mxu0 0.0
    %12968 = vmatpush1.msra.mxu0 %v12754
    %12969 = vmatprep.subr.mxu0 0.0
    %12970 = vmatpush1.msra.mxu0 %v12753
    %12971 = vmatprep.subr.mxu0 0.0
    %12972 = vmatpush1.msra.mxu0 %v12752
    %12973 = vmatprep.subr.mxu0 0.0
    %12974 = vmatpush1.msra.mxu0 %v12751
    %12975 = vmatprep.subr.mxu0 0.0
    %12976 = vmatpush1.msra.mxu0 %v12750
    %12977 = vmatprep.subr.mxu0 0.0
    %12978 = vmatpush1.msra.mxu0 %v12749
    %12979 = vmatprep.subr.mxu0 0.0
    %12980 = vmatpush1.msra.mxu0 %v12748
    %12981 = vmatprep.subr.mxu0 0.0
    %12982 = vmatpush1.msra.mxu0 %v12747
    %12983 = vmatprep.subr.mxu0 0.0
    %12984 = vmatpush1.msra.mxu0 %v12746
    %12985 = vmatprep.subr.mxu0 0.0
    %12986 = vmatpush1.msra.mxu0 %v12745
    %12987 = vmatprep.subr.mxu0 0.0
    %12988 = vmatpush1.msra.mxu0 %v12744
    %12989 = vmatprep.subr.mxu0 0.0
    %12990 = vmatpush1.msra.mxu0 %v12743
    %12991 = vmatprep.subr.mxu0 0.0
    %12992 = vmatpush1.msra.mxu0 %v12742
    %12993 = vmatprep.subr.mxu0 0.0
    %12994 = vmatpush2.msra.mxu0 0.0
    %12995 = vmatprep.subr.mxu0 0.0
    %12996 = vmatpush2.msra.mxu0 0.0
    %12997 = vmatprep.subr.mxu0 0.0
    %12998 = vmatpush2.msra.mxu0 0.0
    %12999 = vmatprep.subr.mxu0 0.0
    %13000 = vmatpush2.msra.mxu0 0.0
    %13001 = vmatprep.subr.mxu0 0.0
    %13002 = vmatpush2.msra.mxu0 0.0
    %13003 = vmatprep.subr.mxu0 0.0
    %13004 = vmatpush2.msra.mxu0 0.0
    %13005 = vmatprep.subr.mxu0 0.0
    %13006 = vmatpush2.msra.mxu0 0.0
    %13007 = vmatprep.subr.mxu0 0.0
    %13008 = vmatpush2.msra.mxu0 0.0
    %13009 = vmatprep.subr.mxu0 0.0
    %13010 = vmatpush2.msra.mxu0 0.0
    %13011 = vmatprep.subr.mxu0 0.0
    %13012 = vmatpush2.msra.mxu0 %v12959
    %13013 = vmatprep.subr.mxu0 0.0
    %13014 = vmatpush2.msra.mxu0 %v12763
    %13015 = vmatprep.subr.mxu0 0.0
    %13016 = vmatpush2.msra.mxu0 %v12762
    %13017 = vmatprep.subr.mxu0 0.0
    %13018 = vmatpush2.msra.mxu0 %v12761
    %13019 = vmatprep.subr.mxu0 0.0
    %13020 = vmatpush2.msra.mxu0 %v12760
    %13021 = vmatprep.subr.mxu0 0.0
    %13022 = vmatpush2.msra.mxu0 %v12759
    %13023 = vmatprep.subr.mxu0 0.0
    %13024 = vmatpush2.msra.mxu0 %v12758
    %13025 = vmatprep.mubr.f32.mxu0 %v12767
    %13026 = vmatmul.mubr.f32.gmra.mxu0 %v12550
    %v13027 = vpop.f32.mrf.mxu0
    %v13028 = vadd.f32 0.0, %v13027
    %v13029 = vpop.f32.mrf.mxu0
    %13030 = vmatprep.mubr.f32.mxu0 %v12770
    %13031 = vmatmul.mubr.f32.gmra.mxu0 %v12551
    %v13032 = vpop.f32.mrf.mxu0
    %v13033 = vadd.f32 0.0, %v13032
    %v13034 = vpop.f32.mrf.mxu0
    %13035 = vmatprep.mubr.f32.mxu0 %v12773
    %13036 = vmatmul.mubr.f32.gmra.mxu0 %v12552
    %v13037 = vpop.f32.mrf.mxu0
    %v13038 = vadd.f32 0.0, %v13037
    %v13039 = vpop.f32.mrf.mxu0
    %13040 = vmatprep.mubr.f32.mxu0 %v12776
    %13041 = vmatmul.mubr.f32.gmra.mxu0 %v12553
    %v13042 = vpop.f32.mrf.mxu0
    %v13043 = vadd.f32 0.0, %v13042
    %v13044 = vpop.f32.mrf.mxu0
    %13045 = vmatprep.mubr.f32.mxu0 %v12779
    %13046 = vmatmul.mubr.f32.gmra.mxu0 %v12554
    %v13047 = vpop.f32.mrf.mxu0
    %v13048 = vadd.f32 0.0, %v13047
    %v13049 = vpop.f32.mrf.mxu0
    %13050 = vmatprep.mubr.f32.mxu0 %v12782
    %13051 = vmatmul.mubr.f32.gmra.mxu0 %v12555
    %v13052 = vpop.f32.mrf.mxu0
    %v13053 = vadd.f32 0.0, %v13052
    %v13054 = vpop.f32.mrf.mxu0
    %13055 = vmatprep.mubr.f32.mxu0 %v12785
    %13056 = vmatmul.mubr.f32.gmra.mxu0 %v12556
    %v13057 = vpop.f32.mrf.mxu0
    %v13058 = vadd.f32 0.0, %v13057
    %v13059 = vpop.f32.mrf.mxu0
    %13060 = vmatprep.mubr.f32.mxu0 %v12788
    %13061 = vmatmul.mubr.f32.gmra.mxu0 %v12557
    %v13062 = vpop.f32.mrf.mxu0
    %v13063 = vadd.f32 0.0, %v13062
    %v13064 = vpop.f32.mrf.mxu0
    %13065 = vmatprep.mubr.f32.mxu0 %v12791
    %13066 = vmatmul.mubr.f32.gmra.mxu0 %v12558
    %v13067 = vpop.f32.mrf.mxu0
    %v13068 = vadd.f32 0.0, %v13067
    %v13069 = vpop.f32.mrf.mxu0
    %13070 = vmatprep.mubr.f32.mxu0 %v12794
    %13071 = vmatmul.mubr.f32.gmra.mxu0 %v12559
    %v13072 = vpop.f32.mrf.mxu0
    %v13073 = vadd.f32 0.0, %v13072
    %v13074 = vpop.f32.mrf.mxu0
    %13075 = vmatprep.mubr.f32.mxu0 %v12797
    %13076 = vmatmul.mubr.f32.gmra.mxu0 %v12560
    %v13077 = vpop.f32.mrf.mxu0
    %v13078 = vadd.f32 0.0, %v13077
    %v13079 = vpop.f32.mrf.mxu0
    %13080 = vmatprep.mubr.f32.mxu0 %v12800
    %13081 = vmatmul.mubr.f32.gmra.mxu0 %v12561
    %v13082 = vpop.f32.mrf.mxu0
    %v13083 = vadd.f32 0.0, %v13082
    %v13084 = vpop.f32.mrf.mxu0
    %13085 = vmatprep.mubr.f32.mxu0 %v12803
    %13086 = vmatmul.mubr.f32.gmra.mxu0 %v12562
    %v13087 = vpop.f32.mrf.mxu0
    %v13088 = vadd.f32 0.0, %v13087
    %v13089 = vpop.f32.mrf.mxu0
    %13090 = vmatprep.mubr.f32.mxu0 %v12806
    %13091 = vmatmul.mubr.f32.gmra.mxu0 %v12563
    %v13092 = vpop.f32.mrf.mxu0
    %v13093 = vadd.f32 0.0, %v13092
    %v13094 = vpop.f32.mrf.mxu0
    %13095 = vmatprep.mubr.f32.mxu0 %v12809
    %13096 = vmatmul.mubr.f32.gmra.mxu0 %v12564
    %v13097 = vpop.f32.mrf.mxu0
    %v13098 = vadd.f32 0.0, %v13097
    %v13099 = vpop.f32.mrf.mxu0
    %13100 = vmatprep.mubr.f32.mxu0 %v12812
    %13101 = vmatmul.mubr.f32.gmra.mxu0 %v12565
    %v13102 = vpop.f32.mrf.mxu0
    %v13103 = vadd.f32 0.0, %v13102
    %v13104 = vpop.f32.mrf.mxu0
    %13105 = vmatprep.mubr.f32.mxu0 %v12815
    %13106 = vmatmul.mubr.f32.gmra.mxu0 %v12566
    %v13107 = vpop.f32.mrf.mxu0
    %v13108 = vadd.f32 0.0, %v13107
    %v13109 = vpop.f32.mrf.mxu0
    %13110 = vmatprep.mubr.f32.mxu0 %v12818
    %13111 = vmatmul.mubr.f32.gmra.mxu0 %v12567
    %v13112 = vpop.f32.mrf.mxu0
    %v13113 = vadd.f32 0.0, %v13112
    %v13114 = vpop.f32.mrf.mxu0
    %13115 = vmatprep.mubr.f32.mxu0 %v12821
    %13116 = vmatmul.mubr.f32.gmra.mxu0 %v12568
    %v13117 = vpop.f32.mrf.mxu0
    %v13118 = vadd.f32 0.0, %v13117
    %v13119 = vpop.f32.mrf.mxu0
    %13120 = vmatprep.mubr.f32.mxu0 %v12824
    %13121 = vmatmul.mubr.f32.gmra.mxu0 %v12569
    %v13122 = vpop.f32.mrf.mxu0
    %v13123 = vadd.f32 0.0, %v13122
    %v13124 = vpop.f32.mrf.mxu0
    %13125 = vmatprep.mubr.f32.mxu0 %v12827
    %13126 = vmatmul.mubr.f32.gmra.mxu0 %v12570
    %v13127 = vpop.f32.mrf.mxu0
    %v13128 = vadd.f32 0.0, %v13127
    %v13129 = vpop.f32.mrf.mxu0
    %13130 = vmatprep.mubr.f32.mxu0 %v12830
    %13131 = vmatmul.mubr.f32.gmra.mxu0 %v12571
    %v13132 = vpop.f32.mrf.mxu0
    %v13133 = vadd.f32 0.0, %v13132
    %v13134 = vpop.f32.mrf.mxu0
    %13135 = vmatprep.mubr.f32.mxu0 %v12833
    %13136 = vmatmul.mubr.f32.gmra.mxu0 %v12572
    %v13137 = vpop.f32.mrf.mxu0
    %v13138 = vadd.f32 0.0, %v13137
    %v13139 = vpop.f32.mrf.mxu0
    %13140 = vmatprep.mubr.f32.mxu0 %v12836
    %13141 = vmatmul.mubr.f32.gmra.mxu0 %v12573
    %v13142 = vpop.f32.mrf.mxu0
    %v13143 = vadd.f32 0.0, %v13142
    %v13144 = vpop.f32.mrf.mxu0
    %13145 = vmatprep.mubr.f32.mxu0 %v12839
    %13146 = vmatmul.mubr.f32.gmra.mxu0 %v12574
    %v13147 = vpop.f32.mrf.mxu0
    %v13148 = vadd.f32 0.0, %v13147
    %v13149 = vpop.f32.mrf.mxu0
    %13150 = vmatprep.mubr.f32.mxu0 %v12842
    %13151 = vmatmul.mubr.f32.gmra.mxu0 %v12575
    %v13152 = vpop.f32.mrf.mxu0
    %v13153 = vadd.f32 0.0, %v13152
    %v13154 = vpop.f32.mrf.mxu0
    %13155 = vmatprep.mubr.f32.mxu0 %v12845
    %13156 = vmatmul.mubr.f32.gmra.mxu0 %v12576
    %v13157 = vpop.f32.mrf.mxu0
    %v13158 = vadd.f32 0.0, %v13157
    %v13159 = vpop.f32.mrf.mxu0
    %13160 = vmatprep.mubr.f32.mxu0 %v12848
    %13161 = vmatmul.mubr.f32.gmra.mxu0 %v12577
    %v13162 = vpop.f32.mrf.mxu0
    %v13163 = vadd.f32 0.0, %v13162
    %v13164 = vpop.f32.mrf.mxu0
    %13165 = vmatprep.mubr.f32.mxu0 %v12851
    %13166 = vmatmul.mubr.f32.gmra.mxu0 %v12578
    %v13167 = vpop.f32.mrf.mxu0
    %v13168 = vadd.f32 0.0, %v13167
    %v13169 = vpop.f32.mrf.mxu0
    %13170 = vmatprep.mubr.f32.mxu0 %v12854
    %13171 = vmatmul.mubr.f32.gmra.mxu0 %v12579
    %v13172 = vpop.f32.mrf.mxu0
    %v13173 = vadd.f32 0.0, %v13172
    %v13174 = vpop.f32.mrf.mxu0
    %13175 = vmatprep.mubr.f32.mxu0 %v12857
    %13176 = vmatmul.mubr.f32.gmra.mxu0 %v12580
    %v13177 = vpop.f32.mrf.mxu0
    %v13178 = vadd.f32 0.0, %v13177
    %v13179 = vpop.f32.mrf.mxu0
    %13180 = vmatprep.mubr.f32.mxu0 %v12860
    %13181 = vmatmul.mubr.f32.gmra.mxu0 %v12581
    %v13182 = vpop.f32.mrf.mxu0
    %v13183 = vadd.f32 0.0, %v13182
    %v13184 = vpop.f32.mrf.mxu0
    %13185 = vmatprep.mubr.f32.mxu0 %v12863
    %13186 = vmatmul.mubr.f32.gmra.mxu0 %v12582
    %v13187 = vpop.f32.mrf.mxu0
    %v13188 = vadd.f32 0.0, %v13187
    %v13189 = vpop.f32.mrf.mxu0
    %13190 = vmatprep.mubr.f32.mxu0 %v12866
    %13191 = vmatmul.mubr.f32.gmra.mxu0 %v12583
    %v13192 = vpop.f32.mrf.mxu0
    %v13193 = vadd.f32 0.0, %v13192
    %v13194 = vpop.f32.mrf.mxu0
    %13195 = vmatprep.mubr.f32.mxu0 %v12869
    %13196 = vmatmul.mubr.f32.gmra.mxu0 %v12584
    %v13197 = vpop.f32.mrf.mxu0
    %v13198 = vadd.f32 0.0, %v13197
    %v13199 = vpop.f32.mrf.mxu0
    %13200 = vmatprep.mubr.f32.mxu0 %v12872
    %13201 = vmatmul.mubr.f32.gmra.mxu0 %v12585
    %v13202 = vpop.f32.mrf.mxu0
    %v13203 = vadd.f32 0.0, %v13202
    %v13204 = vpop.f32.mrf.mxu0
    %13205 = vmatprep.mubr.f32.mxu0 %v12875
    %13206 = vmatmul.mubr.f32.gmra.mxu0 %v12586
    %v13207 = vpop.f32.mrf.mxu0
    %v13208 = vadd.f32 0.0, %v13207
    %v13209 = vpop.f32.mrf.mxu0
    %13210 = vmatprep.mubr.f32.mxu0 %v12878
    %13211 = vmatmul.mubr.f32.gmra.mxu0 %v12587
    %v13212 = vpop.f32.mrf.mxu0
    %v13213 = vadd.f32 0.0, %v13212
    %v13214 = vpop.f32.mrf.mxu0
    %13215 = vmatprep.mubr.f32.mxu0 %v12881
    %13216 = vmatmul.mubr.f32.gmra.mxu0 %v12588
    %v13217 = vpop.f32.mrf.mxu0
    %v13218 = vadd.f32 0.0, %v13217
    %v13219 = vpop.f32.mrf.mxu0
    %13220 = vmatprep.mubr.f32.mxu0 %v12884
    %13221 = vmatmul.mubr.f32.gmra.mxu0 %v12589
    %v13222 = vpop.f32.mrf.mxu0
    %v13223 = vadd.f32 0.0, %v13222
    %v13224 = vpop.f32.mrf.mxu0
    %13225 = vmatprep.mubr.f32.mxu0 %v12887
    %13226 = vmatmul.mubr.f32.gmra.mxu0 %v12590
    %v13227 = vpop.f32.mrf.mxu0
    %v13228 = vadd.f32 0.0, %v13227
    %v13229 = vpop.f32.mrf.mxu0
    %13230 = vmatprep.mubr.f32.mxu0 %v12890
    %13231 = vmatmul.mubr.f32.gmra.mxu0 %v12591
    %v13232 = vpop.f32.mrf.mxu0
    %v13233 = vadd.f32 0.0, %v13232
    %v13234 = vpop.f32.mrf.mxu0
    %13235 = vmatprep.mubr.f32.mxu0 %v12893
    %13236 = vmatmul.mubr.f32.gmra.mxu0 %v12592
    %v13237 = vpop.f32.mrf.mxu0
    %v13238 = vadd.f32 0.0, %v13237
    %v13239 = vpop.f32.mrf.mxu0
    %13240 = vmatprep.mubr.f32.mxu0 %v12896
    %13241 = vmatmul.mubr.f32.gmra.mxu0 %v12593
    %v13242 = vpop.f32.mrf.mxu0
    %v13243 = vadd.f32 0.0, %v13242
    %v13244 = vpop.f32.mrf.mxu0
    %13245 = vmatprep.mubr.f32.mxu0 %v12899
    %13246 = vmatmul.mubr.f32.gmra.mxu0 %v12594
    %v13247 = vpop.f32.mrf.mxu0
    %v13248 = vadd.f32 0.0, %v13247
    %v13249 = vpop.f32.mrf.mxu0
    %13250 = vmatprep.mubr.f32.mxu0 %v12902
    %13251 = vmatmul.mubr.f32.gmra.mxu0 %v12595
    %v13252 = vpop.f32.mrf.mxu0
    %v13253 = vadd.f32 0.0, %v13252
    %v13254 = vpop.f32.mrf.mxu0
    %13255 = vmatprep.mubr.f32.mxu0 %v12905
    %13256 = vmatmul.mubr.f32.gmra.mxu0 %v12596
    %v13257 = vpop.f32.mrf.mxu0
    %v13258 = vadd.f32 0.0, %v13257
    %v13259 = vpop.f32.mrf.mxu0
    %13260 = vmatprep.mubr.f32.mxu0 %v12908
    %13261 = vmatmul.mubr.f32.gmra.mxu0 %v12597
    %v13262 = vpop.f32.mrf.mxu0
    %v13263 = vadd.f32 0.0, %v13262
    %v13264 = vpop.f32.mrf.mxu0
    %13265 = vmatprep.mubr.f32.mxu0 %v12911
    %13266 = vmatmul.mubr.f32.gmra.mxu0 %v12598
    %v13267 = vpop.f32.mrf.mxu0
    %v13268 = vadd.f32 0.0, %v13267
    %v13269 = vpop.f32.mrf.mxu0
    %13270 = vmatprep.mubr.f32.mxu0 %v12914
    %13271 = vmatmul.mubr.f32.gmra.mxu0 %v12599
    %v13272 = vpop.f32.mrf.mxu0
    %v13273 = vadd.f32 0.0, %v13272
    %v13274 = vpop.f32.mrf.mxu0
    %13275 = vmatprep.mubr.f32.mxu0 %v12917
    %13276 = vmatmul.mubr.f32.gmra.mxu0 %v12600
    %v13277 = vpop.f32.mrf.mxu0
    %v13278 = vadd.f32 0.0, %v13277
    %v13279 = vpop.f32.mrf.mxu0
    %13280 = vmatprep.mubr.f32.mxu0 %v12920
    %13281 = vmatmul.mubr.f32.gmra.mxu0 %v12601
    %v13282 = vpop.f32.mrf.mxu0
    %v13283 = vadd.f32 0.0, %v13282
    %v13284 = vpop.f32.mrf.mxu0
    %13285 = vmatprep.mubr.f32.mxu0 %v12923
    %13286 = vmatmul.mubr.f32.gmra.mxu0 %v12602
    %v13287 = vpop.f32.mrf.mxu0
    %v13288 = vadd.f32 0.0, %v13287
    %v13289 = vpop.f32.mrf.mxu0
    %13290 = vmatprep.mubr.f32.mxu0 %v12926
    %13291 = vmatmul.mubr.f32.gmra.mxu0 %v12603
    %v13292 = vpop.f32.mrf.mxu0
    %v13293 = vadd.f32 0.0, %v13292
    %v13294 = vpop.f32.mrf.mxu0
    %13295 = vmatprep.mubr.f32.mxu0 %v12929
    %13296 = vmatmul.mubr.f32.gmra.mxu0 %v12604
    %v13297 = vpop.f32.mrf.mxu0
    %v13298 = vadd.f32 0.0, %v13297
    %v13299 = vpop.f32.mrf.mxu0
    %13300 = vmatprep.mubr.f32.mxu0 %v12932
    %13301 = vmatmul.mubr.f32.gmra.mxu0 %v12605
    %v13302 = vpop.f32.mrf.mxu0
    %v13303 = vadd.f32 0.0, %v13302
    %v13304 = vpop.f32.mrf.mxu0
    %13305 = vmatprep.mubr.f32.mxu0 %v12935
    %13306 = vmatmul.mubr.f32.gmra.mxu0 %v12606
    %v13307 = vpop.f32.mrf.mxu0
    %v13308 = vadd.f32 0.0, %v13307
    %v13309 = vpop.f32.mrf.mxu0
    %13310 = vmatprep.mubr.f32.mxu0 %v12938
    %13311 = vmatmul.mubr.f32.gmra.mxu0 %v12607
    %v13312 = vpop.f32.mrf.mxu0
    %v13313 = vadd.f32 0.0, %v13312
    %v13314 = vpop.f32.mrf.mxu0
    %13315 = vmatprep.mubr.f32.mxu0 %v12941
    %13316 = vmatmul.mubr.f32.gmra.mxu0 %v12608
    %v13317 = vpop.f32.mrf.mxu0
    %v13318 = vadd.f32 0.0, %v13317
    %v13319 = vpop.f32.mrf.mxu0
    %13320 = vmatprep.mubr.f32.mxu0 %v12944
    %13321 = vmatmul.mubr.f32.gmra.mxu0 %v12609
    %v13322 = vpop.f32.mrf.mxu0
    %v13323 = vadd.f32 0.0, %v13322
    %v13324 = vpop.f32.mrf.mxu0
    %13325 = vmatprep.mubr.f32.mxu0 %v12947
    %13326 = vmatmul.mubr.f32.gmra.mxu0 %v12610
    %v13327 = vpop.f32.mrf.mxu0
    %v13328 = vadd.f32 0.0, %v13327
    %v13329 = vpop.f32.mrf.mxu0
    %13330 = vmatprep.mubr.f32.mxu0 %v12950
    %13331 = vmatmul.mubr.f32.gmra.mxu0 %v12611
    %v13332 = vpop.f32.mrf.mxu0
    %v13333 = vadd.f32 0.0, %v13332
    %v13334 = vpop.f32.mrf.mxu0
    %13335 = vmatprep.mubr.f32.mxu0 %v12953
    %13336 = vmatmul.mubr.f32.gmra.mxu0 %v12612
    %v13337 = vpop.f32.mrf.mxu0
    %v13338 = vadd.f32 0.0, %v13337
    %v13339 = vpop.f32.mrf.mxu0
    %13340 = vmatprep.mubr.f32.mxu0 %v12956
    %13341 = vmatmul.mubr.f32.gmra.mxu0 %v12613
    %v13342 = vpop.f32.mrf.mxu0
    %v13343 = vadd.f32 0.0, %v13342
    %v13344 = vpop.f32.mrf.mxu0
    %13345 = vdwg.mxu0
    %v13346 = vsel %vm2965, %v13028, 0.0
    %v13347 = vsel %vm2965, %v13033, 0.0
    %v13348 = vadd.f32 %v13346, %v13347
    %v13349 = vsel %vm2965, %v13038, 0.0
    %v13350 = vadd.f32 %v13348, %v13349
    %v13351 = vsel %vm2965, %v13043, 0.0
    %v13352 = vadd.f32 %v13350, %v13351
    %v13353 = vsel %vm2965, %v13048, 0.0
    %v13354 = vadd.f32 %v13352, %v13353
    %v13355 = vsel %vm2965, %v13053, 0.0
    %v13356 = vadd.f32 %v13354, %v13355
    %v13357 = vsel %vm2965, %v13058, 0.0
    %v13358 = vadd.f32 %v13356, %v13357
    %v13359 = vsel %vm2965, %v13063, 0.0
    %v13360 = vadd.f32 %v13358, %v13359
    %v13361 = vsel %vm2965, %v13068, 0.0
    %v13362 = vadd.f32 %v13360, %v13361
    %v13363 = vsel %vm2965, %v13073, 0.0
    %v13364 = vadd.f32 %v13362, %v13363
    %v13365 = vsel %vm2965, %v13078, 0.0
    %v13366 = vadd.f32 %v13364, %v13365
    %v13367 = vsel %vm2965, %v13083, 0.0
    %v13368 = vadd.f32 %v13366, %v13367
    %v13369 = vsel %vm2965, %v13088, 0.0
    %v13370 = vadd.f32 %v13368, %v13369
    %v13371 = vsel %vm2965, %v13093, 0.0
    %v13372 = vadd.f32 %v13370, %v13371
    %v13373 = vsel %vm2965, %v13098, 0.0
    %v13374 = vadd.f32 %v13372, %v13373
    %v13375 = vsel %vm2965, %v13103, 0.0
    %v13376 = vadd.f32 %v13374, %v13375
    %v13377 = vsel %vm2965, %v13108, 0.0
    %v13378 = vadd.f32 %v13376, %v13377
    %v13379 = vsel %vm2965, %v13113, 0.0
    %v13380 = vadd.f32 %v13378, %v13379
    %v13381 = vsel %vm2965, %v13118, 0.0
    %v13382 = vadd.f32 %v13380, %v13381
    %v13383 = vsel %vm2965, %v13123, 0.0
    %v13384 = vadd.f32 %v13382, %v13383
    %v13385 = vsel %vm2965, %v13128, 0.0
    %v13386 = vadd.f32 %v13384, %v13385
    %v13387 = vsel %vm2965, %v13133, 0.0
    %v13388 = vadd.f32 %v13386, %v13387
    %v13389 = vsel %vm2965, %v13138, 0.0
    %v13390 = vadd.f32 %v13388, %v13389
    %v13391 = vsel %vm2965, %v13143, 0.0
    %v13392 = vadd.f32 %v13390, %v13391
    %v13393 = vsel %vm2965, %v13148, 0.0
    %v13394 = vadd.f32 %v13392, %v13393
    %v13395 = vsel %vm2965, %v13153, 0.0
    %v13396 = vadd.f32 %v13394, %v13395
    %v13397 = vsel %vm2965, %v13158, 0.0
    %v13398 = vadd.f32 %v13396, %v13397
    %v13399 = vsel %vm2965, %v13163, 0.0
    %v13400 = vadd.f32 %v13398, %v13399
    %v13401 = vsel %vm2965, %v13168, 0.0
    %v13402 = vadd.f32 %v13400, %v13401
    %v13403 = vsel %vm2965, %v13173, 0.0
    %v13404 = vadd.f32 %v13402, %v13403
    %v13405 = vsel %vm2965, %v13178, 0.0
    %v13406 = vadd.f32 %v13404, %v13405
    %v13407 = vsel %vm2965, %v13183, 0.0
    %v13408 = vadd.f32 %v13406, %v13407
    %v13409 = vsel %vm2965, %v13188, 0.0
    %v13410 = vadd.f32 %v13408, %v13409
    %v13411 = vsel %vm2965, %v13193, 0.0
    %v13412 = vadd.f32 %v13410, %v13411
    %v13413 = vsel %vm2965, %v13198, 0.0
    %v13414 = vadd.f32 %v13412, %v13413
    %v13415 = vsel %vm2965, %v13203, 0.0
    %v13416 = vadd.f32 %v13414, %v13415
    %v13417 = vsel %vm2965, %v13208, 0.0
    %v13418 = vadd.f32 %v13416, %v13417
    %v13419 = vsel %vm2965, %v13213, 0.0
    %v13420 = vadd.f32 %v13418, %v13419
    %v13421 = vsel %vm2965, %v13218, 0.0
    %v13422 = vadd.f32 %v13420, %v13421
    %v13423 = vsel %vm2965, %v13223, 0.0
    %v13424 = vadd.f32 %v13422, %v13423
    %v13425 = vsel %vm2965, %v13228, 0.0
    %v13426 = vadd.f32 %v13424, %v13425
    %v13427 = vsel %vm2965, %v13233, 0.0
    %v13428 = vadd.f32 %v13426, %v13427
    %v13429 = vsel %vm2965, %v13238, 0.0
    %v13430 = vadd.f32 %v13428, %v13429
    %v13431 = vsel %vm2965, %v13243, 0.0
    %v13432 = vadd.f32 %v13430, %v13431
    %v13433 = vsel %vm2965, %v13248, 0.0
    %v13434 = vadd.f32 %v13432, %v13433
    %v13435 = vsel %vm2965, %v13253, 0.0
    %v13436 = vadd.f32 %v13434, %v13435
    %v13437 = vsel %vm2965, %v13258, 0.0
    %v13438 = vadd.f32 %v13436, %v13437
    %v13439 = vsel %vm2965, %v13263, 0.0
    %v13440 = vadd.f32 %v13438, %v13439
    %v13441 = vsel %vm2965, %v13268, 0.0
    %v13442 = vadd.f32 %v13440, %v13441
    %v13443 = vsel %vm2965, %v13273, 0.0
    %v13444 = vadd.f32 %v13442, %v13443
    %v13445 = vsel %vm2965, %v13278, 0.0
    %v13446 = vadd.f32 %v13444, %v13445
    %v13447 = vsel %vm2965, %v13283, 0.0
    %v13448 = vadd.f32 %v13446, %v13447
    %v13449 = vsel %vm2965, %v13288, 0.0
    %v13450 = vadd.f32 %v13448, %v13449
    %v13451 = vsel %vm2965, %v13293, 0.0
    %v13452 = vadd.f32 %v13450, %v13451
    %v13453 = vsel %vm2965, %v13298, 0.0
    %v13454 = vadd.f32 %v13452, %v13453
    %v13455 = vsel %vm2965, %v13303, 0.0
    %v13456 = vadd.f32 %v13454, %v13455
    %v13457 = vsel %vm2965, %v13308, 0.0
    %v13458 = vadd.f32 %v13456, %v13457
    %v13459 = vsel %vm2965, %v13313, 0.0
    %v13460 = vadd.f32 %v13458, %v13459
    %v13461 = vsel %vm2965, %v13318, 0.0
    %v13462 = vadd.f32 %v13460, %v13461
    %v13463 = vsel %vm2965, %v13323, 0.0
    %v13464 = vadd.f32 %v13462, %v13463
    %v13465 = vsel %vm2965, %v13328, 0.0
    %v13466 = vadd.f32 %v13464, %v13465
    %v13467 = vsel %vm2965, %v13333, 0.0
    %v13468 = vadd.f32 %v13466, %v13467
    %v13469 = vsel %vm2965, %v13338, 0.0
    %v13470 = vadd.f32 %v13468, %v13469
    %v13471 = vsel %vm2965, %v13343, 0.0
    %v13472 = vadd.f32 %v13470, %v13471
    %v13473 = vrot.slane %v13472, 4
    %v13474 = vadd.f32 %v13472, %v13473
    %v13475 = vrot.slane %v13474, 2
    %v13476 = vadd.f32 %v13474, %v13475
    %v13477 = vrot.slane %v13476, 1
    %v13478 = vadd.f32 %v13476, %v13477
    %v13479 = vmul.f32 %v13028, %v13028
    %v13480 = vmul.f32 %v13033, %v13033
    %v13481 = vmul.f32 %v13038, %v13038
    %v13482 = vmul.f32 %v13043, %v13043
    %v13483 = vmul.f32 %v13048, %v13048
    %v13484 = vmul.f32 %v13053, %v13053
    %v13485 = vmul.f32 %v13058, %v13058
    %v13486 = vmul.f32 %v13063, %v13063
    %v13487 = vmul.f32 %v13068, %v13068
    %v13488 = vmul.f32 %v13073, %v13073
    %v13489 = vmul.f32 %v13078, %v13078
    %v13490 = vmul.f32 %v13083, %v13083
    %v13491 = vmul.f32 %v13088, %v13088
    %v13492 = vmul.f32 %v13093, %v13093
    %v13493 = vmul.f32 %v13098, %v13098
    %v13494 = vmul.f32 %v13103, %v13103
    %v13495 = vmul.f32 %v13108, %v13108
    %v13496 = vmul.f32 %v13113, %v13113
    %v13497 = vmul.f32 %v13118, %v13118
    %v13498 = vmul.f32 %v13123, %v13123
    %v13499 = vmul.f32 %v13128, %v13128
    %v13500 = vmul.f32 %v13133, %v13133
    %v13501 = vmul.f32 %v13138, %v13138
    %v13502 = vmul.f32 %v13143, %v13143
    %v13503 = vmul.f32 %v13148, %v13148
    %v13504 = vmul.f32 %v13153, %v13153
    %v13505 = vmul.f32 %v13158, %v13158
    %v13506 = vmul.f32 %v13163, %v13163
    %v13507 = vmul.f32 %v13168, %v13168
    %v13508 = vmul.f32 %v13173, %v13173
    %v13509 = vmul.f32 %v13178, %v13178
    %v13510 = vmul.f32 %v13183, %v13183
    %v13511 = vmul.f32 %v13188, %v13188
    %v13512 = vmul.f32 %v13193, %v13193
    %v13513 = vmul.f32 %v13198, %v13198
    %v13514 = vmul.f32 %v13203, %v13203
    %v13515 = vmul.f32 %v13208, %v13208
    %v13516 = vmul.f32 %v13213, %v13213
    %v13517 = vmul.f32 %v13218, %v13218
    %v13518 = vmul.f32 %v13223, %v13223
    %v13519 = vmul.f32 %v13228, %v13228
    %v13520 = vmul.f32 %v13233, %v13233
    %v13521 = vmul.f32 %v13238, %v13238
    %v13522 = vmul.f32 %v13243, %v13243
    %v13523 = vmul.f32 %v13248, %v13248
    %v13524 = vmul.f32 %v13253, %v13253
    %v13525 = vmul.f32 %v13258, %v13258
    %v13526 = vmul.f32 %v13263, %v13263
    %v13527 = vmul.f32 %v13268, %v13268
    %v13528 = vmul.f32 %v13273, %v13273
    %v13529 = vmul.f32 %v13278, %v13278
    %v13530 = vmul.f32 %v13283, %v13283
    %v13531 = vmul.f32 %v13288, %v13288
    %v13532 = vmul.f32 %v13293, %v13293
    %v13533 = vmul.f32 %v13298, %v13298
    %v13534 = vmul.f32 %v13303, %v13303
    %v13535 = vmul.f32 %v13308, %v13308
    %v13536 = vmul.f32 %v13313, %v13313
    %v13537 = vmul.f32 %v13318, %v13318
    %v13538 = vmul.f32 %v13323, %v13323
    %v13539 = vmul.f32 %v13328, %v13328
    %v13540 = vmul.f32 %v13333, %v13333
    %v13541 = vmul.f32 %v13338, %v13338
    %v13542 = vmul.f32 %v13343, %v13343
    %v13543 = vsel %vm2965, %v13479, 0.0
    %v13544 = vsel %vm2965, %v13480, 0.0
    %v13545 = vadd.f32 %v13543, %v13544
    %v13546 = vsel %vm2965, %v13481, 0.0
    %v13547 = vadd.f32 %v13545, %v13546
    %v13548 = vsel %vm2965, %v13482, 0.0
    %v13549 = vadd.f32 %v13547, %v13548
    %v13550 = vsel %vm2965, %v13483, 0.0
    %v13551 = vadd.f32 %v13549, %v13550
    %v13552 = vsel %vm2965, %v13484, 0.0
    %v13553 = vadd.f32 %v13551, %v13552
    %v13554 = vsel %vm2965, %v13485, 0.0
    %v13555 = vadd.f32 %v13553, %v13554
    %v13556 = vsel %vm2965, %v13486, 0.0
    %v13557 = vadd.f32 %v13555, %v13556
    %v13558 = vsel %vm2965, %v13487, 0.0
    %v13559 = vadd.f32 %v13557, %v13558
    %v13560 = vsel %vm2965, %v13488, 0.0
    %v13561 = vadd.f32 %v13559, %v13560
    %v13562 = vsel %vm2965, %v13489, 0.0
    %v13563 = vadd.f32 %v13561, %v13562
    %v13564 = vsel %vm2965, %v13490, 0.0
    %v13565 = vadd.f32 %v13563, %v13564
    %v13566 = vsel %vm2965, %v13491, 0.0
    %v13567 = vadd.f32 %v13565, %v13566
    %v13568 = vsel %vm2965, %v13492, 0.0
    %v13569 = vadd.f32 %v13567, %v13568
    %v13570 = vsel %vm2965, %v13493, 0.0
    %v13571 = vadd.f32 %v13569, %v13570
    %v13572 = vsel %vm2965, %v13494, 0.0
    %v13573 = vadd.f32 %v13571, %v13572
    %v13574 = vsel %vm2965, %v13495, 0.0
    %v13575 = vadd.f32 %v13573, %v13574
    %v13576 = vsel %vm2965, %v13496, 0.0
    %v13577 = vadd.f32 %v13575, %v13576
    %v13578 = vsel %vm2965, %v13497, 0.0
    %v13579 = vadd.f32 %v13577, %v13578
    %v13580 = vsel %vm2965, %v13498, 0.0
    %v13581 = vadd.f32 %v13579, %v13580
    %v13582 = vsel %vm2965, %v13499, 0.0
    %v13583 = vadd.f32 %v13581, %v13582
    %v13584 = vsel %vm2965, %v13500, 0.0
    %v13585 = vadd.f32 %v13583, %v13584
    %v13586 = vsel %vm2965, %v13501, 0.0
    %v13587 = vadd.f32 %v13585, %v13586
    %v13588 = vsel %vm2965, %v13502, 0.0
    %v13589 = vadd.f32 %v13587, %v13588
    %v13590 = vsel %vm2965, %v13503, 0.0
    %v13591 = vadd.f32 %v13589, %v13590
    %v13592 = vsel %vm2965, %v13504, 0.0
    %v13593 = vadd.f32 %v13591, %v13592
    %v13594 = vsel %vm2965, %v13505, 0.0
    %v13595 = vadd.f32 %v13593, %v13594
    %v13596 = vsel %vm2965, %v13506, 0.0
    %v13597 = vadd.f32 %v13595, %v13596
    %v13598 = vsel %vm2965, %v13507, 0.0
    %v13599 = vadd.f32 %v13597, %v13598
    %v13600 = vsel %vm2965, %v13508, 0.0
    %v13601 = vadd.f32 %v13599, %v13600
    %v13602 = vsel %vm2965, %v13509, 0.0
    %v13603 = vadd.f32 %v13601, %v13602
    %v13604 = vsel %vm2965, %v13510, 0.0
    %v13605 = vadd.f32 %v13603, %v13604
    %v13606 = vsel %vm2965, %v13511, 0.0
    %v13607 = vadd.f32 %v13605, %v13606
    %v13608 = vsel %vm2965, %v13512, 0.0
    %v13609 = vadd.f32 %v13607, %v13608
    %v13610 = vsel %vm2965, %v13513, 0.0
    %v13611 = vadd.f32 %v13609, %v13610
    %v13612 = vsel %vm2965, %v13514, 0.0
    %v13613 = vadd.f32 %v13611, %v13612
    %v13614 = vsel %vm2965, %v13515, 0.0
    %v13615 = vadd.f32 %v13613, %v13614
    %v13616 = vsel %vm2965, %v13516, 0.0
    %v13617 = vadd.f32 %v13615, %v13616
    %v13618 = vsel %vm2965, %v13517, 0.0
    %v13619 = vadd.f32 %v13617, %v13618
    %v13620 = vsel %vm2965, %v13518, 0.0
    %v13621 = vadd.f32 %v13619, %v13620
    %v13622 = vsel %vm2965, %v13519, 0.0
    %v13623 = vadd.f32 %v13621, %v13622
    %v13624 = vsel %vm2965, %v13520, 0.0
    %v13625 = vadd.f32 %v13623, %v13624
    %v13626 = vsel %vm2965, %v13521, 0.0
    %v13627 = vadd.f32 %v13625, %v13626
    %v13628 = vsel %vm2965, %v13522, 0.0
    %v13629 = vadd.f32 %v13627, %v13628
    %v13630 = vsel %vm2965, %v13523, 0.0
    %v13631 = vadd.f32 %v13629, %v13630
    %v13632 = vsel %vm2965, %v13524, 0.0
    %v13633 = vadd.f32 %v13631, %v13632
    %v13634 = vsel %vm2965, %v13525, 0.0
    %v13635 = vadd.f32 %v13633, %v13634
    %v13636 = vsel %vm2965, %v13526, 0.0
    %v13637 = vadd.f32 %v13635, %v13636
    %v13638 = vsel %vm2965, %v13527, 0.0
    %v13639 = vadd.f32 %v13637, %v13638
    %v13640 = vsel %vm2965, %v13528, 0.0
    %v13641 = vadd.f32 %v13639, %v13640
    %v13642 = vsel %vm2965, %v13529, 0.0
    %v13643 = vadd.f32 %v13641, %v13642
    %v13644 = vsel %vm2965, %v13530, 0.0
    %v13645 = vadd.f32 %v13643, %v13644
    %v13646 = vsel %vm2965, %v13531, 0.0
    %v13647 = vadd.f32 %v13645, %v13646
    %v13648 = vsel %vm2965, %v13532, 0.0
    %v13649 = vadd.f32 %v13647, %v13648
    %v13650 = vsel %vm2965, %v13533, 0.0
    %v13651 = vadd.f32 %v13649, %v13650
    %v13652 = vsel %vm2965, %v13534, 0.0
    %v13653 = vadd.f32 %v13651, %v13652
    %v13654 = vsel %vm2965, %v13535, 0.0
    %v13655 = vadd.f32 %v13653, %v13654
    %v13656 = vsel %vm2965, %v13536, 0.0
    %v13657 = vadd.f32 %v13655, %v13656
    %v13658 = vsel %vm2965, %v13537, 0.0
    %v13659 = vadd.f32 %v13657, %v13658
    %v13660 = vsel %vm2965, %v13538, 0.0
    %v13661 = vadd.f32 %v13659, %v13660
    %v13662 = vsel %vm2965, %v13539, 0.0
    %v13663 = vadd.f32 %v13661, %v13662
    %v13664 = vsel %vm2965, %v13540, 0.0
    %v13665 = vadd.f32 %v13663, %v13664
    %v13666 = vsel %vm2965, %v13541, 0.0
    %v13667 = vadd.f32 %v13665, %v13666
    %v13668 = vsel %vm2965, %v13542, 0.0
    %v13669 = vadd.f32 %v13667, %v13668
    %v13670 = vrot.slane %v13669, 4
    %v13671 = vadd.f32 %v13669, %v13670
    %v13672 = vrot.slane %v13671, 2
    %v13673 = vadd.f32 %v13671, %v13672
    %v13674 = vrot.slane %v13673, 1
    %v13675 = vadd.f32 %v13673, %v13674
    %v13676 = vmul.f32 %v13478, 0.001953125
    %v13677 = vmul.f32 %v13675, 0.001953125
    %v13678 = vmul.f32 %v13676, %v13676
    %v13679 = vsub.f32 %v13677, %v13678
    %v13680 = vmax.f32 %v13679, 0.0
    %v13681 = vld [vmem:[%s8] sm:$0x1]
    %v13682 = vadd.f32 %v13680, 1e-05
    %v13683 = vrsqrt.pop %v13682
    %v13684 = vmul.f32 %v13681, %v13683
    %v13685 = vld [vmem:[%s9] sm:$0x1]
    %v13686 = vmul.f32 %v13676, %v13684
    %v13687 = vsub.f32 %v13685, %v13686
    %v13689 = vlaneseq
    %v13690 = vshrl.u32 %v13689, 7
    %v13691 = vsub.s32 0, %v13690
    %v13692 = vrot.slane %v13684, %v13691
    %v13694 = vmul.f32 %v13028, %v13692
    %v13695 = vmul.f32 %v13033, %v13692
    %v13696 = vmul.f32 %v13038, %v13692
    %v13697 = vmul.f32 %v13043, %v13692
    %v13698 = vmul.f32 %v13048, %v13692
    %v13699 = vmul.f32 %v13053, %v13692
    %v13700 = vmul.f32 %v13058, %v13692
    %v13701 = vmul.f32 %v13063, %v13692
    %v13702 = vmul.f32 %v13068, %v13692
    %v13703 = vmul.f32 %v13073, %v13692
    %v13704 = vmul.f32 %v13078, %v13692
    %v13705 = vmul.f32 %v13083, %v13692
    %v13706 = vmul.f32 %v13088, %v13692
    %v13707 = vmul.f32 %v13093, %v13692
    %v13708 = vmul.f32 %v13098, %v13692
    %v13709 = vmul.f32 %v13103, %v13692
    %v13710 = vmul.f32 %v13108, %v13692
    %v13711 = vmul.f32 %v13113, %v13692
    %v13712 = vmul.f32 %v13118, %v13692
    %v13713 = vmul.f32 %v13123, %v13692
    %v13714 = vmul.f32 %v13128, %v13692
    %v13715 = vmul.f32 %v13133, %v13692
    %v13716 = vmul.f32 %v13138, %v13692
    %v13717 = vmul.f32 %v13143, %v13692
    %v13718 = vmul.f32 %v13148, %v13692
    %v13719 = vmul.f32 %v13153, %v13692
    %v13720 = vmul.f32 %v13158, %v13692
    %v13721 = vmul.f32 %v13163, %v13692
    %v13722 = vmul.f32 %v13168, %v13692
    %v13723 = vmul.f32 %v13173, %v13692
    %v13724 = vmul.f32 %v13178, %v13692
    %v13725 = vmul.f32 %v13183, %v13692
    %v13726 = vmul.f32 %v13188, %v13692
    %v13727 = vmul.f32 %v13193, %v13692
    %v13728 = vmul.f32 %v13198, %v13692
    %v13729 = vmul.f32 %v13203, %v13692
    %v13730 = vmul.f32 %v13208, %v13692
    %v13731 = vmul.f32 %v13213, %v13692
    %v13732 = vmul.f32 %v13218, %v13692
    %v13733 = vmul.f32 %v13223, %v13692
    %v13734 = vmul.f32 %v13228, %v13692
    %v13735 = vmul.f32 %v13233, %v13692
    %v13736 = vmul.f32 %v13238, %v13692
    %v13737 = vmul.f32 %v13243, %v13692
    %v13738 = vmul.f32 %v13248, %v13692
    %v13739 = vmul.f32 %v13253, %v13692
    %v13740 = vmul.f32 %v13258, %v13692
    %v13741 = vmul.f32 %v13263, %v13692
    %v13742 = vmul.f32 %v13268, %v13692
    %v13743 = vmul.f32 %v13273, %v13692
    %v13744 = vmul.f32 %v13278, %v13692
    %v13745 = vmul.f32 %v13283, %v13692
    %v13746 = vmul.f32 %v13288, %v13692
    %v13747 = vmul.f32 %v13293, %v13692
    %v13748 = vmul.f32 %v13298, %v13692
    %v13749 = vmul.f32 %v13303, %v13692
    %v13750 = vmul.f32 %v13308, %v13692
    %v13751 = vmul.f32 %v13313, %v13692
    %v13752 = vmul.f32 %v13318, %v13692
    %v13753 = vmul.f32 %v13323, %v13692
    %v13754 = vmul.f32 %v13328, %v13692
    %v13755 = vmul.f32 %v13333, %v13692
    %v13756 = vmul.f32 %v13338, %v13692
    %v13757 = vmul.f32 %v13343, %v13692
    %v13759 = vlaneseq
    %v13760 = vshrl.u32 %v13759, 7
    %v13761 = vsub.s32 0, %v13760
    %v13762 = vrot.slane %v13687, %v13761
    %v13764 = vadd.f32 %v13694, %v13762
    %v13765 = vadd.f32 %v13695, %v13762
    %v13766 = vadd.f32 %v13696, %v13762
    %v13767 = vadd.f32 %v13697, %v13762
    %v13768 = vadd.f32 %v13698, %v13762
    %v13769 = vadd.f32 %v13699, %v13762
    %v13770 = vadd.f32 %v13700, %v13762
    %v13771 = vadd.f32 %v13701, %v13762
    %v13772 = vadd.f32 %v13702, %v13762
    %v13773 = vadd.f32 %v13703, %v13762
    %v13774 = vadd.f32 %v13704, %v13762
    %v13775 = vadd.f32 %v13705, %v13762
    %v13776 = vadd.f32 %v13706, %v13762
    %v13777 = vadd.f32 %v13707, %v13762
    %v13778 = vadd.f32 %v13708, %v13762
    %v13779 = vadd.f32 %v13709, %v13762
    %v13780 = vadd.f32 %v13710, %v13762
    %v13781 = vadd.f32 %v13711, %v13762
    %v13782 = vadd.f32 %v13712, %v13762
    %v13783 = vadd.f32 %v13713, %v13762
    %v13784 = vadd.f32 %v13714, %v13762
    %v13785 = vadd.f32 %v13715, %v13762
    %v13786 = vadd.f32 %v13716, %v13762
    %v13787 = vadd.f32 %v13717, %v13762
    %v13788 = vadd.f32 %v13718, %v13762
    %v13789 = vadd.f32 %v13719, %v13762
    %v13790 = vadd.f32 %v13720, %v13762
    %v13791 = vadd.f32 %v13721, %v13762
    %v13792 = vadd.f32 %v13722, %v13762
    %v13793 = vadd.f32 %v13723, %v13762
    %v13794 = vadd.f32 %v13724, %v13762
    %v13795 = vadd.f32 %v13725, %v13762
    %v13796 = vadd.f32 %v13726, %v13762
    %v13797 = vadd.f32 %v13727, %v13762
    %v13798 = vadd.f32 %v13728, %v13762
    %v13799 = vadd.f32 %v13729, %v13762
    %v13800 = vadd.f32 %v13730, %v13762
    %v13801 = vadd.f32 %v13731, %v13762
    %v13802 = vadd.f32 %v13732, %v13762
    %v13803 = vadd.f32 %v13733, %v13762
    %v13804 = vadd.f32 %v13734, %v13762
    %v13805 = vadd.f32 %v13735, %v13762
    %v13806 = vadd.f32 %v13736, %v13762
    %v13807 = vadd.f32 %v13737, %v13762
    %v13808 = vadd.f32 %v13738, %v13762
    %v13809 = vadd.f32 %v13739, %v13762
    %v13810 = vadd.f32 %v13740, %v13762
    %v13811 = vadd.f32 %v13741, %v13762
    %v13812 = vadd.f32 %v13742, %v13762
    %v13813 = vadd.f32 %v13743, %v13762
    %v13814 = vadd.f32 %v13744, %v13762
    %v13815 = vadd.f32 %v13745, %v13762
    %v13816 = vadd.f32 %v13746, %v13762
    %v13817 = vadd.f32 %v13747, %v13762
    %v13818 = vadd.f32 %v13748, %v13762
    %v13819 = vadd.f32 %v13749, %v13762
    %v13820 = vadd.f32 %v13750, %v13762
    %v13821 = vadd.f32 %v13751, %v13762
    %v13822 = vadd.f32 %v13752, %v13762
    %v13823 = vadd.f32 %v13753, %v13762
    %v13824 = vadd.f32 %v13754, %v13762
    %v13825 = vadd.f32 %v13755, %v13762
    %v13826 = vadd.f32 %v13756, %v13762
    %v13827 = vadd.f32 %v13757, %v13762
    %v13828 = vmax.f32 %v13764, 0.0
    %v13829 = vmax.f32 %v13765, 0.0
    %v13830 = vmax.f32 %v13766, 0.0
    %v13831 = vmax.f32 %v13767, 0.0
    %v13832 = vmax.f32 %v13768, 0.0
    %v13833 = vmax.f32 %v13769, 0.0
    %v13834 = vmax.f32 %v13770, 0.0
    %v13835 = vmax.f32 %v13771, 0.0
    %v13836 = vmax.f32 %v13772, 0.0
    %v13837 = vmax.f32 %v13773, 0.0
    %v13838 = vmax.f32 %v13774, 0.0
    %v13839 = vmax.f32 %v13775, 0.0
    %v13840 = vmax.f32 %v13776, 0.0
    %v13841 = vmax.f32 %v13777, 0.0
    %v13842 = vmax.f32 %v13778, 0.0
    %v13843 = vmax.f32 %v13779, 0.0
    %v13844 = vmax.f32 %v13780, 0.0
    %v13845 = vmax.f32 %v13781, 0.0
    %v13846 = vmax.f32 %v13782, 0.0
    %v13847 = vmax.f32 %v13783, 0.0
    %v13848 = vmax.f32 %v13784, 0.0
    %v13849 = vmax.f32 %v13785, 0.0
    %v13850 = vmax.f32 %v13786, 0.0
    %v13851 = vmax.f32 %v13787, 0.0
    %v13852 = vmax.f32 %v13788, 0.0
    %v13853 = vmax.f32 %v13789, 0.0
    %v13854 = vmax.f32 %v13790, 0.0
    %v13855 = vmax.f32 %v13791, 0.0
    %v13856 = vmax.f32 %v13792, 0.0
    %v13857 = vmax.f32 %v13793, 0.0
    %v13858 = vmax.f32 %v13794, 0.0
    %v13859 = vmax.f32 %v13795, 0.0
    %v13860 = vmax.f32 %v13796, 0.0
    %v13861 = vmax.f32 %v13797, 0.0
    %v13862 = vmax.f32 %v13798, 0.0
    %v13863 = vmax.f32 %v13799, 0.0
    %v13864 = vmax.f32 %v13800, 0.0
    %v13865 = vmax.f32 %v13801, 0.0
    %v13866 = vmax.f32 %v13802, 0.0
    %v13867 = vmax.f32 %v13803, 0.0
    %v13868 = vmax.f32 %v13804, 0.0
    %v13869 = vmax.f32 %v13805, 0.0
    %v13870 = vmax.f32 %v13806, 0.0
    %v13871 = vmax.f32 %v13807, 0.0
    %v13872 = vmax.f32 %v13808, 0.0
    %v13873 = vmax.f32 %v13809, 0.0
    %v13874 = vmax.f32 %v13810, 0.0
    %v13875 = vmax.f32 %v13811, 0.0
    %v13876 = vmax.f32 %v13812, 0.0
    %v13877 = vmax.f32 %v13813, 0.0
    %v13878 = vmax.f32 %v13814, 0.0
    %v13879 = vmax.f32 %v13815, 0.0
    %v13880 = vmax.f32 %v13816, 0.0
    %v13881 = vmax.f32 %v13817, 0.0
    %v13882 = vmax.f32 %v13818, 0.0
    %v13883 = vmax.f32 %v13819, 0.0
    %v13884 = vmax.f32 %v13820, 0.0
    %v13885 = vmax.f32 %v13821, 0.0
    %v13886 = vmax.f32 %v13822, 0.0
    %v13887 = vmax.f32 %v13823, 0.0
    %v13888 = vmax.f32 %v13824, 0.0
    %v13889 = vmax.f32 %v13825, 0.0
    %v13890 = vmax.f32 %v13826, 0.0
    %v13891 = vmax.f32 %v13827, 0.0
    %13956 = vrot.lane.b32.xlu0 %v13828, 20
    %v13957 = vpop.permute.xlu0 %13956
    %13958 = vrot.lane.b32.xlu0 %v13829, 20
    %v13959 = vpop.permute.xlu0 %13958
    %13960 = vrot.lane.b32.xlu0 %v13830, 20
    %v13961 = vpop.permute.xlu0 %13960
    %13962 = vrot.lane.b32.xlu0 %v13831, 20
    %v13963 = vpop.permute.xlu0 %13962
    %13964 = vrot.lane.b32.xlu0 %v13832, 20
    %v13965 = vpop.permute.xlu0 %13964
    %13966 = vrot.lane.b32.xlu0 %v13833, 20
    %v13967 = vpop.permute.xlu0 %13966
    %13968 = vrot.lane.b32.xlu0 %v13834, 20
    %v13969 = vpop.permute.xlu0 %13968
    %13970 = vrot.lane.b32.xlu0 %v13835, 20
    %v13971 = vpop.permute.xlu0 %13970
    %13972 = vrot.lane.b32.xlu0 %v13836, 20
    %v13973 = vpop.permute.xlu0 %13972
    %13974 = vrot.lane.b32.xlu0 %v13837, 20
    %v13975 = vpop.permute.xlu0 %13974
    %13976 = vrot.lane.b32.xlu0 %v13838, 20
    %v13977 = vpop.permute.xlu0 %13976
    %13978 = vrot.lane.b32.xlu0 %v13839, 20
    %v13979 = vpop.permute.xlu0 %13978
    %13980 = vrot.lane.b32.xlu0 %v13840, 20
    %v13981 = vpop.permute.xlu0 %13980
    %13982 = vrot.lane.b32.xlu0 %v13841, 20
    %v13983 = vpop.permute.xlu0 %13982
    %13984 = vrot.lane.b32.xlu0 %v13842, 20
    %v13985 = vpop.permute.xlu0 %13984
    %13986 = vrot.lane.b32.xlu0 %v13843, 20
    %v13987 = vpop.permute.xlu0 %13986
    %13988 = vrot.lane.b32.xlu0 %v13844, 20
    %v13989 = vpop.permute.xlu0 %13988
    %13990 = vrot.lane.b32.xlu0 %v13845, 20
    %v13991 = vpop.permute.xlu0 %13990
    %13992 = vrot.lane.b32.xlu0 %v13846, 20
    %v13993 = vpop.permute.xlu0 %13992
    %13994 = vrot.lane.b32.xlu0 %v13847, 20
    %v13995 = vpop.permute.xlu0 %13994
    %13996 = vrot.lane.b32.xlu0 %v13848, 20
    %v13997 = vpop.permute.xlu0 %13996
    %13998 = vrot.lane.b32.xlu0 %v13849, 20
    %v13999 = vpop.permute.xlu0 %13998
    %14000 = vrot.lane.b32.xlu0 %v13850, 20
    %v14001 = vpop.permute.xlu0 %14000
    %14002 = vrot.lane.b32.xlu0 %v13851, 20
    %v14003 = vpop.permute.xlu0 %14002
    %14004 = vrot.lane.b32.xlu0 %v13852, 20
    %v14005 = vpop.permute.xlu0 %14004
    %14006 = vrot.lane.b32.xlu0 %v13853, 20
    %v14007 = vpop.permute.xlu0 %14006
    %14008 = vrot.lane.b32.xlu0 %v13854, 20
    %v14009 = vpop.permute.xlu0 %14008
    %14010 = vrot.lane.b32.xlu0 %v13855, 20
    %v14011 = vpop.permute.xlu0 %14010
    %14012 = vrot.lane.b32.xlu0 %v13856, 20
    %v14013 = vpop.permute.xlu0 %14012
    %14014 = vrot.lane.b32.xlu0 %v13857, 20
    %v14015 = vpop.permute.xlu0 %14014
    %14016 = vrot.lane.b32.xlu0 %v13858, 20
    %v14017 = vpop.permute.xlu0 %14016
    %14018 = vrot.lane.b32.xlu0 %v13859, 20
    %v14019 = vpop.permute.xlu0 %14018
    %14020 = vrot.lane.b32.xlu0 %v13860, 20
    %v14021 = vpop.permute.xlu0 %14020
    %14022 = vrot.lane.b32.xlu0 %v13861, 20
    %v14023 = vpop.permute.xlu0 %14022
    %14024 = vrot.lane.b32.xlu0 %v13862, 20
    %v14025 = vpop.permute.xlu0 %14024
    %14026 = vrot.lane.b32.xlu0 %v13863, 20
    %v14027 = vpop.permute.xlu0 %14026
    %14028 = vrot.lane.b32.xlu0 %v13864, 20
    %v14029 = vpop.permute.xlu0 %14028
    %14030 = vrot.lane.b32.xlu0 %v13865, 20
    %v14031 = vpop.permute.xlu0 %14030
    %14032 = vrot.lane.b32.xlu0 %v13866, 20
    %v14033 = vpop.permute.xlu0 %14032
    %14034 = vrot.lane.b32.xlu0 %v13867, 20
    %v14035 = vpop.permute.xlu0 %14034
    %14036 = vrot.lane.b32.xlu0 %v13868, 20
    %v14037 = vpop.permute.xlu0 %14036
    %14038 = vrot.lane.b32.xlu0 %v13869, 20
    %v14039 = vpop.permute.xlu0 %14038
    %14040 = vrot.lane.b32.xlu0 %v13870, 20
    %v14041 = vpop.permute.xlu0 %14040
    %14042 = vrot.lane.b32.xlu0 %v13871, 20
    %v14043 = vpop.permute.xlu0 %14042
    %14044 = vrot.lane.b32.xlu0 %v13872, 20
    %v14045 = vpop.permute.xlu0 %14044
    %14046 = vrot.lane.b32.xlu0 %v13873, 20
    %v14047 = vpop.permute.xlu0 %14046
    %14048 = vrot.lane.b32.xlu0 %v13874, 20
    %v14049 = vpop.permute.xlu0 %14048
    %14050 = vrot.lane.b32.xlu0 %v13875, 20
    %v14051 = vpop.permute.xlu0 %14050
    %14052 = vrot.lane.b32.xlu0 %v13876, 20
    %v14053 = vpop.permute.xlu0 %14052
    %14054 = vrot.lane.b32.xlu0 %v13877, 20
    %v14055 = vpop.permute.xlu0 %14054
    %14056 = vrot.lane.b32.xlu0 %v13878, 20
    %v14057 = vpop.permute.xlu0 %14056
    %14058 = vrot.lane.b32.xlu0 %v13879, 20
    %v14059 = vpop.permute.xlu0 %14058
    %14060 = vrot.lane.b32.xlu0 %v13880, 20
    %v14061 = vpop.permute.xlu0 %14060
    %14062 = vrot.lane.b32.xlu0 %v13881, 20
    %v14063 = vpop.permute.xlu0 %14062
    %14064 = vrot.lane.b32.xlu0 %v13882, 20
    %v14065 = vpop.permute.xlu0 %14064
    %14066 = vrot.lane.b32.xlu0 %v13883, 20
    %v14067 = vpop.permute.xlu0 %14066
    %14068 = vrot.lane.b32.xlu0 %v13884, 20
    %v14069 = vpop.permute.xlu0 %14068
    %14070 = vrot.lane.b32.xlu0 %v13885, 20
    %v14071 = vpop.permute.xlu0 %14070
    %14072 = vrot.lane.b32.xlu0 %v13886, 20
    %v14073 = vpop.permute.xlu0 %14072
    %14074 = vrot.lane.b32.xlu0 %v13887, 20
    %v14075 = vpop.permute.xlu0 %14074
    %14076 = vrot.lane.b32.xlu0 %v13888, 20
    %v14077 = vpop.permute.xlu0 %14076
    %14078 = vrot.lane.b32.xlu0 %v13889, 20
    %v14079 = vpop.permute.xlu0 %14078
    %14080 = vrot.lane.b32.xlu0 %v13890, 20
    %v14081 = vpop.permute.xlu0 %14080
    %14082 = vrot.lane.b32.xlu0 %v13891, 20
    %v14083 = vpop.permute.xlu0 %14082
    %v14148 = vsel %vm3160, %v9474, %v13957
    %v14149 = vsel %vm3160, %v9475, %v13959
    %v14150 = vsel %vm3160, %v9476, %v13961
    %v14151 = vsel %vm3160, %v9477, %v13963
    %v14152 = vsel %vm3160, %v9478, %v13965
    %v14153 = vsel %vm3160, %v9479, %v13967
    %v14154 = vsel %vm3160, %v9480, %v13969
    %v14155 = vsel %vm3160, %v9481, %v13971
    %v14156 = vsel %vm3160, %v9482, %v13973
    %v14157 = vsel %vm3160, %v9483, %v13975
    %v14158 = vsel %vm3160, %v9484, %v13977
    %v14159 = vsel %vm3160, %v9485, %v13979
    %v14160 = vsel %vm3160, %v9486, %v13981
    %v14161 = vsel %vm3160, %v9487, %v13983
    %v14162 = vsel %vm3160, %v9488, %v13985
    %v14163 = vsel %vm3160, %v9489, %v13987
    %v14164 = vsel %vm3160, %v9490, %v13989
    %v14165 = vsel %vm3160, %v9491, %v13991
    %v14166 = vsel %vm3160, %v9492, %v13993
    %v14167 = vsel %vm3160, %v9493, %v13995
    %v14168 = vsel %vm3160, %v9494, %v13997
    %v14169 = vsel %vm3160, %v9495, %v13999
    %v14170 = vsel %vm3160, %v9496, %v14001
    %v14171 = vsel %vm3160, %v9497, %v14003
    %v14172 = vsel %vm3160, %v9498, %v14005
    %v14173 = vsel %vm3160, %v9499, %v14007
    %v14174 = vsel %vm3160, %v9500, %v14009
    %v14175 = vsel %vm3160, %v9501, %v14011
    %v14176 = vsel %vm3160, %v9502, %v14013
    %v14177 = vsel %vm3160, %v9503, %v14015
    %v14178 = vsel %vm3160, %v9504, %v14017
    %v14179 = vsel %vm3160, %v9505, %v14019
    %v14180 = vsel %vm3160, %v9506, %v14021
    %v14181 = vsel %vm3160, %v9507, %v14023
    %v14182 = vsel %vm3160, %v9508, %v14025
    %v14183 = vsel %vm3160, %v9509, %v14027
    %v14184 = vsel %vm3160, %v9510, %v14029
    %v14185 = vsel %vm3160, %v9511, %v14031
    %v14186 = vsel %vm3160, %v9512, %v14033
    %v14187 = vsel %vm3160, %v9513, %v14035
    %v14188 = vsel %vm3160, %v9514, %v14037
    %v14189 = vsel %vm3160, %v9515, %v14039
    %v14190 = vsel %vm3160, %v9516, %v14041
    %v14191 = vsel %vm3160, %v9517, %v14043
    %v14192 = vsel %vm3160, %v9518, %v14045
    %v14193 = vsel %vm3160, %v9519, %v14047
    %v14194 = vsel %vm3160, %v9520, %v14049
    %v14195 = vsel %vm3160, %v9521, %v14051
    %v14196 = vsel %vm3160, %v9522, %v14053
    %v14197 = vsel %vm3160, %v9523, %v14055
    %v14198 = vsel %vm3160, %v9524, %v14057
    %v14199 = vsel %vm3160, %v9525, %v14059
    %v14200 = vsel %vm3160, %v9526, %v14061
    %v14201 = vsel %vm3160, %v9527, %v14063
    %v14202 = vsel %vm3160, %v9528, %v14065
    %v14203 = vsel %vm3160, %v9529, %v14067
    %v14204 = vsel %vm3160, %v9530, %v14069
    %v14205 = vsel %vm3160, %v9531, %v14071
    %v14206 = vsel %vm3160, %v9532, %v14073
    %v14207 = vsel %vm3160, %v9533, %v14075
    %v14208 = vsel %vm3160, %v9534, %v14077
    %v14209 = vsel %vm3160, %v9535, %v14079
    %v14210 = vsel %vm3160, %v9536, %v14081
    %v14211 = vsel %vm3160, %v9537, %v14083
    %14212 = vst.msk [vmem:[#allocation3] sm:$0xff] %vm36, %v14148
    %14213 = vst.msk [vmem:[#allocation3 + $0x8] sm:$0xff] %vm36, %v14149
    %14214 = vst.msk [vmem:[#allocation3 + $0x10] sm:$0xff] %vm36, %v14150
    %14215 = vst.msk [vmem:[#allocation3 + $0x18] sm:$0xff] %vm36, %v14151
    %14216 = vst.msk [vmem:[#allocation3 + $0x20] sm:$0xff] %vm36, %v14152
    %14217 = vst.msk [vmem:[#allocation3 + $0x28] sm:$0xff] %vm36, %v14153
    %14218 = vst.msk [vmem:[#allocation3 + $0x30] sm:$0xff] %vm36, %v14154
    %14219 = vst.msk [vmem:[#allocation3 + $0x38] sm:$0xff] %vm36, %v14155
    %14220 = vst.msk [vmem:[#allocation3 + $0x40] sm:$0xff] %vm36, %v14156
    %14221 = vst.msk [vmem:[#allocation3 + $0x48] sm:$0xff] %vm36, %v14157
    %14222 = vst.msk [vmem:[#allocation3 + $0x50] sm:$0xff] %vm36, %v14158
    %14223 = vst.msk [vmem:[#allocation3 + $0x58] sm:$0xff] %vm36, %v14159
    %14224 = vst.msk [vmem:[#allocation3 + $0x60] sm:$0xff] %vm36, %v14160
    %14225 = vst.msk [vmem:[#allocation3 + $0x68] sm:$0xff] %vm36, %v14161
    %14226 = vst.msk [vmem:[#allocation3 + $0x70] sm:$0xff] %vm36, %v14162
    %14227 = vst.msk [vmem:[#allocation3 + $0x78] sm:$0xff] %vm36, %v14163
    %14228 = vst.msk [vmem:[#allocation3 + $0x80] sm:$0xff] %vm36, %v14164
    %14229 = vst.msk [vmem:[#allocation3 + $0x88] sm:$0xff] %vm36, %v14165
    %14230 = vst.msk [vmem:[#allocation3 + $0x90] sm:$0xff] %vm36, %v14166
    %14231 = vst.msk [vmem:[#allocation3 + $0x98] sm:$0xff] %vm36, %v14167
    %14232 = vst.msk [vmem:[#allocation3 + $0xa0] sm:$0xff] %vm36, %v14168
    %14233 = vst.msk [vmem:[#allocation3 + $0xa8] sm:$0xff] %vm36, %v14169
    %14234 = vst.msk [vmem:[#allocation3 + $0xb0] sm:$0xff] %vm36, %v14170
    %14235 = vst.msk [vmem:[#allocation3 + $0xb8] sm:$0xff] %vm36, %v14171
    %14236 = vst.msk [vmem:[#allocation3 + $0xc0] sm:$0xff] %vm36, %v14172
    %14237 = vst.msk [vmem:[#allocation3 + $0xc8] sm:$0xff] %vm36, %v14173
    %14238 = vst.msk [vmem:[#allocation3 + $0xd0] sm:$0xff] %vm36, %v14174
    %14239 = vst.msk [vmem:[#allocation3 + $0xd8] sm:$0xff] %vm36, %v14175
    %14240 = vst.msk [vmem:[#allocation3 + $0xe0] sm:$0xff] %vm36, %v14176
    %14241 = vst.msk [vmem:[#allocation3 + $0xe8] sm:$0xff] %vm36, %v14177
    %14242 = vst.msk [vmem:[#allocation3 + $0xf0] sm:$0xff] %vm36, %v14178
    %14243 = vst.msk [vmem:[#allocation3 + $0xf8] sm:$0xff] %vm36, %v14179
    %14244 = vst.msk [vmem:[#allocation3 + $0x100] sm:$0xff] %vm36, %v14180
    %14245 = vst.msk [vmem:[#allocation3 + $0x108] sm:$0xff] %vm36, %v14181
    %14246 = vst.msk [vmem:[#allocation3 + $0x110] sm:$0xff] %vm36, %v14182
    %14247 = vst.msk [vmem:[#allocation3 + $0x118] sm:$0xff] %vm36, %v14183
    %14248 = vst.msk [vmem:[#allocation3 + $0x120] sm:$0xff] %vm36, %v14184
    %14249 = vst.msk [vmem:[#allocation3 + $0x128] sm:$0xff] %vm36, %v14185
    %14250 = vst.msk [vmem:[#allocation3 + $0x130] sm:$0xff] %vm36, %v14186
    %14251 = vst.msk [vmem:[#allocation3 + $0x138] sm:$0xff] %vm36, %v14187
    %14252 = vst.msk [vmem:[#allocation3 + $0x140] sm:$0xff] %vm36, %v14188
    %14253 = vst.msk [vmem:[#allocation3 + $0x148] sm:$0xff] %vm36, %v14189
    %14254 = vst.msk [vmem:[#allocation3 + $0x150] sm:$0xff] %vm36, %v14190
    %14255 = vst.msk [vmem:[#allocation3 + $0x158] sm:$0xff] %vm36, %v14191
    %14256 = vst.msk [vmem:[#allocation3 + $0x160] sm:$0xff] %vm36, %v14192
    %14257 = vst.msk [vmem:[#allocation3 + $0x168] sm:$0xff] %vm36, %v14193
    %14258 = vst.msk [vmem:[#allocation3 + $0x170] sm:$0xff] %vm36, %v14194
    %14259 = vst.msk [vmem:[#allocation3 + $0x178] sm:$0xff] %vm36, %v14195
    %14260 = vst.msk [vmem:[#allocation3 + $0x180] sm:$0xff] %vm36, %v14196
    %14261 = vst.msk [vmem:[#allocation3 + $0x188] sm:$0xff] %vm36, %v14197
    %14262 = vst.msk [vmem:[#allocation3 + $0x190] sm:$0xff] %vm36, %v14198
    %14263 = vst.msk [vmem:[#allocation3 + $0x198] sm:$0xff] %vm36, %v14199
    %14264 = vst.msk [vmem:[#allocation3 + $0x1a0] sm:$0xff] %vm36, %v14200
    %14265 = vst.msk [vmem:[#allocation3 + $0x1a8] sm:$0xff] %vm36, %v14201
    %14266 = vst.msk [vmem:[#allocation3 + $0x1b0] sm:$0xff] %vm36, %v14202
    %14267 = vst.msk [vmem:[#allocation3 + $0x1b8] sm:$0xff] %vm36, %v14203
    %14268 = vst.msk [vmem:[#allocation3 + $0x1c0] sm:$0xff] %vm36, %v14204
    %14269 = vst.msk [vmem:[#allocation3 + $0x1c8] sm:$0xff] %vm36, %v14205
    %14270 = vst.msk [vmem:[#allocation3 + $0x1d0] sm:$0xff] %vm36, %v14206
    %14271 = vst.msk [vmem:[#allocation3 + $0x1d8] sm:$0xff] %vm36, %v14207
    %14272 = vst.msk [vmem:[#allocation3 + $0x1e0] sm:$0xff] %vm36, %v14208
    %14273 = vst.msk [vmem:[#allocation3 + $0x1e8] sm:$0xff] %vm36, %v14209
    %14274 = vst.msk [vmem:[#allocation3 + $0x1f0] sm:$0xff] %vm36, %v14210
    %14275 = vst.msk [vmem:[#allocation3 + $0x1f8] sm:$0xff] %vm36, %v14211
    // Predicated region
    $region42: #{dense_block_forward.1} parent=1 // pred_check
      _
    $region43: #{dense_block_forward.1} parent=1 // pred_check_branch
      %14277 = sbr.rel (0) target = $region45
    $region44: #{dense_block_forward.1} parent=1 // pred_region
      %s14279 = ssub.s32 8192, 8192
      %14280 = vsyncadd [#allocation4], %s14279
      %s14281 = sshll.u32 [#allocation3], 4
      %s14282 = int_to_ptr.vmem [resolvable:$true] %s14281
      %14287 = dma.vmem_to_hbm [thread:$0]  %s14282, 8192, %s10, [#allocation4], 128, 128, 8
    $region45: #{dense_block_forward.1} parent=1 // pred_fallthru
      _
    // Predicated region
    $region46: #{dense_block_forward.1} parent=1 // pred_check
      _
    $region47: #{dense_block_forward.1} parent=1 // pred_check_branch
      %14289 = sbr.rel (0) target = $region49
    $region48: #{dense_block_forward.1} parent=1 // pred_region
      %14290 = dma.done [#allocation4], 8192
    $region49: #{dense_block_forward.1} parent=1 // pred_fallthru
      _
    %14291 = vsyncpa [#allocation4], 1

</llo_original>
